<compile_context>
chip_gen: v7x
topology: tpu7x:2x2x1
jax: 0.10.0
libtpu: 0.0.40
codegen_flags: <defaults>
</compile_context>

<pallas_src>
import numpy as np
import jax
import jax.numpy as jnp
from jax.experimental import pallas as pl
from jax.experimental.pallas import tpu as pltpu


C1 = 16    # conv1 output channels
C2 = 32    # conv2 output channels
FC1 = 64   # fc1 hidden width


# ----------------------------------------------------------------------------
# Fused forward kernel.  One grid step == TB batch rows.
#   x_ref     : (TB, H*W)          flattened input images (Cin == 1)
#   w1_ref    : (H*W,    H*W*C1)   dense conv1-as-matmul matrix, bf16
#   b1_ref    : (1, H*W*C1)        conv1 bias tiled over positions, f32
#   w2_ref    : (H*W*C1, H*W*C2)   dense conv2-as-matmul matrix, bf16
#   b2_ref    : (1, H*W*C2)        conv2 bias tiled over positions, f32
#   fc1_w_ref : (H*W*C2, 64)       fc1 weights, rows permuted to NHWC order, bf16
#   fc1_b_ref : (1, 64)            f32
#   fc2_w_ref : (64, A)            bf16
#   fc2_b_ref : (1, A)             f32
#   o_ref     : (TB, A)            softmax probabilities, f32
# ----------------------------------------------------------------------------
def _conv_actor_kernel(x_ref, w1_ref, b1_ref, w2_ref, b2_ref,
                       fc1_w_ref, fc1_b_ref, fc2_w_ref, fc2_b_ref, o_ref):
    # conv1 (+bias, ReLU) as one MXU matmul over the whole image.
    x = x_ref[...].astype(jnp.bfloat16)                          # (TB, H*W)
    h1 = jnp.dot(x, w1_ref[...], preferred_element_type=jnp.float32)
    h1 = jnp.maximum(h1 + b1_ref[...], 0.0)                      # (TB, H*W*C1)

    # conv2 (+bias, ReLU): output already flattened in NHWC order.
    h2 = jnp.dot(h1.astype(jnp.bfloat16), w2_ref[...],
                 preferred_element_type=jnp.float32)
    h2 = jnp.maximum(h2 + b2_ref[...], 0.0)                      # (TB, H*W*C2)

    # fc1 + ReLU  (fc1 rows pre-permuted, so no flatten/transpose at runtime)
    z1 = jnp.dot(h2.astype(jnp.bfloat16), fc1_w_ref[...],
                 preferred_element_type=jnp.float32)
    z1 = jnp.maximum(z1 + fc1_b_ref[...], 0.0)                   # (TB, 64)

    # fc2 + softmax
    z2 = jnp.dot(z1.astype(jnp.bfloat16), fc2_w_ref[...],
                 preferred_element_type=jnp.float32) + fc2_b_ref[...]
    m = jnp.max(z2, axis=-1, keepdims=True)
    e = jnp.exp(z2 - m)
    o_ref[...] = e / jnp.sum(e, axis=-1, keepdims=True)


# ----------------------------------------------------------------------------
# Wrapper: one pallas_call for the whole forward pass, batch-tiled.
# ----------------------------------------------------------------------------
def conv_actor_forward(x_nchw, params, *, tb=128):
    n, cin, h, w = x_nchw.shape
    assert cin == 1, "ConvActor takes single-channel input"
    assert tb % 8 == 0, "batch tile must be a multiple of 8 (sublane tiling)"
    a = params["fc2_w"].shape[1]
    hw = h * w

    x = x_nchw.reshape(n, hw)                 # contiguous NCHW, Cin==1: free
    steps = pl.cdiv(n, tb)
    n_pad = steps * tb
    if n_pad != n:
        x = jnp.pad(x, ((0, n_pad - n), (0, 0)))

    out = pl.pallas_call(
        _conv_actor_kernel,
        out_shape=jax.ShapeDtypeStruct((n_pad, a), jnp.float32),
        grid=(steps,),
        in_specs=[
            pl.BlockSpec((tb, hw), lambda i: (i, 0)),
            pl.BlockSpec(params["w1"].shape, lambda i: (0, 0)),
            pl.BlockSpec(params["b1"].shape, lambda i: (0, 0)),
            pl.BlockSpec(params["w2"].shape, lambda i: (0, 0)),
            pl.BlockSpec(params["b2"].shape, lambda i: (0, 0)),
            pl.BlockSpec(params["fc1_w"].shape, lambda i: (0, 0)),
            pl.BlockSpec(params["fc1_b"].shape, lambda i: (0, 0)),
            pl.BlockSpec(params["fc2_w"].shape, lambda i: (0, 0)),
            pl.BlockSpec(params["fc2_b"].shape, lambda i: (0, 0)),
        ],
        out_specs=pl.BlockSpec((tb, a), lambda i: (i, 0)),
        compiler_params=pltpu.CompilerParams(
            dimension_semantics=("parallel",)),
    )(x, params["w1"], params["b1"], params["w2"], params["b2"],
      params["fc1_w"], params["fc1_b"], params["fc2_w"], params["fc2_b"])
    return out[:n]


# ----------------------------------------------------------------------------
# Offline parameter repacking (host-side, happens once).
# ----------------------------------------------------------------------------
def _conv_as_full_matrix(w_oihw, height, width):
    """torch (Cout, Cin, 3, 3) 'same' conv -> dense (H*W*Cin, H*W*Cout) matrix.

    Maps an image flattened in (h, w, cin) order to the output flattened in
    (h, w, cout) order; padding is encoded as zero taps.
    """
    w = np.asarray(w_oihw, np.float32)
    cout, cin, kh, kw = w.shape
    assert kh == 3 and kw == 3
    m = np.zeros((height, width, cin, height, width, cout), np.float32)
    for ky in range(3):
        for kx in range(3):
            tap = w[:, :, ky, kx].T                         # (cin, cout)
            for oh in range(height):
                ih = oh + ky - 1
                if not (0 <= ih < height):
                    continue
                for ow in range(width):
                    iw = ow + kx - 1
                    if not (0 <= iw < width):
                        continue
                    m[ih, iw, :, oh, ow, :] = tap
    return m.reshape(height * width * cin, height * width * cout)


def _tile_bias(b, reps):
    return jnp.asarray(np.tile(np.asarray(b, np.float32), reps)[None, :])


def _pack_fc1(fc1_w, c2, height, width):
    """torch (64, C2*H*W) fc1 weight -> (H*W*C2, 64), rows in NHWC order."""
    fw = np.asarray(fc1_w, np.float32)
    fw = fw.reshape(fw.shape[0], c2, height, width).transpose(0, 2, 3, 1)
    return fw.reshape(fw.shape[0], height * width * c2).T


def pack_params(conv1_w, conv1_b, conv2_w, conv2_b,
                fc1_w, fc1_b, fc2_w, fc2_b, height, width):
    hw = height * width
    return dict(
        w1=jnp.asarray(_conv_as_full_matrix(conv1_w, height, width),
                       jnp.bfloat16),
        b1=_tile_bias(conv1_b, hw),
        w2=jnp.asarray(_conv_as_full_matrix(conv2_w, height, width),
                       jnp.bfloat16),
        b2=_tile_bias(conv2_b, hw),
        fc1_w=jnp.asarray(_pack_fc1(fc1_w, C2, height, width), jnp.bfloat16),
        fc1_b=jnp.asarray(np.asarray(fc1_b, np.float32)[None, :]),
        fc2_w=jnp.asarray(np.asarray(fc2_w, np.float32).T, jnp.bfloat16),
        fc2_b=jnp.asarray(np.asarray(fc2_b, np.float32)[None, :]),
    )


# Pure-JAX f32 reference (mirrors the PyTorch module) used only for testing.
def reference_forward(x_nchw, p):
    hi = jax.lax.Precision.HIGHEST
    y = jax.lax.conv_general_dilated(
        x_nchw, p["conv1_w"], (1, 1), "SAME",
        dimension_numbers=("NCHW", "OIHW", "NCHW"), precision=hi)
    y = jax.nn.relu(y + p["conv1_b"][None, :, None, None])
    y = jax.lax.conv_general_dilated(
        y, p["conv2_w"], (1, 1), "SAME",
        dimension_numbers=("NCHW", "OIHW", "NCHW"), precision=hi)
    y = jax.nn.relu(y + p["conv2_b"][None, :, None, None])
    y = y.reshape(y.shape[0], -1)
    y = jax.nn.relu(jnp.dot(y, p["fc1_w"].T, precision=hi) + p["fc1_b"])
    y = jnp.dot(y, p["fc2_w"].T, precision=hi) + p["fc2_b"]
    return jax.nn.softmax(y, axis=-1)


if __name__ == "__main__":
    H, W, A = 8, 8, 4          # ConvActor(height=8, width=8, num_actions=4)
    N, TB = 20, 8              # small test batch; production default tb=128

    key = jax.random.PRNGKey(0)
    ks = jax.random.split(key, 9)
    # Deterministic synthetic parameters (PyTorch-convention shapes).
    conv1_w = jax.random.normal(ks[0], (C1, 1, 3, 3), jnp.float32) * 0.20
    conv1_b = jax.random.normal(ks[1], (C1,), jnp.float32) * 0.05
    conv2_w = jax.random.normal(ks[2], (C2, C1, 3, 3), jnp.float32) * 0.10
    conv2_b = jax.random.normal(ks[3], (C2,), jnp.float32) * 0.05
    fc1_w = jax.random.normal(ks[4], (FC1, C2 * H * W), jnp.float32) * 0.02
    fc1_b = jax.random.normal(ks[5], (FC1,), jnp.float32) * 0.05
    fc2_w = jax.random.normal(ks[6], (A, FC1), jnp.float32) * 0.10
    fc2_b = jax.random.normal(ks[7], (A,), jnp.float32) * 0.05
    x = jax.random.normal(ks[8], (N, 1, H, W), jnp.float32)

    torch_params = dict(conv1_w=conv1_w, conv1_b=conv1_b,
                        conv2_w=conv2_w, conv2_b=conv2_b,
                        fc1_w=fc1_w, fc1_b=fc1_b,
                        fc2_w=fc2_w, fc2_b=fc2_b)
    kernel_params = pack_params(conv1_w, conv1_b, conv2_w, conv2_b,
                                fc1_w, fc1_b, fc2_w, fc2_b, H, W)

    # tb=8 keeps the test tiny while still exercising batch padding (20 -> 24)
    # and a multi-step "parallel" grid (3 steps).
    out = jax.block_until_ready(conv_actor_forward(x, kernel_params, tb=TB))
    ref = jax.block_until_ready(reference_forward(x, torch_params))

    assert out.shape == (N, A), out.shape
    assert bool(jnp.allclose(jnp.sum(out, axis=-1), 1.0, atol=1e-3))
    err = float(jnp.max(jnp.abs(out - ref)))
    assert err < 5e-3, f"max |kernel - reference| = {err}"   # bf16 MXU operands
    print("KERNEL_OK")
</pallas_src>

<mosaic_0001>
module attributes {stable_mosaic.version = 11 : i64} {
  func.func @_conv_actor_kernel(%arg0: i32, %arg1: memref<8x64xf32, #tpu.memory_space<vmem>>, %arg2: memref<64x1024xbf16, #tpu.memory_space<vmem>>, %arg3: memref<1x1024xf32, #tpu.memory_space<vmem>>, %arg4: memref<1024x2048xbf16, #tpu.memory_space<vmem>>, %arg5: memref<1x2048xf32, #tpu.memory_space<vmem>>, %arg6: memref<2048x64xbf16, #tpu.memory_space<vmem>>, %arg7: memref<1x64xf32, #tpu.memory_space<vmem>>, %arg8: memref<64x4xbf16, #tpu.memory_space<vmem>>, %arg9: memref<1x4xf32, #tpu.memory_space<vmem>>, %arg10: memref<8x4xf32, #tpu.memory_space<vmem>>) attributes {dimension_semantics = [#tpu.dimension_semantics<parallel>], iteration_bounds = array<i64: 3>, scalar_prefetch = 0 : i64, scratch_operands = 0 : i64, tpu.core_type = #tpu.core_type<tc>, window_params = [{transform_indices = @transform_0, window_bounds = array<i64: 8, 64>}, {pipeline_mode = #tpu.pipeline_mode<synchronous>, transform_indices = @transform_1, window_bounds = array<i64: 64, 1024>}, {pipeline_mode = #tpu.pipeline_mode<synchronous>, transform_indices = @transform_2, window_bounds = array<i64: 1, 1024>}, {pipeline_mode = #tpu.pipeline_mode<synchronous>, transform_indices = @transform_3, window_bounds = array<i64: 1024, 2048>}, {pipeline_mode = #tpu.pipeline_mode<synchronous>, transform_indices = @transform_4, window_bounds = array<i64: 1, 2048>}, {pipeline_mode = #tpu.pipeline_mode<synchronous>, transform_indices = @transform_5, window_bounds = array<i64: 2048, 64>}, {pipeline_mode = #tpu.pipeline_mode<synchronous>, transform_indices = @transform_6, window_bounds = array<i64: 1, 64>}, {pipeline_mode = #tpu.pipeline_mode<synchronous>, transform_indices = @transform_7, window_bounds = array<i64: 64, 4>}, {pipeline_mode = #tpu.pipeline_mode<synchronous>, transform_indices = @transform_8, window_bounds = array<i64: 1, 4>}, {transform_indices = @transform_9, window_bounds = array<i64: 8, 4>}]} {
    %c0 = arith.constant 0 : index
    %c0_0 = arith.constant 0 : index
    %0 = vector.load %arg1[%c0, %c0_0] : memref<8x64xf32, #tpu.memory_space<vmem>>, vector<8x64xf32>
    %1 = arith.truncf %0 : vector<8x64xf32> to vector<8x64xbf16>
    %c0_1 = arith.constant 0 : index
    %c0_2 = arith.constant 0 : index
    %2 = vector.load %arg2[%c0_1, %c0_2] : memref<64x1024xbf16, #tpu.memory_space<vmem>>, vector<64x1024xbf16>
    %cst = arith.constant dense<0.000000e+00> : vector<8x1024xf32>
    %3 = tpu.matmul %1, %2, %cst {dimension_numbers = #tpu.dot_dimension_numbers<[1], [0], [0], [1], [0, 0, 1, 1], [], []>} : vector<8x64xbf16>, vector<64x1024xbf16>, vector<8x1024xf32> -> vector<8x1024xf32>
    %c0_3 = arith.constant 0 : index
    %c0_4 = arith.constant 0 : index
    %4 = vector.load %arg3[%c0_3, %c0_4] : memref<1x1024xf32, #tpu.memory_space<vmem>>, vector<1x1024xf32>
    %5 = vector.broadcast %4 : vector<1x1024xf32> to vector<8x1024xf32>
    %6 = arith.addf %3, %5 : vector<8x1024xf32>
    %cst_5 = arith.constant 0.000000e+00 : f32
    %7 = vector.broadcast %cst_5 : f32 to vector<8x1024xf32>
    %8 = arith.maximumf %6, %7 : vector<8x1024xf32>
    %9 = arith.truncf %8 : vector<8x1024xf32> to vector<8x1024xbf16>
    %c0_6 = arith.constant 0 : index
    %c0_7 = arith.constant 0 : index
    %10 = vector.load %arg4[%c0_6, %c0_7] : memref<1024x2048xbf16, #tpu.memory_space<vmem>>, vector<1024x2048xbf16>
    %cst_8 = arith.constant dense<0.000000e+00> : vector<8x2048xf32>
    %11 = tpu.matmul %9, %10, %cst_8 {dimension_numbers = #tpu.dot_dimension_numbers<[1], [0], [0], [1], [0, 0, 1, 1], [], []>} : vector<8x1024xbf16>, vector<1024x2048xbf16>, vector<8x2048xf32> -> vector<8x2048xf32>
    %c0_9 = arith.constant 0 : index
    %c0_10 = arith.constant 0 : index
    %12 = vector.load %arg5[%c0_9, %c0_10] : memref<1x2048xf32, #tpu.memory_space<vmem>>, vector<1x2048xf32>
    %13 = vector.broadcast %12 : vector<1x2048xf32> to vector<8x2048xf32>
    %14 = arith.addf %11, %13 : vector<8x2048xf32>
    %cst_11 = arith.constant 0.000000e+00 : f32
    %15 = vector.broadcast %cst_11 : f32 to vector<8x2048xf32>
    %16 = arith.maximumf %14, %15 : vector<8x2048xf32>
    %17 = arith.truncf %16 : vector<8x2048xf32> to vector<8x2048xbf16>
    %c0_12 = arith.constant 0 : index
    %c0_13 = arith.constant 0 : index
    %18 = vector.load %arg6[%c0_12, %c0_13] : memref<2048x64xbf16, #tpu.memory_space<vmem>>, vector<2048x64xbf16>
    %cst_14 = arith.constant dense<0.000000e+00> : vector<8x64xf32>
    %19 = tpu.matmul %17, %18, %cst_14 {dimension_numbers = #tpu.dot_dimension_numbers<[1], [0], [0], [1], [0, 0, 1, 1], [], []>} : vector<8x2048xbf16>, vector<2048x64xbf16>, vector<8x64xf32> -> vector<8x64xf32>
    %c0_15 = arith.constant 0 : index
    %c0_16 = arith.constant 0 : index
    %20 = vector.load %arg7[%c0_15, %c0_16] : memref<1x64xf32, #tpu.memory_space<vmem>>, vector<1x64xf32>
    %21 = vector.broadcast %20 : vector<1x64xf32> to vector<8x64xf32>
    %22 = arith.addf %19, %21 : vector<8x64xf32>
    %cst_17 = arith.constant 0.000000e+00 : f32
    %23 = vector.broadcast %cst_17 : f32 to vector<8x64xf32>
    %24 = arith.maximumf %22, %23 : vector<8x64xf32>
    %25 = arith.truncf %24 : vector<8x64xf32> to vector<8x64xbf16>
    %c0_18 = arith.constant 0 : index
    %c0_19 = arith.constant 0 : index
    %26 = vector.load %arg8[%c0_18, %c0_19] : memref<64x4xbf16, #tpu.memory_space<vmem>>, vector<64x4xbf16>
    %cst_20 = arith.constant dense<0.000000e+00> : vector<8x4xf32>
    %27 = tpu.matmul %25, %26, %cst_20 {dimension_numbers = #tpu.dot_dimension_numbers<[1], [0], [0], [1], [0, 0, 1, 1], [], []>} : vector<8x64xbf16>, vector<64x4xbf16>, vector<8x4xf32> -> vector<8x4xf32>
    %c0_21 = arith.constant 0 : index
    %c0_22 = arith.constant 0 : index
    %28 = vector.load %arg9[%c0_21, %c0_22] : memref<1x4xf32, #tpu.memory_space<vmem>>, vector<1x4xf32>
    %29 = vector.broadcast %28 : vector<1x4xf32> to vector<8x4xf32>
    %30 = arith.addf %27, %29 : vector<8x4xf32>
    %cst_23 = arith.constant dense<0xFF800000> : vector<8xf32>
    %31 = vector.multi_reduction <maximumf>, %30, %cst_23 [1] : vector<8x4xf32> to vector<8xf32>
    %32 = vector.shape_cast %31 : vector<8xf32> to vector<8x1xf32>
    %33 = vector.broadcast %32 : vector<8x1xf32> to vector<8x4xf32>
    %34 = arith.subf %30, %33 : vector<8x4xf32>
    %35 = math.exp %34 : vector<8x4xf32>
    %cst_24 = arith.constant dense<0.000000e+00> : vector<8xf32>
    %36 = vector.multi_reduction <add>, %35, %cst_24 [1] : vector<8x4xf32> to vector<8xf32>
    %37 = vector.shape_cast %36 : vector<8xf32> to vector<8x1xf32>
    %38 = vector.broadcast %37 : vector<8x1xf32> to vector<8x4xf32>
    %39 = arith.divf %35, %38 : vector<8x4xf32>
    %c0_25 = arith.constant 0 : index
    %c0_26 = arith.constant 0 : index
    %40 = vector.load %arg10[%c0_25, %c0_26] : memref<8x4xf32, #tpu.memory_space<vmem>>, vector<8x4xf32>
    tpu.vector_store %arg10[%c0_25, %c0_26], %39 {strides = array<i32>} : memref<8x4xf32, #tpu.memory_space<vmem>>, vector<8x4xf32>,
    return
  }
  func.func @transform_0(%arg0: i32) -> (i32, i32) {
    %c0_i32 = arith.constant 0 : i32
    %c0_i32_0 = arith.constant 0 : i32
    return %arg0, %c0_i32 : i32, i32
  }
  func.func @transform_1(%arg0: i32) -> (i32, i32) {
    %c0_i32 = arith.constant 0 : i32
    %c0_i32_0 = arith.constant 0 : i32
    %c0_i32_1 = arith.constant 0 : i32
    return %c0_i32, %c0_i32_0 : i32, i32
  }
  func.func @transform_2(%arg0: i32) -> (i32, i32) {
    %c0_i32 = arith.constant 0 : i32
    %c0_i32_0 = arith.constant 0 : i32
    %c0_i32_1 = arith.constant 0 : i32
    return %c0_i32, %c0_i32_0 : i32, i32
  }
  func.func @transform_3(%arg0: i32) -> (i32, i32) {
    %c0_i32 = arith.constant 0 : i32
    %c0_i32_0 = arith.constant 0 : i32
    %c0_i32_1 = arith.constant 0 : i32
    return %c0_i32, %c0_i32_0 : i32, i32
  }
  func.func @transform_4(%arg0: i32) -> (i32, i32) {
    %c0_i32 = arith.constant 0 : i32
    %c0_i32_0 = arith.constant 0 : i32
    %c0_i32_1 = arith.constant 0 : i32
    return %c0_i32, %c0_i32_0 : i32, i32
  }
  func.func @transform_5(%arg0: i32) -> (i32, i32) {
    %c0_i32 = arith.constant 0 : i32
    %c0_i32_0 = arith.constant 0 : i32
    %c0_i32_1 = arith.constant 0 : i32
    return %c0_i32, %c0_i32_0 : i32, i32
  }
  func.func @transform_6(%arg0: i32) -> (i32, i32) {
    %c0_i32 = arith.constant 0 : i32
    %c0_i32_0 = arith.constant 0 : i32
    %c0_i32_1 = arith.constant 0 : i32
    return %c0_i32, %c0_i32_0 : i32, i32
  }
  func.func @transform_7(%arg0: i32) -> (i32, i32) {
    %c0_i32 = arith.constant 0 : i32
    %c0_i32_0 = arith.constant 0 : i32
    %c0_i32_1 = arith.constant 0 : i32
    return %c0_i32, %c0_i32_0 : i32, i32
  }
  func.func @transform_8(%arg0: i32) -> (i32, i32) {
    %c0_i32 = arith.constant 0 : i32
    %c0_i32_0 = arith.constant 0 : i32
    %c0_i32_1 = arith.constant 0 : i32
    return %c0_i32, %c0_i32_0 : i32, i32
  }
  func.func @transform_9(%arg0: i32) -> (i32, i32) {
    %c0_i32 = arith.constant 0 : i32
    %c0_i32_0 = arith.constant 0 : i32
    return %arg0, %c0_i32 : i32, i32
  }
}

</mosaic_0001>

<llo_original>
// kernel: tpu_custom_call.1
$region0: #{tpu_custom_call.1}
  #allocation0 [shape = 'u32[]', space=smem, size = 0x4, offset = 0x4, fixed_abs, tag = 'smem constant byte address 0x4 - core index']
  #allocation1 [shape = 'u32[144,128]{1,0:T(1,128)}', space=vmem, size = 0x12000, scoped, tag = 'internal scratch']
  %s0 = inlined_call_operand.hbm [shape: f32[24,64], index: 0, kind: input, shape index: {}]
  %s1 = inlined_call_operand.hbm [shape: bf16[64,1024], index: 1, kind: input, shape index: {}]
  %s2 = inlined_call_operand.hbm [shape: f32[1,1024], index: 2, kind: input, shape index: {}]
  %s3 = inlined_call_operand.hbm [shape: bf16[1024,2048], index: 3, kind: input, shape index: {}]
  %s4 = inlined_call_operand.hbm [shape: f32[1,2048], index: 4, kind: input, shape index: {}]
  %s5 = inlined_call_operand.vmem [shape: bf16[2048,64], index: 5, kind: input, shape index: {}]
  %s6 = inlined_call_operand.hbm [shape: f32[1,64], index: 6, kind: input, shape index: {}]
  %s7 = inlined_call_operand.vmem [shape: bf16[64,4], index: 7, kind: input, shape index: {}]
  %s8 = inlined_call_operand.hbm [shape: f32[1,4], index: 8, kind: input, shape index: {}]
  %s9 = inlined_call_operand.vmem [shape: f32[24,4], index: 9, kind: output, shape index: {}]
  %s10 = sld [smem:[#allocation0]]
  $region97: #{tpu_custom_call.1} parent=0
    _
  %s12 = ssub.s32 1, %s10
  %s13 = scalar_select 0, %s12, %s10
  $region1: #{tpu_custom_call.1} parent=0
    #allocation2 [shape = 'u8[8192]{0}', space=vmem, size = 0x2000, scoped, tag = 'input window, operand 0']
    #allocation3 [shape = 's32[2]{0}', space=sflag, size = 0x8, scoped, tag = 'scoped memory for tpu_custom_call.1']
    #allocation4 [shape = 'u8[131072]{0}', space=vmem, size = 0x20000, scoped, tag = 'input window, operand 1, single buffered']
    #allocation5 [shape = 's32[1]{0}', space=sflag, size = 0x4, scoped, tag = 'scoped memory for tpu_custom_call.1']
    #allocation6 [shape = 'u8[4096]{0}', space=vmem, size = 0x1000, scoped, tag = 'input window, operand 2, single buffered']
    #allocation7 [shape = 'u8[4194304]{0}', space=vmem, size = 0x400000, scoped, tag = 'input window, operand 3, single buffered']
    #allocation8 [shape = 's32[1]{0}', space=sflag, size = 0x4, scoped, tag = 'scoped memory for tpu_custom_call.1']
    #allocation9 [shape = 'u8[8192]{0}', space=vmem, size = 0x2000, scoped, tag = 'input window, operand 4, single buffered']
    #allocation10 [shape = 'u8[512]{0}', space=vmem, size = 0x400, scoped, tag = 'input window, operand 6, single buffered']
    #allocation11 [shape = 's32[1]{0}', space=sflag, size = 0x4, scoped, tag = 'scoped memory for tpu_custom_call.1']
    #allocation12 [shape = 'u8[512]{0}', space=vmem, size = 0x400, scoped, tag = 'input window, operand 8, single buffered']
    %14 = vsyncpa [#allocation3], 0
    %s15 = scalar_lea.sflag [#allocation3], 1
    %16 = vsyncpa %s15, 0
    %17 = vsyncpa [#allocation5], 0
    %18 = vsyncpa [#allocation8], 0
    %19 = vsyncpa [#allocation11], 0
    loop: start=0, step=1, limit=5
    $region2: #{tpu_custom_call.1} parent=1 // loop_pre_header
      _
    $region3: #{tpu_custom_call.1} parent=1 // loop_header
      %s21 = sphi 0, %s25
      %p22 = scmp.ge.s32.totalorder %s21, 5
      %s31 = sphi 0, %s33
      %s34 = sphi 0, %s31
      %s35 = sphi 0, %s34
      %s51 = sphi 0, %s35
      %s55 = sphi 0, %s55
      %s57 = sphi 0, %s55
      %s58 = sphi 0, %s57
      %s72 = sphi 0, %s58
      %s76 = sphi 0, %s76
      %s78 = sphi 0, %s76
      %s79 = sphi 0, %s78
      %s93 = sphi 0, %s79
      %s97 = sphi 0, %s97
      %s99 = sphi 0, %s97
      %s100 = sphi 0, %s99
      %s114 = sphi 0, %s100
      %s118 = sphi 0, %s118
      %s120 = sphi 0, %s118
      %s121 = sphi 0, %s120
      %s135 = sphi 0, %s121
      %s139 = sphi 0, %s139
      %s141 = sphi 0, %s139
      %s142 = sphi 0, %s141
      %s156 = sphi 0, %s142
      %s160 = sphi 0, %s160
      %s162 = sphi 0, %s160
      %s163 = sphi 0, %s162
      %s177 = sphi 0, %s163
      %s181 = sphi 0, %s181
      %s183 = sphi 0, %s181
      %s184 = sphi 0, %s183
      %s198 = sphi 0, %s184
      %s202 = sphi 0, %s202
      %s204 = sphi 0, %s202
      %s205 = sphi 0, %s204
      %s219 = sphi 0, %s205
      %s225 = sphi 0, %s227
      %s228 = sphi 0, %s225
      %s229 = sphi 0, %s228
      %s245 = sphi 0, %s229
    $region4: #{tpu_custom_call.1} parent=1 // loop_header_branch
      %24 = sbr.rel (%p22) target = $region8
    $region5: #{tpu_custom_call.1} parent=1 // loop_body
      %s26 = ssub.s32 %s21, 1
      %s27 = ssub.s32 %s21, 2
      %s28 = sadd.s32 %s21, 1
      %s29 = ssub.s32 %s21, %s28
      %p30 = scmp.eq.s32.totalorder %s29, 0
      %s32 = sadd.s32 %s31, 1
      %s33 = scalar_select %p30, %s31, %s32
      %p36 = pneg %p30
      %p37 = scmp.eq.s32.totalorder %s21, 2
      %p38 = por %p36, %p37
      %p39 = scmp.ne.s32.totalorder %s31, %s34
      %p40 = scmp.eq.s32.totalorder %s21, 0
      %p41 = por %p39, %p40
      %p42 = scmp.ne.s32.totalorder %s31, %s34
      %p43 = scmp.eq.s32.totalorder %s26, 2
      %p44 = por %p42, %p43
      %p45 = scmp.ne.s32.totalorder %s34, %s35
      %p46 = scmp.eq.s32.totalorder %s26, 0
      %p47 = por %p45, %p46
      %p48 = scmp.ne.s32.totalorder %s34, %s35
      %p49 = scmp.eq.s32.totalorder %s27, 2
      %p50 = por %p48, %p49
      %p52 = scmp.ne.s32.totalorder %s35, %s51
      %p53 = scmp.eq.s32.totalorder %s27, 0
      %p54 = por %p52, %p53
      %s56 = sadd.s32 %s55, 1
      %p59 = scmp.eq.s32.totalorder %s21, 2
      %p60 = scmp.ne.s32.totalorder %s55, %s57
      %p61 = scmp.eq.s32.totalorder %s21, 0
      %p62 = por %p60, %p61
      %p63 = scmp.ne.s32.totalorder %s55, %s57
      %p64 = scmp.eq.s32.totalorder %s26, 2
      %p65 = por %p63, %p64
      %p66 = scmp.ne.s32.totalorder %s57, %s58
      %p67 = scmp.eq.s32.totalorder %s26, 0
      %p68 = por %p66, %p67
      %p69 = scmp.ne.s32.totalorder %s57, %s58
      %p70 = scmp.eq.s32.totalorder %s27, 2
      %p71 = por %p69, %p70
      %p73 = scmp.ne.s32.totalorder %s58, %s72
      %p74 = scmp.eq.s32.totalorder %s27, 0
      %p75 = por %p73, %p74
      %s77 = sadd.s32 %s76, 1
      %p80 = scmp.eq.s32.totalorder %s21, 2
      %p81 = scmp.ne.s32.totalorder %s76, %s78
      %p82 = scmp.eq.s32.totalorder %s21, 0
      %p83 = por %p81, %p82
      %p84 = scmp.ne.s32.totalorder %s76, %s78
      %p85 = scmp.eq.s32.totalorder %s26, 2
      %p86 = por %p84, %p85
      %p87 = scmp.ne.s32.totalorder %s78, %s79
      %p88 = scmp.eq.s32.totalorder %s26, 0
      %p89 = por %p87, %p88
      %p90 = scmp.ne.s32.totalorder %s78, %s79
      %p91 = scmp.eq.s32.totalorder %s27, 2
      %p92 = por %p90, %p91
      %p94 = scmp.ne.s32.totalorder %s79, %s93
      %p95 = scmp.eq.s32.totalorder %s27, 0
      %p96 = por %p94, %p95
      %s98 = sadd.s32 %s97, 1
      %p101 = scmp.eq.s32.totalorder %s21, 2
      %p102 = scmp.ne.s32.totalorder %s97, %s99
      %p103 = scmp.eq.s32.totalorder %s21, 0
      %p104 = por %p102, %p103
      %p105 = scmp.ne.s32.totalorder %s97, %s99
      %p106 = scmp.eq.s32.totalorder %s26, 2
      %p107 = por %p105, %p106
      %p108 = scmp.ne.s32.totalorder %s99, %s100
      %p109 = scmp.eq.s32.totalorder %s26, 0
      %p110 = por %p108, %p109
      %p111 = scmp.ne.s32.totalorder %s99, %s100
      %p112 = scmp.eq.s32.totalorder %s27, 2
      %p113 = por %p111, %p112
      %p115 = scmp.ne.s32.totalorder %s100, %s114
      %p116 = scmp.eq.s32.totalorder %s27, 0
      %p117 = por %p115, %p116
      %s119 = sadd.s32 %s118, 1
      %p122 = scmp.eq.s32.totalorder %s21, 2
      %p123 = scmp.ne.s32.totalorder %s118, %s120
      %p124 = scmp.eq.s32.totalorder %s21, 0
      %p125 = por %p123, %p124
      %p126 = scmp.ne.s32.totalorder %s118, %s120
      %p127 = scmp.eq.s32.totalorder %s26, 2
      %p128 = por %p126, %p127
      %p129 = scmp.ne.s32.totalorder %s120, %s121
      %p130 = scmp.eq.s32.totalorder %s26, 0
      %p131 = por %p129, %p130
      %p132 = scmp.ne.s32.totalorder %s120, %s121
      %p133 = scmp.eq.s32.totalorder %s27, 2
      %p134 = por %p132, %p133
      %p136 = scmp.ne.s32.totalorder %s121, %s135
      %p137 = scmp.eq.s32.totalorder %s27, 0
      %p138 = por %p136, %p137
      %s140 = sadd.s32 %s139, 1
      %p143 = scmp.eq.s32.totalorder %s21, 2
      %p144 = scmp.ne.s32.totalorder %s139, %s141
      %p145 = scmp.eq.s32.totalorder %s21, 0
      %p146 = por %p144, %p145
      %p147 = scmp.ne.s32.totalorder %s139, %s141
      %p148 = scmp.eq.s32.totalorder %s26, 2
      %p149 = por %p147, %p148
      %p150 = scmp.ne.s32.totalorder %s141, %s142
      %p151 = scmp.eq.s32.totalorder %s26, 0
      %p152 = por %p150, %p151
      %p153 = scmp.ne.s32.totalorder %s141, %s142
      %p154 = scmp.eq.s32.totalorder %s27, 2
      %p155 = por %p153, %p154
      %p157 = scmp.ne.s32.totalorder %s142, %s156
      %p158 = scmp.eq.s32.totalorder %s27, 0
      %p159 = por %p157, %p158
      %s161 = sadd.s32 %s160, 1
      %p164 = scmp.eq.s32.totalorder %s21, 2
      %p165 = scmp.ne.s32.totalorder %s160, %s162
      %p166 = scmp.eq.s32.totalorder %s21, 0
      %p167 = por %p165, %p166
      %p168 = scmp.ne.s32.totalorder %s160, %s162
      %p169 = scmp.eq.s32.totalorder %s26, 2
      %p170 = por %p168, %p169
      %p171 = scmp.ne.s32.totalorder %s162, %s163
      %p172 = scmp.eq.s32.totalorder %s26, 0
      %p173 = por %p171, %p172
      %p174 = scmp.ne.s32.totalorder %s162, %s163
      %p175 = scmp.eq.s32.totalorder %s27, 2
      %p176 = por %p174, %p175
      %p178 = scmp.ne.s32.totalorder %s163, %s177
      %p179 = scmp.eq.s32.totalorder %s27, 0
      %p180 = por %p178, %p179
      %s182 = sadd.s32 %s181, 1
      %p185 = scmp.eq.s32.totalorder %s21, 2
      %p186 = scmp.ne.s32.totalorder %s181, %s183
      %p187 = scmp.eq.s32.totalorder %s21, 0
      %p188 = por %p186, %p187
      %p189 = scmp.ne.s32.totalorder %s181, %s183
      %p190 = scmp.eq.s32.totalorder %s26, 2
      %p191 = por %p189, %p190
      %p192 = scmp.ne.s32.totalorder %s183, %s184
      %p193 = scmp.eq.s32.totalorder %s26, 0
      %p194 = por %p192, %p193
      %p195 = scmp.ne.s32.totalorder %s183, %s184
      %p196 = scmp.eq.s32.totalorder %s27, 2
      %p197 = por %p195, %p196
      %p199 = scmp.ne.s32.totalorder %s184, %s198
      %p200 = scmp.eq.s32.totalorder %s27, 0
      %p201 = por %p199, %p200
      %s203 = sadd.s32 %s202, 1
      %p206 = scmp.eq.s32.totalorder %s21, 2
      %p207 = scmp.ne.s32.totalorder %s202, %s204
      %p208 = scmp.eq.s32.totalorder %s21, 0
      %p209 = por %p207, %p208
      %p210 = scmp.ne.s32.totalorder %s202, %s204
      %p211 = scmp.eq.s32.totalorder %s26, 2
      %p212 = por %p210, %p211
      %p213 = scmp.ne.s32.totalorder %s204, %s205
      %p214 = scmp.eq.s32.totalorder %s26, 0
      %p215 = por %p213, %p214
      %p216 = scmp.ne.s32.totalorder %s204, %s205
      %p217 = scmp.eq.s32.totalorder %s27, 2
      %p218 = por %p216, %p217
      %p220 = scmp.ne.s32.totalorder %s205, %s219
      %p221 = scmp.eq.s32.totalorder %s27, 0
      %p222 = por %p220, %p221
      %s223 = ssub.s32 %s21, %s28
      %p224 = scmp.eq.s32.totalorder %s223, 0
      %s226 = sadd.s32 %s225, 1
      %s227 = scalar_select %p224, %s225, %s226
      %p230 = pneg %p224
      %p231 = scmp.eq.s32.totalorder %s21, 2
      %p232 = por %p230, %p231
      %p233 = scmp.ne.s32.totalorder %s225, %s228
      %p234 = scmp.eq.s32.totalorder %s21, 0
      %p235 = por %p233, %p234
      %p236 = scmp.ne.s32.totalorder %s225, %s228
      %p237 = scmp.eq.s32.totalorder %s26, 2
      %p238 = por %p236, %p237
      %p239 = scmp.ne.s32.totalorder %s228, %s229
      %p240 = scmp.eq.s32.totalorder %s26, 0
      %p241 = por %p239, %p240
      %p242 = scmp.ne.s32.totalorder %s228, %s229
      %p243 = scmp.eq.s32.totalorder %s27, 2
      %p244 = por %p242, %p243
      %p246 = scmp.ne.s32.totalorder %s229, %s245
      %p247 = scmp.eq.s32.totalorder %s27, 0
      %p248 = por %p246, %p247
      %p249 = scmp.le.s32.totalorder 1, %s21
      %p250 = scmp.lt.s32.totalorder %s21, 4
      %p251 = pnand %p249, %p250
      %p252 = pneg %p251
      // Predicated region
      $region9: #{tpu_custom_call.1} parent=5 // pred_check
        _
      $region10: #{tpu_custom_call.1} parent=5 // pred_check_branch
        %254 = sbr.rel (%p251) target = $region12
      $region11: #{tpu_custom_call.1} parent=5 // pred_region
        %s255 = ssub.s32 %s21, 1
        // Predicated region
        $region13: #{tpu_custom_call.1} parent=11 // pred_check
          %p256 = pneg %p68
        $region14: #{tpu_custom_call.1} parent=11 // pred_check_branch
          %258 = sbr.rel (%p256) target = $region16
        $region15: #{tpu_custom_call.1} parent=11 // pred_region
          %s260 = ssub.s32 4096, 4096
          %261 = vsyncadd [#allocation5], %s260
          %s262 = sshll.u32 [#allocation4], 4
          %s263 = int_to_ptr.vmem [resolvable:$true] %s262
          %268 = dma.hbm_to_vmem [thread:$0]  %s1, 4096, %s263, [#allocation5], 512, 512, 32
        $region16: #{tpu_custom_call.1} parent=11 // pred_fallthru
          _
        // Predicated region
        $region17: #{tpu_custom_call.1} parent=11 // pred_check
          %p269 = pneg %p89
        $region18: #{tpu_custom_call.1} parent=11 // pred_check_branch
          %271 = sbr.rel (%p269) target = $region20
        $region19: #{tpu_custom_call.1} parent=11 // pred_region
          %s273 = ssub.s32 128, 128
          %274 = vsyncadd [#allocation5], %s273
          %s276 = sshll.u32 [#allocation6], 4
          %s277 = int_to_ptr.vmem [resolvable:$true] %s276
          %279 = dma.hbm_to_vmem [thread:$0]  %s2, 128, %s277, [#allocation5]
        $region20: #{tpu_custom_call.1} parent=11 // pred_fallthru
          _
        // Predicated region
        $region21: #{tpu_custom_call.1} parent=11 // pred_check
          %p280 = pneg %p110
        $region22: #{tpu_custom_call.1} parent=11 // pred_check_branch
          %282 = sbr.rel (%p280) target = $region24
        $region23: #{tpu_custom_call.1} parent=11 // pred_region
          %s284 = ssub.s32 131072, 131072
          %285 = vsyncadd [#allocation8], %s284
          %s286 = sshll.u32 [#allocation7], 4
          %s287 = int_to_ptr.vmem [resolvable:$true] %s286
          %292 = dma.hbm_to_vmem [thread:$0]  %s3, 131072, %s287, [#allocation8], 1024, 1024, 64
        $region24: #{tpu_custom_call.1} parent=11 // pred_fallthru
          _
        // Predicated region
        $region25: #{tpu_custom_call.1} parent=11 // pred_check
          %p293 = pneg %p131
        $region26: #{tpu_custom_call.1} parent=11 // pred_check_branch
          %295 = sbr.rel (%p293) target = $region28
        $region27: #{tpu_custom_call.1} parent=11 // pred_region
          %s297 = ssub.s32 256, 256
          %298 = vsyncadd [#allocation8], %s297
          %s300 = sshll.u32 [#allocation9], 4
          %s301 = int_to_ptr.vmem [resolvable:$true] %s300
          %303 = dma.hbm_to_vmem [thread:$0]  %s4, 256, %s301, [#allocation8]
        $region28: #{tpu_custom_call.1} parent=11 // pred_fallthru
          _
        // Predicated region
        $region29: #{tpu_custom_call.1} parent=11 // pred_check
          %p304 = pneg %p152
        $region30: #{tpu_custom_call.1} parent=11 // pred_check_branch
          %306 = sbr.rel (%p304) target = $region32
        $region31: #{tpu_custom_call.1} parent=11 // pred_region
          _
        $region32: #{tpu_custom_call.1} parent=11 // pred_fallthru
          _
        // Predicated region
        $region33: #{tpu_custom_call.1} parent=11 // pred_check
          %p307 = pneg %p173
        $region34: #{tpu_custom_call.1} parent=11 // pred_check_branch
          %309 = sbr.rel (%p307) target = $region36
        $region35: #{tpu_custom_call.1} parent=11 // pred_region
          %s311 = ssub.s32 16, 16
          %312 = vsyncadd [#allocation11], %s311
          %s314 = sshll.u32 [#allocation10], 4
          %s315 = int_to_ptr.vmem [resolvable:$true] %s314
          %317 = dma.hbm_to_vmem [thread:$0]  %s6, 16, %s315, [#allocation11]
        $region36: #{tpu_custom_call.1} parent=11 // pred_fallthru
          _
        // Predicated region
        $region37: #{tpu_custom_call.1} parent=11 // pred_check
          %p318 = pneg %p194
        $region38: #{tpu_custom_call.1} parent=11 // pred_check_branch
          %320 = sbr.rel (%p318) target = $region40
        $region39: #{tpu_custom_call.1} parent=11 // pred_region
          _
        $region40: #{tpu_custom_call.1} parent=11 // pred_fallthru
          _
        // Predicated region
        $region41: #{tpu_custom_call.1} parent=11 // pred_check
          %p321 = pneg %p215
        $region42: #{tpu_custom_call.1} parent=11 // pred_check_branch
          %323 = sbr.rel (%p321) target = $region44
        $region43: #{tpu_custom_call.1} parent=11 // pred_region
          %s325 = ssub.s32 16, 16
          %326 = vsyncadd [#allocation11], %s325
          %s328 = sshll.u32 [#allocation12], 4
          %s329 = int_to_ptr.vmem [resolvable:$true] %s328
          %331 = dma.hbm_to_vmem [thread:$0]  %s8, 16, %s329, [#allocation11]
        $region44: #{tpu_custom_call.1} parent=11 // pred_fallthru
          _
      $region12: #{tpu_custom_call.1} parent=5 // pred_fallthru
        _
      %p332 = scmp.lt.s32.totalorder %s21, 3
      // Predicated region
      $region45: #{tpu_custom_call.1} parent=5 // pred_check
        %p333 = pneg %p332
      $region46: #{tpu_custom_call.1} parent=5 // pred_check_branch
        %335 = sbr.rel (%p333) target = $region48
      $region47: #{tpu_custom_call.1} parent=5 // pred_region
        // Predicated region
        $region49: #{tpu_custom_call.1} parent=47 // pred_check
          %p336 = pneg %p41
        $region50: #{tpu_custom_call.1} parent=47 // pred_check_branch
          %338 = sbr.rel (%p336) target = $region52
        $region51: #{tpu_custom_call.1} parent=47 // pred_region
          %s339 = sand.u32 %s31, 1
          %s340 = scalar_lea.sflag [#allocation3], %s339
          %s341 = sand.u32 %s31, 1
          %s342 = smul.addr %s341, 8
          %s343 = scalar_lea.vmem [#allocation2], %s342
          %s345 = ssub.s32 128, 128
          %346 = vsyncadd %s340, %s345
          %s347 = smul.addr %s21, 128
          %s348 = scalar_lea.hbm %s0, %s347
          %s350 = sshll.u32 %s343, 4
          %s351 = int_to_ptr.vmem [resolvable:$true] %s350
          %353 = dma.hbm_to_vmem [thread:$0]  %s348, 128, %s351, %s340
        $region52: #{tpu_custom_call.1} parent=47 // pred_fallthru
          _
      $region48: #{tpu_custom_call.1} parent=5 // pred_fallthru
        _
      %p354 = scmp.le.s32.totalorder 1, %s21
      %p355 = scmp.lt.s32.totalorder %s21, 4
      %p356 = pnand %p354, %p355
      %p357 = pneg %p356
      // Predicated region
      $region53: #{tpu_custom_call.1} parent=5 // pred_check
        _
      $region54: #{tpu_custom_call.1} parent=5 // pred_check_branch
        %359 = sbr.rel (%p356) target = $region56
      $region55: #{tpu_custom_call.1} parent=5 // pred_region
        %s360 = ssub.s32 %s21, 1
        %s361 = sand.u32 %s34, 1
        %s362 = scalar_lea.sflag [#allocation3], %s361
        %s363 = sand.u32 %s34, 1
        %s364 = smul.addr %s363, 8
        %s365 = scalar_lea.vmem [#allocation2], %s364
        // Predicated region
        $region57: #{tpu_custom_call.1} parent=55 // pred_check
          %p366 = pneg %p47
        $region58: #{tpu_custom_call.1} parent=55 // pred_check_branch
          %368 = sbr.rel (%p366) target = $region60
        $region59: #{tpu_custom_call.1} parent=55 // pred_region
          %369 = dma.done %s362, 128
        $region60: #{tpu_custom_call.1} parent=55 // pred_fallthru
          _
        // Predicated region
        $region61: #{tpu_custom_call.1} parent=55 // pred_check
          %p370 = pneg %p68
        $region62: #{tpu_custom_call.1} parent=55 // pred_check_branch
          %372 = sbr.rel (%p370) target = $region64
        $region63: #{tpu_custom_call.1} parent=55 // pred_region
          %373 = dma.done [#allocation5], 4096
        $region64: #{tpu_custom_call.1} parent=55 // pred_fallthru
          _
        // Predicated region
        $region65: #{tpu_custom_call.1} parent=55 // pred_check
          %p374 = pneg %p89
        $region66: #{tpu_custom_call.1} parent=55 // pred_check_branch
          %376 = sbr.rel (%p374) target = $region68
        $region67: #{tpu_custom_call.1} parent=55 // pred_region
          %377 = dma.done [#allocation5], 128
        $region68: #{tpu_custom_call.1} parent=55 // pred_fallthru
          _
        // Predicated region
        $region69: #{tpu_custom_call.1} parent=55 // pred_check
          %p378 = pneg %p110
        $region70: #{tpu_custom_call.1} parent=55 // pred_check_branch
          %380 = sbr.rel (%p378) target = $region72
        $region71: #{tpu_custom_call.1} parent=55 // pred_region
          %381 = dma.done [#allocation8], 131072
        $region72: #{tpu_custom_call.1} parent=55 // pred_fallthru
          _
        // Predicated region
        $region73: #{tpu_custom_call.1} parent=55 // pred_check
          %p382 = pneg %p131
        $region74: #{tpu_custom_call.1} parent=55 // pred_check_branch
          %384 = sbr.rel (%p382) target = $region76
        $region75: #{tpu_custom_call.1} parent=55 // pred_region
          %385 = dma.done [#allocation8], 256
        $region76: #{tpu_custom_call.1} parent=55 // pred_fallthru
          _
        // Predicated region
        $region77: #{tpu_custom_call.1} parent=55 // pred_check
          %p386 = pneg %p173
        $region78: #{tpu_custom_call.1} parent=55 // pred_check_branch
          %388 = sbr.rel (%p386) target = $region80
        $region79: #{tpu_custom_call.1} parent=55 // pred_region
          %389 = dma.done [#allocation11], 16
        $region80: #{tpu_custom_call.1} parent=55 // pred_fallthru
          _
        // Predicated region
        $region81: #{tpu_custom_call.1} parent=55 // pred_check
          %p390 = pneg %p215
        $region82: #{tpu_custom_call.1} parent=55 // pred_check_branch
          %392 = sbr.rel (%p390) target = $region84
        $region83: #{tpu_custom_call.1} parent=55 // pred_region
          %393 = dma.done [#allocation11], 16
        $region84: #{tpu_custom_call.1} parent=55 // pred_fallthru
          _
        %s394 = sand.u32 %s34, 1
        %s395 = scalar_lea.sflag [#allocation3], %s394
        %s396 = sand.u32 %s34, 1
        %s397 = smul.addr %s396, 8
        %s398 = scalar_lea.vmem [#allocation2], %s397
        %p399 = pneg %p47
        %p400 = pneg %p44
        %p401 = pneg %p68
        %p402 = pneg %p65
        %p403 = pneg %p89
        %p404 = pneg %p86
        %p405 = pneg %p110
        %p406 = pneg %p107
        %p407 = pneg %p131
        %p408 = pneg %p128
        %p409 = pneg %p152
        %p410 = pneg %p149
        %p411 = pneg %p173
        %p412 = pneg %p170
        %p413 = pneg %p194
        %p414 = pneg %p191
        %p415 = pneg %p215
        %p416 = pneg %p212
        %p417 = pneg %p241
        %p418 = pneg %p238
        %p419 = scmp.lt.s32.totalorder %s26, 2
        %s420 = scalar_select %p419, %s26, 2
        %s421 = smul.addr %s420, 8
        %s422 = scalar_lea.vmem %s9, %s421
        %p423 = scmp.lt.s32.totalorder %s26, 2
        %s424 = scalar_select %p423, %s26, 2
        %s425 = smul.addr %s424, 8
        %s426 = scalar_lea.vmem %s9, %s425
        %v428 = vld [vmem:[%s365] sm:$0xff]
        %v429 = vpack.c.bf16 %v428, %v428
        %v430 = vld [vmem:[#allocation4] sm:$0xff]
        %v431 = vld [vmem:[#allocation4 + $0x8] sm:$0xff]
        %v432 = vld [vmem:[#allocation4 + $0x10] sm:$0xff]
        %v433 = vld [vmem:[#allocation4 + $0x18] sm:$0xff]
        %v434 = vld [vmem:[#allocation4 + $0x20] sm:$0xff]
        %v435 = vld [vmem:[#allocation4 + $0x28] sm:$0xff]
        %v436 = vld [vmem:[#allocation4 + $0x30] sm:$0xff]
        %v437 = vld [vmem:[#allocation4 + $0x38] sm:$0xff]
        %v438 = vld [vmem:[#allocation4 + $0x40] sm:$0xff]
        %v439 = vld [vmem:[#allocation4 + $0x48] sm:$0xff]
        %v440 = vld [vmem:[#allocation4 + $0x50] sm:$0xff]
        %v441 = vld [vmem:[#allocation4 + $0x58] sm:$0xff]
        %v442 = vld [vmem:[#allocation4 + $0x60] sm:$0xff]
        %v443 = vld [vmem:[#allocation4 + $0x68] sm:$0xff]
        %v444 = vld [vmem:[#allocation4 + $0x70] sm:$0xff]
        %v445 = vld [vmem:[#allocation4 + $0x78] sm:$0xff]
        %v446 = vld [vmem:[#allocation4 + $0x80] sm:$0xff]
        %v447 = vld [vmem:[#allocation4 + $0x88] sm:$0xff]
        %v448 = vld [vmem:[#allocation4 + $0x90] sm:$0xff]
        %v449 = vld [vmem:[#allocation4 + $0x98] sm:$0xff]
        %v450 = vld [vmem:[#allocation4 + $0xa0] sm:$0xff]
        %v451 = vld [vmem:[#allocation4 + $0xa8] sm:$0xff]
        %v452 = vld [vmem:[#allocation4 + $0xb0] sm:$0xff]
        %v453 = vld [vmem:[#allocation4 + $0xb8] sm:$0xff]
        %v454 = vld [vmem:[#allocation4 + $0xc0] sm:$0xff]
        %v455 = vld [vmem:[#allocation4 + $0xc8] sm:$0xff]
        %v456 = vld [vmem:[#allocation4 + $0xd0] sm:$0xff]
        %v457 = vld [vmem:[#allocation4 + $0xd8] sm:$0xff]
        %v458 = vld [vmem:[#allocation4 + $0xe0] sm:$0xff]
        %v459 = vld [vmem:[#allocation4 + $0xe8] sm:$0xff]
        %v460 = vld [vmem:[#allocation4 + $0xf0] sm:$0xff]
        %v461 = vld [vmem:[#allocation4 + $0xf8] sm:$0xff]
        %v462 = vld [vmem:[#allocation6] sm:$0xff]
        %v464 = vlaneseq
        %v465 = vshrl.u32 %v464, 7
        %v466 = vsub.s32 0, %v465
        %v467 = vrot.slane %v462, %v466
        %v468 = vlaneseq
        %v469 = vshrl.u32 %v468, 7
        %v470 = vsub.s32 1, %v469
        %v471 = vrot.slane %v462, %v470
        %v472 = vlaneseq
        %v473 = vshrl.u32 %v472, 7
        %v474 = vsub.s32 2, %v473
        %v475 = vrot.slane %v462, %v474
        %v476 = vlaneseq
        %v477 = vshrl.u32 %v476, 7
        %v478 = vsub.s32 3, %v477
        %v479 = vrot.slane %v462, %v478
        %v480 = vlaneseq
        %v481 = vshrl.u32 %v480, 7
        %v482 = vsub.s32 4, %v481
        %v483 = vrot.slane %v462, %v482
        %v484 = vlaneseq
        %v485 = vshrl.u32 %v484, 7
        %v486 = vsub.s32 5, %v485
        %v487 = vrot.slane %v462, %v486
        %v488 = vlaneseq
        %v489 = vshrl.u32 %v488, 7
        %v490 = vsub.s32 6, %v489
        %v491 = vrot.slane %v462, %v490
        %v492 = vlaneseq
        %v493 = vshrl.u32 %v492, 7
        %v494 = vsub.s32 7, %v493
        %v495 = vrot.slane %v462, %v494
        %v536 = vunpack.c.l.b16 %v430
        %v537 = vunpack.c.h.b16 %v430
        %v538 = vunpack.c.l.b16 %v431
        %v539 = vunpack.c.h.b16 %v431
        %v540 = vunpack.c.l.b16 %v432
        %v541 = vunpack.c.h.b16 %v432
        %v542 = vunpack.c.l.b16 %v433
        %v543 = vunpack.c.h.b16 %v433
        %v544 = vunpack.c.l.b16 %v434
        %v545 = vunpack.c.h.b16 %v434
        %v546 = vunpack.c.l.b16 %v435
        %v547 = vunpack.c.h.b16 %v435
        %v548 = vunpack.c.l.b16 %v436
        %v549 = vunpack.c.h.b16 %v436
        %v550 = vunpack.c.l.b16 %v437
        %v551 = vunpack.c.h.b16 %v437
        %v552 = vunpack.c.l.b16 %v438
        %v553 = vunpack.c.h.b16 %v438
        %v554 = vunpack.c.l.b16 %v439
        %v555 = vunpack.c.h.b16 %v439
        %v556 = vunpack.c.l.b16 %v440
        %v557 = vunpack.c.h.b16 %v440
        %v558 = vunpack.c.l.b16 %v441
        %v559 = vunpack.c.h.b16 %v441
        %v560 = vunpack.c.l.b16 %v442
        %v561 = vunpack.c.h.b16 %v442
        %v562 = vunpack.c.l.b16 %v443
        %v563 = vunpack.c.h.b16 %v443
        %v564 = vunpack.c.l.b16 %v444
        %v565 = vunpack.c.h.b16 %v444
        %v566 = vunpack.c.l.b16 %v445
        %v567 = vunpack.c.h.b16 %v445
        %v568 = vunpack.c.l.b16 %v446
        %v569 = vunpack.c.h.b16 %v446
        %v570 = vunpack.c.l.b16 %v447
        %v571 = vunpack.c.h.b16 %v447
        %v572 = vunpack.c.l.b16 %v448
        %v573 = vunpack.c.h.b16 %v448
        %v574 = vunpack.c.l.b16 %v449
        %v575 = vunpack.c.h.b16 %v449
        %v576 = vunpack.c.l.b16 %v450
        %v577 = vunpack.c.h.b16 %v450
        %v578 = vunpack.c.l.b16 %v451
        %v579 = vunpack.c.h.b16 %v451
        %v580 = vunpack.c.l.b16 %v452
        %v581 = vunpack.c.h.b16 %v452
        %v582 = vunpack.c.l.b16 %v453
        %v583 = vunpack.c.h.b16 %v453
        %v584 = vunpack.c.l.b16 %v454
        %v585 = vunpack.c.h.b16 %v454
        %v586 = vunpack.c.l.b16 %v455
        %v587 = vunpack.c.h.b16 %v455
        %v588 = vunpack.c.l.b16 %v456
        %v589 = vunpack.c.h.b16 %v456
        %v590 = vunpack.c.l.b16 %v457
        %v591 = vunpack.c.h.b16 %v457
        %v592 = vunpack.c.l.b16 %v458
        %v593 = vunpack.c.h.b16 %v458
        %v594 = vunpack.c.l.b16 %v459
        %v595 = vunpack.c.h.b16 %v459
        %v596 = vunpack.c.l.b16 %v460
        %v597 = vunpack.c.h.b16 %v460
        %v598 = vunpack.c.l.b16 %v461
        %v599 = vunpack.c.h.b16 %v461
        %v600 = vpack.c.b16 %v544, %v536
        %v601 = vpack.c.b16 %v545, %v537
        %v602 = vpack.c.b16 %v546, %v538
        %v603 = vpack.c.b16 %v547, %v539
        %v604 = vpack.c.b16 %v548, %v540
        %v605 = vpack.c.b16 %v549, %v541
        %v606 = vpack.c.b16 %v550, %v542
        %v607 = vpack.c.b16 %v551, %v543
        %v608 = vpack.c.b16 %v560, %v552
        %v609 = vpack.c.b16 %v561, %v553
        %v610 = vpack.c.b16 %v562, %v554
        %v611 = vpack.c.b16 %v563, %v555
        %v612 = vpack.c.b16 %v564, %v556
        %v613 = vpack.c.b16 %v565, %v557
        %v614 = vpack.c.b16 %v566, %v558
        %v615 = vpack.c.b16 %v567, %v559
        %v616 = vpack.c.b16 %v576, %v568
        %v617 = vpack.c.b16 %v577, %v569
        %v618 = vpack.c.b16 %v578, %v570
        %v619 = vpack.c.b16 %v579, %v571
        %v620 = vpack.c.b16 %v580, %v572
        %v621 = vpack.c.b16 %v581, %v573
        %v622 = vpack.c.b16 %v582, %v574
        %v623 = vpack.c.b16 %v583, %v575
        %v624 = vpack.c.b16 %v592, %v584
        %v625 = vpack.c.b16 %v593, %v585
        %v626 = vpack.c.b16 %v594, %v586
        %v627 = vpack.c.b16 %v595, %v587
        %v628 = vpack.c.b16 %v596, %v588
        %v629 = vpack.c.b16 %v597, %v589
        %v630 = vpack.c.b16 %v598, %v590
        %v631 = vpack.c.b16 %v599, %v591
        %vm664 = vcmask 523264
        %v666 = vsel %vm664, %v429, 0
        %668 = vmatprep.subr.bf16.mxu0 %v601
        %669 = vmatpush1.bf16.msra.mxu0 %v600
        %670 = vmatprep.subr.bf16.mxu0 %v609
        %671 = vmatpush1.bf16.msra.mxu0 %v608
        %672 = vmatprep.subr.bf16.mxu0 %v617
        %673 = vmatpush1.bf16.msra.mxu0 %v616
        %674 = vmatprep.subr.bf16.mxu0 %v625
        %675 = vmatpush1.bf16.msra.mxu0 %v624
        %676 = vmatprep.subr.bf16.mxu0 0
        %677 = vmatpush1.bf16.msra.mxu0 0
        %678 = vmatprep.subr.bf16.mxu0 0
        %679 = vmatpush1.bf16.msra.mxu0 0
        %680 = vmatprep.subr.bf16.mxu0 0
        %681 = vmatpush1.bf16.msra.mxu0 0
        %682 = vmatprep.subr.bf16.mxu0 0
        %683 = vmatpush1.bf16.msra.mxu0 0
        %684 = vmatprep.subr.bf16.mxu0 0
        %685 = vmatpush1.bf16.msra.mxu0 0
        %686 = vmatprep.subr.bf16.mxu0 0
        %687 = vmatpush1.bf16.msra.mxu0 0
        %688 = vmatprep.subr.bf16.mxu0 0
        %689 = vmatpush1.bf16.msra.mxu0 0
        %690 = vmatprep.subr.bf16.mxu0 0
        %691 = vmatpush1.bf16.msra.mxu0 0
        %692 = vmatprep.subr.bf16.mxu0 0
        %693 = vmatpush1.bf16.msra.mxu0 0
        %694 = vmatprep.subr.bf16.mxu0 0
        %695 = vmatpush1.bf16.msra.mxu0 0
        %696 = vmatprep.subr.bf16.mxu0 0
        %697 = vmatpush1.bf16.msra.mxu0 0
        %698 = vmatprep.subr.bf16.mxu0 0
        %699 = vmatpush1.bf16.msra.mxu0 0
        %700 = vmatprep.mubr.bf16.mxu0 0
        %701 = vmatmul.mubr.bf16.gmra.mrb[0].mxu0 %v666
        %v702 = vpop.f32.mrb[0].mxu0
        %v703 = vadd.f32 %v467, %v702
        %v704 = vpop.f32.mrb[0].mxu0
        %v705 = vadd.f32 %v471, %v704
        %v706 = vpop.f32.mrb[0].mxu0
        %v707 = vpop.f32.mrb[0].mxu0
        %708 = vdwg.mxu0
        %709 = vmatprep.subr.bf16.mxu0 %v603
        %710 = vmatpush1.bf16.msra.mxu0 %v602
        %711 = vmatprep.subr.bf16.mxu0 %v611
        %712 = vmatpush1.bf16.msra.mxu0 %v610
        %713 = vmatprep.subr.bf16.mxu0 %v619
        %714 = vmatpush1.bf16.msra.mxu0 %v618
        %715 = vmatprep.subr.bf16.mxu0 %v627
        %716 = vmatpush1.bf16.msra.mxu0 %v626
        %717 = vmatprep.subr.bf16.mxu0 0
        %718 = vmatpush1.bf16.msra.mxu0 0
        %719 = vmatprep.subr.bf16.mxu0 0
        %720 = vmatpush1.bf16.msra.mxu0 0
        %721 = vmatprep.subr.bf16.mxu0 0
        %722 = vmatpush1.bf16.msra.mxu0 0
        %723 = vmatprep.subr.bf16.mxu0 0
        %724 = vmatpush1.bf16.msra.mxu0 0
        %725 = vmatprep.subr.bf16.mxu0 0
        %726 = vmatpush1.bf16.msra.mxu0 0
        %727 = vmatprep.subr.bf16.mxu0 0
        %728 = vmatpush1.bf16.msra.mxu0 0
        %729 = vmatprep.subr.bf16.mxu0 0
        %730 = vmatpush1.bf16.msra.mxu0 0
        %731 = vmatprep.subr.bf16.mxu0 0
        %732 = vmatpush1.bf16.msra.mxu0 0
        %733 = vmatprep.subr.bf16.mxu0 0
        %734 = vmatpush1.bf16.msra.mxu0 0
        %735 = vmatprep.subr.bf16.mxu0 0
        %736 = vmatpush1.bf16.msra.mxu0 0
        %737 = vmatprep.subr.bf16.mxu0 0
        %738 = vmatpush1.bf16.msra.mxu0 0
        %739 = vmatprep.subr.bf16.mxu0 0
        %740 = vmatpush1.bf16.msra.mxu0 0
        %741 = vmatprep.mubr.bf16.mxu0 0
        %742 = vmatmul.mubr.bf16.gmra.mrb[0].mxu0 %v666
        %v743 = vpop.f32.mrb[0].mxu0
        %v744 = vadd.f32 %v475, %v743
        %v745 = vpop.f32.mrb[0].mxu0
        %v746 = vadd.f32 %v479, %v745
        %v747 = vpop.f32.mrb[0].mxu0
        %v748 = vpop.f32.mrb[0].mxu0
        %749 = vdwg.mxu0
        %750 = vmatprep.subr.bf16.mxu0 %v605
        %751 = vmatpush1.bf16.msra.mxu0 %v604
        %752 = vmatprep.subr.bf16.mxu0 %v613
        %753 = vmatpush1.bf16.msra.mxu0 %v612
        %754 = vmatprep.subr.bf16.mxu0 %v621
        %755 = vmatpush1.bf16.msra.mxu0 %v620
        %756 = vmatprep.subr.bf16.mxu0 %v629
        %757 = vmatpush1.bf16.msra.mxu0 %v628
        %758 = vmatprep.subr.bf16.mxu0 0
        %759 = vmatpush1.bf16.msra.mxu0 0
        %760 = vmatprep.subr.bf16.mxu0 0
        %761 = vmatpush1.bf16.msra.mxu0 0
        %762 = vmatprep.subr.bf16.mxu0 0
        %763 = vmatpush1.bf16.msra.mxu0 0
        %764 = vmatprep.subr.bf16.mxu0 0
        %765 = vmatpush1.bf16.msra.mxu0 0
        %766 = vmatprep.subr.bf16.mxu0 0
        %767 = vmatpush1.bf16.msra.mxu0 0
        %768 = vmatprep.subr.bf16.mxu0 0
        %769 = vmatpush1.bf16.msra.mxu0 0
        %770 = vmatprep.subr.bf16.mxu0 0
        %771 = vmatpush1.bf16.msra.mxu0 0
        %772 = vmatprep.subr.bf16.mxu0 0
        %773 = vmatpush1.bf16.msra.mxu0 0
        %774 = vmatprep.subr.bf16.mxu0 0
        %775 = vmatpush1.bf16.msra.mxu0 0
        %776 = vmatprep.subr.bf16.mxu0 0
        %777 = vmatpush1.bf16.msra.mxu0 0
        %778 = vmatprep.subr.bf16.mxu0 0
        %779 = vmatpush1.bf16.msra.mxu0 0
        %780 = vmatprep.subr.bf16.mxu0 0
        %781 = vmatpush1.bf16.msra.mxu0 0
        %782 = vmatprep.mubr.bf16.mxu0 0
        %783 = vmatmul.mubr.bf16.gmra.mrb[0].mxu0 %v666
        %v784 = vpop.f32.mrb[0].mxu0
        %v785 = vadd.f32 %v483, %v784
        %v786 = vpop.f32.mrb[0].mxu0
        %v787 = vadd.f32 %v487, %v786
        %v788 = vpop.f32.mrb[0].mxu0
        %v789 = vpop.f32.mrb[0].mxu0
        %790 = vdwg.mxu0
        %791 = vmatprep.subr.bf16.mxu0 %v607
        %792 = vmatpush1.bf16.msra.mxu0 %v606
        %793 = vmatprep.subr.bf16.mxu0 %v615
        %794 = vmatpush1.bf16.msra.mxu0 %v614
        %795 = vmatprep.subr.bf16.mxu0 %v623
        %796 = vmatpush1.bf16.msra.mxu0 %v622
        %797 = vmatprep.subr.bf16.mxu0 %v631
        %798 = vmatpush1.bf16.msra.mxu0 %v630
        %799 = vmatprep.subr.bf16.mxu0 0
        %800 = vmatpush1.bf16.msra.mxu0 0
        %801 = vmatprep.subr.bf16.mxu0 0
        %802 = vmatpush1.bf16.msra.mxu0 0
        %803 = vmatprep.subr.bf16.mxu0 0
        %804 = vmatpush1.bf16.msra.mxu0 0
        %805 = vmatprep.subr.bf16.mxu0 0
        %806 = vmatpush1.bf16.msra.mxu0 0
        %807 = vmatprep.subr.bf16.mxu0 0
        %808 = vmatpush1.bf16.msra.mxu0 0
        %809 = vmatprep.subr.bf16.mxu0 0
        %810 = vmatpush1.bf16.msra.mxu0 0
        %811 = vmatprep.subr.bf16.mxu0 0
        %812 = vmatpush1.bf16.msra.mxu0 0
        %813 = vmatprep.subr.bf16.mxu0 0
        %814 = vmatpush1.bf16.msra.mxu0 0
        %815 = vmatprep.subr.bf16.mxu0 0
        %816 = vmatpush1.bf16.msra.mxu0 0
        %817 = vmatprep.subr.bf16.mxu0 0
        %818 = vmatpush1.bf16.msra.mxu0 0
        %819 = vmatprep.subr.bf16.mxu0 0
        %820 = vmatpush1.bf16.msra.mxu0 0
        %821 = vmatprep.subr.bf16.mxu0 0
        %822 = vmatpush1.bf16.msra.mxu0 0
        %823 = vmatprep.mubr.bf16.mxu0 0
        %824 = vmatmul.mubr.bf16.gmra.mrb[0].mxu0 %v666
        %v825 = vpop.f32.mrb[0].mxu0
        %v826 = vadd.f32 %v491, %v825
        %v827 = vpop.f32.mrb[0].mxu0
        %v828 = vadd.f32 %v495, %v827
        %v829 = vpop.f32.mrb[0].mxu0
        %v830 = vpop.f32.mrb[0].mxu0
        %831 = vdwg.mxu0
        %v832 = vmax.f32 %v703, 0.0
        %v833 = vmax.f32 %v705, 0.0
        %v834 = vmax.f32 %v744, 0.0
        %v835 = vmax.f32 %v746, 0.0
        %v836 = vmax.f32 %v785, 0.0
        %v837 = vmax.f32 %v787, 0.0
        %v838 = vmax.f32 %v826, 0.0
        %v839 = vmax.f32 %v828, 0.0
        %v840 = vpack.c.bf16 %v832, %v832
        %v841 = vpack.c.bf16 %v833, %v833
        %v842 = vpack.c.bf16 %v834, %v834
        %v843 = vpack.c.bf16 %v835, %v835
        %v844 = vpack.c.bf16 %v836, %v836
        %v845 = vpack.c.bf16 %v837, %v837
        %v846 = vpack.c.bf16 %v838, %v838
        %v847 = vpack.c.bf16 %v839, %v839
        %v848 = vld [vmem:[#allocation7] sm:$0xff]
        %v849 = vld [vmem:[#allocation7 + $0x8] sm:$0xff]
        %v850 = vld [vmem:[#allocation7 + $0x10] sm:$0xff]
        %v851 = vld [vmem:[#allocation7 + $0x18] sm:$0xff]
        %v852 = vld [vmem:[#allocation7 + $0x20] sm:$0xff]
        %v853 = vld [vmem:[#allocation7 + $0x28] sm:$0xff]
        %v854 = vld [vmem:[#allocation7 + $0x30] sm:$0xff]
        %v855 = vld [vmem:[#allocation7 + $0x38] sm:$0xff]
        %v856 = vld [vmem:[#allocation7 + $0x40] sm:$0xff]
        %v857 = vld [vmem:[#allocation7 + $0x48] sm:$0xff]
        %v858 = vld [vmem:[#allocation7 + $0x50] sm:$0xff]
        %v859 = vld [vmem:[#allocation7 + $0x58] sm:$0xff]
        %v860 = vld [vmem:[#allocation7 + $0x60] sm:$0xff]
        %v861 = vld [vmem:[#allocation7 + $0x68] sm:$0xff]
        %v862 = vld [vmem:[#allocation7 + $0x70] sm:$0xff]
        %v863 = vld [vmem:[#allocation7 + $0x78] sm:$0xff]
        %v864 = vld [vmem:[#allocation7 + $0x80] sm:$0xff]
        %v865 = vld [vmem:[#allocation7 + $0x88] sm:$0xff]
        %v866 = vld [vmem:[#allocation7 + $0x90] sm:$0xff]
        %v867 = vld [vmem:[#allocation7 + $0x98] sm:$0xff]
        %v868 = vld [vmem:[#allocation7 + $0xa0] sm:$0xff]
        %v869 = vld [vmem:[#allocation7 + $0xa8] sm:$0xff]
        %v870 = vld [vmem:[#allocation7 + $0xb0] sm:$0xff]
        %v871 = vld [vmem:[#allocation7 + $0xb8] sm:$0xff]
        %v872 = vld [vmem:[#allocation7 + $0xc0] sm:$0xff]
        %v873 = vld [vmem:[#allocation7 + $0xc8] sm:$0xff]
        %v874 = vld [vmem:[#allocation7 + $0xd0] sm:$0xff]
        %v875 = vld [vmem:[#allocation7 + $0xd8] sm:$0xff]
        %v876 = vld [vmem:[#allocation7 + $0xe0] sm:$0xff]
        %v877 = vld [vmem:[#allocation7 + $0xe8] sm:$0xff]
        %v878 = vld [vmem:[#allocation7 + $0xf0] sm:$0xff]
        %v879 = vld [vmem:[#allocation7 + $0xf8] sm:$0xff]
        %v880 = vld [vmem:[#allocation7 + $0x100] sm:$0xff]
        %v881 = vld [vmem:[#allocation7 + $0x108] sm:$0xff]
        %v882 = vld [vmem:[#allocation7 + $0x110] sm:$0xff]
        %v883 = vld [vmem:[#allocation7 + $0x118] sm:$0xff]
        %v884 = vld [vmem:[#allocation7 + $0x120] sm:$0xff]
        %v885 = vld [vmem:[#allocation7 + $0x128] sm:$0xff]
        %v886 = vld [vmem:[#allocation7 + $0x130] sm:$0xff]
        %v887 = vld [vmem:[#allocation7 + $0x138] sm:$0xff]
        %v888 = vld [vmem:[#allocation7 + $0x140] sm:$0xff]
        %v889 = vld [vmem:[#allocation7 + $0x148] sm:$0xff]
        %v890 = vld [vmem:[#allocation7 + $0x150] sm:$0xff]
        %v891 = vld [vmem:[#allocation7 + $0x158] sm:$0xff]
        %v892 = vld [vmem:[#allocation7 + $0x160] sm:$0xff]
        %v893 = vld [vmem:[#allocation7 + $0x168] sm:$0xff]
        %v894 = vld [vmem:[#allocation7 + $0x170] sm:$0xff]
        %v895 = vld [vmem:[#allocation7 + $0x178] sm:$0xff]
        %v896 = vld [vmem:[#allocation7 + $0x180] sm:$0xff]
        %v897 = vld [vmem:[#allocation7 + $0x188] sm:$0xff]
        %v898 = vld [vmem:[#allocation7 + $0x190] sm:$0xff]
        %v899 = vld [vmem:[#allocation7 + $0x198] sm:$0xff]
        %v900 = vld [vmem:[#allocation7 + $0x1a0] sm:$0xff]
        %v901 = vld [vmem:[#allocation7 + $0x1a8] sm:$0xff]
        %v902 = vld [vmem:[#allocation7 + $0x1b0] sm:$0xff]
        %v903 = vld [vmem:[#allocation7 + $0x1b8] sm:$0xff]
        %v904 = vld [vmem:[#allocation7 + $0x1c0] sm:$0xff]
        %v905 = vld [vmem:[#allocation7 + $0x1c8] sm:$0xff]
        %v906 = vld [vmem:[#allocation7 + $0x1d0] sm:$0xff]
        %v907 = vld [vmem:[#allocation7 + $0x1d8] sm:$0xff]
        %v908 = vld [vmem:[#allocation7 + $0x1e0] sm:$0xff]
        %v909 = vld [vmem:[#allocation7 + $0x1e8] sm:$0xff]
        %v910 = vld [vmem:[#allocation7 + $0x1f0] sm:$0xff]
        %v911 = vld [vmem:[#allocation7 + $0x1f8] sm:$0xff]
        %v912 = vld [vmem:[#allocation7 + $0x200] sm:$0xff]
        %v913 = vld [vmem:[#allocation7 + $0x208] sm:$0xff]
        %v914 = vld [vmem:[#allocation7 + $0x210] sm:$0xff]
        %v915 = vld [vmem:[#allocation7 + $0x218] sm:$0xff]
        %v916 = vld [vmem:[#allocation7 + $0x220] sm:$0xff]
        %v917 = vld [vmem:[#allocation7 + $0x228] sm:$0xff]
        %v918 = vld [vmem:[#allocation7 + $0x230] sm:$0xff]
        %v919 = vld [vmem:[#allocation7 + $0x238] sm:$0xff]
        %v920 = vld [vmem:[#allocation7 + $0x240] sm:$0xff]
        %v921 = vld [vmem:[#allocation7 + $0x248] sm:$0xff]
        %v922 = vld [vmem:[#allocation7 + $0x250] sm:$0xff]
        %v923 = vld [vmem:[#allocation7 + $0x258] sm:$0xff]
        %v924 = vld [vmem:[#allocation7 + $0x260] sm:$0xff]
        %v925 = vld [vmem:[#allocation7 + $0x268] sm:$0xff]
        %v926 = vld [vmem:[#allocation7 + $0x270] sm:$0xff]
        %v927 = vld [vmem:[#allocation7 + $0x278] sm:$0xff]
        %v928 = vld [vmem:[#allocation7 + $0x280] sm:$0xff]
        %v929 = vld [vmem:[#allocation7 + $0x288] sm:$0xff]
        %v930 = vld [vmem:[#allocation7 + $0x290] sm:$0xff]
        %v931 = vld [vmem:[#allocation7 + $0x298] sm:$0xff]
        %v932 = vld [vmem:[#allocation7 + $0x2a0] sm:$0xff]
        %v933 = vld [vmem:[#allocation7 + $0x2a8] sm:$0xff]
        %v934 = vld [vmem:[#allocation7 + $0x2b0] sm:$0xff]
        %v935 = vld [vmem:[#allocation7 + $0x2b8] sm:$0xff]
        %v936 = vld [vmem:[#allocation7 + $0x2c0] sm:$0xff]
        %v937 = vld [vmem:[#allocation7 + $0x2c8] sm:$0xff]
        %v938 = vld [vmem:[#allocation7 + $0x2d0] sm:$0xff]
        %v939 = vld [vmem:[#allocation7 + $0x2d8] sm:$0xff]
        %v940 = vld [vmem:[#allocation7 + $0x2e0] sm:$0xff]
        %v941 = vld [vmem:[#allocation7 + $0x2e8] sm:$0xff]
        %v942 = vld [vmem:[#allocation7 + $0x2f0] sm:$0xff]
        %v943 = vld [vmem:[#allocation7 + $0x2f8] sm:$0xff]
        %v944 = vld [vmem:[#allocation7 + $0x300] sm:$0xff]
        %v945 = vld [vmem:[#allocation7 + $0x308] sm:$0xff]
        %v946 = vld [vmem:[#allocation7 + $0x310] sm:$0xff]
        %v947 = vld [vmem:[#allocation7 + $0x318] sm:$0xff]
        %v948 = vld [vmem:[#allocation7 + $0x320] sm:$0xff]
        %v949 = vld [vmem:[#allocation7 + $0x328] sm:$0xff]
        %v950 = vld [vmem:[#allocation7 + $0x330] sm:$0xff]
        %v951 = vld [vmem:[#allocation7 + $0x338] sm:$0xff]
        %v952 = vld [vmem:[#allocation7 + $0x340] sm:$0xff]
        %v953 = vld [vmem:[#allocation7 + $0x348] sm:$0xff]
        %v954 = vld [vmem:[#allocation7 + $0x350] sm:$0xff]
        %v955 = vld [vmem:[#allocation7 + $0x358] sm:$0xff]
        %v956 = vld [vmem:[#allocation7 + $0x360] sm:$0xff]
        %v957 = vld [vmem:[#allocation7 + $0x368] sm:$0xff]
        %v958 = vld [vmem:[#allocation7 + $0x370] sm:$0xff]
        %v959 = vld [vmem:[#allocation7 + $0x378] sm:$0xff]
        %v960 = vld [vmem:[#allocation7 + $0x380] sm:$0xff]
        %v961 = vld [vmem:[#allocation7 + $0x388] sm:$0xff]
        %v962 = vld [vmem:[#allocation7 + $0x390] sm:$0xff]
        %v963 = vld [vmem:[#allocation7 + $0x398] sm:$0xff]
        %v964 = vld [vmem:[#allocation7 + $0x3a0] sm:$0xff]
        %v965 = vld [vmem:[#allocation7 + $0x3a8] sm:$0xff]
        %v966 = vld [vmem:[#allocation7 + $0x3b0] sm:$0xff]
        %v967 = vld [vmem:[#allocation7 + $0x3b8] sm:$0xff]
        %v968 = vld [vmem:[#allocation7 + $0x3c0] sm:$0xff]
        %v969 = vld [vmem:[#allocation7 + $0x3c8] sm:$0xff]
        %v970 = vld [vmem:[#allocation7 + $0x3d0] sm:$0xff]
        %v971 = vld [vmem:[#allocation7 + $0x3d8] sm:$0xff]
        %v972 = vld [vmem:[#allocation7 + $0x3e0] sm:$0xff]
        %v973 = vld [vmem:[#allocation7 + $0x3e8] sm:$0xff]
        %v974 = vld [vmem:[#allocation7 + $0x3f0] sm:$0xff]
        %v975 = vld [vmem:[#allocation7 + $0x3f8] sm:$0xff]
        %v976 = vld [vmem:[#allocation7 + $0x400] sm:$0xff]
        %v977 = vld [vmem:[#allocation7 + $0x408] sm:$0xff]
        %v978 = vld [vmem:[#allocation7 + $0x410] sm:$0xff]
        %v979 = vld [vmem:[#allocation7 + $0x418] sm:$0xff]
        %v980 = vld [vmem:[#allocation7 + $0x420] sm:$0xff]
        %v981 = vld [vmem:[#allocation7 + $0x428] sm:$0xff]
        %v982 = vld [vmem:[#allocation7 + $0x430] sm:$0xff]
        %v983 = vld [vmem:[#allocation7 + $0x438] sm:$0xff]
        %v984 = vld [vmem:[#allocation7 + $0x440] sm:$0xff]
        %v985 = vld [vmem:[#allocation7 + $0x448] sm:$0xff]
        %v986 = vld [vmem:[#allocation7 + $0x450] sm:$0xff]
        %v987 = vld [vmem:[#allocation7 + $0x458] sm:$0xff]
        %v988 = vld [vmem:[#allocation7 + $0x460] sm:$0xff]
        %v989 = vld [vmem:[#allocation7 + $0x468] sm:$0xff]
        %v990 = vld [vmem:[#allocation7 + $0x470] sm:$0xff]
        %v991 = vld [vmem:[#allocation7 + $0x478] sm:$0xff]
        %v992 = vld [vmem:[#allocation7 + $0x480] sm:$0xff]
        %v993 = vld [vmem:[#allocation7 + $0x488] sm:$0xff]
        %v994 = vld [vmem:[#allocation7 + $0x490] sm:$0xff]
        %v995 = vld [vmem:[#allocation7 + $0x498] sm:$0xff]
        %v996 = vld [vmem:[#allocation7 + $0x4a0] sm:$0xff]
        %v997 = vld [vmem:[#allocation7 + $0x4a8] sm:$0xff]
        %v998 = vld [vmem:[#allocation7 + $0x4b0] sm:$0xff]
        %v999 = vld [vmem:[#allocation7 + $0x4b8] sm:$0xff]
        %v1000 = vld [vmem:[#allocation7 + $0x4c0] sm:$0xff]
        %v1001 = vld [vmem:[#allocation7 + $0x4c8] sm:$0xff]
        %v1002 = vld [vmem:[#allocation7 + $0x4d0] sm:$0xff]
        %v1003 = vld [vmem:[#allocation7 + $0x4d8] sm:$0xff]
        %v1004 = vld [vmem:[#allocation7 + $0x4e0] sm:$0xff]
        %v1005 = vld [vmem:[#allocation7 + $0x4e8] sm:$0xff]
        %v1006 = vld [vmem:[#allocation7 + $0x4f0] sm:$0xff]
        %v1007 = vld [vmem:[#allocation7 + $0x4f8] sm:$0xff]
        %v1008 = vld [vmem:[#allocation7 + $0x500] sm:$0xff]
        %v1009 = vld [vmem:[#allocation7 + $0x508] sm:$0xff]
        %v1010 = vld [vmem:[#allocation7 + $0x510] sm:$0xff]
        %v1011 = vld [vmem:[#allocation7 + $0x518] sm:$0xff]
        %v1012 = vld [vmem:[#allocation7 + $0x520] sm:$0xff]
        %v1013 = vld [vmem:[#allocation7 + $0x528] sm:$0xff]
        %v1014 = vld [vmem:[#allocation7 + $0x530] sm:$0xff]
        %v1015 = vld [vmem:[#allocation7 + $0x538] sm:$0xff]
        %v1016 = vld [vmem:[#allocation7 + $0x540] sm:$0xff]
        %v1017 = vld [vmem:[#allocation7 + $0x548] sm:$0xff]
        %v1018 = vld [vmem:[#allocation7 + $0x550] sm:$0xff]
        %v1019 = vld [vmem:[#allocation7 + $0x558] sm:$0xff]
        %v1020 = vld [vmem:[#allocation7 + $0x560] sm:$0xff]
        %v1021 = vld [vmem:[#allocation7 + $0x568] sm:$0xff]
        %v1022 = vld [vmem:[#allocation7 + $0x570] sm:$0xff]
        %v1023 = vld [vmem:[#allocation7 + $0x578] sm:$0xff]
        %v1024 = vld [vmem:[#allocation7 + $0x580] sm:$0xff]
        %v1025 = vld [vmem:[#allocation7 + $0x588] sm:$0xff]
        %v1026 = vld [vmem:[#allocation7 + $0x590] sm:$0xff]
        %v1027 = vld [vmem:[#allocation7 + $0x598] sm:$0xff]
        %v1028 = vld [vmem:[#allocation7 + $0x5a0] sm:$0xff]
        %v1029 = vld [vmem:[#allocation7 + $0x5a8] sm:$0xff]
        %v1030 = vld [vmem:[#allocation7 + $0x5b0] sm:$0xff]
        %v1031 = vld [vmem:[#allocation7 + $0x5b8] sm:$0xff]
        %v1032 = vld [vmem:[#allocation7 + $0x5c0] sm:$0xff]
        %v1033 = vld [vmem:[#allocation7 + $0x5c8] sm:$0xff]
        %v1034 = vld [vmem:[#allocation7 + $0x5d0] sm:$0xff]
        %v1035 = vld [vmem:[#allocation7 + $0x5d8] sm:$0xff]
        %v1036 = vld [vmem:[#allocation7 + $0x5e0] sm:$0xff]
        %v1037 = vld [vmem:[#allocation7 + $0x5e8] sm:$0xff]
        %v1038 = vld [vmem:[#allocation7 + $0x5f0] sm:$0xff]
        %v1039 = vld [vmem:[#allocation7 + $0x5f8] sm:$0xff]
        %v1040 = vld [vmem:[#allocation7 + $0x600] sm:$0xff]
        %v1041 = vld [vmem:[#allocation7 + $0x608] sm:$0xff]
        %v1042 = vld [vmem:[#allocation7 + $0x610] sm:$0xff]
        %v1043 = vld [vmem:[#allocation7 + $0x618] sm:$0xff]
        %v1044 = vld [vmem:[#allocation7 + $0x620] sm:$0xff]
        %v1045 = vld [vmem:[#allocation7 + $0x628] sm:$0xff]
        %v1046 = vld [vmem:[#allocation7 + $0x630] sm:$0xff]
        %v1047 = vld [vmem:[#allocation7 + $0x638] sm:$0xff]
        %v1048 = vld [vmem:[#allocation7 + $0x640] sm:$0xff]
        %v1049 = vld [vmem:[#allocation7 + $0x648] sm:$0xff]
        %v1050 = vld [vmem:[#allocation7 + $0x650] sm:$0xff]
        %v1051 = vld [vmem:[#allocation7 + $0x658] sm:$0xff]
        %v1052 = vld [vmem:[#allocation7 + $0x660] sm:$0xff]
        %v1053 = vld [vmem:[#allocation7 + $0x668] sm:$0xff]
        %v1054 = vld [vmem:[#allocation7 + $0x670] sm:$0xff]
        %v1055 = vld [vmem:[#allocation7 + $0x678] sm:$0xff]
        %v1056 = vld [vmem:[#allocation7 + $0x680] sm:$0xff]
        %v1057 = vld [vmem:[#allocation7 + $0x688] sm:$0xff]
        %v1058 = vld [vmem:[#allocation7 + $0x690] sm:$0xff]
        %v1059 = vld [vmem:[#allocation7 + $0x698] sm:$0xff]
        %v1060 = vld [vmem:[#allocation7 + $0x6a0] sm:$0xff]
        %v1061 = vld [vmem:[#allocation7 + $0x6a8] sm:$0xff]
        %v1062 = vld [vmem:[#allocation7 + $0x6b0] sm:$0xff]
        %v1063 = vld [vmem:[#allocation7 + $0x6b8] sm:$0xff]
        %v1064 = vld [vmem:[#allocation7 + $0x6c0] sm:$0xff]
        %v1065 = vld [vmem:[#allocation7 + $0x6c8] sm:$0xff]
        %v1066 = vld [vmem:[#allocation7 + $0x6d0] sm:$0xff]
        %v1067 = vld [vmem:[#allocation7 + $0x6d8] sm:$0xff]
        %v1068 = vld [vmem:[#allocation7 + $0x6e0] sm:$0xff]
        %v1069 = vld [vmem:[#allocation7 + $0x6e8] sm:$0xff]
        %v1070 = vld [vmem:[#allocation7 + $0x6f0] sm:$0xff]
        %v1071 = vld [vmem:[#allocation7 + $0x6f8] sm:$0xff]
        %v1072 = vld [vmem:[#allocation7 + $0x700] sm:$0xff]
        %v1073 = vld [vmem:[#allocation7 + $0x708] sm:$0xff]
        %v1074 = vld [vmem:[#allocation7 + $0x710] sm:$0xff]
        %v1075 = vld [vmem:[#allocation7 + $0x718] sm:$0xff]
        %v1076 = vld [vmem:[#allocation7 + $0x720] sm:$0xff]
        %v1077 = vld [vmem:[#allocation7 + $0x728] sm:$0xff]
        %v1078 = vld [vmem:[#allocation7 + $0x730] sm:$0xff]
        %v1079 = vld [vmem:[#allocation7 + $0x738] sm:$0xff]
        %v1080 = vld [vmem:[#allocation7 + $0x740] sm:$0xff]
        %v1081 = vld [vmem:[#allocation7 + $0x748] sm:$0xff]
        %v1082 = vld [vmem:[#allocation7 + $0x750] sm:$0xff]
        %v1083 = vld [vmem:[#allocation7 + $0x758] sm:$0xff]
        %v1084 = vld [vmem:[#allocation7 + $0x760] sm:$0xff]
        %v1085 = vld [vmem:[#allocation7 + $0x768] sm:$0xff]
        %v1086 = vld [vmem:[#allocation7 + $0x770] sm:$0xff]
        %v1087 = vld [vmem:[#allocation7 + $0x778] sm:$0xff]
        %v1088 = vld [vmem:[#allocation7 + $0x780] sm:$0xff]
        %v1089 = vld [vmem:[#allocation7 + $0x788] sm:$0xff]
        %v1090 = vld [vmem:[#allocation7 + $0x790] sm:$0xff]
        %v1091 = vld [vmem:[#allocation7 + $0x798] sm:$0xff]
        %v1092 = vld [vmem:[#allocation7 + $0x7a0] sm:$0xff]
        %v1093 = vld [vmem:[#allocation7 + $0x7a8] sm:$0xff]
        %v1094 = vld [vmem:[#allocation7 + $0x7b0] sm:$0xff]
        %v1095 = vld [vmem:[#allocation7 + $0x7b8] sm:$0xff]
        %v1096 = vld [vmem:[#allocation7 + $0x7c0] sm:$0xff]
        %v1097 = vld [vmem:[#allocation7 + $0x7c8] sm:$0xff]
        %v1098 = vld [vmem:[#allocation7 + $0x7d0] sm:$0xff]
        %v1099 = vld [vmem:[#allocation7 + $0x7d8] sm:$0xff]
        %v1100 = vld [vmem:[#allocation7 + $0x7e0] sm:$0xff]
        %v1101 = vld [vmem:[#allocation7 + $0x7e8] sm:$0xff]
        %v1102 = vld [vmem:[#allocation7 + $0x7f0] sm:$0xff]
        %v1103 = vld [vmem:[#allocation7 + $0x7f8] sm:$0xff]
        %v1104 = vld [vmem:[#allocation7 + $0x800] sm:$0xff]
        %v1105 = vld [vmem:[#allocation7 + $0x808] sm:$0xff]
        %v1106 = vld [vmem:[#allocation7 + $0x810] sm:$0xff]
        %v1107 = vld [vmem:[#allocation7 + $0x818] sm:$0xff]
        %v1108 = vld [vmem:[#allocation7 + $0x820] sm:$0xff]
        %v1109 = vld [vmem:[#allocation7 + $0x828] sm:$0xff]
        %v1110 = vld [vmem:[#allocation7 + $0x830] sm:$0xff]
        %v1111 = vld [vmem:[#allocation7 + $0x838] sm:$0xff]
        %v1112 = vld [vmem:[#allocation7 + $0x840] sm:$0xff]
        %v1113 = vld [vmem:[#allocation7 + $0x848] sm:$0xff]
        %v1114 = vld [vmem:[#allocation7 + $0x850] sm:$0xff]
        %v1115 = vld [vmem:[#allocation7 + $0x858] sm:$0xff]
        %v1116 = vld [vmem:[#allocation7 + $0x860] sm:$0xff]
        %v1117 = vld [vmem:[#allocation7 + $0x868] sm:$0xff]
        %v1118 = vld [vmem:[#allocation7 + $0x870] sm:$0xff]
        %v1119 = vld [vmem:[#allocation7 + $0x878] sm:$0xff]
        %v1120 = vld [vmem:[#allocation7 + $0x880] sm:$0xff]
        %v1121 = vld [vmem:[#allocation7 + $0x888] sm:$0xff]
        %v1122 = vld [vmem:[#allocation7 + $0x890] sm:$0xff]
        %v1123 = vld [vmem:[#allocation7 + $0x898] sm:$0xff]
        %v1124 = vld [vmem:[#allocation7 + $0x8a0] sm:$0xff]
        %v1125 = vld [vmem:[#allocation7 + $0x8a8] sm:$0xff]
        %v1126 = vld [vmem:[#allocation7 + $0x8b0] sm:$0xff]
        %v1127 = vld [vmem:[#allocation7 + $0x8b8] sm:$0xff]
        %v1128 = vld [vmem:[#allocation7 + $0x8c0] sm:$0xff]
        %v1129 = vld [vmem:[#allocation7 + $0x8c8] sm:$0xff]
        %v1130 = vld [vmem:[#allocation7 + $0x8d0] sm:$0xff]
        %v1131 = vld [vmem:[#allocation7 + $0x8d8] sm:$0xff]
        %v1132 = vld [vmem:[#allocation7 + $0x8e0] sm:$0xff]
        %v1133 = vld [vmem:[#allocation7 + $0x8e8] sm:$0xff]
        %v1134 = vld [vmem:[#allocation7 + $0x8f0] sm:$0xff]
        %v1135 = vld [vmem:[#allocation7 + $0x8f8] sm:$0xff]
        %v1136 = vld [vmem:[#allocation7 + $0x900] sm:$0xff]
        %v1137 = vld [vmem:[#allocation7 + $0x908] sm:$0xff]
        %v1138 = vld [vmem:[#allocation7 + $0x910] sm:$0xff]
        %v1139 = vld [vmem:[#allocation7 + $0x918] sm:$0xff]
        %v1140 = vld [vmem:[#allocation7 + $0x920] sm:$0xff]
        %v1141 = vld [vmem:[#allocation7 + $0x928] sm:$0xff]
        %v1142 = vld [vmem:[#allocation7 + $0x930] sm:$0xff]
        %v1143 = vld [vmem:[#allocation7 + $0x938] sm:$0xff]
        %v1144 = vld [vmem:[#allocation7 + $0x940] sm:$0xff]
        %v1145 = vld [vmem:[#allocation7 + $0x948] sm:$0xff]
        %v1146 = vld [vmem:[#allocation7 + $0x950] sm:$0xff]
        %v1147 = vld [vmem:[#allocation7 + $0x958] sm:$0xff]
        %v1148 = vld [vmem:[#allocation7 + $0x960] sm:$0xff]
        %v1149 = vld [vmem:[#allocation7 + $0x968] sm:$0xff]
        %v1150 = vld [vmem:[#allocation7 + $0x970] sm:$0xff]
        %v1151 = vld [vmem:[#allocation7 + $0x978] sm:$0xff]
        %v1152 = vld [vmem:[#allocation7 + $0x980] sm:$0xff]
        %v1153 = vld [vmem:[#allocation7 + $0x988] sm:$0xff]
        %v1154 = vld [vmem:[#allocation7 + $0x990] sm:$0xff]
        %v1155 = vld [vmem:[#allocation7 + $0x998] sm:$0xff]
        %v1156 = vld [vmem:[#allocation7 + $0x9a0] sm:$0xff]
        %v1157 = vld [vmem:[#allocation7 + $0x9a8] sm:$0xff]
        %v1158 = vld [vmem:[#allocation7 + $0x9b0] sm:$0xff]
        %v1159 = vld [vmem:[#allocation7 + $0x9b8] sm:$0xff]
        %v1160 = vld [vmem:[#allocation7 + $0x9c0] sm:$0xff]
        %v1161 = vld [vmem:[#allocation7 + $0x9c8] sm:$0xff]
        %v1162 = vld [vmem:[#allocation7 + $0x9d0] sm:$0xff]
        %v1163 = vld [vmem:[#allocation7 + $0x9d8] sm:$0xff]
        %v1164 = vld [vmem:[#allocation7 + $0x9e0] sm:$0xff]
        %v1165 = vld [vmem:[#allocation7 + $0x9e8] sm:$0xff]
        %v1166 = vld [vmem:[#allocation7 + $0x9f0] sm:$0xff]
        %v1167 = vld [vmem:[#allocation7 + $0x9f8] sm:$0xff]
        %v1168 = vld [vmem:[#allocation7 + $0xa00] sm:$0xff]
        %v1169 = vld [vmem:[#allocation7 + $0xa08] sm:$0xff]
        %v1170 = vld [vmem:[#allocation7 + $0xa10] sm:$0xff]
        %v1171 = vld [vmem:[#allocation7 + $0xa18] sm:$0xff]
        %v1172 = vld [vmem:[#allocation7 + $0xa20] sm:$0xff]
        %v1173 = vld [vmem:[#allocation7 + $0xa28] sm:$0xff]
        %v1174 = vld [vmem:[#allocation7 + $0xa30] sm:$0xff]
        %v1175 = vld [vmem:[#allocation7 + $0xa38] sm:$0xff]
        %v1176 = vld [vmem:[#allocation7 + $0xa40] sm:$0xff]
        %v1177 = vld [vmem:[#allocation7 + $0xa48] sm:$0xff]
        %v1178 = vld [vmem:[#allocation7 + $0xa50] sm:$0xff]
        %v1179 = vld [vmem:[#allocation7 + $0xa58] sm:$0xff]
        %v1180 = vld [vmem:[#allocation7 + $0xa60] sm:$0xff]
        %v1181 = vld [vmem:[#allocation7 + $0xa68] sm:$0xff]
        %v1182 = vld [vmem:[#allocation7 + $0xa70] sm:$0xff]
        %v1183 = vld [vmem:[#allocation7 + $0xa78] sm:$0xff]
        %v1184 = vld [vmem:[#allocation7 + $0xa80] sm:$0xff]
        %v1185 = vld [vmem:[#allocation7 + $0xa88] sm:$0xff]
        %v1186 = vld [vmem:[#allocation7 + $0xa90] sm:$0xff]
        %v1187 = vld [vmem:[#allocation7 + $0xa98] sm:$0xff]
        %v1188 = vld [vmem:[#allocation7 + $0xaa0] sm:$0xff]
        %v1189 = vld [vmem:[#allocation7 + $0xaa8] sm:$0xff]
        %v1190 = vld [vmem:[#allocation7 + $0xab0] sm:$0xff]
        %v1191 = vld [vmem:[#allocation7 + $0xab8] sm:$0xff]
        %v1192 = vld [vmem:[#allocation7 + $0xac0] sm:$0xff]
        %v1193 = vld [vmem:[#allocation7 + $0xac8] sm:$0xff]
        %v1194 = vld [vmem:[#allocation7 + $0xad0] sm:$0xff]
        %v1195 = vld [vmem:[#allocation7 + $0xad8] sm:$0xff]
        %v1196 = vld [vmem:[#allocation7 + $0xae0] sm:$0xff]
        %v1197 = vld [vmem:[#allocation7 + $0xae8] sm:$0xff]
        %v1198 = vld [vmem:[#allocation7 + $0xaf0] sm:$0xff]
        %v1199 = vld [vmem:[#allocation7 + $0xaf8] sm:$0xff]
        %v1200 = vld [vmem:[#allocation7 + $0xb00] sm:$0xff]
        %v1201 = vld [vmem:[#allocation7 + $0xb08] sm:$0xff]
        %v1202 = vld [vmem:[#allocation7 + $0xb10] sm:$0xff]
        %v1203 = vld [vmem:[#allocation7 + $0xb18] sm:$0xff]
        %v1204 = vld [vmem:[#allocation7 + $0xb20] sm:$0xff]
        %v1205 = vld [vmem:[#allocation7 + $0xb28] sm:$0xff]
        %v1206 = vld [vmem:[#allocation7 + $0xb30] sm:$0xff]
        %v1207 = vld [vmem:[#allocation7 + $0xb38] sm:$0xff]
        %v1208 = vld [vmem:[#allocation7 + $0xb40] sm:$0xff]
        %v1209 = vld [vmem:[#allocation7 + $0xb48] sm:$0xff]
        %v1210 = vld [vmem:[#allocation7 + $0xb50] sm:$0xff]
        %v1211 = vld [vmem:[#allocation7 + $0xb58] sm:$0xff]
        %v1212 = vld [vmem:[#allocation7 + $0xb60] sm:$0xff]
        %v1213 = vld [vmem:[#allocation7 + $0xb68] sm:$0xff]
        %v1214 = vld [vmem:[#allocation7 + $0xb70] sm:$0xff]
        %v1215 = vld [vmem:[#allocation7 + $0xb78] sm:$0xff]
        %v1216 = vld [vmem:[#allocation7 + $0xb80] sm:$0xff]
        %v1217 = vld [vmem:[#allocation7 + $0xb88] sm:$0xff]
        %v1218 = vld [vmem:[#allocation7 + $0xb90] sm:$0xff]
        %v1219 = vld [vmem:[#allocation7 + $0xb98] sm:$0xff]
        %v1220 = vld [vmem:[#allocation7 + $0xba0] sm:$0xff]
        %v1221 = vld [vmem:[#allocation7 + $0xba8] sm:$0xff]
        %v1222 = vld [vmem:[#allocation7 + $0xbb0] sm:$0xff]
        %v1223 = vld [vmem:[#allocation7 + $0xbb8] sm:$0xff]
        %v1224 = vld [vmem:[#allocation7 + $0xbc0] sm:$0xff]
        %v1225 = vld [vmem:[#allocation7 + $0xbc8] sm:$0xff]
        %v1226 = vld [vmem:[#allocation7 + $0xbd0] sm:$0xff]
        %v1227 = vld [vmem:[#allocation7 + $0xbd8] sm:$0xff]
        %v1228 = vld [vmem:[#allocation7 + $0xbe0] sm:$0xff]
        %v1229 = vld [vmem:[#allocation7 + $0xbe8] sm:$0xff]
        %v1230 = vld [vmem:[#allocation7 + $0xbf0] sm:$0xff]
        %v1231 = vld [vmem:[#allocation7 + $0xbf8] sm:$0xff]
        %v1232 = vld [vmem:[#allocation7 + $0xc00] sm:$0xff]
        %v1233 = vld [vmem:[#allocation7 + $0xc08] sm:$0xff]
        %v1234 = vld [vmem:[#allocation7 + $0xc10] sm:$0xff]
        %v1235 = vld [vmem:[#allocation7 + $0xc18] sm:$0xff]
        %v1236 = vld [vmem:[#allocation7 + $0xc20] sm:$0xff]
        %v1237 = vld [vmem:[#allocation7 + $0xc28] sm:$0xff]
        %v1238 = vld [vmem:[#allocation7 + $0xc30] sm:$0xff]
        %v1239 = vld [vmem:[#allocation7 + $0xc38] sm:$0xff]
        %v1240 = vld [vmem:[#allocation7 + $0xc40] sm:$0xff]
        %v1241 = vld [vmem:[#allocation7 + $0xc48] sm:$0xff]
        %v1242 = vld [vmem:[#allocation7 + $0xc50] sm:$0xff]
        %v1243 = vld [vmem:[#allocation7 + $0xc58] sm:$0xff]
        %v1244 = vld [vmem:[#allocation7 + $0xc60] sm:$0xff]
        %v1245 = vld [vmem:[#allocation7 + $0xc68] sm:$0xff]
        %v1246 = vld [vmem:[#allocation7 + $0xc70] sm:$0xff]
        %v1247 = vld [vmem:[#allocation7 + $0xc78] sm:$0xff]
        %v1248 = vld [vmem:[#allocation7 + $0xc80] sm:$0xff]
        %v1249 = vld [vmem:[#allocation7 + $0xc88] sm:$0xff]
        %v1250 = vld [vmem:[#allocation7 + $0xc90] sm:$0xff]
        %v1251 = vld [vmem:[#allocation7 + $0xc98] sm:$0xff]
        %v1252 = vld [vmem:[#allocation7 + $0xca0] sm:$0xff]
        %v1253 = vld [vmem:[#allocation7 + $0xca8] sm:$0xff]
        %v1254 = vld [vmem:[#allocation7 + $0xcb0] sm:$0xff]
        %v1255 = vld [vmem:[#allocation7 + $0xcb8] sm:$0xff]
        %v1256 = vld [vmem:[#allocation7 + $0xcc0] sm:$0xff]
        %v1257 = vld [vmem:[#allocation7 + $0xcc8] sm:$0xff]
        %v1258 = vld [vmem:[#allocation7 + $0xcd0] sm:$0xff]
        %v1259 = vld [vmem:[#allocation7 + $0xcd8] sm:$0xff]
        %v1260 = vld [vmem:[#allocation7 + $0xce0] sm:$0xff]
        %v1261 = vld [vmem:[#allocation7 + $0xce8] sm:$0xff]
        %v1262 = vld [vmem:[#allocation7 + $0xcf0] sm:$0xff]
        %v1263 = vld [vmem:[#allocation7 + $0xcf8] sm:$0xff]
        %v1264 = vld [vmem:[#allocation7 + $0xd00] sm:$0xff]
        %v1265 = vld [vmem:[#allocation7 + $0xd08] sm:$0xff]
        %v1266 = vld [vmem:[#allocation7 + $0xd10] sm:$0xff]
        %v1267 = vld [vmem:[#allocation7 + $0xd18] sm:$0xff]
        %v1268 = vld [vmem:[#allocation7 + $0xd20] sm:$0xff]
        %v1269 = vld [vmem:[#allocation7 + $0xd28] sm:$0xff]
        %v1270 = vld [vmem:[#allocation7 + $0xd30] sm:$0xff]
        %v1271 = vld [vmem:[#allocation7 + $0xd38] sm:$0xff]
        %v1272 = vld [vmem:[#allocation7 + $0xd40] sm:$0xff]
        %v1273 = vld [vmem:[#allocation7 + $0xd48] sm:$0xff]
        %v1274 = vld [vmem:[#allocation7 + $0xd50] sm:$0xff]
        %v1275 = vld [vmem:[#allocation7 + $0xd58] sm:$0xff]
        %v1276 = vld [vmem:[#allocation7 + $0xd60] sm:$0xff]
        %v1277 = vld [vmem:[#allocation7 + $0xd68] sm:$0xff]
        %v1278 = vld [vmem:[#allocation7 + $0xd70] sm:$0xff]
        %v1279 = vld [vmem:[#allocation7 + $0xd78] sm:$0xff]
        %v1280 = vld [vmem:[#allocation7 + $0xd80] sm:$0xff]
        %v1281 = vld [vmem:[#allocation7 + $0xd88] sm:$0xff]
        %v1282 = vld [vmem:[#allocation7 + $0xd90] sm:$0xff]
        %v1283 = vld [vmem:[#allocation7 + $0xd98] sm:$0xff]
        %v1284 = vld [vmem:[#allocation7 + $0xda0] sm:$0xff]
        %v1285 = vld [vmem:[#allocation7 + $0xda8] sm:$0xff]
        %v1286 = vld [vmem:[#allocation7 + $0xdb0] sm:$0xff]
        %v1287 = vld [vmem:[#allocation7 + $0xdb8] sm:$0xff]
        %v1288 = vld [vmem:[#allocation7 + $0xdc0] sm:$0xff]
        %v1289 = vld [vmem:[#allocation7 + $0xdc8] sm:$0xff]
        %v1290 = vld [vmem:[#allocation7 + $0xdd0] sm:$0xff]
        %v1291 = vld [vmem:[#allocation7 + $0xdd8] sm:$0xff]
        %v1292 = vld [vmem:[#allocation7 + $0xde0] sm:$0xff]
        %v1293 = vld [vmem:[#allocation7 + $0xde8] sm:$0xff]
        %v1294 = vld [vmem:[#allocation7 + $0xdf0] sm:$0xff]
        %v1295 = vld [vmem:[#allocation7 + $0xdf8] sm:$0xff]
        %v1296 = vld [vmem:[#allocation7 + $0xe00] sm:$0xff]
        %v1297 = vld [vmem:[#allocation7 + $0xe08] sm:$0xff]
        %v1298 = vld [vmem:[#allocation7 + $0xe10] sm:$0xff]
        %v1299 = vld [vmem:[#allocation7 + $0xe18] sm:$0xff]
        %v1300 = vld [vmem:[#allocation7 + $0xe20] sm:$0xff]
        %v1301 = vld [vmem:[#allocation7 + $0xe28] sm:$0xff]
        %v1302 = vld [vmem:[#allocation7 + $0xe30] sm:$0xff]
        %v1303 = vld [vmem:[#allocation7 + $0xe38] sm:$0xff]
        %v1304 = vld [vmem:[#allocation7 + $0xe40] sm:$0xff]
        %v1305 = vld [vmem:[#allocation7 + $0xe48] sm:$0xff]
        %v1306 = vld [vmem:[#allocation7 + $0xe50] sm:$0xff]
        %v1307 = vld [vmem:[#allocation7 + $0xe58] sm:$0xff]
        %v1308 = vld [vmem:[#allocation7 + $0xe60] sm:$0xff]
        %v1309 = vld [vmem:[#allocation7 + $0xe68] sm:$0xff]
        %v1310 = vld [vmem:[#allocation7 + $0xe70] sm:$0xff]
        %v1311 = vld [vmem:[#allocation7 + $0xe78] sm:$0xff]
        %v1312 = vld [vmem:[#allocation7 + $0xe80] sm:$0xff]
        %v1313 = vld [vmem:[#allocation7 + $0xe88] sm:$0xff]
        %v1314 = vld [vmem:[#allocation7 + $0xe90] sm:$0xff]
        %v1315 = vld [vmem:[#allocation7 + $0xe98] sm:$0xff]
        %v1316 = vld [vmem:[#allocation7 + $0xea0] sm:$0xff]
        %v1317 = vld [vmem:[#allocation7 + $0xea8] sm:$0xff]
        %v1318 = vld [vmem:[#allocation7 + $0xeb0] sm:$0xff]
        %v1319 = vld [vmem:[#allocation7 + $0xeb8] sm:$0xff]
        %v1320 = vld [vmem:[#allocation7 + $0xec0] sm:$0xff]
        %v1321 = vld [vmem:[#allocation7 + $0xec8] sm:$0xff]
        %v1322 = vld [vmem:[#allocation7 + $0xed0] sm:$0xff]
        %v1323 = vld [vmem:[#allocation7 + $0xed8] sm:$0xff]
        %v1324 = vld [vmem:[#allocation7 + $0xee0] sm:$0xff]
        %v1325 = vld [vmem:[#allocation7 + $0xee8] sm:$0xff]
        %v1326 = vld [vmem:[#allocation7 + $0xef0] sm:$0xff]
        %v1327 = vld [vmem:[#allocation7 + $0xef8] sm:$0xff]
        %v1328 = vld [vmem:[#allocation7 + $0xf00] sm:$0xff]
        %v1329 = vld [vmem:[#allocation7 + $0xf08] sm:$0xff]
        %v1330 = vld [vmem:[#allocation7 + $0xf10] sm:$0xff]
        %v1331 = vld [vmem:[#allocation7 + $0xf18] sm:$0xff]
        %v1332 = vld [vmem:[#allocation7 + $0xf20] sm:$0xff]
        %v1333 = vld [vmem:[#allocation7 + $0xf28] sm:$0xff]
        %v1334 = vld [vmem:[#allocation7 + $0xf30] sm:$0xff]
        %v1335 = vld [vmem:[#allocation7 + $0xf38] sm:$0xff]
        %v1336 = vld [vmem:[#allocation7 + $0xf40] sm:$0xff]
        %v1337 = vld [vmem:[#allocation7 + $0xf48] sm:$0xff]
        %v1338 = vld [vmem:[#allocation7 + $0xf50] sm:$0xff]
        %v1339 = vld [vmem:[#allocation7 + $0xf58] sm:$0xff]
        %v1340 = vld [vmem:[#allocation7 + $0xf60] sm:$0xff]
        %v1341 = vld [vmem:[#allocation7 + $0xf68] sm:$0xff]
        %v1342 = vld [vmem:[#allocation7 + $0xf70] sm:$0xff]
        %v1343 = vld [vmem:[#allocation7 + $0xf78] sm:$0xff]
        %v1344 = vld [vmem:[#allocation7 + $0xf80] sm:$0xff]
        %v1345 = vld [vmem:[#allocation7 + $0xf88] sm:$0xff]
        %v1346 = vld [vmem:[#allocation7 + $0xf90] sm:$0xff]
        %v1347 = vld [vmem:[#allocation7 + $0xf98] sm:$0xff]
        %v1348 = vld [vmem:[#allocation7 + $0xfa0] sm:$0xff]
        %v1349 = vld [vmem:[#allocation7 + $0xfa8] sm:$0xff]
        %v1350 = vld [vmem:[#allocation7 + $0xfb0] sm:$0xff]
        %v1351 = vld [vmem:[#allocation7 + $0xfb8] sm:$0xff]
        %v1352 = vld [vmem:[#allocation7 + $0xfc0] sm:$0xff]
        %v1353 = vld [vmem:[#allocation7 + $0xfc8] sm:$0xff]
        %v1354 = vld [vmem:[#allocation7 + $0xfd0] sm:$0xff]
        %v1355 = vld [vmem:[#allocation7 + $0xfd8] sm:$0xff]
        %v1356 = vld [vmem:[#allocation7 + $0xfe0] sm:$0xff]
        %v1357 = vld [vmem:[#allocation7 + $0xfe8] sm:$0xff]
        %v1358 = vld [vmem:[#allocation7 + $0xff0] sm:$0xff]
        %v1359 = vld [vmem:[#allocation7 + $0xff8] sm:$0xff]
        %v1360 = vld [vmem:[#allocation7 + $0x1000] sm:$0xff]
        %v1361 = vld [vmem:[#allocation7 + $0x1008] sm:$0xff]
        %v1362 = vld [vmem:[#allocation7 + $0x1010] sm:$0xff]
        %v1363 = vld [vmem:[#allocation7 + $0x1018] sm:$0xff]
        %v1364 = vld [vmem:[#allocation7 + $0x1020] sm:$0xff]
        %v1365 = vld [vmem:[#allocation7 + $0x1028] sm:$0xff]
        %v1366 = vld [vmem:[#allocation7 + $0x1030] sm:$0xff]
        %v1367 = vld [vmem:[#allocation7 + $0x1038] sm:$0xff]
        %v1368 = vld [vmem:[#allocation7 + $0x1040] sm:$0xff]
        %v1369 = vld [vmem:[#allocation7 + $0x1048] sm:$0xff]
        %v1370 = vld [vmem:[#allocation7 + $0x1050] sm:$0xff]
        %v1371 = vld [vmem:[#allocation7 + $0x1058] sm:$0xff]
        %v1372 = vld [vmem:[#allocation7 + $0x1060] sm:$0xff]
        %v1373 = vld [vmem:[#allocation7 + $0x1068] sm:$0xff]
        %v1374 = vld [vmem:[#allocation7 + $0x1070] sm:$0xff]
        %v1375 = vld [vmem:[#allocation7 + $0x1078] sm:$0xff]
        %v1376 = vld [vmem:[#allocation7 + $0x1080] sm:$0xff]
        %v1377 = vld [vmem:[#allocation7 + $0x1088] sm:$0xff]
        %v1378 = vld [vmem:[#allocation7 + $0x1090] sm:$0xff]
        %v1379 = vld [vmem:[#allocation7 + $0x1098] sm:$0xff]
        %v1380 = vld [vmem:[#allocation7 + $0x10a0] sm:$0xff]
        %v1381 = vld [vmem:[#allocation7 + $0x10a8] sm:$0xff]
        %v1382 = vld [vmem:[#allocation7 + $0x10b0] sm:$0xff]
        %v1383 = vld [vmem:[#allocation7 + $0x10b8] sm:$0xff]
        %v1384 = vld [vmem:[#allocation7 + $0x10c0] sm:$0xff]
        %v1385 = vld [vmem:[#allocation7 + $0x10c8] sm:$0xff]
        %v1386 = vld [vmem:[#allocation7 + $0x10d0] sm:$0xff]
        %v1387 = vld [vmem:[#allocation7 + $0x10d8] sm:$0xff]
        %v1388 = vld [vmem:[#allocation7 + $0x10e0] sm:$0xff]
        %v1389 = vld [vmem:[#allocation7 + $0x10e8] sm:$0xff]
        %v1390 = vld [vmem:[#allocation7 + $0x10f0] sm:$0xff]
        %v1391 = vld [vmem:[#allocation7 + $0x10f8] sm:$0xff]
        %v1392 = vld [vmem:[#allocation7 + $0x1100] sm:$0xff]
        %v1393 = vld [vmem:[#allocation7 + $0x1108] sm:$0xff]
        %v1394 = vld [vmem:[#allocation7 + $0x1110] sm:$0xff]
        %v1395 = vld [vmem:[#allocation7 + $0x1118] sm:$0xff]
        %v1396 = vld [vmem:[#allocation7 + $0x1120] sm:$0xff]
        %v1397 = vld [vmem:[#allocation7 + $0x1128] sm:$0xff]
        %v1398 = vld [vmem:[#allocation7 + $0x1130] sm:$0xff]
        %v1399 = vld [vmem:[#allocation7 + $0x1138] sm:$0xff]
        %v1400 = vld [vmem:[#allocation7 + $0x1140] sm:$0xff]
        %v1401 = vld [vmem:[#allocation7 + $0x1148] sm:$0xff]
        %v1402 = vld [vmem:[#allocation7 + $0x1150] sm:$0xff]
        %v1403 = vld [vmem:[#allocation7 + $0x1158] sm:$0xff]
        %v1404 = vld [vmem:[#allocation7 + $0x1160] sm:$0xff]
        %v1405 = vld [vmem:[#allocation7 + $0x1168] sm:$0xff]
        %v1406 = vld [vmem:[#allocation7 + $0x1170] sm:$0xff]
        %v1407 = vld [vmem:[#allocation7 + $0x1178] sm:$0xff]
        %v1408 = vld [vmem:[#allocation7 + $0x1180] sm:$0xff]
        %v1409 = vld [vmem:[#allocation7 + $0x1188] sm:$0xff]
        %v1410 = vld [vmem:[#allocation7 + $0x1190] sm:$0xff]
        %v1411 = vld [vmem:[#allocation7 + $0x1198] sm:$0xff]
        %v1412 = vld [vmem:[#allocation7 + $0x11a0] sm:$0xff]
        %v1413 = vld [vmem:[#allocation7 + $0x11a8] sm:$0xff]
        %v1414 = vld [vmem:[#allocation7 + $0x11b0] sm:$0xff]
        %v1415 = vld [vmem:[#allocation7 + $0x11b8] sm:$0xff]
        %v1416 = vld [vmem:[#allocation7 + $0x11c0] sm:$0xff]
        %v1417 = vld [vmem:[#allocation7 + $0x11c8] sm:$0xff]
        %v1418 = vld [vmem:[#allocation7 + $0x11d0] sm:$0xff]
        %v1419 = vld [vmem:[#allocation7 + $0x11d8] sm:$0xff]
        %v1420 = vld [vmem:[#allocation7 + $0x11e0] sm:$0xff]
        %v1421 = vld [vmem:[#allocation7 + $0x11e8] sm:$0xff]
        %v1422 = vld [vmem:[#allocation7 + $0x11f0] sm:$0xff]
        %v1423 = vld [vmem:[#allocation7 + $0x11f8] sm:$0xff]
        %v1424 = vld [vmem:[#allocation7 + $0x1200] sm:$0xff]
        %v1425 = vld [vmem:[#allocation7 + $0x1208] sm:$0xff]
        %v1426 = vld [vmem:[#allocation7 + $0x1210] sm:$0xff]
        %v1427 = vld [vmem:[#allocation7 + $0x1218] sm:$0xff]
        %v1428 = vld [vmem:[#allocation7 + $0x1220] sm:$0xff]
        %v1429 = vld [vmem:[#allocation7 + $0x1228] sm:$0xff]
        %v1430 = vld [vmem:[#allocation7 + $0x1230] sm:$0xff]
        %v1431 = vld [vmem:[#allocation7 + $0x1238] sm:$0xff]
        %v1432 = vld [vmem:[#allocation7 + $0x1240] sm:$0xff]
        %v1433 = vld [vmem:[#allocation7 + $0x1248] sm:$0xff]
        %v1434 = vld [vmem:[#allocation7 + $0x1250] sm:$0xff]
        %v1435 = vld [vmem:[#allocation7 + $0x1258] sm:$0xff]
        %v1436 = vld [vmem:[#allocation7 + $0x1260] sm:$0xff]
        %v1437 = vld [vmem:[#allocation7 + $0x1268] sm:$0xff]
        %v1438 = vld [vmem:[#allocation7 + $0x1270] sm:$0xff]
        %v1439 = vld [vmem:[#allocation7 + $0x1278] sm:$0xff]
        %v1440 = vld [vmem:[#allocation7 + $0x1280] sm:$0xff]
        %v1441 = vld [vmem:[#allocation7 + $0x1288] sm:$0xff]
        %v1442 = vld [vmem:[#allocation7 + $0x1290] sm:$0xff]
        %v1443 = vld [vmem:[#allocation7 + $0x1298] sm:$0xff]
        %v1444 = vld [vmem:[#allocation7 + $0x12a0] sm:$0xff]
        %v1445 = vld [vmem:[#allocation7 + $0x12a8] sm:$0xff]
        %v1446 = vld [vmem:[#allocation7 + $0x12b0] sm:$0xff]
        %v1447 = vld [vmem:[#allocation7 + $0x12b8] sm:$0xff]
        %v1448 = vld [vmem:[#allocation7 + $0x12c0] sm:$0xff]
        %v1449 = vld [vmem:[#allocation7 + $0x12c8] sm:$0xff]
        %v1450 = vld [vmem:[#allocation7 + $0x12d0] sm:$0xff]
        %v1451 = vld [vmem:[#allocation7 + $0x12d8] sm:$0xff]
        %v1452 = vld [vmem:[#allocation7 + $0x12e0] sm:$0xff]
        %v1453 = vld [vmem:[#allocation7 + $0x12e8] sm:$0xff]
        %v1454 = vld [vmem:[#allocation7 + $0x12f0] sm:$0xff]
        %v1455 = vld [vmem:[#allocation7 + $0x12f8] sm:$0xff]
        %v1456 = vld [vmem:[#allocation7 + $0x1300] sm:$0xff]
        %v1457 = vld [vmem:[#allocation7 + $0x1308] sm:$0xff]
        %v1458 = vld [vmem:[#allocation7 + $0x1310] sm:$0xff]
        %v1459 = vld [vmem:[#allocation7 + $0x1318] sm:$0xff]
        %v1460 = vld [vmem:[#allocation7 + $0x1320] sm:$0xff]
        %v1461 = vld [vmem:[#allocation7 + $0x1328] sm:$0xff]
        %v1462 = vld [vmem:[#allocation7 + $0x1330] sm:$0xff]
        %v1463 = vld [vmem:[#allocation7 + $0x1338] sm:$0xff]
        %v1464 = vld [vmem:[#allocation7 + $0x1340] sm:$0xff]
        %v1465 = vld [vmem:[#allocation7 + $0x1348] sm:$0xff]
        %v1466 = vld [vmem:[#allocation7 + $0x1350] sm:$0xff]
        %v1467 = vld [vmem:[#allocation7 + $0x1358] sm:$0xff]
        %v1468 = vld [vmem:[#allocation7 + $0x1360] sm:$0xff]
        %v1469 = vld [vmem:[#allocation7 + $0x1368] sm:$0xff]
        %v1470 = vld [vmem:[#allocation7 + $0x1370] sm:$0xff]
        %v1471 = vld [vmem:[#allocation7 + $0x1378] sm:$0xff]
        %v1472 = vld [vmem:[#allocation7 + $0x1380] sm:$0xff]
        %v1473 = vld [vmem:[#allocation7 + $0x1388] sm:$0xff]
        %v1474 = vld [vmem:[#allocation7 + $0x1390] sm:$0xff]
        %v1475 = vld [vmem:[#allocation7 + $0x1398] sm:$0xff]
        %v1476 = vld [vmem:[#allocation7 + $0x13a0] sm:$0xff]
        %v1477 = vld [vmem:[#allocation7 + $0x13a8] sm:$0xff]
        %v1478 = vld [vmem:[#allocation7 + $0x13b0] sm:$0xff]
        %v1479 = vld [vmem:[#allocation7 + $0x13b8] sm:$0xff]
        %v1480 = vld [vmem:[#allocation7 + $0x13c0] sm:$0xff]
        %v1481 = vld [vmem:[#allocation7 + $0x13c8] sm:$0xff]
        %v1482 = vld [vmem:[#allocation7 + $0x13d0] sm:$0xff]
        %v1483 = vld [vmem:[#allocation7 + $0x13d8] sm:$0xff]
        %v1484 = vld [vmem:[#allocation7 + $0x13e0] sm:$0xff]
        %v1485 = vld [vmem:[#allocation7 + $0x13e8] sm:$0xff]
        %v1486 = vld [vmem:[#allocation7 + $0x13f0] sm:$0xff]
        %v1487 = vld [vmem:[#allocation7 + $0x13f8] sm:$0xff]
        %v1488 = vld [vmem:[#allocation7 + $0x1400] sm:$0xff]
        %v1489 = vld [vmem:[#allocation7 + $0x1408] sm:$0xff]
        %v1490 = vld [vmem:[#allocation7 + $0x1410] sm:$0xff]
        %v1491 = vld [vmem:[#allocation7 + $0x1418] sm:$0xff]
        %v1492 = vld [vmem:[#allocation7 + $0x1420] sm:$0xff]
        %v1493 = vld [vmem:[#allocation7 + $0x1428] sm:$0xff]
        %v1494 = vld [vmem:[#allocation7 + $0x1430] sm:$0xff]
        %v1495 = vld [vmem:[#allocation7 + $0x1438] sm:$0xff]
        %v1496 = vld [vmem:[#allocation7 + $0x1440] sm:$0xff]
        %v1497 = vld [vmem:[#allocation7 + $0x1448] sm:$0xff]
        %v1498 = vld [vmem:[#allocation7 + $0x1450] sm:$0xff]
        %v1499 = vld [vmem:[#allocation7 + $0x1458] sm:$0xff]
        %v1500 = vld [vmem:[#allocation7 + $0x1460] sm:$0xff]
        %v1501 = vld [vmem:[#allocation7 + $0x1468] sm:$0xff]
        %v1502 = vld [vmem:[#allocation7 + $0x1470] sm:$0xff]
        %v1503 = vld [vmem:[#allocation7 + $0x1478] sm:$0xff]
        %v1504 = vld [vmem:[#allocation7 + $0x1480] sm:$0xff]
        %v1505 = vld [vmem:[#allocation7 + $0x1488] sm:$0xff]
        %v1506 = vld [vmem:[#allocation7 + $0x1490] sm:$0xff]
        %v1507 = vld [vmem:[#allocation7 + $0x1498] sm:$0xff]
        %v1508 = vld [vmem:[#allocation7 + $0x14a0] sm:$0xff]
        %v1509 = vld [vmem:[#allocation7 + $0x14a8] sm:$0xff]
        %v1510 = vld [vmem:[#allocation7 + $0x14b0] sm:$0xff]
        %v1511 = vld [vmem:[#allocation7 + $0x14b8] sm:$0xff]
        %v1512 = vld [vmem:[#allocation7 + $0x14c0] sm:$0xff]
        %v1513 = vld [vmem:[#allocation7 + $0x14c8] sm:$0xff]
        %v1514 = vld [vmem:[#allocation7 + $0x14d0] sm:$0xff]
        %v1515 = vld [vmem:[#allocation7 + $0x14d8] sm:$0xff]
        %v1516 = vld [vmem:[#allocation7 + $0x14e0] sm:$0xff]
        %v1517 = vld [vmem:[#allocation7 + $0x14e8] sm:$0xff]
        %v1518 = vld [vmem:[#allocation7 + $0x14f0] sm:$0xff]
        %v1519 = vld [vmem:[#allocation7 + $0x14f8] sm:$0xff]
        %v1520 = vld [vmem:[#allocation7 + $0x1500] sm:$0xff]
        %v1521 = vld [vmem:[#allocation7 + $0x1508] sm:$0xff]
        %v1522 = vld [vmem:[#allocation7 + $0x1510] sm:$0xff]
        %v1523 = vld [vmem:[#allocation7 + $0x1518] sm:$0xff]
        %v1524 = vld [vmem:[#allocation7 + $0x1520] sm:$0xff]
        %v1525 = vld [vmem:[#allocation7 + $0x1528] sm:$0xff]
        %v1526 = vld [vmem:[#allocation7 + $0x1530] sm:$0xff]
        %v1527 = vld [vmem:[#allocation7 + $0x1538] sm:$0xff]
        %v1528 = vld [vmem:[#allocation7 + $0x1540] sm:$0xff]
        %v1529 = vld [vmem:[#allocation7 + $0x1548] sm:$0xff]
        %v1530 = vld [vmem:[#allocation7 + $0x1550] sm:$0xff]
        %v1531 = vld [vmem:[#allocation7 + $0x1558] sm:$0xff]
        %v1532 = vld [vmem:[#allocation7 + $0x1560] sm:$0xff]
        %v1533 = vld [vmem:[#allocation7 + $0x1568] sm:$0xff]
        %v1534 = vld [vmem:[#allocation7 + $0x1570] sm:$0xff]
        %v1535 = vld [vmem:[#allocation7 + $0x1578] sm:$0xff]
        %v1536 = vld [vmem:[#allocation7 + $0x1580] sm:$0xff]
        %v1537 = vld [vmem:[#allocation7 + $0x1588] sm:$0xff]
        %v1538 = vld [vmem:[#allocation7 + $0x1590] sm:$0xff]
        %v1539 = vld [vmem:[#allocation7 + $0x1598] sm:$0xff]
        %v1540 = vld [vmem:[#allocation7 + $0x15a0] sm:$0xff]
        %v1541 = vld [vmem:[#allocation7 + $0x15a8] sm:$0xff]
        %v1542 = vld [vmem:[#allocation7 + $0x15b0] sm:$0xff]
        %v1543 = vld [vmem:[#allocation7 + $0x15b8] sm:$0xff]
        %v1544 = vld [vmem:[#allocation7 + $0x15c0] sm:$0xff]
        %v1545 = vld [vmem:[#allocation7 + $0x15c8] sm:$0xff]
        %v1546 = vld [vmem:[#allocation7 + $0x15d0] sm:$0xff]
        %v1547 = vld [vmem:[#allocation7 + $0x15d8] sm:$0xff]
        %v1548 = vld [vmem:[#allocation7 + $0x15e0] sm:$0xff]
        %v1549 = vld [vmem:[#allocation7 + $0x15e8] sm:$0xff]
        %v1550 = vld [vmem:[#allocation7 + $0x15f0] sm:$0xff]
        %v1551 = vld [vmem:[#allocation7 + $0x15f8] sm:$0xff]
        %v1552 = vld [vmem:[#allocation7 + $0x1600] sm:$0xff]
        %v1553 = vld [vmem:[#allocation7 + $0x1608] sm:$0xff]
        %v1554 = vld [vmem:[#allocation7 + $0x1610] sm:$0xff]
        %v1555 = vld [vmem:[#allocation7 + $0x1618] sm:$0xff]
        %v1556 = vld [vmem:[#allocation7 + $0x1620] sm:$0xff]
        %v1557 = vld [vmem:[#allocation7 + $0x1628] sm:$0xff]
        %v1558 = vld [vmem:[#allocation7 + $0x1630] sm:$0xff]
        %v1559 = vld [vmem:[#allocation7 + $0x1638] sm:$0xff]
        %v1560 = vld [vmem:[#allocation7 + $0x1640] sm:$0xff]
        %v1561 = vld [vmem:[#allocation7 + $0x1648] sm:$0xff]
        %v1562 = vld [vmem:[#allocation7 + $0x1650] sm:$0xff]
        %v1563 = vld [vmem:[#allocation7 + $0x1658] sm:$0xff]
        %v1564 = vld [vmem:[#allocation7 + $0x1660] sm:$0xff]
        %v1565 = vld [vmem:[#allocation7 + $0x1668] sm:$0xff]
        %v1566 = vld [vmem:[#allocation7 + $0x1670] sm:$0xff]
        %v1567 = vld [vmem:[#allocation7 + $0x1678] sm:$0xff]
        %v1568 = vld [vmem:[#allocation7 + $0x1680] sm:$0xff]
        %v1569 = vld [vmem:[#allocation7 + $0x1688] sm:$0xff]
        %v1570 = vld [vmem:[#allocation7 + $0x1690] sm:$0xff]
        %v1571 = vld [vmem:[#allocation7 + $0x1698] sm:$0xff]
        %v1572 = vld [vmem:[#allocation7 + $0x16a0] sm:$0xff]
        %v1573 = vld [vmem:[#allocation7 + $0x16a8] sm:$0xff]
        %v1574 = vld [vmem:[#allocation7 + $0x16b0] sm:$0xff]
        %v1575 = vld [vmem:[#allocation7 + $0x16b8] sm:$0xff]
        %v1576 = vld [vmem:[#allocation7 + $0x16c0] sm:$0xff]
        %v1577 = vld [vmem:[#allocation7 + $0x16c8] sm:$0xff]
        %v1578 = vld [vmem:[#allocation7 + $0x16d0] sm:$0xff]
        %v1579 = vld [vmem:[#allocation7 + $0x16d8] sm:$0xff]
        %v1580 = vld [vmem:[#allocation7 + $0x16e0] sm:$0xff]
        %v1581 = vld [vmem:[#allocation7 + $0x16e8] sm:$0xff]
        %v1582 = vld [vmem:[#allocation7 + $0x16f0] sm:$0xff]
        %v1583 = vld [vmem:[#allocation7 + $0x16f8] sm:$0xff]
        %v1584 = vld [vmem:[#allocation7 + $0x1700] sm:$0xff]
        %v1585 = vld [vmem:[#allocation7 + $0x1708] sm:$0xff]
        %v1586 = vld [vmem:[#allocation7 + $0x1710] sm:$0xff]
        %v1587 = vld [vmem:[#allocation7 + $0x1718] sm:$0xff]
        %v1588 = vld [vmem:[#allocation7 + $0x1720] sm:$0xff]
        %v1589 = vld [vmem:[#allocation7 + $0x1728] sm:$0xff]
        %v1590 = vld [vmem:[#allocation7 + $0x1730] sm:$0xff]
        %v1591 = vld [vmem:[#allocation7 + $0x1738] sm:$0xff]
        %v1592 = vld [vmem:[#allocation7 + $0x1740] sm:$0xff]
        %v1593 = vld [vmem:[#allocation7 + $0x1748] sm:$0xff]
        %v1594 = vld [vmem:[#allocation7 + $0x1750] sm:$0xff]
        %v1595 = vld [vmem:[#allocation7 + $0x1758] sm:$0xff]
        %v1596 = vld [vmem:[#allocation7 + $0x1760] sm:$0xff]
        %v1597 = vld [vmem:[#allocation7 + $0x1768] sm:$0xff]
        %v1598 = vld [vmem:[#allocation7 + $0x1770] sm:$0xff]
        %v1599 = vld [vmem:[#allocation7 + $0x1778] sm:$0xff]
        %v1600 = vld [vmem:[#allocation7 + $0x1780] sm:$0xff]
        %v1601 = vld [vmem:[#allocation7 + $0x1788] sm:$0xff]
        %v1602 = vld [vmem:[#allocation7 + $0x1790] sm:$0xff]
        %v1603 = vld [vmem:[#allocation7 + $0x1798] sm:$0xff]
        %v1604 = vld [vmem:[#allocation7 + $0x17a0] sm:$0xff]
        %v1605 = vld [vmem:[#allocation7 + $0x17a8] sm:$0xff]
        %v1606 = vld [vmem:[#allocation7 + $0x17b0] sm:$0xff]
        %v1607 = vld [vmem:[#allocation7 + $0x17b8] sm:$0xff]
        %v1608 = vld [vmem:[#allocation7 + $0x17c0] sm:$0xff]
        %v1609 = vld [vmem:[#allocation7 + $0x17c8] sm:$0xff]
        %v1610 = vld [vmem:[#allocation7 + $0x17d0] sm:$0xff]
        %v1611 = vld [vmem:[#allocation7 + $0x17d8] sm:$0xff]
        %v1612 = vld [vmem:[#allocation7 + $0x17e0] sm:$0xff]
        %v1613 = vld [vmem:[#allocation7 + $0x17e8] sm:$0xff]
        %v1614 = vld [vmem:[#allocation7 + $0x17f0] sm:$0xff]
        %v1615 = vld [vmem:[#allocation7 + $0x17f8] sm:$0xff]
        %v1616 = vld [vmem:[#allocation7 + $0x1800] sm:$0xff]
        %v1617 = vld [vmem:[#allocation7 + $0x1808] sm:$0xff]
        %v1618 = vld [vmem:[#allocation7 + $0x1810] sm:$0xff]
        %v1619 = vld [vmem:[#allocation7 + $0x1818] sm:$0xff]
        %v1620 = vld [vmem:[#allocation7 + $0x1820] sm:$0xff]
        %v1621 = vld [vmem:[#allocation7 + $0x1828] sm:$0xff]
        %v1622 = vld [vmem:[#allocation7 + $0x1830] sm:$0xff]
        %v1623 = vld [vmem:[#allocation7 + $0x1838] sm:$0xff]
        %v1624 = vld [vmem:[#allocation7 + $0x1840] sm:$0xff]
        %v1625 = vld [vmem:[#allocation7 + $0x1848] sm:$0xff]
        %v1626 = vld [vmem:[#allocation7 + $0x1850] sm:$0xff]
        %v1627 = vld [vmem:[#allocation7 + $0x1858] sm:$0xff]
        %v1628 = vld [vmem:[#allocation7 + $0x1860] sm:$0xff]
        %v1629 = vld [vmem:[#allocation7 + $0x1868] sm:$0xff]
        %v1630 = vld [vmem:[#allocation7 + $0x1870] sm:$0xff]
        %v1631 = vld [vmem:[#allocation7 + $0x1878] sm:$0xff]
        %v1632 = vld [vmem:[#allocation7 + $0x1880] sm:$0xff]
        %v1633 = vld [vmem:[#allocation7 + $0x1888] sm:$0xff]
        %v1634 = vld [vmem:[#allocation7 + $0x1890] sm:$0xff]
        %v1635 = vld [vmem:[#allocation7 + $0x1898] sm:$0xff]
        %v1636 = vld [vmem:[#allocation7 + $0x18a0] sm:$0xff]
        %v1637 = vld [vmem:[#allocation7 + $0x18a8] sm:$0xff]
        %v1638 = vld [vmem:[#allocation7 + $0x18b0] sm:$0xff]
        %v1639 = vld [vmem:[#allocation7 + $0x18b8] sm:$0xff]
        %v1640 = vld [vmem:[#allocation7 + $0x18c0] sm:$0xff]
        %v1641 = vld [vmem:[#allocation7 + $0x18c8] sm:$0xff]
        %v1642 = vld [vmem:[#allocation7 + $0x18d0] sm:$0xff]
        %v1643 = vld [vmem:[#allocation7 + $0x18d8] sm:$0xff]
        %v1644 = vld [vmem:[#allocation7 + $0x18e0] sm:$0xff]
        %v1645 = vld [vmem:[#allocation7 + $0x18e8] sm:$0xff]
        %v1646 = vld [vmem:[#allocation7 + $0x18f0] sm:$0xff]
        %v1647 = vld [vmem:[#allocation7 + $0x18f8] sm:$0xff]
        %v1648 = vld [vmem:[#allocation7 + $0x1900] sm:$0xff]
        %v1649 = vld [vmem:[#allocation7 + $0x1908] sm:$0xff]
        %v1650 = vld [vmem:[#allocation7 + $0x1910] sm:$0xff]
        %v1651 = vld [vmem:[#allocation7 + $0x1918] sm:$0xff]
        %v1652 = vld [vmem:[#allocation7 + $0x1920] sm:$0xff]
        %v1653 = vld [vmem:[#allocation7 + $0x1928] sm:$0xff]
        %v1654 = vld [vmem:[#allocation7 + $0x1930] sm:$0xff]
        %v1655 = vld [vmem:[#allocation7 + $0x1938] sm:$0xff]
        %v1656 = vld [vmem:[#allocation7 + $0x1940] sm:$0xff]
        %v1657 = vld [vmem:[#allocation7 + $0x1948] sm:$0xff]
        %v1658 = vld [vmem:[#allocation7 + $0x1950] sm:$0xff]
        %v1659 = vld [vmem:[#allocation7 + $0x1958] sm:$0xff]
        %v1660 = vld [vmem:[#allocation7 + $0x1960] sm:$0xff]
        %v1661 = vld [vmem:[#allocation7 + $0x1968] sm:$0xff]
        %v1662 = vld [vmem:[#allocation7 + $0x1970] sm:$0xff]
        %v1663 = vld [vmem:[#allocation7 + $0x1978] sm:$0xff]
        %v1664 = vld [vmem:[#allocation7 + $0x1980] sm:$0xff]
        %v1665 = vld [vmem:[#allocation7 + $0x1988] sm:$0xff]
        %v1666 = vld [vmem:[#allocation7 + $0x1990] sm:$0xff]
        %v1667 = vld [vmem:[#allocation7 + $0x1998] sm:$0xff]
        %v1668 = vld [vmem:[#allocation7 + $0x19a0] sm:$0xff]
        %v1669 = vld [vmem:[#allocation7 + $0x19a8] sm:$0xff]
        %v1670 = vld [vmem:[#allocation7 + $0x19b0] sm:$0xff]
        %v1671 = vld [vmem:[#allocation7 + $0x19b8] sm:$0xff]
        %v1672 = vld [vmem:[#allocation7 + $0x19c0] sm:$0xff]
        %v1673 = vld [vmem:[#allocation7 + $0x19c8] sm:$0xff]
        %v1674 = vld [vmem:[#allocation7 + $0x19d0] sm:$0xff]
        %v1675 = vld [vmem:[#allocation7 + $0x19d8] sm:$0xff]
        %v1676 = vld [vmem:[#allocation7 + $0x19e0] sm:$0xff]
        %v1677 = vld [vmem:[#allocation7 + $0x19e8] sm:$0xff]
        %v1678 = vld [vmem:[#allocation7 + $0x19f0] sm:$0xff]
        %v1679 = vld [vmem:[#allocation7 + $0x19f8] sm:$0xff]
        %v1680 = vld [vmem:[#allocation7 + $0x1a00] sm:$0xff]
        %v1681 = vld [vmem:[#allocation7 + $0x1a08] sm:$0xff]
        %v1682 = vld [vmem:[#allocation7 + $0x1a10] sm:$0xff]
        %v1683 = vld [vmem:[#allocation7 + $0x1a18] sm:$0xff]
        %v1684 = vld [vmem:[#allocation7 + $0x1a20] sm:$0xff]
        %v1685 = vld [vmem:[#allocation7 + $0x1a28] sm:$0xff]
        %v1686 = vld [vmem:[#allocation7 + $0x1a30] sm:$0xff]
        %v1687 = vld [vmem:[#allocation7 + $0x1a38] sm:$0xff]
        %v1688 = vld [vmem:[#allocation7 + $0x1a40] sm:$0xff]
        %v1689 = vld [vmem:[#allocation7 + $0x1a48] sm:$0xff]
        %v1690 = vld [vmem:[#allocation7 + $0x1a50] sm:$0xff]
        %v1691 = vld [vmem:[#allocation7 + $0x1a58] sm:$0xff]
        %v1692 = vld [vmem:[#allocation7 + $0x1a60] sm:$0xff]
        %v1693 = vld [vmem:[#allocation7 + $0x1a68] sm:$0xff]
        %v1694 = vld [vmem:[#allocation7 + $0x1a70] sm:$0xff]
        %v1695 = vld [vmem:[#allocation7 + $0x1a78] sm:$0xff]
        %v1696 = vld [vmem:[#allocation7 + $0x1a80] sm:$0xff]
        %v1697 = vld [vmem:[#allocation7 + $0x1a88] sm:$0xff]
        %v1698 = vld [vmem:[#allocation7 + $0x1a90] sm:$0xff]
        %v1699 = vld [vmem:[#allocation7 + $0x1a98] sm:$0xff]
        %v1700 = vld [vmem:[#allocation7 + $0x1aa0] sm:$0xff]
        %v1701 = vld [vmem:[#allocation7 + $0x1aa8] sm:$0xff]
        %v1702 = vld [vmem:[#allocation7 + $0x1ab0] sm:$0xff]
        %v1703 = vld [vmem:[#allocation7 + $0x1ab8] sm:$0xff]
        %v1704 = vld [vmem:[#allocation7 + $0x1ac0] sm:$0xff]
        %v1705 = vld [vmem:[#allocation7 + $0x1ac8] sm:$0xff]
        %v1706 = vld [vmem:[#allocation7 + $0x1ad0] sm:$0xff]
        %v1707 = vld [vmem:[#allocation7 + $0x1ad8] sm:$0xff]
        %v1708 = vld [vmem:[#allocation7 + $0x1ae0] sm:$0xff]
        %v1709 = vld [vmem:[#allocation7 + $0x1ae8] sm:$0xff]
        %v1710 = vld [vmem:[#allocation7 + $0x1af0] sm:$0xff]
        %v1711 = vld [vmem:[#allocation7 + $0x1af8] sm:$0xff]
        %v1712 = vld [vmem:[#allocation7 + $0x1b00] sm:$0xff]
        %v1713 = vld [vmem:[#allocation7 + $0x1b08] sm:$0xff]
        %v1714 = vld [vmem:[#allocation7 + $0x1b10] sm:$0xff]
        %v1715 = vld [vmem:[#allocation7 + $0x1b18] sm:$0xff]
        %v1716 = vld [vmem:[#allocation7 + $0x1b20] sm:$0xff]
        %v1717 = vld [vmem:[#allocation7 + $0x1b28] sm:$0xff]
        %v1718 = vld [vmem:[#allocation7 + $0x1b30] sm:$0xff]
        %v1719 = vld [vmem:[#allocation7 + $0x1b38] sm:$0xff]
        %v1720 = vld [vmem:[#allocation7 + $0x1b40] sm:$0xff]
        %v1721 = vld [vmem:[#allocation7 + $0x1b48] sm:$0xff]
        %v1722 = vld [vmem:[#allocation7 + $0x1b50] sm:$0xff]
        %v1723 = vld [vmem:[#allocation7 + $0x1b58] sm:$0xff]
        %v1724 = vld [vmem:[#allocation7 + $0x1b60] sm:$0xff]
        %v1725 = vld [vmem:[#allocation7 + $0x1b68] sm:$0xff]
        %v1726 = vld [vmem:[#allocation7 + $0x1b70] sm:$0xff]
        %v1727 = vld [vmem:[#allocation7 + $0x1b78] sm:$0xff]
        %v1728 = vld [vmem:[#allocation7 + $0x1b80] sm:$0xff]
        %v1729 = vld [vmem:[#allocation7 + $0x1b88] sm:$0xff]
        %v1730 = vld [vmem:[#allocation7 + $0x1b90] sm:$0xff]
        %v1731 = vld [vmem:[#allocation7 + $0x1b98] sm:$0xff]
        %v1732 = vld [vmem:[#allocation7 + $0x1ba0] sm:$0xff]
        %v1733 = vld [vmem:[#allocation7 + $0x1ba8] sm:$0xff]
        %v1734 = vld [vmem:[#allocation7 + $0x1bb0] sm:$0xff]
        %v1735 = vld [vmem:[#allocation7 + $0x1bb8] sm:$0xff]
        %v1736 = vld [vmem:[#allocation7 + $0x1bc0] sm:$0xff]
        %v1737 = vld [vmem:[#allocation7 + $0x1bc8] sm:$0xff]
        %v1738 = vld [vmem:[#allocation7 + $0x1bd0] sm:$0xff]
        %v1739 = vld [vmem:[#allocation7 + $0x1bd8] sm:$0xff]
        %v1740 = vld [vmem:[#allocation7 + $0x1be0] sm:$0xff]
        %v1741 = vld [vmem:[#allocation7 + $0x1be8] sm:$0xff]
        %v1742 = vld [vmem:[#allocation7 + $0x1bf0] sm:$0xff]
        %v1743 = vld [vmem:[#allocation7 + $0x1bf8] sm:$0xff]
        %v1744 = vld [vmem:[#allocation7 + $0x1c00] sm:$0xff]
        %v1745 = vld [vmem:[#allocation7 + $0x1c08] sm:$0xff]
        %v1746 = vld [vmem:[#allocation7 + $0x1c10] sm:$0xff]
        %v1747 = vld [vmem:[#allocation7 + $0x1c18] sm:$0xff]
        %v1748 = vld [vmem:[#allocation7 + $0x1c20] sm:$0xff]
        %v1749 = vld [vmem:[#allocation7 + $0x1c28] sm:$0xff]
        %v1750 = vld [vmem:[#allocation7 + $0x1c30] sm:$0xff]
        %v1751 = vld [vmem:[#allocation7 + $0x1c38] sm:$0xff]
        %v1752 = vld [vmem:[#allocation7 + $0x1c40] sm:$0xff]
        %v1753 = vld [vmem:[#allocation7 + $0x1c48] sm:$0xff]
        %v1754 = vld [vmem:[#allocation7 + $0x1c50] sm:$0xff]
        %v1755 = vld [vmem:[#allocation7 + $0x1c58] sm:$0xff]
        %v1756 = vld [vmem:[#allocation7 + $0x1c60] sm:$0xff]
        %v1757 = vld [vmem:[#allocation7 + $0x1c68] sm:$0xff]
        %v1758 = vld [vmem:[#allocation7 + $0x1c70] sm:$0xff]
        %v1759 = vld [vmem:[#allocation7 + $0x1c78] sm:$0xff]
        %v1760 = vld [vmem:[#allocation7 + $0x1c80] sm:$0xff]
        %v1761 = vld [vmem:[#allocation7 + $0x1c88] sm:$0xff]
        %v1762 = vld [vmem:[#allocation7 + $0x1c90] sm:$0xff]
        %v1763 = vld [vmem:[#allocation7 + $0x1c98] sm:$0xff]
        %v1764 = vld [vmem:[#allocation7 + $0x1ca0] sm:$0xff]
        %v1765 = vld [vmem:[#allocation7 + $0x1ca8] sm:$0xff]
        %v1766 = vld [vmem:[#allocation7 + $0x1cb0] sm:$0xff]
        %v1767 = vld [vmem:[#allocation7 + $0x1cb8] sm:$0xff]
        %v1768 = vld [vmem:[#allocation7 + $0x1cc0] sm:$0xff]
        %v1769 = vld [vmem:[#allocation7 + $0x1cc8] sm:$0xff]
        %v1770 = vld [vmem:[#allocation7 + $0x1cd0] sm:$0xff]
        %v1771 = vld [vmem:[#allocation7 + $0x1cd8] sm:$0xff]
        %v1772 = vld [vmem:[#allocation7 + $0x1ce0] sm:$0xff]
        %v1773 = vld [vmem:[#allocation7 + $0x1ce8] sm:$0xff]
        %v1774 = vld [vmem:[#allocation7 + $0x1cf0] sm:$0xff]
        %v1775 = vld [vmem:[#allocation7 + $0x1cf8] sm:$0xff]
        %v1776 = vld [vmem:[#allocation7 + $0x1d00] sm:$0xff]
        %v1777 = vld [vmem:[#allocation7 + $0x1d08] sm:$0xff]
        %v1778 = vld [vmem:[#allocation7 + $0x1d10] sm:$0xff]
        %v1779 = vld [vmem:[#allocation7 + $0x1d18] sm:$0xff]
        %v1780 = vld [vmem:[#allocation7 + $0x1d20] sm:$0xff]
        %v1781 = vld [vmem:[#allocation7 + $0x1d28] sm:$0xff]
        %v1782 = vld [vmem:[#allocation7 + $0x1d30] sm:$0xff]
        %v1783 = vld [vmem:[#allocation7 + $0x1d38] sm:$0xff]
        %v1784 = vld [vmem:[#allocation7 + $0x1d40] sm:$0xff]
        %v1785 = vld [vmem:[#allocation7 + $0x1d48] sm:$0xff]
        %v1786 = vld [vmem:[#allocation7 + $0x1d50] sm:$0xff]
        %v1787 = vld [vmem:[#allocation7 + $0x1d58] sm:$0xff]
        %v1788 = vld [vmem:[#allocation7 + $0x1d60] sm:$0xff]
        %v1789 = vld [vmem:[#allocation7 + $0x1d68] sm:$0xff]
        %v1790 = vld [vmem:[#allocation7 + $0x1d70] sm:$0xff]
        %v1791 = vld [vmem:[#allocation7 + $0x1d78] sm:$0xff]
        %v1792 = vld [vmem:[#allocation7 + $0x1d80] sm:$0xff]
        %v1793 = vld [vmem:[#allocation7 + $0x1d88] sm:$0xff]
        %v1794 = vld [vmem:[#allocation7 + $0x1d90] sm:$0xff]
        %v1795 = vld [vmem:[#allocation7 + $0x1d98] sm:$0xff]
        %v1796 = vld [vmem:[#allocation7 + $0x1da0] sm:$0xff]
        %v1797 = vld [vmem:[#allocation7 + $0x1da8] sm:$0xff]
        %v1798 = vld [vmem:[#allocation7 + $0x1db0] sm:$0xff]
        %v1799 = vld [vmem:[#allocation7 + $0x1db8] sm:$0xff]
        %v1800 = vld [vmem:[#allocation7 + $0x1dc0] sm:$0xff]
        %v1801 = vld [vmem:[#allocation7 + $0x1dc8] sm:$0xff]
        %v1802 = vld [vmem:[#allocation7 + $0x1dd0] sm:$0xff]
        %v1803 = vld [vmem:[#allocation7 + $0x1dd8] sm:$0xff]
        %v1804 = vld [vmem:[#allocation7 + $0x1de0] sm:$0xff]
        %v1805 = vld [vmem:[#allocation7 + $0x1de8] sm:$0xff]
        %v1806 = vld [vmem:[#allocation7 + $0x1df0] sm:$0xff]
        %v1807 = vld [vmem:[#allocation7 + $0x1df8] sm:$0xff]
        %v1808 = vld [vmem:[#allocation7 + $0x1e00] sm:$0xff]
        %v1809 = vld [vmem:[#allocation7 + $0x1e08] sm:$0xff]
        %v1810 = vld [vmem:[#allocation7 + $0x1e10] sm:$0xff]
        %v1811 = vld [vmem:[#allocation7 + $0x1e18] sm:$0xff]
        %v1812 = vld [vmem:[#allocation7 + $0x1e20] sm:$0xff]
        %v1813 = vld [vmem:[#allocation7 + $0x1e28] sm:$0xff]
        %v1814 = vld [vmem:[#allocation7 + $0x1e30] sm:$0xff]
        %v1815 = vld [vmem:[#allocation7 + $0x1e38] sm:$0xff]
        %v1816 = vld [vmem:[#allocation7 + $0x1e40] sm:$0xff]
        %v1817 = vld [vmem:[#allocation7 + $0x1e48] sm:$0xff]
        %v1818 = vld [vmem:[#allocation7 + $0x1e50] sm:$0xff]
        %v1819 = vld [vmem:[#allocation7 + $0x1e58] sm:$0xff]
        %v1820 = vld [vmem:[#allocation7 + $0x1e60] sm:$0xff]
        %v1821 = vld [vmem:[#allocation7 + $0x1e68] sm:$0xff]
        %v1822 = vld [vmem:[#allocation7 + $0x1e70] sm:$0xff]
        %v1823 = vld [vmem:[#allocation7 + $0x1e78] sm:$0xff]
        %v1824 = vld [vmem:[#allocation7 + $0x1e80] sm:$0xff]
        %v1825 = vld [vmem:[#allocation7 + $0x1e88] sm:$0xff]
        %v1826 = vld [vmem:[#allocation7 + $0x1e90] sm:$0xff]
        %v1827 = vld [vmem:[#allocation7 + $0x1e98] sm:$0xff]
        %v1828 = vld [vmem:[#allocation7 + $0x1ea0] sm:$0xff]
        %v1829 = vld [vmem:[#allocation7 + $0x1ea8] sm:$0xff]
        %v1830 = vld [vmem:[#allocation7 + $0x1eb0] sm:$0xff]
        %v1831 = vld [vmem:[#allocation7 + $0x1eb8] sm:$0xff]
        %v1832 = vld [vmem:[#allocation7 + $0x1ec0] sm:$0xff]
        %v1833 = vld [vmem:[#allocation7 + $0x1ec8] sm:$0xff]
        %v1834 = vld [vmem:[#allocation7 + $0x1ed0] sm:$0xff]
        %v1835 = vld [vmem:[#allocation7 + $0x1ed8] sm:$0xff]
        %v1836 = vld [vmem:[#allocation7 + $0x1ee0] sm:$0xff]
        %v1837 = vld [vmem:[#allocation7 + $0x1ee8] sm:$0xff]
        %v1838 = vld [vmem:[#allocation7 + $0x1ef0] sm:$0xff]
        %v1839 = vld [vmem:[#allocation7 + $0x1ef8] sm:$0xff]
        %v1840 = vld [vmem:[#allocation7 + $0x1f00] sm:$0xff]
        %v1841 = vld [vmem:[#allocation7 + $0x1f08] sm:$0xff]
        %v1842 = vld [vmem:[#allocation7 + $0x1f10] sm:$0xff]
        %v1843 = vld [vmem:[#allocation7 + $0x1f18] sm:$0xff]
        %v1844 = vld [vmem:[#allocation7 + $0x1f20] sm:$0xff]
        %v1845 = vld [vmem:[#allocation7 + $0x1f28] sm:$0xff]
        %v1846 = vld [vmem:[#allocation7 + $0x1f30] sm:$0xff]
        %v1847 = vld [vmem:[#allocation7 + $0x1f38] sm:$0xff]
        %v1848 = vld [vmem:[#allocation7 + $0x1f40] sm:$0xff]
        %v1849 = vld [vmem:[#allocation7 + $0x1f48] sm:$0xff]
        %v1850 = vld [vmem:[#allocation7 + $0x1f50] sm:$0xff]
        %v1851 = vld [vmem:[#allocation7 + $0x1f58] sm:$0xff]
        %v1852 = vld [vmem:[#allocation7 + $0x1f60] sm:$0xff]
        %v1853 = vld [vmem:[#allocation7 + $0x1f68] sm:$0xff]
        %v1854 = vld [vmem:[#allocation7 + $0x1f70] sm:$0xff]
        %v1855 = vld [vmem:[#allocation7 + $0x1f78] sm:$0xff]
        %v1856 = vld [vmem:[#allocation7 + $0x1f80] sm:$0xff]
        %v1857 = vld [vmem:[#allocation7 + $0x1f88] sm:$0xff]
        %v1858 = vld [vmem:[#allocation7 + $0x1f90] sm:$0xff]
        %v1859 = vld [vmem:[#allocation7 + $0x1f98] sm:$0xff]
        %v1860 = vld [vmem:[#allocation7 + $0x1fa0] sm:$0xff]
        %v1861 = vld [vmem:[#allocation7 + $0x1fa8] sm:$0xff]
        %v1862 = vld [vmem:[#allocation7 + $0x1fb0] sm:$0xff]
        %v1863 = vld [vmem:[#allocation7 + $0x1fb8] sm:$0xff]
        %v1864 = vld [vmem:[#allocation7 + $0x1fc0] sm:$0xff]
        %v1865 = vld [vmem:[#allocation7 + $0x1fc8] sm:$0xff]
        %v1866 = vld [vmem:[#allocation7 + $0x1fd0] sm:$0xff]
        %v1867 = vld [vmem:[#allocation7 + $0x1fd8] sm:$0xff]
        %v1868 = vld [vmem:[#allocation7 + $0x1fe0] sm:$0xff]
        %v1869 = vld [vmem:[#allocation7 + $0x1fe8] sm:$0xff]
        %v1870 = vld [vmem:[#allocation7 + $0x1ff0] sm:$0xff]
        %v1871 = vld [vmem:[#allocation7 + $0x1ff8] sm:$0xff]
        %v1872 = vld [vmem:[#allocation9] sm:$0xff]
        %v1873 = vld [vmem:[#allocation9 + $0x8] sm:$0xff]
        %v1876 = vlaneseq
        %v1877 = vshrl.u32 %v1876, 7
        %v1878 = vsub.s32 0, %v1877
        %v1879 = vrot.slane %v1872, %v1878
        %v1880 = vlaneseq
        %v1881 = vshrl.u32 %v1880, 7
        %v1882 = vsub.s32 1, %v1881
        %v1883 = vrot.slane %v1872, %v1882
        %v1884 = vlaneseq
        %v1885 = vshrl.u32 %v1884, 7
        %v1886 = vsub.s32 2, %v1885
        %v1887 = vrot.slane %v1872, %v1886
        %v1888 = vlaneseq
        %v1889 = vshrl.u32 %v1888, 7
        %v1890 = vsub.s32 3, %v1889
        %v1891 = vrot.slane %v1872, %v1890
        %v1892 = vlaneseq
        %v1893 = vshrl.u32 %v1892, 7
        %v1894 = vsub.s32 4, %v1893
        %v1895 = vrot.slane %v1872, %v1894
        %v1896 = vlaneseq
        %v1897 = vshrl.u32 %v1896, 7
        %v1898 = vsub.s32 5, %v1897
        %v1899 = vrot.slane %v1872, %v1898
        %v1900 = vlaneseq
        %v1901 = vshrl.u32 %v1900, 7
        %v1902 = vsub.s32 6, %v1901
        %v1903 = vrot.slane %v1872, %v1902
        %v1904 = vlaneseq
        %v1905 = vshrl.u32 %v1904, 7
        %v1906 = vsub.s32 7, %v1905
        %v1907 = vrot.slane %v1872, %v1906
        %v1908 = vlaneseq
        %v1909 = vshrl.u32 %v1908, 7
        %v1910 = vsub.s32 0, %v1909
        %v1911 = vrot.slane %v1873, %v1910
        %v1912 = vlaneseq
        %v1913 = vshrl.u32 %v1912, 7
        %v1914 = vsub.s32 1, %v1913
        %v1915 = vrot.slane %v1873, %v1914
        %v1916 = vlaneseq
        %v1917 = vshrl.u32 %v1916, 7
        %v1918 = vsub.s32 2, %v1917
        %v1919 = vrot.slane %v1873, %v1918
        %v1920 = vlaneseq
        %v1921 = vshrl.u32 %v1920, 7
        %v1922 = vsub.s32 3, %v1921
        %v1923 = vrot.slane %v1873, %v1922
        %v1924 = vlaneseq
        %v1925 = vshrl.u32 %v1924, 7
        %v1926 = vsub.s32 4, %v1925
        %v1927 = vrot.slane %v1873, %v1926
        %v1928 = vlaneseq
        %v1929 = vshrl.u32 %v1928, 7
        %v1930 = vsub.s32 5, %v1929
        %v1931 = vrot.slane %v1873, %v1930
        %v1932 = vlaneseq
        %v1933 = vshrl.u32 %v1932, 7
        %v1934 = vsub.s32 6, %v1933
        %v1935 = vrot.slane %v1873, %v1934
        %v1936 = vlaneseq
        %v1937 = vshrl.u32 %v1936, 7
        %v1938 = vsub.s32 7, %v1937
        %v1939 = vrot.slane %v1873, %v1938
        %v2980 = vunpack.c.l.b16 %v848
        %v2981 = vunpack.c.h.b16 %v848
        %v2982 = vunpack.c.l.b16 %v849
        %v2983 = vunpack.c.h.b16 %v849
        %v2984 = vunpack.c.l.b16 %v850
        %v2985 = vunpack.c.h.b16 %v850
        %v2986 = vunpack.c.l.b16 %v851
        %v2987 = vunpack.c.h.b16 %v851
        %v2988 = vunpack.c.l.b16 %v852
        %v2989 = vunpack.c.h.b16 %v852
        %v2990 = vunpack.c.l.b16 %v853
        %v2991 = vunpack.c.h.b16 %v853
        %v2992 = vunpack.c.l.b16 %v854
        %v2993 = vunpack.c.h.b16 %v854
        %v2994 = vunpack.c.l.b16 %v855
        %v2995 = vunpack.c.h.b16 %v855
        %v2996 = vunpack.c.l.b16 %v856
        %v2997 = vunpack.c.h.b16 %v856
        %v2998 = vunpack.c.l.b16 %v857
        %v2999 = vunpack.c.h.b16 %v857
        %v3000 = vunpack.c.l.b16 %v858
        %v3001 = vunpack.c.h.b16 %v858
        %v3002 = vunpack.c.l.b16 %v859
        %v3003 = vunpack.c.h.b16 %v859
        %v3004 = vunpack.c.l.b16 %v860
        %v3005 = vunpack.c.h.b16 %v860
        %v3006 = vunpack.c.l.b16 %v861
        %v3007 = vunpack.c.h.b16 %v861
        %v3008 = vunpack.c.l.b16 %v862
        %v3009 = vunpack.c.h.b16 %v862
        %v3010 = vunpack.c.l.b16 %v863
        %v3011 = vunpack.c.h.b16 %v863
        %v3012 = vunpack.c.l.b16 %v864
        %v3013 = vunpack.c.h.b16 %v864
        %v3014 = vunpack.c.l.b16 %v865
        %v3015 = vunpack.c.h.b16 %v865
        %v3016 = vunpack.c.l.b16 %v866
        %v3017 = vunpack.c.h.b16 %v866
        %v3018 = vunpack.c.l.b16 %v867
        %v3019 = vunpack.c.h.b16 %v867
        %v3020 = vunpack.c.l.b16 %v868
        %v3021 = vunpack.c.h.b16 %v868
        %v3022 = vunpack.c.l.b16 %v869
        %v3023 = vunpack.c.h.b16 %v869
        %v3024 = vunpack.c.l.b16 %v870
        %v3025 = vunpack.c.h.b16 %v870
        %v3026 = vunpack.c.l.b16 %v871
        %v3027 = vunpack.c.h.b16 %v871
        %v3028 = vunpack.c.l.b16 %v872
        %v3029 = vunpack.c.h.b16 %v872
        %v3030 = vunpack.c.l.b16 %v873
        %v3031 = vunpack.c.h.b16 %v873
        %v3032 = vunpack.c.l.b16 %v874
        %v3033 = vunpack.c.h.b16 %v874
        %v3034 = vunpack.c.l.b16 %v875
        %v3035 = vunpack.c.h.b16 %v875
        %v3036 = vunpack.c.l.b16 %v876
        %v3037 = vunpack.c.h.b16 %v876
        %v3038 = vunpack.c.l.b16 %v877
        %v3039 = vunpack.c.h.b16 %v877
        %v3040 = vunpack.c.l.b16 %v878
        %v3041 = vunpack.c.h.b16 %v878
        %v3042 = vunpack.c.l.b16 %v879
        %v3043 = vunpack.c.h.b16 %v879
        %v3044 = vunpack.c.l.b16 %v880
        %v3045 = vunpack.c.h.b16 %v880
        %v3046 = vunpack.c.l.b16 %v881
        %v3047 = vunpack.c.h.b16 %v881
        %v3048 = vunpack.c.l.b16 %v882
        %v3049 = vunpack.c.h.b16 %v882
        %v3050 = vunpack.c.l.b16 %v883
        %v3051 = vunpack.c.h.b16 %v883
        %v3052 = vunpack.c.l.b16 %v884
        %v3053 = vunpack.c.h.b16 %v884
        %v3054 = vunpack.c.l.b16 %v885
        %v3055 = vunpack.c.h.b16 %v885
        %v3056 = vunpack.c.l.b16 %v886
        %v3057 = vunpack.c.h.b16 %v886
        %v3058 = vunpack.c.l.b16 %v887
        %v3059 = vunpack.c.h.b16 %v887
        %v3060 = vunpack.c.l.b16 %v888
        %v3061 = vunpack.c.h.b16 %v888
        %v3062 = vunpack.c.l.b16 %v889
        %v3063 = vunpack.c.h.b16 %v889
        %v3064 = vunpack.c.l.b16 %v890
        %v3065 = vunpack.c.h.b16 %v890
        %v3066 = vunpack.c.l.b16 %v891
        %v3067 = vunpack.c.h.b16 %v891
        %v3068 = vunpack.c.l.b16 %v892
        %v3069 = vunpack.c.h.b16 %v892
        %v3070 = vunpack.c.l.b16 %v893
        %v3071 = vunpack.c.h.b16 %v893
        %v3072 = vunpack.c.l.b16 %v894
        %v3073 = vunpack.c.h.b16 %v894
        %v3074 = vunpack.c.l.b16 %v895
        %v3075 = vunpack.c.h.b16 %v895
        %v3076 = vunpack.c.l.b16 %v896
        %v3077 = vunpack.c.h.b16 %v896
        %v3078 = vunpack.c.l.b16 %v897
        %v3079 = vunpack.c.h.b16 %v897
        %v3080 = vunpack.c.l.b16 %v898
        %v3081 = vunpack.c.h.b16 %v898
        %v3082 = vunpack.c.l.b16 %v899
        %v3083 = vunpack.c.h.b16 %v899
        %v3084 = vunpack.c.l.b16 %v900
        %v3085 = vunpack.c.h.b16 %v900
        %v3086 = vunpack.c.l.b16 %v901
        %v3087 = vunpack.c.h.b16 %v901
        %v3088 = vunpack.c.l.b16 %v902
        %v3089 = vunpack.c.h.b16 %v902
        %v3090 = vunpack.c.l.b16 %v903
        %v3091 = vunpack.c.h.b16 %v903
        %v3092 = vunpack.c.l.b16 %v904
        %v3093 = vunpack.c.h.b16 %v904
        %v3094 = vunpack.c.l.b16 %v905
        %v3095 = vunpack.c.h.b16 %v905
        %v3096 = vunpack.c.l.b16 %v906
        %v3097 = vunpack.c.h.b16 %v906
        %v3098 = vunpack.c.l.b16 %v907
        %v3099 = vunpack.c.h.b16 %v907
        %v3100 = vunpack.c.l.b16 %v908
        %v3101 = vunpack.c.h.b16 %v908
        %v3102 = vunpack.c.l.b16 %v909
        %v3103 = vunpack.c.h.b16 %v909
        %v3104 = vunpack.c.l.b16 %v910
        %v3105 = vunpack.c.h.b16 %v910
        %v3106 = vunpack.c.l.b16 %v911
        %v3107 = vunpack.c.h.b16 %v911
        %v3108 = vunpack.c.l.b16 %v912
        %v3109 = vunpack.c.h.b16 %v912
        %v3110 = vunpack.c.l.b16 %v913
        %v3111 = vunpack.c.h.b16 %v913
        %v3112 = vunpack.c.l.b16 %v914
        %v3113 = vunpack.c.h.b16 %v914
        %v3114 = vunpack.c.l.b16 %v915
        %v3115 = vunpack.c.h.b16 %v915
        %v3116 = vunpack.c.l.b16 %v916
        %v3117 = vunpack.c.h.b16 %v916
        %v3118 = vunpack.c.l.b16 %v917
        %v3119 = vunpack.c.h.b16 %v917
        %v3120 = vunpack.c.l.b16 %v918
        %v3121 = vunpack.c.h.b16 %v918
        %v3122 = vunpack.c.l.b16 %v919
        %v3123 = vunpack.c.h.b16 %v919
        %v3124 = vunpack.c.l.b16 %v920
        %v3125 = vunpack.c.h.b16 %v920
        %v3126 = vunpack.c.l.b16 %v921
        %v3127 = vunpack.c.h.b16 %v921
        %v3128 = vunpack.c.l.b16 %v922
        %v3129 = vunpack.c.h.b16 %v922
        %v3130 = vunpack.c.l.b16 %v923
        %v3131 = vunpack.c.h.b16 %v923
        %v3132 = vunpack.c.l.b16 %v924
        %v3133 = vunpack.c.h.b16 %v924
        %v3134 = vunpack.c.l.b16 %v925
        %v3135 = vunpack.c.h.b16 %v925
        %v3136 = vunpack.c.l.b16 %v926
        %v3137 = vunpack.c.h.b16 %v926
        %v3138 = vunpack.c.l.b16 %v927
        %v3139 = vunpack.c.h.b16 %v927
        %v3140 = vunpack.c.l.b16 %v928
        %v3141 = vunpack.c.h.b16 %v928
        %v3142 = vunpack.c.l.b16 %v929
        %v3143 = vunpack.c.h.b16 %v929
        %v3144 = vunpack.c.l.b16 %v930
        %v3145 = vunpack.c.h.b16 %v930
        %v3146 = vunpack.c.l.b16 %v931
        %v3147 = vunpack.c.h.b16 %v931
        %v3148 = vunpack.c.l.b16 %v932
        %v3149 = vunpack.c.h.b16 %v932
        %v3150 = vunpack.c.l.b16 %v933
        %v3151 = vunpack.c.h.b16 %v933
        %v3152 = vunpack.c.l.b16 %v934
        %v3153 = vunpack.c.h.b16 %v934
        %v3154 = vunpack.c.l.b16 %v935
        %v3155 = vunpack.c.h.b16 %v935
        %v3156 = vunpack.c.l.b16 %v936
        %v3157 = vunpack.c.h.b16 %v936
        %v3158 = vunpack.c.l.b16 %v937
        %v3159 = vunpack.c.h.b16 %v937
        %v3160 = vunpack.c.l.b16 %v938
        %v3161 = vunpack.c.h.b16 %v938
        %v3162 = vunpack.c.l.b16 %v939
        %v3163 = vunpack.c.h.b16 %v939
        %v3164 = vunpack.c.l.b16 %v940
        %v3165 = vunpack.c.h.b16 %v940
        %v3166 = vunpack.c.l.b16 %v941
        %v3167 = vunpack.c.h.b16 %v941
        %v3168 = vunpack.c.l.b16 %v942
        %v3169 = vunpack.c.h.b16 %v942
        %v3170 = vunpack.c.l.b16 %v943
        %v3171 = vunpack.c.h.b16 %v943
        %v3172 = vunpack.c.l.b16 %v944
        %v3173 = vunpack.c.h.b16 %v944
        %v3174 = vunpack.c.l.b16 %v945
        %v3175 = vunpack.c.h.b16 %v945
        %v3176 = vunpack.c.l.b16 %v946
        %v3177 = vunpack.c.h.b16 %v946
        %v3178 = vunpack.c.l.b16 %v947
        %v3179 = vunpack.c.h.b16 %v947
        %v3180 = vunpack.c.l.b16 %v948
        %v3181 = vunpack.c.h.b16 %v948
        %v3182 = vunpack.c.l.b16 %v949
        %v3183 = vunpack.c.h.b16 %v949
        %v3184 = vunpack.c.l.b16 %v950
        %v3185 = vunpack.c.h.b16 %v950
        %v3186 = vunpack.c.l.b16 %v951
        %v3187 = vunpack.c.h.b16 %v951
        %v3188 = vunpack.c.l.b16 %v952
        %v3189 = vunpack.c.h.b16 %v952
        %v3190 = vunpack.c.l.b16 %v953
        %v3191 = vunpack.c.h.b16 %v953
        %v3192 = vunpack.c.l.b16 %v954
        %v3193 = vunpack.c.h.b16 %v954
        %v3194 = vunpack.c.l.b16 %v955
        %v3195 = vunpack.c.h.b16 %v955
        %v3196 = vunpack.c.l.b16 %v956
        %v3197 = vunpack.c.h.b16 %v956
        %v3198 = vunpack.c.l.b16 %v957
        %v3199 = vunpack.c.h.b16 %v957
        %v3200 = vunpack.c.l.b16 %v958
        %v3201 = vunpack.c.h.b16 %v958
        %v3202 = vunpack.c.l.b16 %v959
        %v3203 = vunpack.c.h.b16 %v959
        %v3204 = vunpack.c.l.b16 %v960
        %v3205 = vunpack.c.h.b16 %v960
        %v3206 = vunpack.c.l.b16 %v961
        %v3207 = vunpack.c.h.b16 %v961
        %v3208 = vunpack.c.l.b16 %v962
        %v3209 = vunpack.c.h.b16 %v962
        %v3210 = vunpack.c.l.b16 %v963
        %v3211 = vunpack.c.h.b16 %v963
        %v3212 = vunpack.c.l.b16 %v964
        %v3213 = vunpack.c.h.b16 %v964
        %v3214 = vunpack.c.l.b16 %v965
        %v3215 = vunpack.c.h.b16 %v965
        %v3216 = vunpack.c.l.b16 %v966
        %v3217 = vunpack.c.h.b16 %v966
        %v3218 = vunpack.c.l.b16 %v967
        %v3219 = vunpack.c.h.b16 %v967
        %v3220 = vunpack.c.l.b16 %v968
        %v3221 = vunpack.c.h.b16 %v968
        %v3222 = vunpack.c.l.b16 %v969
        %v3223 = vunpack.c.h.b16 %v969
        %v3224 = vunpack.c.l.b16 %v970
        %v3225 = vunpack.c.h.b16 %v970
        %v3226 = vunpack.c.l.b16 %v971
        %v3227 = vunpack.c.h.b16 %v971
        %v3228 = vunpack.c.l.b16 %v972
        %v3229 = vunpack.c.h.b16 %v972
        %v3230 = vunpack.c.l.b16 %v973
        %v3231 = vunpack.c.h.b16 %v973
        %v3232 = vunpack.c.l.b16 %v974
        %v3233 = vunpack.c.h.b16 %v974
        %v3234 = vunpack.c.l.b16 %v975
        %v3235 = vunpack.c.h.b16 %v975
        %v3236 = vunpack.c.l.b16 %v976
        %v3237 = vunpack.c.h.b16 %v976
        %v3238 = vunpack.c.l.b16 %v977
        %v3239 = vunpack.c.h.b16 %v977
        %v3240 = vunpack.c.l.b16 %v978
        %v3241 = vunpack.c.h.b16 %v978
        %v3242 = vunpack.c.l.b16 %v979
        %v3243 = vunpack.c.h.b16 %v979
        %v3244 = vunpack.c.l.b16 %v980
        %v3245 = vunpack.c.h.b16 %v980
        %v3246 = vunpack.c.l.b16 %v981
        %v3247 = vunpack.c.h.b16 %v981
        %v3248 = vunpack.c.l.b16 %v982
        %v3249 = vunpack.c.h.b16 %v982
        %v3250 = vunpack.c.l.b16 %v983
        %v3251 = vunpack.c.h.b16 %v983
        %v3252 = vunpack.c.l.b16 %v984
        %v3253 = vunpack.c.h.b16 %v984
        %v3254 = vunpack.c.l.b16 %v985
        %v3255 = vunpack.c.h.b16 %v985
        %v3256 = vunpack.c.l.b16 %v986
        %v3257 = vunpack.c.h.b16 %v986
        %v3258 = vunpack.c.l.b16 %v987
        %v3259 = vunpack.c.h.b16 %v987
        %v3260 = vunpack.c.l.b16 %v988
        %v3261 = vunpack.c.h.b16 %v988
        %v3262 = vunpack.c.l.b16 %v989
        %v3263 = vunpack.c.h.b16 %v989
        %v3264 = vunpack.c.l.b16 %v990
        %v3265 = vunpack.c.h.b16 %v990
        %v3266 = vunpack.c.l.b16 %v991
        %v3267 = vunpack.c.h.b16 %v991
        %v3268 = vunpack.c.l.b16 %v992
        %v3269 = vunpack.c.h.b16 %v992
        %v3270 = vunpack.c.l.b16 %v993
        %v3271 = vunpack.c.h.b16 %v993
        %v3272 = vunpack.c.l.b16 %v994
        %v3273 = vunpack.c.h.b16 %v994
        %v3274 = vunpack.c.l.b16 %v995
        %v3275 = vunpack.c.h.b16 %v995
        %v3276 = vunpack.c.l.b16 %v996
        %v3277 = vunpack.c.h.b16 %v996
        %v3278 = vunpack.c.l.b16 %v997
        %v3279 = vunpack.c.h.b16 %v997
        %v3280 = vunpack.c.l.b16 %v998
        %v3281 = vunpack.c.h.b16 %v998
        %v3282 = vunpack.c.l.b16 %v999
        %v3283 = vunpack.c.h.b16 %v999
        %v3284 = vunpack.c.l.b16 %v1000
        %v3285 = vunpack.c.h.b16 %v1000
        %v3286 = vunpack.c.l.b16 %v1001
        %v3287 = vunpack.c.h.b16 %v1001
        %v3288 = vunpack.c.l.b16 %v1002
        %v3289 = vunpack.c.h.b16 %v1002
        %v3290 = vunpack.c.l.b16 %v1003
        %v3291 = vunpack.c.h.b16 %v1003
        %v3292 = vunpack.c.l.b16 %v1004
        %v3293 = vunpack.c.h.b16 %v1004
        %v3294 = vunpack.c.l.b16 %v1005
        %v3295 = vunpack.c.h.b16 %v1005
        %v3296 = vunpack.c.l.b16 %v1006
        %v3297 = vunpack.c.h.b16 %v1006
        %v3298 = vunpack.c.l.b16 %v1007
        %v3299 = vunpack.c.h.b16 %v1007
        %v3300 = vunpack.c.l.b16 %v1008
        %v3301 = vunpack.c.h.b16 %v1008
        %v3302 = vunpack.c.l.b16 %v1009
        %v3303 = vunpack.c.h.b16 %v1009
        %v3304 = vunpack.c.l.b16 %v1010
        %v3305 = vunpack.c.h.b16 %v1010
        %v3306 = vunpack.c.l.b16 %v1011
        %v3307 = vunpack.c.h.b16 %v1011
        %v3308 = vunpack.c.l.b16 %v1012
        %v3309 = vunpack.c.h.b16 %v1012
        %v3310 = vunpack.c.l.b16 %v1013
        %v3311 = vunpack.c.h.b16 %v1013
        %v3312 = vunpack.c.l.b16 %v1014
        %v3313 = vunpack.c.h.b16 %v1014
        %v3314 = vunpack.c.l.b16 %v1015
        %v3315 = vunpack.c.h.b16 %v1015
        %v3316 = vunpack.c.l.b16 %v1016
        %v3317 = vunpack.c.h.b16 %v1016
        %v3318 = vunpack.c.l.b16 %v1017
        %v3319 = vunpack.c.h.b16 %v1017
        %v3320 = vunpack.c.l.b16 %v1018
        %v3321 = vunpack.c.h.b16 %v1018
        %v3322 = vunpack.c.l.b16 %v1019
        %v3323 = vunpack.c.h.b16 %v1019
        %v3324 = vunpack.c.l.b16 %v1020
        %v3325 = vunpack.c.h.b16 %v1020
        %v3326 = vunpack.c.l.b16 %v1021
        %v3327 = vunpack.c.h.b16 %v1021
        %v3328 = vunpack.c.l.b16 %v1022
        %v3329 = vunpack.c.h.b16 %v1022
        %v3330 = vunpack.c.l.b16 %v1023
        %v3331 = vunpack.c.h.b16 %v1023
        %v3332 = vunpack.c.l.b16 %v1024
        %v3333 = vunpack.c.h.b16 %v1024
        %v3334 = vunpack.c.l.b16 %v1025
        %v3335 = vunpack.c.h.b16 %v1025
        %v3336 = vunpack.c.l.b16 %v1026
        %v3337 = vunpack.c.h.b16 %v1026
        %v3338 = vunpack.c.l.b16 %v1027
        %v3339 = vunpack.c.h.b16 %v1027
        %v3340 = vunpack.c.l.b16 %v1028
        %v3341 = vunpack.c.h.b16 %v1028
        %v3342 = vunpack.c.l.b16 %v1029
        %v3343 = vunpack.c.h.b16 %v1029
        %v3344 = vunpack.c.l.b16 %v1030
        %v3345 = vunpack.c.h.b16 %v1030
        %v3346 = vunpack.c.l.b16 %v1031
        %v3347 = vunpack.c.h.b16 %v1031
        %v3348 = vunpack.c.l.b16 %v1032
        %v3349 = vunpack.c.h.b16 %v1032
        %v3350 = vunpack.c.l.b16 %v1033
        %v3351 = vunpack.c.h.b16 %v1033
        %v3352 = vunpack.c.l.b16 %v1034
        %v3353 = vunpack.c.h.b16 %v1034
        %v3354 = vunpack.c.l.b16 %v1035
        %v3355 = vunpack.c.h.b16 %v1035
        %v3356 = vunpack.c.l.b16 %v1036
        %v3357 = vunpack.c.h.b16 %v1036
        %v3358 = vunpack.c.l.b16 %v1037
        %v3359 = vunpack.c.h.b16 %v1037
        %v3360 = vunpack.c.l.b16 %v1038
        %v3361 = vunpack.c.h.b16 %v1038
        %v3362 = vunpack.c.l.b16 %v1039
        %v3363 = vunpack.c.h.b16 %v1039
        %v3364 = vunpack.c.l.b16 %v1040
        %v3365 = vunpack.c.h.b16 %v1040
        %v3366 = vunpack.c.l.b16 %v1041
        %v3367 = vunpack.c.h.b16 %v1041
        %v3368 = vunpack.c.l.b16 %v1042
        %v3369 = vunpack.c.h.b16 %v1042
        %v3370 = vunpack.c.l.b16 %v1043
        %v3371 = vunpack.c.h.b16 %v1043
        %v3372 = vunpack.c.l.b16 %v1044
        %v3373 = vunpack.c.h.b16 %v1044
        %v3374 = vunpack.c.l.b16 %v1045
        %v3375 = vunpack.c.h.b16 %v1045
        %v3376 = vunpack.c.l.b16 %v1046
        %v3377 = vunpack.c.h.b16 %v1046
        %v3378 = vunpack.c.l.b16 %v1047
        %v3379 = vunpack.c.h.b16 %v1047
        %v3380 = vunpack.c.l.b16 %v1048
        %v3381 = vunpack.c.h.b16 %v1048
        %v3382 = vunpack.c.l.b16 %v1049
        %v3383 = vunpack.c.h.b16 %v1049
        %v3384 = vunpack.c.l.b16 %v1050
        %v3385 = vunpack.c.h.b16 %v1050
        %v3386 = vunpack.c.l.b16 %v1051
        %v3387 = vunpack.c.h.b16 %v1051
        %v3388 = vunpack.c.l.b16 %v1052
        %v3389 = vunpack.c.h.b16 %v1052
        %v3390 = vunpack.c.l.b16 %v1053
        %v3391 = vunpack.c.h.b16 %v1053
        %v3392 = vunpack.c.l.b16 %v1054
        %v3393 = vunpack.c.h.b16 %v1054
        %v3394 = vunpack.c.l.b16 %v1055
        %v3395 = vunpack.c.h.b16 %v1055
        %v3396 = vunpack.c.l.b16 %v1056
        %v3397 = vunpack.c.h.b16 %v1056
        %v3398 = vunpack.c.l.b16 %v1057
        %v3399 = vunpack.c.h.b16 %v1057
        %v3400 = vunpack.c.l.b16 %v1058
        %v3401 = vunpack.c.h.b16 %v1058
        %v3402 = vunpack.c.l.b16 %v1059
        %v3403 = vunpack.c.h.b16 %v1059
        %v3404 = vunpack.c.l.b16 %v1060
        %v3405 = vunpack.c.h.b16 %v1060
        %v3406 = vunpack.c.l.b16 %v1061
        %v3407 = vunpack.c.h.b16 %v1061
        %v3408 = vunpack.c.l.b16 %v1062
        %v3409 = vunpack.c.h.b16 %v1062
        %v3410 = vunpack.c.l.b16 %v1063
        %v3411 = vunpack.c.h.b16 %v1063
        %v3412 = vunpack.c.l.b16 %v1064
        %v3413 = vunpack.c.h.b16 %v1064
        %v3414 = vunpack.c.l.b16 %v1065
        %v3415 = vunpack.c.h.b16 %v1065
        %v3416 = vunpack.c.l.b16 %v1066
        %v3417 = vunpack.c.h.b16 %v1066
        %v3418 = vunpack.c.l.b16 %v1067
        %v3419 = vunpack.c.h.b16 %v1067
        %v3420 = vunpack.c.l.b16 %v1068
        %v3421 = vunpack.c.h.b16 %v1068
        %v3422 = vunpack.c.l.b16 %v1069
        %v3423 = vunpack.c.h.b16 %v1069
        %v3424 = vunpack.c.l.b16 %v1070
        %v3425 = vunpack.c.h.b16 %v1070
        %v3426 = vunpack.c.l.b16 %v1071
        %v3427 = vunpack.c.h.b16 %v1071
        %v3428 = vunpack.c.l.b16 %v1072
        %v3429 = vunpack.c.h.b16 %v1072
        %v3430 = vunpack.c.l.b16 %v1073
        %v3431 = vunpack.c.h.b16 %v1073
        %v3432 = vunpack.c.l.b16 %v1074
        %v3433 = vunpack.c.h.b16 %v1074
        %v3434 = vunpack.c.l.b16 %v1075
        %v3435 = vunpack.c.h.b16 %v1075
        %v3436 = vunpack.c.l.b16 %v1076
        %v3437 = vunpack.c.h.b16 %v1076
        %v3438 = vunpack.c.l.b16 %v1077
        %v3439 = vunpack.c.h.b16 %v1077
        %v3440 = vunpack.c.l.b16 %v1078
        %v3441 = vunpack.c.h.b16 %v1078
        %v3442 = vunpack.c.l.b16 %v1079
        %v3443 = vunpack.c.h.b16 %v1079
        %v3444 = vunpack.c.l.b16 %v1080
        %v3445 = vunpack.c.h.b16 %v1080
        %v3446 = vunpack.c.l.b16 %v1081
        %v3447 = vunpack.c.h.b16 %v1081
        %v3448 = vunpack.c.l.b16 %v1082
        %v3449 = vunpack.c.h.b16 %v1082
        %v3450 = vunpack.c.l.b16 %v1083
        %v3451 = vunpack.c.h.b16 %v1083
        %v3452 = vunpack.c.l.b16 %v1084
        %v3453 = vunpack.c.h.b16 %v1084
        %v3454 = vunpack.c.l.b16 %v1085
        %v3455 = vunpack.c.h.b16 %v1085
        %v3456 = vunpack.c.l.b16 %v1086
        %v3457 = vunpack.c.h.b16 %v1086
        %v3458 = vunpack.c.l.b16 %v1087
        %v3459 = vunpack.c.h.b16 %v1087
        %v3460 = vunpack.c.l.b16 %v1088
        %v3461 = vunpack.c.h.b16 %v1088
        %v3462 = vunpack.c.l.b16 %v1089
        %v3463 = vunpack.c.h.b16 %v1089
        %v3464 = vunpack.c.l.b16 %v1090
        %v3465 = vunpack.c.h.b16 %v1090
        %v3466 = vunpack.c.l.b16 %v1091
        %v3467 = vunpack.c.h.b16 %v1091
        %v3468 = vunpack.c.l.b16 %v1092
        %v3469 = vunpack.c.h.b16 %v1092
        %v3470 = vunpack.c.l.b16 %v1093
        %v3471 = vunpack.c.h.b16 %v1093
        %v3472 = vunpack.c.l.b16 %v1094
        %v3473 = vunpack.c.h.b16 %v1094
        %v3474 = vunpack.c.l.b16 %v1095
        %v3475 = vunpack.c.h.b16 %v1095
        %v3476 = vunpack.c.l.b16 %v1096
        %v3477 = vunpack.c.h.b16 %v1096
        %v3478 = vunpack.c.l.b16 %v1097
        %v3479 = vunpack.c.h.b16 %v1097
        %v3480 = vunpack.c.l.b16 %v1098
        %v3481 = vunpack.c.h.b16 %v1098
        %v3482 = vunpack.c.l.b16 %v1099
        %v3483 = vunpack.c.h.b16 %v1099
        %v3484 = vunpack.c.l.b16 %v1100
        %v3485 = vunpack.c.h.b16 %v1100
        %v3486 = vunpack.c.l.b16 %v1101
        %v3487 = vunpack.c.h.b16 %v1101
        %v3488 = vunpack.c.l.b16 %v1102
        %v3489 = vunpack.c.h.b16 %v1102
        %v3490 = vunpack.c.l.b16 %v1103
        %v3491 = vunpack.c.h.b16 %v1103
        %v3492 = vunpack.c.l.b16 %v1104
        %v3493 = vunpack.c.h.b16 %v1104
        %v3494 = vunpack.c.l.b16 %v1105
        %v3495 = vunpack.c.h.b16 %v1105
        %v3496 = vunpack.c.l.b16 %v1106
        %v3497 = vunpack.c.h.b16 %v1106
        %v3498 = vunpack.c.l.b16 %v1107
        %v3499 = vunpack.c.h.b16 %v1107
        %v3500 = vunpack.c.l.b16 %v1108
        %v3501 = vunpack.c.h.b16 %v1108
        %v3502 = vunpack.c.l.b16 %v1109
        %v3503 = vunpack.c.h.b16 %v1109
        %v3504 = vunpack.c.l.b16 %v1110
        %v3505 = vunpack.c.h.b16 %v1110
        %v3506 = vunpack.c.l.b16 %v1111
        %v3507 = vunpack.c.h.b16 %v1111
        %v3508 = vunpack.c.l.b16 %v1112
        %v3509 = vunpack.c.h.b16 %v1112
        %v3510 = vunpack.c.l.b16 %v1113
        %v3511 = vunpack.c.h.b16 %v1113
        %v3512 = vunpack.c.l.b16 %v1114
        %v3513 = vunpack.c.h.b16 %v1114
        %v3514 = vunpack.c.l.b16 %v1115
        %v3515 = vunpack.c.h.b16 %v1115
        %v3516 = vunpack.c.l.b16 %v1116
        %v3517 = vunpack.c.h.b16 %v1116
        %v3518 = vunpack.c.l.b16 %v1117
        %v3519 = vunpack.c.h.b16 %v1117
        %v3520 = vunpack.c.l.b16 %v1118
        %v3521 = vunpack.c.h.b16 %v1118
        %v3522 = vunpack.c.l.b16 %v1119
        %v3523 = vunpack.c.h.b16 %v1119
        %v3524 = vunpack.c.l.b16 %v1120
        %v3525 = vunpack.c.h.b16 %v1120
        %v3526 = vunpack.c.l.b16 %v1121
        %v3527 = vunpack.c.h.b16 %v1121
        %v3528 = vunpack.c.l.b16 %v1122
        %v3529 = vunpack.c.h.b16 %v1122
        %v3530 = vunpack.c.l.b16 %v1123
        %v3531 = vunpack.c.h.b16 %v1123
        %v3532 = vunpack.c.l.b16 %v1124
        %v3533 = vunpack.c.h.b16 %v1124
        %v3534 = vunpack.c.l.b16 %v1125
        %v3535 = vunpack.c.h.b16 %v1125
        %v3536 = vunpack.c.l.b16 %v1126
        %v3537 = vunpack.c.h.b16 %v1126
        %v3538 = vunpack.c.l.b16 %v1127
        %v3539 = vunpack.c.h.b16 %v1127
        %v3540 = vunpack.c.l.b16 %v1128
        %v3541 = vunpack.c.h.b16 %v1128
        %v3542 = vunpack.c.l.b16 %v1129
        %v3543 = vunpack.c.h.b16 %v1129
        %v3544 = vunpack.c.l.b16 %v1130
        %v3545 = vunpack.c.h.b16 %v1130
        %v3546 = vunpack.c.l.b16 %v1131
        %v3547 = vunpack.c.h.b16 %v1131
        %v3548 = vunpack.c.l.b16 %v1132
        %v3549 = vunpack.c.h.b16 %v1132
        %v3550 = vunpack.c.l.b16 %v1133
        %v3551 = vunpack.c.h.b16 %v1133
        %v3552 = vunpack.c.l.b16 %v1134
        %v3553 = vunpack.c.h.b16 %v1134
        %v3554 = vunpack.c.l.b16 %v1135
        %v3555 = vunpack.c.h.b16 %v1135
        %v3556 = vunpack.c.l.b16 %v1136
        %v3557 = vunpack.c.h.b16 %v1136
        %v3558 = vunpack.c.l.b16 %v1137
        %v3559 = vunpack.c.h.b16 %v1137
        %v3560 = vunpack.c.l.b16 %v1138
        %v3561 = vunpack.c.h.b16 %v1138
        %v3562 = vunpack.c.l.b16 %v1139
        %v3563 = vunpack.c.h.b16 %v1139
        %v3564 = vunpack.c.l.b16 %v1140
        %v3565 = vunpack.c.h.b16 %v1140
        %v3566 = vunpack.c.l.b16 %v1141
        %v3567 = vunpack.c.h.b16 %v1141
        %v3568 = vunpack.c.l.b16 %v1142
        %v3569 = vunpack.c.h.b16 %v1142
        %v3570 = vunpack.c.l.b16 %v1143
        %v3571 = vunpack.c.h.b16 %v1143
        %v3572 = vunpack.c.l.b16 %v1144
        %v3573 = vunpack.c.h.b16 %v1144
        %v3574 = vunpack.c.l.b16 %v1145
        %v3575 = vunpack.c.h.b16 %v1145
        %v3576 = vunpack.c.l.b16 %v1146
        %v3577 = vunpack.c.h.b16 %v1146
        %v3578 = vunpack.c.l.b16 %v1147
        %v3579 = vunpack.c.h.b16 %v1147
        %v3580 = vunpack.c.l.b16 %v1148
        %v3581 = vunpack.c.h.b16 %v1148
        %v3582 = vunpack.c.l.b16 %v1149
        %v3583 = vunpack.c.h.b16 %v1149
        %v3584 = vunpack.c.l.b16 %v1150
        %v3585 = vunpack.c.h.b16 %v1150
        %v3586 = vunpack.c.l.b16 %v1151
        %v3587 = vunpack.c.h.b16 %v1151
        %v3588 = vunpack.c.l.b16 %v1152
        %v3589 = vunpack.c.h.b16 %v1152
        %v3590 = vunpack.c.l.b16 %v1153
        %v3591 = vunpack.c.h.b16 %v1153
        %v3592 = vunpack.c.l.b16 %v1154
        %v3593 = vunpack.c.h.b16 %v1154
        %v3594 = vunpack.c.l.b16 %v1155
        %v3595 = vunpack.c.h.b16 %v1155
        %v3596 = vunpack.c.l.b16 %v1156
        %v3597 = vunpack.c.h.b16 %v1156
        %v3598 = vunpack.c.l.b16 %v1157
        %v3599 = vunpack.c.h.b16 %v1157
        %v3600 = vunpack.c.l.b16 %v1158
        %v3601 = vunpack.c.h.b16 %v1158
        %v3602 = vunpack.c.l.b16 %v1159
        %v3603 = vunpack.c.h.b16 %v1159
        %v3604 = vunpack.c.l.b16 %v1160
        %v3605 = vunpack.c.h.b16 %v1160
        %v3606 = vunpack.c.l.b16 %v1161
        %v3607 = vunpack.c.h.b16 %v1161
        %v3608 = vunpack.c.l.b16 %v1162
        %v3609 = vunpack.c.h.b16 %v1162
        %v3610 = vunpack.c.l.b16 %v1163
        %v3611 = vunpack.c.h.b16 %v1163
        %v3612 = vunpack.c.l.b16 %v1164
        %v3613 = vunpack.c.h.b16 %v1164
        %v3614 = vunpack.c.l.b16 %v1165
        %v3615 = vunpack.c.h.b16 %v1165
        %v3616 = vunpack.c.l.b16 %v1166
        %v3617 = vunpack.c.h.b16 %v1166
        %v3618 = vunpack.c.l.b16 %v1167
        %v3619 = vunpack.c.h.b16 %v1167
        %v3620 = vunpack.c.l.b16 %v1168
        %v3621 = vunpack.c.h.b16 %v1168
        %v3622 = vunpack.c.l.b16 %v1169
        %v3623 = vunpack.c.h.b16 %v1169
        %v3624 = vunpack.c.l.b16 %v1170
        %v3625 = vunpack.c.h.b16 %v1170
        %v3626 = vunpack.c.l.b16 %v1171
        %v3627 = vunpack.c.h.b16 %v1171
        %v3628 = vunpack.c.l.b16 %v1172
        %v3629 = vunpack.c.h.b16 %v1172
        %v3630 = vunpack.c.l.b16 %v1173
        %v3631 = vunpack.c.h.b16 %v1173
        %v3632 = vunpack.c.l.b16 %v1174
        %v3633 = vunpack.c.h.b16 %v1174
        %v3634 = vunpack.c.l.b16 %v1175
        %v3635 = vunpack.c.h.b16 %v1175
        %v3636 = vunpack.c.l.b16 %v1176
        %v3637 = vunpack.c.h.b16 %v1176
        %v3638 = vunpack.c.l.b16 %v1177
        %v3639 = vunpack.c.h.b16 %v1177
        %v3640 = vunpack.c.l.b16 %v1178
        %v3641 = vunpack.c.h.b16 %v1178
        %v3642 = vunpack.c.l.b16 %v1179
        %v3643 = vunpack.c.h.b16 %v1179
        %v3644 = vunpack.c.l.b16 %v1180
        %v3645 = vunpack.c.h.b16 %v1180
        %v3646 = vunpack.c.l.b16 %v1181
        %v3647 = vunpack.c.h.b16 %v1181
        %v3648 = vunpack.c.l.b16 %v1182
        %v3649 = vunpack.c.h.b16 %v1182
        %v3650 = vunpack.c.l.b16 %v1183
        %v3651 = vunpack.c.h.b16 %v1183
        %v3652 = vunpack.c.l.b16 %v1184
        %v3653 = vunpack.c.h.b16 %v1184
        %v3654 = vunpack.c.l.b16 %v1185
        %v3655 = vunpack.c.h.b16 %v1185
        %v3656 = vunpack.c.l.b16 %v1186
        %v3657 = vunpack.c.h.b16 %v1186
        %v3658 = vunpack.c.l.b16 %v1187
        %v3659 = vunpack.c.h.b16 %v1187
        %v3660 = vunpack.c.l.b16 %v1188
        %v3661 = vunpack.c.h.b16 %v1188
        %v3662 = vunpack.c.l.b16 %v1189
        %v3663 = vunpack.c.h.b16 %v1189
        %v3664 = vunpack.c.l.b16 %v1190
        %v3665 = vunpack.c.h.b16 %v1190
        %v3666 = vunpack.c.l.b16 %v1191
        %v3667 = vunpack.c.h.b16 %v1191
        %v3668 = vunpack.c.l.b16 %v1192
        %v3669 = vunpack.c.h.b16 %v1192
        %v3670 = vunpack.c.l.b16 %v1193
        %v3671 = vunpack.c.h.b16 %v1193
        %v3672 = vunpack.c.l.b16 %v1194
        %v3673 = vunpack.c.h.b16 %v1194
        %v3674 = vunpack.c.l.b16 %v1195
        %v3675 = vunpack.c.h.b16 %v1195
        %v3676 = vunpack.c.l.b16 %v1196
        %v3677 = vunpack.c.h.b16 %v1196
        %v3678 = vunpack.c.l.b16 %v1197
        %v3679 = vunpack.c.h.b16 %v1197
        %v3680 = vunpack.c.l.b16 %v1198
        %v3681 = vunpack.c.h.b16 %v1198
        %v3682 = vunpack.c.l.b16 %v1199
        %v3683 = vunpack.c.h.b16 %v1199
        %v3684 = vunpack.c.l.b16 %v1200
        %v3685 = vunpack.c.h.b16 %v1200
        %v3686 = vunpack.c.l.b16 %v1201
        %v3687 = vunpack.c.h.b16 %v1201
        %v3688 = vunpack.c.l.b16 %v1202
        %v3689 = vunpack.c.h.b16 %v1202
        %v3690 = vunpack.c.l.b16 %v1203
        %v3691 = vunpack.c.h.b16 %v1203
        %v3692 = vunpack.c.l.b16 %v1204
        %v3693 = vunpack.c.h.b16 %v1204
        %v3694 = vunpack.c.l.b16 %v1205
        %v3695 = vunpack.c.h.b16 %v1205
        %v3696 = vunpack.c.l.b16 %v1206
        %v3697 = vunpack.c.h.b16 %v1206
        %v3698 = vunpack.c.l.b16 %v1207
        %v3699 = vunpack.c.h.b16 %v1207
        %v3700 = vunpack.c.l.b16 %v1208
        %v3701 = vunpack.c.h.b16 %v1208
        %v3702 = vunpack.c.l.b16 %v1209
        %v3703 = vunpack.c.h.b16 %v1209
        %v3704 = vunpack.c.l.b16 %v1210
        %v3705 = vunpack.c.h.b16 %v1210
        %v3706 = vunpack.c.l.b16 %v1211
        %v3707 = vunpack.c.h.b16 %v1211
        %v3708 = vunpack.c.l.b16 %v1212
        %v3709 = vunpack.c.h.b16 %v1212
        %v3710 = vunpack.c.l.b16 %v1213
        %v3711 = vunpack.c.h.b16 %v1213
        %v3712 = vunpack.c.l.b16 %v1214
        %v3713 = vunpack.c.h.b16 %v1214
        %v3714 = vunpack.c.l.b16 %v1215
        %v3715 = vunpack.c.h.b16 %v1215
        %v3716 = vunpack.c.l.b16 %v1216
        %v3717 = vunpack.c.h.b16 %v1216
        %v3718 = vunpack.c.l.b16 %v1217
        %v3719 = vunpack.c.h.b16 %v1217
        %v3720 = vunpack.c.l.b16 %v1218
        %v3721 = vunpack.c.h.b16 %v1218
        %v3722 = vunpack.c.l.b16 %v1219
        %v3723 = vunpack.c.h.b16 %v1219
        %v3724 = vunpack.c.l.b16 %v1220
        %v3725 = vunpack.c.h.b16 %v1220
        %v3726 = vunpack.c.l.b16 %v1221
        %v3727 = vunpack.c.h.b16 %v1221
        %v3728 = vunpack.c.l.b16 %v1222
        %v3729 = vunpack.c.h.b16 %v1222
        %v3730 = vunpack.c.l.b16 %v1223
        %v3731 = vunpack.c.h.b16 %v1223
        %v3732 = vunpack.c.l.b16 %v1224
        %v3733 = vunpack.c.h.b16 %v1224
        %v3734 = vunpack.c.l.b16 %v1225
        %v3735 = vunpack.c.h.b16 %v1225
        %v3736 = vunpack.c.l.b16 %v1226
        %v3737 = vunpack.c.h.b16 %v1226
        %v3738 = vunpack.c.l.b16 %v1227
        %v3739 = vunpack.c.h.b16 %v1227
        %v3740 = vunpack.c.l.b16 %v1228
        %v3741 = vunpack.c.h.b16 %v1228
        %v3742 = vunpack.c.l.b16 %v1229
        %v3743 = vunpack.c.h.b16 %v1229
        %v3744 = vunpack.c.l.b16 %v1230
        %v3745 = vunpack.c.h.b16 %v1230
        %v3746 = vunpack.c.l.b16 %v1231
        %v3747 = vunpack.c.h.b16 %v1231
        %v3748 = vunpack.c.l.b16 %v1232
        %v3749 = vunpack.c.h.b16 %v1232
        %v3750 = vunpack.c.l.b16 %v1233
        %v3751 = vunpack.c.h.b16 %v1233
        %v3752 = vunpack.c.l.b16 %v1234
        %v3753 = vunpack.c.h.b16 %v1234
        %v3754 = vunpack.c.l.b16 %v1235
        %v3755 = vunpack.c.h.b16 %v1235
        %v3756 = vunpack.c.l.b16 %v1236
        %v3757 = vunpack.c.h.b16 %v1236
        %v3758 = vunpack.c.l.b16 %v1237
        %v3759 = vunpack.c.h.b16 %v1237
        %v3760 = vunpack.c.l.b16 %v1238
        %v3761 = vunpack.c.h.b16 %v1238
        %v3762 = vunpack.c.l.b16 %v1239
        %v3763 = vunpack.c.h.b16 %v1239
        %v3764 = vunpack.c.l.b16 %v1240
        %v3765 = vunpack.c.h.b16 %v1240
        %v3766 = vunpack.c.l.b16 %v1241
        %v3767 = vunpack.c.h.b16 %v1241
        %v3768 = vunpack.c.l.b16 %v1242
        %v3769 = vunpack.c.h.b16 %v1242
        %v3770 = vunpack.c.l.b16 %v1243
        %v3771 = vunpack.c.h.b16 %v1243
        %v3772 = vunpack.c.l.b16 %v1244
        %v3773 = vunpack.c.h.b16 %v1244
        %v3774 = vunpack.c.l.b16 %v1245
        %v3775 = vunpack.c.h.b16 %v1245
        %v3776 = vunpack.c.l.b16 %v1246
        %v3777 = vunpack.c.h.b16 %v1246
        %v3778 = vunpack.c.l.b16 %v1247
        %v3779 = vunpack.c.h.b16 %v1247
        %v3780 = vunpack.c.l.b16 %v1248
        %v3781 = vunpack.c.h.b16 %v1248
        %v3782 = vunpack.c.l.b16 %v1249
        %v3783 = vunpack.c.h.b16 %v1249
        %v3784 = vunpack.c.l.b16 %v1250
        %v3785 = vunpack.c.h.b16 %v1250
        %v3786 = vunpack.c.l.b16 %v1251
        %v3787 = vunpack.c.h.b16 %v1251
        %v3788 = vunpack.c.l.b16 %v1252
        %v3789 = vunpack.c.h.b16 %v1252
        %v3790 = vunpack.c.l.b16 %v1253
        %v3791 = vunpack.c.h.b16 %v1253
        %v3792 = vunpack.c.l.b16 %v1254
        %v3793 = vunpack.c.h.b16 %v1254
        %v3794 = vunpack.c.l.b16 %v1255
        %v3795 = vunpack.c.h.b16 %v1255
        %v3796 = vunpack.c.l.b16 %v1256
        %v3797 = vunpack.c.h.b16 %v1256
        %v3798 = vunpack.c.l.b16 %v1257
        %v3799 = vunpack.c.h.b16 %v1257
        %v3800 = vunpack.c.l.b16 %v1258
        %v3801 = vunpack.c.h.b16 %v1258
        %v3802 = vunpack.c.l.b16 %v1259
        %v3803 = vunpack.c.h.b16 %v1259
        %v3804 = vunpack.c.l.b16 %v1260
        %v3805 = vunpack.c.h.b16 %v1260
        %v3806 = vunpack.c.l.b16 %v1261
        %v3807 = vunpack.c.h.b16 %v1261
        %v3808 = vunpack.c.l.b16 %v1262
        %v3809 = vunpack.c.h.b16 %v1262
        %v3810 = vunpack.c.l.b16 %v1263
        %v3811 = vunpack.c.h.b16 %v1263
        %v3812 = vunpack.c.l.b16 %v1264
        %v3813 = vunpack.c.h.b16 %v1264
        %v3814 = vunpack.c.l.b16 %v1265
        %v3815 = vunpack.c.h.b16 %v1265
        %v3816 = vunpack.c.l.b16 %v1266
        %v3817 = vunpack.c.h.b16 %v1266
        %v3818 = vunpack.c.l.b16 %v1267
        %v3819 = vunpack.c.h.b16 %v1267
        %v3820 = vunpack.c.l.b16 %v1268
        %v3821 = vunpack.c.h.b16 %v1268
        %v3822 = vunpack.c.l.b16 %v1269
        %v3823 = vunpack.c.h.b16 %v1269
        %v3824 = vunpack.c.l.b16 %v1270
        %v3825 = vunpack.c.h.b16 %v1270
        %v3826 = vunpack.c.l.b16 %v1271
        %v3827 = vunpack.c.h.b16 %v1271
        %v3828 = vunpack.c.l.b16 %v1272
        %v3829 = vunpack.c.h.b16 %v1272
        %v3830 = vunpack.c.l.b16 %v1273
        %v3831 = vunpack.c.h.b16 %v1273
        %v3832 = vunpack.c.l.b16 %v1274
        %v3833 = vunpack.c.h.b16 %v1274
        %v3834 = vunpack.c.l.b16 %v1275
        %v3835 = vunpack.c.h.b16 %v1275
        %v3836 = vunpack.c.l.b16 %v1276
        %v3837 = vunpack.c.h.b16 %v1276
        %v3838 = vunpack.c.l.b16 %v1277
        %v3839 = vunpack.c.h.b16 %v1277
        %v3840 = vunpack.c.l.b16 %v1278
        %v3841 = vunpack.c.h.b16 %v1278
        %v3842 = vunpack.c.l.b16 %v1279
        %v3843 = vunpack.c.h.b16 %v1279
        %v3844 = vunpack.c.l.b16 %v1280
        %v3845 = vunpack.c.h.b16 %v1280
        %v3846 = vunpack.c.l.b16 %v1281
        %v3847 = vunpack.c.h.b16 %v1281
        %v3848 = vunpack.c.l.b16 %v1282
        %v3849 = vunpack.c.h.b16 %v1282
        %v3850 = vunpack.c.l.b16 %v1283
        %v3851 = vunpack.c.h.b16 %v1283
        %v3852 = vunpack.c.l.b16 %v1284
        %v3853 = vunpack.c.h.b16 %v1284
        %v3854 = vunpack.c.l.b16 %v1285
        %v3855 = vunpack.c.h.b16 %v1285
        %v3856 = vunpack.c.l.b16 %v1286
        %v3857 = vunpack.c.h.b16 %v1286
        %v3858 = vunpack.c.l.b16 %v1287
        %v3859 = vunpack.c.h.b16 %v1287
        %v3860 = vunpack.c.l.b16 %v1288
        %v3861 = vunpack.c.h.b16 %v1288
        %v3862 = vunpack.c.l.b16 %v1289
        %v3863 = vunpack.c.h.b16 %v1289
        %v3864 = vunpack.c.l.b16 %v1290
        %v3865 = vunpack.c.h.b16 %v1290
        %v3866 = vunpack.c.l.b16 %v1291
        %v3867 = vunpack.c.h.b16 %v1291
        %v3868 = vunpack.c.l.b16 %v1292
        %v3869 = vunpack.c.h.b16 %v1292
        %v3870 = vunpack.c.l.b16 %v1293
        %v3871 = vunpack.c.h.b16 %v1293
        %v3872 = vunpack.c.l.b16 %v1294
        %v3873 = vunpack.c.h.b16 %v1294
        %v3874 = vunpack.c.l.b16 %v1295
        %v3875 = vunpack.c.h.b16 %v1295
        %v3876 = vunpack.c.l.b16 %v1296
        %v3877 = vunpack.c.h.b16 %v1296
        %v3878 = vunpack.c.l.b16 %v1297
        %v3879 = vunpack.c.h.b16 %v1297
        %v3880 = vunpack.c.l.b16 %v1298
        %v3881 = vunpack.c.h.b16 %v1298
        %v3882 = vunpack.c.l.b16 %v1299
        %v3883 = vunpack.c.h.b16 %v1299
        %v3884 = vunpack.c.l.b16 %v1300
        %v3885 = vunpack.c.h.b16 %v1300
        %v3886 = vunpack.c.l.b16 %v1301
        %v3887 = vunpack.c.h.b16 %v1301
        %v3888 = vunpack.c.l.b16 %v1302
        %v3889 = vunpack.c.h.b16 %v1302
        %v3890 = vunpack.c.l.b16 %v1303
        %v3891 = vunpack.c.h.b16 %v1303
        %v3892 = vunpack.c.l.b16 %v1304
        %v3893 = vunpack.c.h.b16 %v1304
        %v3894 = vunpack.c.l.b16 %v1305
        %v3895 = vunpack.c.h.b16 %v1305
        %v3896 = vunpack.c.l.b16 %v1306
        %v3897 = vunpack.c.h.b16 %v1306
        %v3898 = vunpack.c.l.b16 %v1307
        %v3899 = vunpack.c.h.b16 %v1307
        %v3900 = vunpack.c.l.b16 %v1308
        %v3901 = vunpack.c.h.b16 %v1308
        %v3902 = vunpack.c.l.b16 %v1309
        %v3903 = vunpack.c.h.b16 %v1309
        %v3904 = vunpack.c.l.b16 %v1310
        %v3905 = vunpack.c.h.b16 %v1310
        %v3906 = vunpack.c.l.b16 %v1311
        %v3907 = vunpack.c.h.b16 %v1311
        %v3908 = vunpack.c.l.b16 %v1312
        %v3909 = vunpack.c.h.b16 %v1312
        %v3910 = vunpack.c.l.b16 %v1313
        %v3911 = vunpack.c.h.b16 %v1313
        %v3912 = vunpack.c.l.b16 %v1314
        %v3913 = vunpack.c.h.b16 %v1314
        %v3914 = vunpack.c.l.b16 %v1315
        %v3915 = vunpack.c.h.b16 %v1315
        %v3916 = vunpack.c.l.b16 %v1316
        %v3917 = vunpack.c.h.b16 %v1316
        %v3918 = vunpack.c.l.b16 %v1317
        %v3919 = vunpack.c.h.b16 %v1317
        %v3920 = vunpack.c.l.b16 %v1318
        %v3921 = vunpack.c.h.b16 %v1318
        %v3922 = vunpack.c.l.b16 %v1319
        %v3923 = vunpack.c.h.b16 %v1319
        %v3924 = vunpack.c.l.b16 %v1320
        %v3925 = vunpack.c.h.b16 %v1320
        %v3926 = vunpack.c.l.b16 %v1321
        %v3927 = vunpack.c.h.b16 %v1321
        %v3928 = vunpack.c.l.b16 %v1322
        %v3929 = vunpack.c.h.b16 %v1322
        %v3930 = vunpack.c.l.b16 %v1323
        %v3931 = vunpack.c.h.b16 %v1323
        %v3932 = vunpack.c.l.b16 %v1324
        %v3933 = vunpack.c.h.b16 %v1324
        %v3934 = vunpack.c.l.b16 %v1325
        %v3935 = vunpack.c.h.b16 %v1325
        %v3936 = vunpack.c.l.b16 %v1326
        %v3937 = vunpack.c.h.b16 %v1326
        %v3938 = vunpack.c.l.b16 %v1327
        %v3939 = vunpack.c.h.b16 %v1327
        %v3940 = vunpack.c.l.b16 %v1328
        %v3941 = vunpack.c.h.b16 %v1328
        %v3942 = vunpack.c.l.b16 %v1329
        %v3943 = vunpack.c.h.b16 %v1329
        %v3944 = vunpack.c.l.b16 %v1330
        %v3945 = vunpack.c.h.b16 %v1330
        %v3946 = vunpack.c.l.b16 %v1331
        %v3947 = vunpack.c.h.b16 %v1331
        %v3948 = vunpack.c.l.b16 %v1332
        %v3949 = vunpack.c.h.b16 %v1332
        %v3950 = vunpack.c.l.b16 %v1333
        %v3951 = vunpack.c.h.b16 %v1333
        %v3952 = vunpack.c.l.b16 %v1334
        %v3953 = vunpack.c.h.b16 %v1334
        %v3954 = vunpack.c.l.b16 %v1335
        %v3955 = vunpack.c.h.b16 %v1335
        %v3956 = vunpack.c.l.b16 %v1336
        %v3957 = vunpack.c.h.b16 %v1336
        %v3958 = vunpack.c.l.b16 %v1337
        %v3959 = vunpack.c.h.b16 %v1337
        %v3960 = vunpack.c.l.b16 %v1338
        %v3961 = vunpack.c.h.b16 %v1338
        %v3962 = vunpack.c.l.b16 %v1339
        %v3963 = vunpack.c.h.b16 %v1339
        %v3964 = vunpack.c.l.b16 %v1340
        %v3965 = vunpack.c.h.b16 %v1340
        %v3966 = vunpack.c.l.b16 %v1341
        %v3967 = vunpack.c.h.b16 %v1341
        %v3968 = vunpack.c.l.b16 %v1342
        %v3969 = vunpack.c.h.b16 %v1342
        %v3970 = vunpack.c.l.b16 %v1343
        %v3971 = vunpack.c.h.b16 %v1343
        %v3972 = vunpack.c.l.b16 %v1344
        %v3973 = vunpack.c.h.b16 %v1344
        %v3974 = vunpack.c.l.b16 %v1345
        %v3975 = vunpack.c.h.b16 %v1345
        %v3976 = vunpack.c.l.b16 %v1346
        %v3977 = vunpack.c.h.b16 %v1346
        %v3978 = vunpack.c.l.b16 %v1347
        %v3979 = vunpack.c.h.b16 %v1347
        %v3980 = vunpack.c.l.b16 %v1348
        %v3981 = vunpack.c.h.b16 %v1348
        %v3982 = vunpack.c.l.b16 %v1349
        %v3983 = vunpack.c.h.b16 %v1349
        %v3984 = vunpack.c.l.b16 %v1350
        %v3985 = vunpack.c.h.b16 %v1350
        %v3986 = vunpack.c.l.b16 %v1351
        %v3987 = vunpack.c.h.b16 %v1351
        %v3988 = vunpack.c.l.b16 %v1352
        %v3989 = vunpack.c.h.b16 %v1352
        %v3990 = vunpack.c.l.b16 %v1353
        %v3991 = vunpack.c.h.b16 %v1353
        %v3992 = vunpack.c.l.b16 %v1354
        %v3993 = vunpack.c.h.b16 %v1354
        %v3994 = vunpack.c.l.b16 %v1355
        %v3995 = vunpack.c.h.b16 %v1355
        %v3996 = vunpack.c.l.b16 %v1356
        %v3997 = vunpack.c.h.b16 %v1356
        %v3998 = vunpack.c.l.b16 %v1357
        %v3999 = vunpack.c.h.b16 %v1357
        %v4000 = vunpack.c.l.b16 %v1358
        %v4001 = vunpack.c.h.b16 %v1358
        %v4002 = vunpack.c.l.b16 %v1359
        %v4003 = vunpack.c.h.b16 %v1359
        %v4004 = vunpack.c.l.b16 %v1360
        %v4005 = vunpack.c.h.b16 %v1360
        %v4006 = vunpack.c.l.b16 %v1361
        %v4007 = vunpack.c.h.b16 %v1361
        %v4008 = vunpack.c.l.b16 %v1362
        %v4009 = vunpack.c.h.b16 %v1362
        %v4010 = vunpack.c.l.b16 %v1363
        %v4011 = vunpack.c.h.b16 %v1363
        %v4012 = vunpack.c.l.b16 %v1364
        %v4013 = vunpack.c.h.b16 %v1364
        %v4014 = vunpack.c.l.b16 %v1365
        %v4015 = vunpack.c.h.b16 %v1365
        %v4016 = vunpack.c.l.b16 %v1366
        %v4017 = vunpack.c.h.b16 %v1366
        %v4018 = vunpack.c.l.b16 %v1367
        %v4019 = vunpack.c.h.b16 %v1367
        %v4020 = vunpack.c.l.b16 %v1368
        %v4021 = vunpack.c.h.b16 %v1368
        %v4022 = vunpack.c.l.b16 %v1369
        %v4023 = vunpack.c.h.b16 %v1369
        %v4024 = vunpack.c.l.b16 %v1370
        %v4025 = vunpack.c.h.b16 %v1370
        %v4026 = vunpack.c.l.b16 %v1371
        %v4027 = vunpack.c.h.b16 %v1371
        %v4028 = vunpack.c.l.b16 %v1372
        %v4029 = vunpack.c.h.b16 %v1372
        %v4030 = vunpack.c.l.b16 %v1373
        %v4031 = vunpack.c.h.b16 %v1373
        %v4032 = vunpack.c.l.b16 %v1374
        %v4033 = vunpack.c.h.b16 %v1374
        %v4034 = vunpack.c.l.b16 %v1375
        %v4035 = vunpack.c.h.b16 %v1375
        %v4036 = vunpack.c.l.b16 %v1376
        %v4037 = vunpack.c.h.b16 %v1376
        %v4038 = vunpack.c.l.b16 %v1377
        %v4039 = vunpack.c.h.b16 %v1377
        %v4040 = vunpack.c.l.b16 %v1378
        %v4041 = vunpack.c.h.b16 %v1378
        %v4042 = vunpack.c.l.b16 %v1379
        %v4043 = vunpack.c.h.b16 %v1379
        %v4044 = vunpack.c.l.b16 %v1380
        %v4045 = vunpack.c.h.b16 %v1380
        %v4046 = vunpack.c.l.b16 %v1381
        %v4047 = vunpack.c.h.b16 %v1381
        %v4048 = vunpack.c.l.b16 %v1382
        %v4049 = vunpack.c.h.b16 %v1382
        %v4050 = vunpack.c.l.b16 %v1383
        %v4051 = vunpack.c.h.b16 %v1383
        %v4052 = vunpack.c.l.b16 %v1384
        %v4053 = vunpack.c.h.b16 %v1384
        %v4054 = vunpack.c.l.b16 %v1385
        %v4055 = vunpack.c.h.b16 %v1385
        %v4056 = vunpack.c.l.b16 %v1386
        %v4057 = vunpack.c.h.b16 %v1386
        %v4058 = vunpack.c.l.b16 %v1387
        %v4059 = vunpack.c.h.b16 %v1387
        %v4060 = vunpack.c.l.b16 %v1388
        %v4061 = vunpack.c.h.b16 %v1388
        %v4062 = vunpack.c.l.b16 %v1389
        %v4063 = vunpack.c.h.b16 %v1389
        %v4064 = vunpack.c.l.b16 %v1390
        %v4065 = vunpack.c.h.b16 %v1390
        %v4066 = vunpack.c.l.b16 %v1391
        %v4067 = vunpack.c.h.b16 %v1391
        %v4068 = vunpack.c.l.b16 %v1392
        %v4069 = vunpack.c.h.b16 %v1392
        %v4070 = vunpack.c.l.b16 %v1393
        %v4071 = vunpack.c.h.b16 %v1393
        %v4072 = vunpack.c.l.b16 %v1394
        %v4073 = vunpack.c.h.b16 %v1394
        %v4074 = vunpack.c.l.b16 %v1395
        %v4075 = vunpack.c.h.b16 %v1395
        %v4076 = vunpack.c.l.b16 %v1396
        %v4077 = vunpack.c.h.b16 %v1396
        %v4078 = vunpack.c.l.b16 %v1397
        %v4079 = vunpack.c.h.b16 %v1397
        %v4080 = vunpack.c.l.b16 %v1398
        %v4081 = vunpack.c.h.b16 %v1398
        %v4082 = vunpack.c.l.b16 %v1399
        %v4083 = vunpack.c.h.b16 %v1399
        %v4084 = vunpack.c.l.b16 %v1400
        %v4085 = vunpack.c.h.b16 %v1400
        %v4086 = vunpack.c.l.b16 %v1401
        %v4087 = vunpack.c.h.b16 %v1401
        %v4088 = vunpack.c.l.b16 %v1402
        %v4089 = vunpack.c.h.b16 %v1402
        %v4090 = vunpack.c.l.b16 %v1403
        %v4091 = vunpack.c.h.b16 %v1403
        %v4092 = vunpack.c.l.b16 %v1404
        %v4093 = vunpack.c.h.b16 %v1404
        %v4094 = vunpack.c.l.b16 %v1405
        %v4095 = vunpack.c.h.b16 %v1405
        %v4096 = vunpack.c.l.b16 %v1406
        %v4097 = vunpack.c.h.b16 %v1406
        %v4098 = vunpack.c.l.b16 %v1407
        %v4099 = vunpack.c.h.b16 %v1407
        %v4100 = vunpack.c.l.b16 %v1408
        %v4101 = vunpack.c.h.b16 %v1408
        %v4102 = vunpack.c.l.b16 %v1409
        %v4103 = vunpack.c.h.b16 %v1409
        %v4104 = vunpack.c.l.b16 %v1410
        %v4105 = vunpack.c.h.b16 %v1410
        %v4106 = vunpack.c.l.b16 %v1411
        %v4107 = vunpack.c.h.b16 %v1411
        %v4108 = vunpack.c.l.b16 %v1412
        %v4109 = vunpack.c.h.b16 %v1412
        %v4110 = vunpack.c.l.b16 %v1413
        %v4111 = vunpack.c.h.b16 %v1413
        %v4112 = vunpack.c.l.b16 %v1414
        %v4113 = vunpack.c.h.b16 %v1414
        %v4114 = vunpack.c.l.b16 %v1415
        %v4115 = vunpack.c.h.b16 %v1415
        %v4116 = vunpack.c.l.b16 %v1416
        %v4117 = vunpack.c.h.b16 %v1416
        %v4118 = vunpack.c.l.b16 %v1417
        %v4119 = vunpack.c.h.b16 %v1417
        %v4120 = vunpack.c.l.b16 %v1418
        %v4121 = vunpack.c.h.b16 %v1418
        %v4122 = vunpack.c.l.b16 %v1419
        %v4123 = vunpack.c.h.b16 %v1419
        %v4124 = vunpack.c.l.b16 %v1420
        %v4125 = vunpack.c.h.b16 %v1420
        %v4126 = vunpack.c.l.b16 %v1421
        %v4127 = vunpack.c.h.b16 %v1421
        %v4128 = vunpack.c.l.b16 %v1422
        %v4129 = vunpack.c.h.b16 %v1422
        %v4130 = vunpack.c.l.b16 %v1423
        %v4131 = vunpack.c.h.b16 %v1423
        %v4132 = vunpack.c.l.b16 %v1424
        %v4133 = vunpack.c.h.b16 %v1424
        %v4134 = vunpack.c.l.b16 %v1425
        %v4135 = vunpack.c.h.b16 %v1425
        %v4136 = vunpack.c.l.b16 %v1426
        %v4137 = vunpack.c.h.b16 %v1426
        %v4138 = vunpack.c.l.b16 %v1427
        %v4139 = vunpack.c.h.b16 %v1427
        %v4140 = vunpack.c.l.b16 %v1428
        %v4141 = vunpack.c.h.b16 %v1428
        %v4142 = vunpack.c.l.b16 %v1429
        %v4143 = vunpack.c.h.b16 %v1429
        %v4144 = vunpack.c.l.b16 %v1430
        %v4145 = vunpack.c.h.b16 %v1430
        %v4146 = vunpack.c.l.b16 %v1431
        %v4147 = vunpack.c.h.b16 %v1431
        %v4148 = vunpack.c.l.b16 %v1432
        %v4149 = vunpack.c.h.b16 %v1432
        %v4150 = vunpack.c.l.b16 %v1433
        %v4151 = vunpack.c.h.b16 %v1433
        %v4152 = vunpack.c.l.b16 %v1434
        %v4153 = vunpack.c.h.b16 %v1434
        %v4154 = vunpack.c.l.b16 %v1435
        %v4155 = vunpack.c.h.b16 %v1435
        %v4156 = vunpack.c.l.b16 %v1436
        %v4157 = vunpack.c.h.b16 %v1436
        %v4158 = vunpack.c.l.b16 %v1437
        %v4159 = vunpack.c.h.b16 %v1437
        %v4160 = vunpack.c.l.b16 %v1438
        %v4161 = vunpack.c.h.b16 %v1438
        %v4162 = vunpack.c.l.b16 %v1439
        %v4163 = vunpack.c.h.b16 %v1439
        %v4164 = vunpack.c.l.b16 %v1440
        %v4165 = vunpack.c.h.b16 %v1440
        %v4166 = vunpack.c.l.b16 %v1441
        %v4167 = vunpack.c.h.b16 %v1441
        %v4168 = vunpack.c.l.b16 %v1442
        %v4169 = vunpack.c.h.b16 %v1442
        %v4170 = vunpack.c.l.b16 %v1443
        %v4171 = vunpack.c.h.b16 %v1443
        %v4172 = vunpack.c.l.b16 %v1444
        %v4173 = vunpack.c.h.b16 %v1444
        %v4174 = vunpack.c.l.b16 %v1445
        %v4175 = vunpack.c.h.b16 %v1445
        %v4176 = vunpack.c.l.b16 %v1446
        %v4177 = vunpack.c.h.b16 %v1446
        %v4178 = vunpack.c.l.b16 %v1447
        %v4179 = vunpack.c.h.b16 %v1447
        %v4180 = vunpack.c.l.b16 %v1448
        %v4181 = vunpack.c.h.b16 %v1448
        %v4182 = vunpack.c.l.b16 %v1449
        %v4183 = vunpack.c.h.b16 %v1449
        %v4184 = vunpack.c.l.b16 %v1450
        %v4185 = vunpack.c.h.b16 %v1450
        %v4186 = vunpack.c.l.b16 %v1451
        %v4187 = vunpack.c.h.b16 %v1451
        %v4188 = vunpack.c.l.b16 %v1452
        %v4189 = vunpack.c.h.b16 %v1452
        %v4190 = vunpack.c.l.b16 %v1453
        %v4191 = vunpack.c.h.b16 %v1453
        %v4192 = vunpack.c.l.b16 %v1454
        %v4193 = vunpack.c.h.b16 %v1454
        %v4194 = vunpack.c.l.b16 %v1455
        %v4195 = vunpack.c.h.b16 %v1455
        %v4196 = vunpack.c.l.b16 %v1456
        %v4197 = vunpack.c.h.b16 %v1456
        %v4198 = vunpack.c.l.b16 %v1457
        %v4199 = vunpack.c.h.b16 %v1457
        %v4200 = vunpack.c.l.b16 %v1458
        %v4201 = vunpack.c.h.b16 %v1458
        %v4202 = vunpack.c.l.b16 %v1459
        %v4203 = vunpack.c.h.b16 %v1459
        %v4204 = vunpack.c.l.b16 %v1460
        %v4205 = vunpack.c.h.b16 %v1460
        %v4206 = vunpack.c.l.b16 %v1461
        %v4207 = vunpack.c.h.b16 %v1461
        %v4208 = vunpack.c.l.b16 %v1462
        %v4209 = vunpack.c.h.b16 %v1462
        %v4210 = vunpack.c.l.b16 %v1463
        %v4211 = vunpack.c.h.b16 %v1463
        %v4212 = vunpack.c.l.b16 %v1464
        %v4213 = vunpack.c.h.b16 %v1464
        %v4214 = vunpack.c.l.b16 %v1465
        %v4215 = vunpack.c.h.b16 %v1465
        %v4216 = vunpack.c.l.b16 %v1466
        %v4217 = vunpack.c.h.b16 %v1466
        %v4218 = vunpack.c.l.b16 %v1467
        %v4219 = vunpack.c.h.b16 %v1467
        %v4220 = vunpack.c.l.b16 %v1468
        %v4221 = vunpack.c.h.b16 %v1468
        %v4222 = vunpack.c.l.b16 %v1469
        %v4223 = vunpack.c.h.b16 %v1469
        %v4224 = vunpack.c.l.b16 %v1470
        %v4225 = vunpack.c.h.b16 %v1470
        %v4226 = vunpack.c.l.b16 %v1471
        %v4227 = vunpack.c.h.b16 %v1471
        %v4228 = vunpack.c.l.b16 %v1472
        %v4229 = vunpack.c.h.b16 %v1472
        %v4230 = vunpack.c.l.b16 %v1473
        %v4231 = vunpack.c.h.b16 %v1473
        %v4232 = vunpack.c.l.b16 %v1474
        %v4233 = vunpack.c.h.b16 %v1474
        %v4234 = vunpack.c.l.b16 %v1475
        %v4235 = vunpack.c.h.b16 %v1475
        %v4236 = vunpack.c.l.b16 %v1476
        %v4237 = vunpack.c.h.b16 %v1476
        %v4238 = vunpack.c.l.b16 %v1477
        %v4239 = vunpack.c.h.b16 %v1477
        %v4240 = vunpack.c.l.b16 %v1478
        %v4241 = vunpack.c.h.b16 %v1478
        %v4242 = vunpack.c.l.b16 %v1479
        %v4243 = vunpack.c.h.b16 %v1479
        %v4244 = vunpack.c.l.b16 %v1480
        %v4245 = vunpack.c.h.b16 %v1480
        %v4246 = vunpack.c.l.b16 %v1481
        %v4247 = vunpack.c.h.b16 %v1481
        %v4248 = vunpack.c.l.b16 %v1482
        %v4249 = vunpack.c.h.b16 %v1482
        %v4250 = vunpack.c.l.b16 %v1483
        %v4251 = vunpack.c.h.b16 %v1483
        %v4252 = vunpack.c.l.b16 %v1484
        %v4253 = vunpack.c.h.b16 %v1484
        %v4254 = vunpack.c.l.b16 %v1485
        %v4255 = vunpack.c.h.b16 %v1485
        %v4256 = vunpack.c.l.b16 %v1486
        %v4257 = vunpack.c.h.b16 %v1486
        %v4258 = vunpack.c.l.b16 %v1487
        %v4259 = vunpack.c.h.b16 %v1487
        %v4260 = vunpack.c.l.b16 %v1488
        %v4261 = vunpack.c.h.b16 %v1488
        %v4262 = vunpack.c.l.b16 %v1489
        %v4263 = vunpack.c.h.b16 %v1489
        %v4264 = vunpack.c.l.b16 %v1490
        %v4265 = vunpack.c.h.b16 %v1490
        %v4266 = vunpack.c.l.b16 %v1491
        %v4267 = vunpack.c.h.b16 %v1491
        %v4268 = vunpack.c.l.b16 %v1492
        %v4269 = vunpack.c.h.b16 %v1492
        %v4270 = vunpack.c.l.b16 %v1493
        %v4271 = vunpack.c.h.b16 %v1493
        %v4272 = vunpack.c.l.b16 %v1494
        %v4273 = vunpack.c.h.b16 %v1494
        %v4274 = vunpack.c.l.b16 %v1495
        %v4275 = vunpack.c.h.b16 %v1495
        %v4276 = vunpack.c.l.b16 %v1496
        %v4277 = vunpack.c.h.b16 %v1496
        %v4278 = vunpack.c.l.b16 %v1497
        %v4279 = vunpack.c.h.b16 %v1497
        %v4280 = vunpack.c.l.b16 %v1498
        %v4281 = vunpack.c.h.b16 %v1498
        %v4282 = vunpack.c.l.b16 %v1499
        %v4283 = vunpack.c.h.b16 %v1499
        %v4284 = vunpack.c.l.b16 %v1500
        %v4285 = vunpack.c.h.b16 %v1500
        %v4286 = vunpack.c.l.b16 %v1501
        %v4287 = vunpack.c.h.b16 %v1501
        %v4288 = vunpack.c.l.b16 %v1502
        %v4289 = vunpack.c.h.b16 %v1502
        %v4290 = vunpack.c.l.b16 %v1503
        %v4291 = vunpack.c.h.b16 %v1503
        %v4292 = vunpack.c.l.b16 %v1504
        %v4293 = vunpack.c.h.b16 %v1504
        %v4294 = vunpack.c.l.b16 %v1505
        %v4295 = vunpack.c.h.b16 %v1505
        %v4296 = vunpack.c.l.b16 %v1506
        %v4297 = vunpack.c.h.b16 %v1506
        %v4298 = vunpack.c.l.b16 %v1507
        %v4299 = vunpack.c.h.b16 %v1507
        %v4300 = vunpack.c.l.b16 %v1508
        %v4301 = vunpack.c.h.b16 %v1508
        %v4302 = vunpack.c.l.b16 %v1509
        %v4303 = vunpack.c.h.b16 %v1509
        %v4304 = vunpack.c.l.b16 %v1510
        %v4305 = vunpack.c.h.b16 %v1510
        %v4306 = vunpack.c.l.b16 %v1511
        %v4307 = vunpack.c.h.b16 %v1511
        %v4308 = vunpack.c.l.b16 %v1512
        %v4309 = vunpack.c.h.b16 %v1512
        %v4310 = vunpack.c.l.b16 %v1513
        %v4311 = vunpack.c.h.b16 %v1513
        %v4312 = vunpack.c.l.b16 %v1514
        %v4313 = vunpack.c.h.b16 %v1514
        %v4314 = vunpack.c.l.b16 %v1515
        %v4315 = vunpack.c.h.b16 %v1515
        %v4316 = vunpack.c.l.b16 %v1516
        %v4317 = vunpack.c.h.b16 %v1516
        %v4318 = vunpack.c.l.b16 %v1517
        %v4319 = vunpack.c.h.b16 %v1517
        %v4320 = vunpack.c.l.b16 %v1518
        %v4321 = vunpack.c.h.b16 %v1518
        %v4322 = vunpack.c.l.b16 %v1519
        %v4323 = vunpack.c.h.b16 %v1519
        %v4324 = vunpack.c.l.b16 %v1520
        %v4325 = vunpack.c.h.b16 %v1520
        %v4326 = vunpack.c.l.b16 %v1521
        %v4327 = vunpack.c.h.b16 %v1521
        %v4328 = vunpack.c.l.b16 %v1522
        %v4329 = vunpack.c.h.b16 %v1522
        %v4330 = vunpack.c.l.b16 %v1523
        %v4331 = vunpack.c.h.b16 %v1523
        %v4332 = vunpack.c.l.b16 %v1524
        %v4333 = vunpack.c.h.b16 %v1524
        %v4334 = vunpack.c.l.b16 %v1525
        %v4335 = vunpack.c.h.b16 %v1525
        %v4336 = vunpack.c.l.b16 %v1526
        %v4337 = vunpack.c.h.b16 %v1526
        %v4338 = vunpack.c.l.b16 %v1527
        %v4339 = vunpack.c.h.b16 %v1527
        %v4340 = vunpack.c.l.b16 %v1528
        %v4341 = vunpack.c.h.b16 %v1528
        %v4342 = vunpack.c.l.b16 %v1529
        %v4343 = vunpack.c.h.b16 %v1529
        %v4344 = vunpack.c.l.b16 %v1530
        %v4345 = vunpack.c.h.b16 %v1530
        %v4346 = vunpack.c.l.b16 %v1531
        %v4347 = vunpack.c.h.b16 %v1531
        %v4348 = vunpack.c.l.b16 %v1532
        %v4349 = vunpack.c.h.b16 %v1532
        %v4350 = vunpack.c.l.b16 %v1533
        %v4351 = vunpack.c.h.b16 %v1533
        %v4352 = vunpack.c.l.b16 %v1534
        %v4353 = vunpack.c.h.b16 %v1534
        %v4354 = vunpack.c.l.b16 %v1535
        %v4355 = vunpack.c.h.b16 %v1535
        %v4356 = vunpack.c.l.b16 %v1536
        %v4357 = vunpack.c.h.b16 %v1536
        %v4358 = vunpack.c.l.b16 %v1537
        %v4359 = vunpack.c.h.b16 %v1537
        %v4360 = vunpack.c.l.b16 %v1538
        %v4361 = vunpack.c.h.b16 %v1538
        %v4362 = vunpack.c.l.b16 %v1539
        %v4363 = vunpack.c.h.b16 %v1539
        %v4364 = vunpack.c.l.b16 %v1540
        %v4365 = vunpack.c.h.b16 %v1540
        %v4366 = vunpack.c.l.b16 %v1541
        %v4367 = vunpack.c.h.b16 %v1541
        %v4368 = vunpack.c.l.b16 %v1542
        %v4369 = vunpack.c.h.b16 %v1542
        %v4370 = vunpack.c.l.b16 %v1543
        %v4371 = vunpack.c.h.b16 %v1543
        %v4372 = vunpack.c.l.b16 %v1544
        %v4373 = vunpack.c.h.b16 %v1544
        %v4374 = vunpack.c.l.b16 %v1545
        %v4375 = vunpack.c.h.b16 %v1545
        %v4376 = vunpack.c.l.b16 %v1546
        %v4377 = vunpack.c.h.b16 %v1546
        %v4378 = vunpack.c.l.b16 %v1547
        %v4379 = vunpack.c.h.b16 %v1547
        %v4380 = vunpack.c.l.b16 %v1548
        %v4381 = vunpack.c.h.b16 %v1548
        %v4382 = vunpack.c.l.b16 %v1549
        %v4383 = vunpack.c.h.b16 %v1549
        %v4384 = vunpack.c.l.b16 %v1550
        %v4385 = vunpack.c.h.b16 %v1550
        %v4386 = vunpack.c.l.b16 %v1551
        %v4387 = vunpack.c.h.b16 %v1551
        %v4388 = vunpack.c.l.b16 %v1552
        %v4389 = vunpack.c.h.b16 %v1552
        %v4390 = vunpack.c.l.b16 %v1553
        %v4391 = vunpack.c.h.b16 %v1553
        %v4392 = vunpack.c.l.b16 %v1554
        %v4393 = vunpack.c.h.b16 %v1554
        %v4394 = vunpack.c.l.b16 %v1555
        %v4395 = vunpack.c.h.b16 %v1555
        %v4396 = vunpack.c.l.b16 %v1556
        %v4397 = vunpack.c.h.b16 %v1556
        %v4398 = vunpack.c.l.b16 %v1557
        %v4399 = vunpack.c.h.b16 %v1557
        %v4400 = vunpack.c.l.b16 %v1558
        %v4401 = vunpack.c.h.b16 %v1558
        %v4402 = vunpack.c.l.b16 %v1559
        %v4403 = vunpack.c.h.b16 %v1559
        %v4404 = vunpack.c.l.b16 %v1560
        %v4405 = vunpack.c.h.b16 %v1560
        %v4406 = vunpack.c.l.b16 %v1561
        %v4407 = vunpack.c.h.b16 %v1561
        %v4408 = vunpack.c.l.b16 %v1562
        %v4409 = vunpack.c.h.b16 %v1562
        %v4410 = vunpack.c.l.b16 %v1563
        %v4411 = vunpack.c.h.b16 %v1563
        %v4412 = vunpack.c.l.b16 %v1564
        %v4413 = vunpack.c.h.b16 %v1564
        %v4414 = vunpack.c.l.b16 %v1565
        %v4415 = vunpack.c.h.b16 %v1565
        %v4416 = vunpack.c.l.b16 %v1566
        %v4417 = vunpack.c.h.b16 %v1566
        %v4418 = vunpack.c.l.b16 %v1567
        %v4419 = vunpack.c.h.b16 %v1567
        %v4420 = vunpack.c.l.b16 %v1568
        %v4421 = vunpack.c.h.b16 %v1568
        %v4422 = vunpack.c.l.b16 %v1569
        %v4423 = vunpack.c.h.b16 %v1569
        %v4424 = vunpack.c.l.b16 %v1570
        %v4425 = vunpack.c.h.b16 %v1570
        %v4426 = vunpack.c.l.b16 %v1571
        %v4427 = vunpack.c.h.b16 %v1571
        %v4428 = vunpack.c.l.b16 %v1572
        %v4429 = vunpack.c.h.b16 %v1572
        %v4430 = vunpack.c.l.b16 %v1573
        %v4431 = vunpack.c.h.b16 %v1573
        %v4432 = vunpack.c.l.b16 %v1574
        %v4433 = vunpack.c.h.b16 %v1574
        %v4434 = vunpack.c.l.b16 %v1575
        %v4435 = vunpack.c.h.b16 %v1575
        %v4436 = vunpack.c.l.b16 %v1576
        %v4437 = vunpack.c.h.b16 %v1576
        %v4438 = vunpack.c.l.b16 %v1577
        %v4439 = vunpack.c.h.b16 %v1577
        %v4440 = vunpack.c.l.b16 %v1578
        %v4441 = vunpack.c.h.b16 %v1578
        %v4442 = vunpack.c.l.b16 %v1579
        %v4443 = vunpack.c.h.b16 %v1579
        %v4444 = vunpack.c.l.b16 %v1580
        %v4445 = vunpack.c.h.b16 %v1580
        %v4446 = vunpack.c.l.b16 %v1581
        %v4447 = vunpack.c.h.b16 %v1581
        %v4448 = vunpack.c.l.b16 %v1582
        %v4449 = vunpack.c.h.b16 %v1582
        %v4450 = vunpack.c.l.b16 %v1583
        %v4451 = vunpack.c.h.b16 %v1583
        %v4452 = vunpack.c.l.b16 %v1584
        %v4453 = vunpack.c.h.b16 %v1584
        %v4454 = vunpack.c.l.b16 %v1585
        %v4455 = vunpack.c.h.b16 %v1585
        %v4456 = vunpack.c.l.b16 %v1586
        %v4457 = vunpack.c.h.b16 %v1586
        %v4458 = vunpack.c.l.b16 %v1587
        %v4459 = vunpack.c.h.b16 %v1587
        %v4460 = vunpack.c.l.b16 %v1588
        %v4461 = vunpack.c.h.b16 %v1588
        %v4462 = vunpack.c.l.b16 %v1589
        %v4463 = vunpack.c.h.b16 %v1589
        %v4464 = vunpack.c.l.b16 %v1590
        %v4465 = vunpack.c.h.b16 %v1590
        %v4466 = vunpack.c.l.b16 %v1591
        %v4467 = vunpack.c.h.b16 %v1591
        %v4468 = vunpack.c.l.b16 %v1592
        %v4469 = vunpack.c.h.b16 %v1592
        %v4470 = vunpack.c.l.b16 %v1593
        %v4471 = vunpack.c.h.b16 %v1593
        %v4472 = vunpack.c.l.b16 %v1594
        %v4473 = vunpack.c.h.b16 %v1594
        %v4474 = vunpack.c.l.b16 %v1595
        %v4475 = vunpack.c.h.b16 %v1595
        %v4476 = vunpack.c.l.b16 %v1596
        %v4477 = vunpack.c.h.b16 %v1596
        %v4478 = vunpack.c.l.b16 %v1597
        %v4479 = vunpack.c.h.b16 %v1597
        %v4480 = vunpack.c.l.b16 %v1598
        %v4481 = vunpack.c.h.b16 %v1598
        %v4482 = vunpack.c.l.b16 %v1599
        %v4483 = vunpack.c.h.b16 %v1599
        %v4484 = vunpack.c.l.b16 %v1600
        %v4485 = vunpack.c.h.b16 %v1600
        %v4486 = vunpack.c.l.b16 %v1601
        %v4487 = vunpack.c.h.b16 %v1601
        %v4488 = vunpack.c.l.b16 %v1602
        %v4489 = vunpack.c.h.b16 %v1602
        %v4490 = vunpack.c.l.b16 %v1603
        %v4491 = vunpack.c.h.b16 %v1603
        %v4492 = vunpack.c.l.b16 %v1604
        %v4493 = vunpack.c.h.b16 %v1604
        %v4494 = vunpack.c.l.b16 %v1605
        %v4495 = vunpack.c.h.b16 %v1605
        %v4496 = vunpack.c.l.b16 %v1606
        %v4497 = vunpack.c.h.b16 %v1606
        %v4498 = vunpack.c.l.b16 %v1607
        %v4499 = vunpack.c.h.b16 %v1607
        %v4500 = vunpack.c.l.b16 %v1608
        %v4501 = vunpack.c.h.b16 %v1608
        %v4502 = vunpack.c.l.b16 %v1609
        %v4503 = vunpack.c.h.b16 %v1609
        %v4504 = vunpack.c.l.b16 %v1610
        %v4505 = vunpack.c.h.b16 %v1610
        %v4506 = vunpack.c.l.b16 %v1611
        %v4507 = vunpack.c.h.b16 %v1611
        %v4508 = vunpack.c.l.b16 %v1612
        %v4509 = vunpack.c.h.b16 %v1612
        %v4510 = vunpack.c.l.b16 %v1613
        %v4511 = vunpack.c.h.b16 %v1613
        %v4512 = vunpack.c.l.b16 %v1614
        %v4513 = vunpack.c.h.b16 %v1614
        %v4514 = vunpack.c.l.b16 %v1615
        %v4515 = vunpack.c.h.b16 %v1615
        %v4516 = vunpack.c.l.b16 %v1616
        %v4517 = vunpack.c.h.b16 %v1616
        %v4518 = vunpack.c.l.b16 %v1617
        %v4519 = vunpack.c.h.b16 %v1617
        %v4520 = vunpack.c.l.b16 %v1618
        %v4521 = vunpack.c.h.b16 %v1618
        %v4522 = vunpack.c.l.b16 %v1619
        %v4523 = vunpack.c.h.b16 %v1619
        %v4524 = vunpack.c.l.b16 %v1620
        %v4525 = vunpack.c.h.b16 %v1620
        %v4526 = vunpack.c.l.b16 %v1621
        %v4527 = vunpack.c.h.b16 %v1621
        %v4528 = vunpack.c.l.b16 %v1622
        %v4529 = vunpack.c.h.b16 %v1622
        %v4530 = vunpack.c.l.b16 %v1623
        %v4531 = vunpack.c.h.b16 %v1623
        %v4532 = vunpack.c.l.b16 %v1624
        %v4533 = vunpack.c.h.b16 %v1624
        %v4534 = vunpack.c.l.b16 %v1625
        %v4535 = vunpack.c.h.b16 %v1625
        %v4536 = vunpack.c.l.b16 %v1626
        %v4537 = vunpack.c.h.b16 %v1626
        %v4538 = vunpack.c.l.b16 %v1627
        %v4539 = vunpack.c.h.b16 %v1627
        %v4540 = vunpack.c.l.b16 %v1628
        %v4541 = vunpack.c.h.b16 %v1628
        %v4542 = vunpack.c.l.b16 %v1629
        %v4543 = vunpack.c.h.b16 %v1629
        %v4544 = vunpack.c.l.b16 %v1630
        %v4545 = vunpack.c.h.b16 %v1630
        %v4546 = vunpack.c.l.b16 %v1631
        %v4547 = vunpack.c.h.b16 %v1631
        %v4548 = vunpack.c.l.b16 %v1632
        %v4549 = vunpack.c.h.b16 %v1632
        %v4550 = vunpack.c.l.b16 %v1633
        %v4551 = vunpack.c.h.b16 %v1633
        %v4552 = vunpack.c.l.b16 %v1634
        %v4553 = vunpack.c.h.b16 %v1634
        %v4554 = vunpack.c.l.b16 %v1635
        %v4555 = vunpack.c.h.b16 %v1635
        %v4556 = vunpack.c.l.b16 %v1636
        %v4557 = vunpack.c.h.b16 %v1636
        %v4558 = vunpack.c.l.b16 %v1637
        %v4559 = vunpack.c.h.b16 %v1637
        %v4560 = vunpack.c.l.b16 %v1638
        %v4561 = vunpack.c.h.b16 %v1638
        %v4562 = vunpack.c.l.b16 %v1639
        %v4563 = vunpack.c.h.b16 %v1639
        %v4564 = vunpack.c.l.b16 %v1640
        %v4565 = vunpack.c.h.b16 %v1640
        %v4566 = vunpack.c.l.b16 %v1641
        %v4567 = vunpack.c.h.b16 %v1641
        %v4568 = vunpack.c.l.b16 %v1642
        %v4569 = vunpack.c.h.b16 %v1642
        %v4570 = vunpack.c.l.b16 %v1643
        %v4571 = vunpack.c.h.b16 %v1643
        %v4572 = vunpack.c.l.b16 %v1644
        %v4573 = vunpack.c.h.b16 %v1644
        %v4574 = vunpack.c.l.b16 %v1645
        %v4575 = vunpack.c.h.b16 %v1645
        %v4576 = vunpack.c.l.b16 %v1646
        %v4577 = vunpack.c.h.b16 %v1646
        %v4578 = vunpack.c.l.b16 %v1647
        %v4579 = vunpack.c.h.b16 %v1647
        %v4580 = vunpack.c.l.b16 %v1648
        %v4581 = vunpack.c.h.b16 %v1648
        %v4582 = vunpack.c.l.b16 %v1649
        %v4583 = vunpack.c.h.b16 %v1649
        %v4584 = vunpack.c.l.b16 %v1650
        %v4585 = vunpack.c.h.b16 %v1650
        %v4586 = vunpack.c.l.b16 %v1651
        %v4587 = vunpack.c.h.b16 %v1651
        %v4588 = vunpack.c.l.b16 %v1652
        %v4589 = vunpack.c.h.b16 %v1652
        %v4590 = vunpack.c.l.b16 %v1653
        %v4591 = vunpack.c.h.b16 %v1653
        %v4592 = vunpack.c.l.b16 %v1654
        %v4593 = vunpack.c.h.b16 %v1654
        %v4594 = vunpack.c.l.b16 %v1655
        %v4595 = vunpack.c.h.b16 %v1655
        %v4596 = vunpack.c.l.b16 %v1656
        %v4597 = vunpack.c.h.b16 %v1656
        %v4598 = vunpack.c.l.b16 %v1657
        %v4599 = vunpack.c.h.b16 %v1657
        %v4600 = vunpack.c.l.b16 %v1658
        %v4601 = vunpack.c.h.b16 %v1658
        %v4602 = vunpack.c.l.b16 %v1659
        %v4603 = vunpack.c.h.b16 %v1659
        %v4604 = vunpack.c.l.b16 %v1660
        %v4605 = vunpack.c.h.b16 %v1660
        %v4606 = vunpack.c.l.b16 %v1661
        %v4607 = vunpack.c.h.b16 %v1661
        %v4608 = vunpack.c.l.b16 %v1662
        %v4609 = vunpack.c.h.b16 %v1662
        %v4610 = vunpack.c.l.b16 %v1663
        %v4611 = vunpack.c.h.b16 %v1663
        %v4612 = vunpack.c.l.b16 %v1664
        %v4613 = vunpack.c.h.b16 %v1664
        %v4614 = vunpack.c.l.b16 %v1665
        %v4615 = vunpack.c.h.b16 %v1665
        %v4616 = vunpack.c.l.b16 %v1666
        %v4617 = vunpack.c.h.b16 %v1666
        %v4618 = vunpack.c.l.b16 %v1667
        %v4619 = vunpack.c.h.b16 %v1667
        %v4620 = vunpack.c.l.b16 %v1668
        %v4621 = vunpack.c.h.b16 %v1668
        %v4622 = vunpack.c.l.b16 %v1669
        %v4623 = vunpack.c.h.b16 %v1669
        %v4624 = vunpack.c.l.b16 %v1670
        %v4625 = vunpack.c.h.b16 %v1670
        %v4626 = vunpack.c.l.b16 %v1671
        %v4627 = vunpack.c.h.b16 %v1671
        %v4628 = vunpack.c.l.b16 %v1672
        %v4629 = vunpack.c.h.b16 %v1672
        %v4630 = vunpack.c.l.b16 %v1673
        %v4631 = vunpack.c.h.b16 %v1673
        %v4632 = vunpack.c.l.b16 %v1674
        %v4633 = vunpack.c.h.b16 %v1674
        %v4634 = vunpack.c.l.b16 %v1675
        %v4635 = vunpack.c.h.b16 %v1675
        %v4636 = vunpack.c.l.b16 %v1676
        %v4637 = vunpack.c.h.b16 %v1676
        %v4638 = vunpack.c.l.b16 %v1677
        %v4639 = vunpack.c.h.b16 %v1677
        %v4640 = vunpack.c.l.b16 %v1678
        %v4641 = vunpack.c.h.b16 %v1678
        %v4642 = vunpack.c.l.b16 %v1679
        %v4643 = vunpack.c.h.b16 %v1679
        %v4644 = vunpack.c.l.b16 %v1680
        %v4645 = vunpack.c.h.b16 %v1680
        %v4646 = vunpack.c.l.b16 %v1681
        %v4647 = vunpack.c.h.b16 %v1681
        %v4648 = vunpack.c.l.b16 %v1682
        %v4649 = vunpack.c.h.b16 %v1682
        %v4650 = vunpack.c.l.b16 %v1683
        %v4651 = vunpack.c.h.b16 %v1683
        %v4652 = vunpack.c.l.b16 %v1684
        %v4653 = vunpack.c.h.b16 %v1684
        %v4654 = vunpack.c.l.b16 %v1685
        %v4655 = vunpack.c.h.b16 %v1685
        %v4656 = vunpack.c.l.b16 %v1686
        %v4657 = vunpack.c.h.b16 %v1686
        %v4658 = vunpack.c.l.b16 %v1687
        %v4659 = vunpack.c.h.b16 %v1687
        %v4660 = vunpack.c.l.b16 %v1688
        %v4661 = vunpack.c.h.b16 %v1688
        %v4662 = vunpack.c.l.b16 %v1689
        %v4663 = vunpack.c.h.b16 %v1689
        %v4664 = vunpack.c.l.b16 %v1690
        %v4665 = vunpack.c.h.b16 %v1690
        %v4666 = vunpack.c.l.b16 %v1691
        %v4667 = vunpack.c.h.b16 %v1691
        %v4668 = vunpack.c.l.b16 %v1692
        %v4669 = vunpack.c.h.b16 %v1692
        %v4670 = vunpack.c.l.b16 %v1693
        %v4671 = vunpack.c.h.b16 %v1693
        %v4672 = vunpack.c.l.b16 %v1694
        %v4673 = vunpack.c.h.b16 %v1694
        %v4674 = vunpack.c.l.b16 %v1695
        %v4675 = vunpack.c.h.b16 %v1695
        %v4676 = vunpack.c.l.b16 %v1696
        %v4677 = vunpack.c.h.b16 %v1696
        %v4678 = vunpack.c.l.b16 %v1697
        %v4679 = vunpack.c.h.b16 %v1697
        %v4680 = vunpack.c.l.b16 %v1698
        %v4681 = vunpack.c.h.b16 %v1698
        %v4682 = vunpack.c.l.b16 %v1699
        %v4683 = vunpack.c.h.b16 %v1699
        %v4684 = vunpack.c.l.b16 %v1700
        %v4685 = vunpack.c.h.b16 %v1700
        %v4686 = vunpack.c.l.b16 %v1701
        %v4687 = vunpack.c.h.b16 %v1701
        %v4688 = vunpack.c.l.b16 %v1702
        %v4689 = vunpack.c.h.b16 %v1702
        %v4690 = vunpack.c.l.b16 %v1703
        %v4691 = vunpack.c.h.b16 %v1703
        %v4692 = vunpack.c.l.b16 %v1704
        %v4693 = vunpack.c.h.b16 %v1704
        %v4694 = vunpack.c.l.b16 %v1705
        %v4695 = vunpack.c.h.b16 %v1705
        %v4696 = vunpack.c.l.b16 %v1706
        %v4697 = vunpack.c.h.b16 %v1706
        %v4698 = vunpack.c.l.b16 %v1707
        %v4699 = vunpack.c.h.b16 %v1707
        %v4700 = vunpack.c.l.b16 %v1708
        %v4701 = vunpack.c.h.b16 %v1708
        %v4702 = vunpack.c.l.b16 %v1709
        %v4703 = vunpack.c.h.b16 %v1709
        %v4704 = vunpack.c.l.b16 %v1710
        %v4705 = vunpack.c.h.b16 %v1710
        %v4706 = vunpack.c.l.b16 %v1711
        %v4707 = vunpack.c.h.b16 %v1711
        %v4708 = vunpack.c.l.b16 %v1712
        %v4709 = vunpack.c.h.b16 %v1712
        %v4710 = vunpack.c.l.b16 %v1713
        %v4711 = vunpack.c.h.b16 %v1713
        %v4712 = vunpack.c.l.b16 %v1714
        %v4713 = vunpack.c.h.b16 %v1714
        %v4714 = vunpack.c.l.b16 %v1715
        %v4715 = vunpack.c.h.b16 %v1715
        %v4716 = vunpack.c.l.b16 %v1716
        %v4717 = vunpack.c.h.b16 %v1716
        %v4718 = vunpack.c.l.b16 %v1717
        %v4719 = vunpack.c.h.b16 %v1717
        %v4720 = vunpack.c.l.b16 %v1718
        %v4721 = vunpack.c.h.b16 %v1718
        %v4722 = vunpack.c.l.b16 %v1719
        %v4723 = vunpack.c.h.b16 %v1719
        %v4724 = vunpack.c.l.b16 %v1720
        %v4725 = vunpack.c.h.b16 %v1720
        %v4726 = vunpack.c.l.b16 %v1721
        %v4727 = vunpack.c.h.b16 %v1721
        %v4728 = vunpack.c.l.b16 %v1722
        %v4729 = vunpack.c.h.b16 %v1722
        %v4730 = vunpack.c.l.b16 %v1723
        %v4731 = vunpack.c.h.b16 %v1723
        %v4732 = vunpack.c.l.b16 %v1724
        %v4733 = vunpack.c.h.b16 %v1724
        %v4734 = vunpack.c.l.b16 %v1725
        %v4735 = vunpack.c.h.b16 %v1725
        %v4736 = vunpack.c.l.b16 %v1726
        %v4737 = vunpack.c.h.b16 %v1726
        %v4738 = vunpack.c.l.b16 %v1727
        %v4739 = vunpack.c.h.b16 %v1727
        %v4740 = vunpack.c.l.b16 %v1728
        %v4741 = vunpack.c.h.b16 %v1728
        %v4742 = vunpack.c.l.b16 %v1729
        %v4743 = vunpack.c.h.b16 %v1729
        %v4744 = vunpack.c.l.b16 %v1730
        %v4745 = vunpack.c.h.b16 %v1730
        %v4746 = vunpack.c.l.b16 %v1731
        %v4747 = vunpack.c.h.b16 %v1731
        %v4748 = vunpack.c.l.b16 %v1732
        %v4749 = vunpack.c.h.b16 %v1732
        %v4750 = vunpack.c.l.b16 %v1733
        %v4751 = vunpack.c.h.b16 %v1733
        %v4752 = vunpack.c.l.b16 %v1734
        %v4753 = vunpack.c.h.b16 %v1734
        %v4754 = vunpack.c.l.b16 %v1735
        %v4755 = vunpack.c.h.b16 %v1735
        %v4756 = vunpack.c.l.b16 %v1736
        %v4757 = vunpack.c.h.b16 %v1736
        %v4758 = vunpack.c.l.b16 %v1737
        %v4759 = vunpack.c.h.b16 %v1737
        %v4760 = vunpack.c.l.b16 %v1738
        %v4761 = vunpack.c.h.b16 %v1738
        %v4762 = vunpack.c.l.b16 %v1739
        %v4763 = vunpack.c.h.b16 %v1739
        %v4764 = vunpack.c.l.b16 %v1740
        %v4765 = vunpack.c.h.b16 %v1740
        %v4766 = vunpack.c.l.b16 %v1741
        %v4767 = vunpack.c.h.b16 %v1741
        %v4768 = vunpack.c.l.b16 %v1742
        %v4769 = vunpack.c.h.b16 %v1742
        %v4770 = vunpack.c.l.b16 %v1743
        %v4771 = vunpack.c.h.b16 %v1743
        %v4772 = vunpack.c.l.b16 %v1744
        %v4773 = vunpack.c.h.b16 %v1744
        %v4774 = vunpack.c.l.b16 %v1745
        %v4775 = vunpack.c.h.b16 %v1745
        %v4776 = vunpack.c.l.b16 %v1746
        %v4777 = vunpack.c.h.b16 %v1746
        %v4778 = vunpack.c.l.b16 %v1747
        %v4779 = vunpack.c.h.b16 %v1747
        %v4780 = vunpack.c.l.b16 %v1748
        %v4781 = vunpack.c.h.b16 %v1748
        %v4782 = vunpack.c.l.b16 %v1749
        %v4783 = vunpack.c.h.b16 %v1749
        %v4784 = vunpack.c.l.b16 %v1750
        %v4785 = vunpack.c.h.b16 %v1750
        %v4786 = vunpack.c.l.b16 %v1751
        %v4787 = vunpack.c.h.b16 %v1751
        %v4788 = vunpack.c.l.b16 %v1752
        %v4789 = vunpack.c.h.b16 %v1752
        %v4790 = vunpack.c.l.b16 %v1753
        %v4791 = vunpack.c.h.b16 %v1753
        %v4792 = vunpack.c.l.b16 %v1754
        %v4793 = vunpack.c.h.b16 %v1754
        %v4794 = vunpack.c.l.b16 %v1755
        %v4795 = vunpack.c.h.b16 %v1755
        %v4796 = vunpack.c.l.b16 %v1756
        %v4797 = vunpack.c.h.b16 %v1756
        %v4798 = vunpack.c.l.b16 %v1757
        %v4799 = vunpack.c.h.b16 %v1757
        %v4800 = vunpack.c.l.b16 %v1758
        %v4801 = vunpack.c.h.b16 %v1758
        %v4802 = vunpack.c.l.b16 %v1759
        %v4803 = vunpack.c.h.b16 %v1759
        %v4804 = vunpack.c.l.b16 %v1760
        %v4805 = vunpack.c.h.b16 %v1760
        %v4806 = vunpack.c.l.b16 %v1761
        %v4807 = vunpack.c.h.b16 %v1761
        %v4808 = vunpack.c.l.b16 %v1762
        %v4809 = vunpack.c.h.b16 %v1762
        %v4810 = vunpack.c.l.b16 %v1763
        %v4811 = vunpack.c.h.b16 %v1763
        %v4812 = vunpack.c.l.b16 %v1764
        %v4813 = vunpack.c.h.b16 %v1764
        %v4814 = vunpack.c.l.b16 %v1765
        %v4815 = vunpack.c.h.b16 %v1765
        %v4816 = vunpack.c.l.b16 %v1766
        %v4817 = vunpack.c.h.b16 %v1766
        %v4818 = vunpack.c.l.b16 %v1767
        %v4819 = vunpack.c.h.b16 %v1767
        %v4820 = vunpack.c.l.b16 %v1768
        %v4821 = vunpack.c.h.b16 %v1768
        %v4822 = vunpack.c.l.b16 %v1769
        %v4823 = vunpack.c.h.b16 %v1769
        %v4824 = vunpack.c.l.b16 %v1770
        %v4825 = vunpack.c.h.b16 %v1770
        %v4826 = vunpack.c.l.b16 %v1771
        %v4827 = vunpack.c.h.b16 %v1771
        %v4828 = vunpack.c.l.b16 %v1772
        %v4829 = vunpack.c.h.b16 %v1772
        %v4830 = vunpack.c.l.b16 %v1773
        %v4831 = vunpack.c.h.b16 %v1773
        %v4832 = vunpack.c.l.b16 %v1774
        %v4833 = vunpack.c.h.b16 %v1774
        %v4834 = vunpack.c.l.b16 %v1775
        %v4835 = vunpack.c.h.b16 %v1775
        %v4836 = vunpack.c.l.b16 %v1776
        %v4837 = vunpack.c.h.b16 %v1776
        %v4838 = vunpack.c.l.b16 %v1777
        %v4839 = vunpack.c.h.b16 %v1777
        %v4840 = vunpack.c.l.b16 %v1778
        %v4841 = vunpack.c.h.b16 %v1778
        %v4842 = vunpack.c.l.b16 %v1779
        %v4843 = vunpack.c.h.b16 %v1779
        %v4844 = vunpack.c.l.b16 %v1780
        %v4845 = vunpack.c.h.b16 %v1780
        %v4846 = vunpack.c.l.b16 %v1781
        %v4847 = vunpack.c.h.b16 %v1781
        %v4848 = vunpack.c.l.b16 %v1782
        %v4849 = vunpack.c.h.b16 %v1782
        %v4850 = vunpack.c.l.b16 %v1783
        %v4851 = vunpack.c.h.b16 %v1783
        %v4852 = vunpack.c.l.b16 %v1784
        %v4853 = vunpack.c.h.b16 %v1784
        %v4854 = vunpack.c.l.b16 %v1785
        %v4855 = vunpack.c.h.b16 %v1785
        %v4856 = vunpack.c.l.b16 %v1786
        %v4857 = vunpack.c.h.b16 %v1786
        %v4858 = vunpack.c.l.b16 %v1787
        %v4859 = vunpack.c.h.b16 %v1787
        %v4860 = vunpack.c.l.b16 %v1788
        %v4861 = vunpack.c.h.b16 %v1788
        %v4862 = vunpack.c.l.b16 %v1789
        %v4863 = vunpack.c.h.b16 %v1789
        %v4864 = vunpack.c.l.b16 %v1790
        %v4865 = vunpack.c.h.b16 %v1790
        %v4866 = vunpack.c.l.b16 %v1791
        %v4867 = vunpack.c.h.b16 %v1791
        %v4868 = vunpack.c.l.b16 %v1792
        %v4869 = vunpack.c.h.b16 %v1792
        %v4870 = vunpack.c.l.b16 %v1793
        %v4871 = vunpack.c.h.b16 %v1793
        %v4872 = vunpack.c.l.b16 %v1794
        %v4873 = vunpack.c.h.b16 %v1794
        %v4874 = vunpack.c.l.b16 %v1795
        %v4875 = vunpack.c.h.b16 %v1795
        %v4876 = vunpack.c.l.b16 %v1796
        %v4877 = vunpack.c.h.b16 %v1796
        %v4878 = vunpack.c.l.b16 %v1797
        %v4879 = vunpack.c.h.b16 %v1797
        %v4880 = vunpack.c.l.b16 %v1798
        %v4881 = vunpack.c.h.b16 %v1798
        %v4882 = vunpack.c.l.b16 %v1799
        %v4883 = vunpack.c.h.b16 %v1799
        %v4884 = vunpack.c.l.b16 %v1800
        %v4885 = vunpack.c.h.b16 %v1800
        %v4886 = vunpack.c.l.b16 %v1801
        %v4887 = vunpack.c.h.b16 %v1801
        %v4888 = vunpack.c.l.b16 %v1802
        %v4889 = vunpack.c.h.b16 %v1802
        %v4890 = vunpack.c.l.b16 %v1803
        %v4891 = vunpack.c.h.b16 %v1803
        %v4892 = vunpack.c.l.b16 %v1804
        %v4893 = vunpack.c.h.b16 %v1804
        %v4894 = vunpack.c.l.b16 %v1805
        %v4895 = vunpack.c.h.b16 %v1805
        %v4896 = vunpack.c.l.b16 %v1806
        %v4897 = vunpack.c.h.b16 %v1806
        %v4898 = vunpack.c.l.b16 %v1807
        %v4899 = vunpack.c.h.b16 %v1807
        %v4900 = vunpack.c.l.b16 %v1808
        %v4901 = vunpack.c.h.b16 %v1808
        %v4902 = vunpack.c.l.b16 %v1809
        %v4903 = vunpack.c.h.b16 %v1809
        %v4904 = vunpack.c.l.b16 %v1810
        %v4905 = vunpack.c.h.b16 %v1810
        %v4906 = vunpack.c.l.b16 %v1811
        %v4907 = vunpack.c.h.b16 %v1811
        %v4908 = vunpack.c.l.b16 %v1812
        %v4909 = vunpack.c.h.b16 %v1812
        %v4910 = vunpack.c.l.b16 %v1813
        %v4911 = vunpack.c.h.b16 %v1813
        %v4912 = vunpack.c.l.b16 %v1814
        %v4913 = vunpack.c.h.b16 %v1814
        %v4914 = vunpack.c.l.b16 %v1815
        %v4915 = vunpack.c.h.b16 %v1815
        %v4916 = vunpack.c.l.b16 %v1816
        %v4917 = vunpack.c.h.b16 %v1816
        %v4918 = vunpack.c.l.b16 %v1817
        %v4919 = vunpack.c.h.b16 %v1817
        %v4920 = vunpack.c.l.b16 %v1818
        %v4921 = vunpack.c.h.b16 %v1818
        %v4922 = vunpack.c.l.b16 %v1819
        %v4923 = vunpack.c.h.b16 %v1819
        %v4924 = vunpack.c.l.b16 %v1820
        %v4925 = vunpack.c.h.b16 %v1820
        %v4926 = vunpack.c.l.b16 %v1821
        %v4927 = vunpack.c.h.b16 %v1821
        %v4928 = vunpack.c.l.b16 %v1822
        %v4929 = vunpack.c.h.b16 %v1822
        %v4930 = vunpack.c.l.b16 %v1823
        %v4931 = vunpack.c.h.b16 %v1823
        %v4932 = vunpack.c.l.b16 %v1824
        %v4933 = vunpack.c.h.b16 %v1824
        %v4934 = vunpack.c.l.b16 %v1825
        %v4935 = vunpack.c.h.b16 %v1825
        %v4936 = vunpack.c.l.b16 %v1826
        %v4937 = vunpack.c.h.b16 %v1826
        %v4938 = vunpack.c.l.b16 %v1827
        %v4939 = vunpack.c.h.b16 %v1827
        %v4940 = vunpack.c.l.b16 %v1828
        %v4941 = vunpack.c.h.b16 %v1828
        %v4942 = vunpack.c.l.b16 %v1829
        %v4943 = vunpack.c.h.b16 %v1829
        %v4944 = vunpack.c.l.b16 %v1830
        %v4945 = vunpack.c.h.b16 %v1830
        %v4946 = vunpack.c.l.b16 %v1831
        %v4947 = vunpack.c.h.b16 %v1831
        %v4948 = vunpack.c.l.b16 %v1832
        %v4949 = vunpack.c.h.b16 %v1832
        %v4950 = vunpack.c.l.b16 %v1833
        %v4951 = vunpack.c.h.b16 %v1833
        %v4952 = vunpack.c.l.b16 %v1834
        %v4953 = vunpack.c.h.b16 %v1834
        %v4954 = vunpack.c.l.b16 %v1835
        %v4955 = vunpack.c.h.b16 %v1835
        %v4956 = vunpack.c.l.b16 %v1836
        %v4957 = vunpack.c.h.b16 %v1836
        %v4958 = vunpack.c.l.b16 %v1837
        %v4959 = vunpack.c.h.b16 %v1837
        %v4960 = vunpack.c.l.b16 %v1838
        %v4961 = vunpack.c.h.b16 %v1838
        %v4962 = vunpack.c.l.b16 %v1839
        %v4963 = vunpack.c.h.b16 %v1839
        %v4964 = vunpack.c.l.b16 %v1840
        %v4965 = vunpack.c.h.b16 %v1840
        %v4966 = vunpack.c.l.b16 %v1841
        %v4967 = vunpack.c.h.b16 %v1841
        %v4968 = vunpack.c.l.b16 %v1842
        %v4969 = vunpack.c.h.b16 %v1842
        %v4970 = vunpack.c.l.b16 %v1843
        %v4971 = vunpack.c.h.b16 %v1843
        %v4972 = vunpack.c.l.b16 %v1844
        %v4973 = vunpack.c.h.b16 %v1844
        %v4974 = vunpack.c.l.b16 %v1845
        %v4975 = vunpack.c.h.b16 %v1845
        %v4976 = vunpack.c.l.b16 %v1846
        %v4977 = vunpack.c.h.b16 %v1846
        %v4978 = vunpack.c.l.b16 %v1847
        %v4979 = vunpack.c.h.b16 %v1847
        %v4980 = vunpack.c.l.b16 %v1848
        %v4981 = vunpack.c.h.b16 %v1848
        %v4982 = vunpack.c.l.b16 %v1849
        %v4983 = vunpack.c.h.b16 %v1849
        %v4984 = vunpack.c.l.b16 %v1850
        %v4985 = vunpack.c.h.b16 %v1850
        %v4986 = vunpack.c.l.b16 %v1851
        %v4987 = vunpack.c.h.b16 %v1851
        %v4988 = vunpack.c.l.b16 %v1852
        %v4989 = vunpack.c.h.b16 %v1852
        %v4990 = vunpack.c.l.b16 %v1853
        %v4991 = vunpack.c.h.b16 %v1853
        %v4992 = vunpack.c.l.b16 %v1854
        %v4993 = vunpack.c.h.b16 %v1854
        %v4994 = vunpack.c.l.b16 %v1855
        %v4995 = vunpack.c.h.b16 %v1855
        %v4996 = vunpack.c.l.b16 %v1856
        %v4997 = vunpack.c.h.b16 %v1856
        %v4998 = vunpack.c.l.b16 %v1857
        %v4999 = vunpack.c.h.b16 %v1857
        %v5000 = vunpack.c.l.b16 %v1858
        %v5001 = vunpack.c.h.b16 %v1858
        %v5002 = vunpack.c.l.b16 %v1859
        %v5003 = vunpack.c.h.b16 %v1859
        %v5004 = vunpack.c.l.b16 %v1860
        %v5005 = vunpack.c.h.b16 %v1860
        %v5006 = vunpack.c.l.b16 %v1861
        %v5007 = vunpack.c.h.b16 %v1861
        %v5008 = vunpack.c.l.b16 %v1862
        %v5009 = vunpack.c.h.b16 %v1862
        %v5010 = vunpack.c.l.b16 %v1863
        %v5011 = vunpack.c.h.b16 %v1863
        %v5012 = vunpack.c.l.b16 %v1864
        %v5013 = vunpack.c.h.b16 %v1864
        %v5014 = vunpack.c.l.b16 %v1865
        %v5015 = vunpack.c.h.b16 %v1865
        %v5016 = vunpack.c.l.b16 %v1866
        %v5017 = vunpack.c.h.b16 %v1866
        %v5018 = vunpack.c.l.b16 %v1867
        %v5019 = vunpack.c.h.b16 %v1867
        %v5020 = vunpack.c.l.b16 %v1868
        %v5021 = vunpack.c.h.b16 %v1868
        %v5022 = vunpack.c.l.b16 %v1869
        %v5023 = vunpack.c.h.b16 %v1869
        %v5024 = vunpack.c.l.b16 %v1870
        %v5025 = vunpack.c.h.b16 %v1870
        %v5026 = vunpack.c.l.b16 %v1871
        %v5027 = vunpack.c.h.b16 %v1871
        %v5028 = vpack.c.b16 %v2996, %v2980
        %v5029 = vpack.c.b16 %v2997, %v2981
        %v5030 = vpack.c.b16 %v2998, %v2982
        %v5031 = vpack.c.b16 %v2999, %v2983
        %v5032 = vpack.c.b16 %v3000, %v2984
        %v5033 = vpack.c.b16 %v3001, %v2985
        %v5034 = vpack.c.b16 %v3002, %v2986
        %v5035 = vpack.c.b16 %v3003, %v2987
        %v5036 = vpack.c.b16 %v3004, %v2988
        %v5037 = vpack.c.b16 %v3005, %v2989
        %v5038 = vpack.c.b16 %v3006, %v2990
        %v5039 = vpack.c.b16 %v3007, %v2991
        %v5040 = vpack.c.b16 %v3008, %v2992
        %v5041 = vpack.c.b16 %v3009, %v2993
        %v5042 = vpack.c.b16 %v3010, %v2994
        %v5043 = vpack.c.b16 %v3011, %v2995
        %v5044 = vpack.c.b16 %v3028, %v3012
        %v5045 = vpack.c.b16 %v3029, %v3013
        %v5046 = vpack.c.b16 %v3030, %v3014
        %v5047 = vpack.c.b16 %v3031, %v3015
        %v5048 = vpack.c.b16 %v3032, %v3016
        %v5049 = vpack.c.b16 %v3033, %v3017
        %v5050 = vpack.c.b16 %v3034, %v3018
        %v5051 = vpack.c.b16 %v3035, %v3019
        %v5052 = vpack.c.b16 %v3036, %v3020
        %v5053 = vpack.c.b16 %v3037, %v3021
        %v5054 = vpack.c.b16 %v3038, %v3022
        %v5055 = vpack.c.b16 %v3039, %v3023
        %v5056 = vpack.c.b16 %v3040, %v3024
        %v5057 = vpack.c.b16 %v3041, %v3025
        %v5058 = vpack.c.b16 %v3042, %v3026
        %v5059 = vpack.c.b16 %v3043, %v3027
        %v5060 = vpack.c.b16 %v3060, %v3044
        %v5061 = vpack.c.b16 %v3061, %v3045
        %v5062 = vpack.c.b16 %v3062, %v3046
        %v5063 = vpack.c.b16 %v3063, %v3047
        %v5064 = vpack.c.b16 %v3064, %v3048
        %v5065 = vpack.c.b16 %v3065, %v3049
        %v5066 = vpack.c.b16 %v3066, %v3050
        %v5067 = vpack.c.b16 %v3067, %v3051
        %v5068 = vpack.c.b16 %v3068, %v3052
        %v5069 = vpack.c.b16 %v3069, %v3053
        %v5070 = vpack.c.b16 %v3070, %v3054
        %v5071 = vpack.c.b16 %v3071, %v3055
        %v5072 = vpack.c.b16 %v3072, %v3056
        %v5073 = vpack.c.b16 %v3073, %v3057
        %v5074 = vpack.c.b16 %v3074, %v3058
        %v5075 = vpack.c.b16 %v3075, %v3059
        %v5076 = vpack.c.b16 %v3092, %v3076
        %v5077 = vpack.c.b16 %v3093, %v3077
        %v5078 = vpack.c.b16 %v3094, %v3078
        %v5079 = vpack.c.b16 %v3095, %v3079
        %v5080 = vpack.c.b16 %v3096, %v3080
        %v5081 = vpack.c.b16 %v3097, %v3081
        %v5082 = vpack.c.b16 %v3098, %v3082
        %v5083 = vpack.c.b16 %v3099, %v3083
        %v5084 = vpack.c.b16 %v3100, %v3084
        %v5085 = vpack.c.b16 %v3101, %v3085
        %v5086 = vpack.c.b16 %v3102, %v3086
        %v5087 = vpack.c.b16 %v3103, %v3087
        %v5088 = vpack.c.b16 %v3104, %v3088
        %v5089 = vpack.c.b16 %v3105, %v3089
        %v5090 = vpack.c.b16 %v3106, %v3090
        %v5091 = vpack.c.b16 %v3107, %v3091
        %v5092 = vpack.c.b16 %v3124, %v3108
        %v5093 = vpack.c.b16 %v3125, %v3109
        %v5094 = vpack.c.b16 %v3126, %v3110
        %v5095 = vpack.c.b16 %v3127, %v3111
        %v5096 = vpack.c.b16 %v3128, %v3112
        %v5097 = vpack.c.b16 %v3129, %v3113
        %v5098 = vpack.c.b16 %v3130, %v3114
        %v5099 = vpack.c.b16 %v3131, %v3115
        %v5100 = vpack.c.b16 %v3132, %v3116
        %v5101 = vpack.c.b16 %v3133, %v3117
        %v5102 = vpack.c.b16 %v3134, %v3118
        %v5103 = vpack.c.b16 %v3135, %v3119
        %v5104 = vpack.c.b16 %v3136, %v3120
        %v5105 = vpack.c.b16 %v3137, %v3121
        %v5106 = vpack.c.b16 %v3138, %v3122
        %v5107 = vpack.c.b16 %v3139, %v3123
        %v5108 = vpack.c.b16 %v3156, %v3140
        %v5109 = vpack.c.b16 %v3157, %v3141
        %v5110 = vpack.c.b16 %v3158, %v3142
        %v5111 = vpack.c.b16 %v3159, %v3143
        %v5112 = vpack.c.b16 %v3160, %v3144
        %v5113 = vpack.c.b16 %v3161, %v3145
        %v5114 = vpack.c.b16 %v3162, %v3146
        %v5115 = vpack.c.b16 %v3163, %v3147
        %v5116 = vpack.c.b16 %v3164, %v3148
        %v5117 = vpack.c.b16 %v3165, %v3149
        %v5118 = vpack.c.b16 %v3166, %v3150
        %v5119 = vpack.c.b16 %v3167, %v3151
        %v5120 = vpack.c.b16 %v3168, %v3152
        %v5121 = vpack.c.b16 %v3169, %v3153
        %v5122 = vpack.c.b16 %v3170, %v3154
        %v5123 = vpack.c.b16 %v3171, %v3155
        %v5124 = vpack.c.b16 %v3188, %v3172
        %v5125 = vpack.c.b16 %v3189, %v3173
        %v5126 = vpack.c.b16 %v3190, %v3174
        %v5127 = vpack.c.b16 %v3191, %v3175
        %v5128 = vpack.c.b16 %v3192, %v3176
        %v5129 = vpack.c.b16 %v3193, %v3177
        %v5130 = vpack.c.b16 %v3194, %v3178
        %v5131 = vpack.c.b16 %v3195, %v3179
        %v5132 = vpack.c.b16 %v3196, %v3180
        %v5133 = vpack.c.b16 %v3197, %v3181
        %v5134 = vpack.c.b16 %v3198, %v3182
        %v5135 = vpack.c.b16 %v3199, %v3183
        %v5136 = vpack.c.b16 %v3200, %v3184
        %v5137 = vpack.c.b16 %v3201, %v3185
        %v5138 = vpack.c.b16 %v3202, %v3186
        %v5139 = vpack.c.b16 %v3203, %v3187
        %v5140 = vpack.c.b16 %v3220, %v3204
        %v5141 = vpack.c.b16 %v3221, %v3205
        %v5142 = vpack.c.b16 %v3222, %v3206
        %v5143 = vpack.c.b16 %v3223, %v3207
        %v5144 = vpack.c.b16 %v3224, %v3208
        %v5145 = vpack.c.b16 %v3225, %v3209
        %v5146 = vpack.c.b16 %v3226, %v3210
        %v5147 = vpack.c.b16 %v3227, %v3211
        %v5148 = vpack.c.b16 %v3228, %v3212
        %v5149 = vpack.c.b16 %v3229, %v3213
        %v5150 = vpack.c.b16 %v3230, %v3214
        %v5151 = vpack.c.b16 %v3231, %v3215
        %v5152 = vpack.c.b16 %v3232, %v3216
        %v5153 = vpack.c.b16 %v3233, %v3217
        %v5154 = vpack.c.b16 %v3234, %v3218
        %v5155 = vpack.c.b16 %v3235, %v3219
        %v5156 = vpack.c.b16 %v3252, %v3236
        %v5157 = vpack.c.b16 %v3253, %v3237
        %v5158 = vpack.c.b16 %v3254, %v3238
        %v5159 = vpack.c.b16 %v3255, %v3239
        %v5160 = vpack.c.b16 %v3256, %v3240
        %v5161 = vpack.c.b16 %v3257, %v3241
        %v5162 = vpack.c.b16 %v3258, %v3242
        %v5163 = vpack.c.b16 %v3259, %v3243
        %v5164 = vpack.c.b16 %v3260, %v3244
        %v5165 = vpack.c.b16 %v3261, %v3245
        %v5166 = vpack.c.b16 %v3262, %v3246
        %v5167 = vpack.c.b16 %v3263, %v3247
        %v5168 = vpack.c.b16 %v3264, %v3248
        %v5169 = vpack.c.b16 %v3265, %v3249
        %v5170 = vpack.c.b16 %v3266, %v3250
        %v5171 = vpack.c.b16 %v3267, %v3251
        %v5172 = vpack.c.b16 %v3284, %v3268
        %v5173 = vpack.c.b16 %v3285, %v3269
        %v5174 = vpack.c.b16 %v3286, %v3270
        %v5175 = vpack.c.b16 %v3287, %v3271
        %v5176 = vpack.c.b16 %v3288, %v3272
        %v5177 = vpack.c.b16 %v3289, %v3273
        %v5178 = vpack.c.b16 %v3290, %v3274
        %v5179 = vpack.c.b16 %v3291, %v3275
        %v5180 = vpack.c.b16 %v3292, %v3276
        %v5181 = vpack.c.b16 %v3293, %v3277
        %v5182 = vpack.c.b16 %v3294, %v3278
        %v5183 = vpack.c.b16 %v3295, %v3279
        %v5184 = vpack.c.b16 %v3296, %v3280
        %v5185 = vpack.c.b16 %v3297, %v3281
        %v5186 = vpack.c.b16 %v3298, %v3282
        %v5187 = vpack.c.b16 %v3299, %v3283
        %v5188 = vpack.c.b16 %v3316, %v3300
        %v5189 = vpack.c.b16 %v3317, %v3301
        %v5190 = vpack.c.b16 %v3318, %v3302
        %v5191 = vpack.c.b16 %v3319, %v3303
        %v5192 = vpack.c.b16 %v3320, %v3304
        %v5193 = vpack.c.b16 %v3321, %v3305
        %v5194 = vpack.c.b16 %v3322, %v3306
        %v5195 = vpack.c.b16 %v3323, %v3307
        %v5196 = vpack.c.b16 %v3324, %v3308
        %v5197 = vpack.c.b16 %v3325, %v3309
        %v5198 = vpack.c.b16 %v3326, %v3310
        %v5199 = vpack.c.b16 %v3327, %v3311
        %v5200 = vpack.c.b16 %v3328, %v3312
        %v5201 = vpack.c.b16 %v3329, %v3313
        %v5202 = vpack.c.b16 %v3330, %v3314
        %v5203 = vpack.c.b16 %v3331, %v3315
        %v5204 = vpack.c.b16 %v3348, %v3332
        %v5205 = vpack.c.b16 %v3349, %v3333
        %v5206 = vpack.c.b16 %v3350, %v3334
        %v5207 = vpack.c.b16 %v3351, %v3335
        %v5208 = vpack.c.b16 %v3352, %v3336
        %v5209 = vpack.c.b16 %v3353, %v3337
        %v5210 = vpack.c.b16 %v3354, %v3338
        %v5211 = vpack.c.b16 %v3355, %v3339
        %v5212 = vpack.c.b16 %v3356, %v3340
        %v5213 = vpack.c.b16 %v3357, %v3341
        %v5214 = vpack.c.b16 %v3358, %v3342
        %v5215 = vpack.c.b16 %v3359, %v3343
        %v5216 = vpack.c.b16 %v3360, %v3344
        %v5217 = vpack.c.b16 %v3361, %v3345
        %v5218 = vpack.c.b16 %v3362, %v3346
        %v5219 = vpack.c.b16 %v3363, %v3347
        %v5220 = vpack.c.b16 %v3380, %v3364
        %v5221 = vpack.c.b16 %v3381, %v3365
        %v5222 = vpack.c.b16 %v3382, %v3366
        %v5223 = vpack.c.b16 %v3383, %v3367
        %v5224 = vpack.c.b16 %v3384, %v3368
        %v5225 = vpack.c.b16 %v3385, %v3369
        %v5226 = vpack.c.b16 %v3386, %v3370
        %v5227 = vpack.c.b16 %v3387, %v3371
        %v5228 = vpack.c.b16 %v3388, %v3372
        %v5229 = vpack.c.b16 %v3389, %v3373
        %v5230 = vpack.c.b16 %v3390, %v3374
        %v5231 = vpack.c.b16 %v3391, %v3375
        %v5232 = vpack.c.b16 %v3392, %v3376
        %v5233 = vpack.c.b16 %v3393, %v3377
        %v5234 = vpack.c.b16 %v3394, %v3378
        %v5235 = vpack.c.b16 %v3395, %v3379
        %v5236 = vpack.c.b16 %v3412, %v3396
        %v5237 = vpack.c.b16 %v3413, %v3397
        %v5238 = vpack.c.b16 %v3414, %v3398
        %v5239 = vpack.c.b16 %v3415, %v3399
        %v5240 = vpack.c.b16 %v3416, %v3400
        %v5241 = vpack.c.b16 %v3417, %v3401
        %v5242 = vpack.c.b16 %v3418, %v3402
        %v5243 = vpack.c.b16 %v3419, %v3403
        %v5244 = vpack.c.b16 %v3420, %v3404
        %v5245 = vpack.c.b16 %v3421, %v3405
        %v5246 = vpack.c.b16 %v3422, %v3406
        %v5247 = vpack.c.b16 %v3423, %v3407
        %v5248 = vpack.c.b16 %v3424, %v3408
        %v5249 = vpack.c.b16 %v3425, %v3409
        %v5250 = vpack.c.b16 %v3426, %v3410
        %v5251 = vpack.c.b16 %v3427, %v3411
        %v5252 = vpack.c.b16 %v3444, %v3428
        %v5253 = vpack.c.b16 %v3445, %v3429
        %v5254 = vpack.c.b16 %v3446, %v3430
        %v5255 = vpack.c.b16 %v3447, %v3431
        %v5256 = vpack.c.b16 %v3448, %v3432
        %v5257 = vpack.c.b16 %v3449, %v3433
        %v5258 = vpack.c.b16 %v3450, %v3434
        %v5259 = vpack.c.b16 %v3451, %v3435
        %v5260 = vpack.c.b16 %v3452, %v3436
        %v5261 = vpack.c.b16 %v3453, %v3437
        %v5262 = vpack.c.b16 %v3454, %v3438
        %v5263 = vpack.c.b16 %v3455, %v3439
        %v5264 = vpack.c.b16 %v3456, %v3440
        %v5265 = vpack.c.b16 %v3457, %v3441
        %v5266 = vpack.c.b16 %v3458, %v3442
        %v5267 = vpack.c.b16 %v3459, %v3443
        %v5268 = vpack.c.b16 %v3476, %v3460
        %v5269 = vpack.c.b16 %v3477, %v3461
        %v5270 = vpack.c.b16 %v3478, %v3462
        %v5271 = vpack.c.b16 %v3479, %v3463
        %v5272 = vpack.c.b16 %v3480, %v3464
        %v5273 = vpack.c.b16 %v3481, %v3465
        %v5274 = vpack.c.b16 %v3482, %v3466
        %v5275 = vpack.c.b16 %v3483, %v3467
        %v5276 = vpack.c.b16 %v3484, %v3468
        %v5277 = vpack.c.b16 %v3485, %v3469
        %v5278 = vpack.c.b16 %v3486, %v3470
        %v5279 = vpack.c.b16 %v3487, %v3471
        %v5280 = vpack.c.b16 %v3488, %v3472
        %v5281 = vpack.c.b16 %v3489, %v3473
        %v5282 = vpack.c.b16 %v3490, %v3474
        %v5283 = vpack.c.b16 %v3491, %v3475
        %v5284 = vpack.c.b16 %v3508, %v3492
        %v5285 = vpack.c.b16 %v3509, %v3493
        %v5286 = vpack.c.b16 %v3510, %v3494
        %v5287 = vpack.c.b16 %v3511, %v3495
        %v5288 = vpack.c.b16 %v3512, %v3496
        %v5289 = vpack.c.b16 %v3513, %v3497
        %v5290 = vpack.c.b16 %v3514, %v3498
        %v5291 = vpack.c.b16 %v3515, %v3499
        %v5292 = vpack.c.b16 %v3516, %v3500
        %v5293 = vpack.c.b16 %v3517, %v3501
        %v5294 = vpack.c.b16 %v3518, %v3502
        %v5295 = vpack.c.b16 %v3519, %v3503
        %v5296 = vpack.c.b16 %v3520, %v3504
        %v5297 = vpack.c.b16 %v3521, %v3505
        %v5298 = vpack.c.b16 %v3522, %v3506
        %v5299 = vpack.c.b16 %v3523, %v3507
        %v5300 = vpack.c.b16 %v3540, %v3524
        %v5301 = vpack.c.b16 %v3541, %v3525
        %v5302 = vpack.c.b16 %v3542, %v3526
        %v5303 = vpack.c.b16 %v3543, %v3527
        %v5304 = vpack.c.b16 %v3544, %v3528
        %v5305 = vpack.c.b16 %v3545, %v3529
        %v5306 = vpack.c.b16 %v3546, %v3530
        %v5307 = vpack.c.b16 %v3547, %v3531
        %v5308 = vpack.c.b16 %v3548, %v3532
        %v5309 = vpack.c.b16 %v3549, %v3533
        %v5310 = vpack.c.b16 %v3550, %v3534
        %v5311 = vpack.c.b16 %v3551, %v3535
        %v5312 = vpack.c.b16 %v3552, %v3536
        %v5313 = vpack.c.b16 %v3553, %v3537
        %v5314 = vpack.c.b16 %v3554, %v3538
        %v5315 = vpack.c.b16 %v3555, %v3539
        %v5316 = vpack.c.b16 %v3572, %v3556
        %v5317 = vpack.c.b16 %v3573, %v3557
        %v5318 = vpack.c.b16 %v3574, %v3558
        %v5319 = vpack.c.b16 %v3575, %v3559
        %v5320 = vpack.c.b16 %v3576, %v3560
        %v5321 = vpack.c.b16 %v3577, %v3561
        %v5322 = vpack.c.b16 %v3578, %v3562
        %v5323 = vpack.c.b16 %v3579, %v3563
        %v5324 = vpack.c.b16 %v3580, %v3564
        %v5325 = vpack.c.b16 %v3581, %v3565
        %v5326 = vpack.c.b16 %v3582, %v3566
        %v5327 = vpack.c.b16 %v3583, %v3567
        %v5328 = vpack.c.b16 %v3584, %v3568
        %v5329 = vpack.c.b16 %v3585, %v3569
        %v5330 = vpack.c.b16 %v3586, %v3570
        %v5331 = vpack.c.b16 %v3587, %v3571
        %v5332 = vpack.c.b16 %v3604, %v3588
        %v5333 = vpack.c.b16 %v3605, %v3589
        %v5334 = vpack.c.b16 %v3606, %v3590
        %v5335 = vpack.c.b16 %v3607, %v3591
        %v5336 = vpack.c.b16 %v3608, %v3592
        %v5337 = vpack.c.b16 %v3609, %v3593
        %v5338 = vpack.c.b16 %v3610, %v3594
        %v5339 = vpack.c.b16 %v3611, %v3595
        %v5340 = vpack.c.b16 %v3612, %v3596
        %v5341 = vpack.c.b16 %v3613, %v3597
        %v5342 = vpack.c.b16 %v3614, %v3598
        %v5343 = vpack.c.b16 %v3615, %v3599
        %v5344 = vpack.c.b16 %v3616, %v3600
        %v5345 = vpack.c.b16 %v3617, %v3601
        %v5346 = vpack.c.b16 %v3618, %v3602
        %v5347 = vpack.c.b16 %v3619, %v3603
        %v5348 = vpack.c.b16 %v3636, %v3620
        %v5349 = vpack.c.b16 %v3637, %v3621
        %v5350 = vpack.c.b16 %v3638, %v3622
        %v5351 = vpack.c.b16 %v3639, %v3623
        %v5352 = vpack.c.b16 %v3640, %v3624
        %v5353 = vpack.c.b16 %v3641, %v3625
        %v5354 = vpack.c.b16 %v3642, %v3626
        %v5355 = vpack.c.b16 %v3643, %v3627
        %v5356 = vpack.c.b16 %v3644, %v3628
        %v5357 = vpack.c.b16 %v3645, %v3629
        %v5358 = vpack.c.b16 %v3646, %v3630
        %v5359 = vpack.c.b16 %v3647, %v3631
        %v5360 = vpack.c.b16 %v3648, %v3632
        %v5361 = vpack.c.b16 %v3649, %v3633
        %v5362 = vpack.c.b16 %v3650, %v3634
        %v5363 = vpack.c.b16 %v3651, %v3635
        %v5364 = vpack.c.b16 %v3668, %v3652
        %v5365 = vpack.c.b16 %v3669, %v3653
        %v5366 = vpack.c.b16 %v3670, %v3654
        %v5367 = vpack.c.b16 %v3671, %v3655
        %v5368 = vpack.c.b16 %v3672, %v3656
        %v5369 = vpack.c.b16 %v3673, %v3657
        %v5370 = vpack.c.b16 %v3674, %v3658
        %v5371 = vpack.c.b16 %v3675, %v3659
        %v5372 = vpack.c.b16 %v3676, %v3660
        %v5373 = vpack.c.b16 %v3677, %v3661
        %v5374 = vpack.c.b16 %v3678, %v3662
        %v5375 = vpack.c.b16 %v3679, %v3663
        %v5376 = vpack.c.b16 %v3680, %v3664
        %v5377 = vpack.c.b16 %v3681, %v3665
        %v5378 = vpack.c.b16 %v3682, %v3666
        %v5379 = vpack.c.b16 %v3683, %v3667
        %v5380 = vpack.c.b16 %v3700, %v3684
        %v5381 = vpack.c.b16 %v3701, %v3685
        %v5382 = vpack.c.b16 %v3702, %v3686
        %v5383 = vpack.c.b16 %v3703, %v3687
        %v5384 = vpack.c.b16 %v3704, %v3688
        %v5385 = vpack.c.b16 %v3705, %v3689
        %v5386 = vpack.c.b16 %v3706, %v3690
        %v5387 = vpack.c.b16 %v3707, %v3691
        %v5388 = vpack.c.b16 %v3708, %v3692
        %v5389 = vpack.c.b16 %v3709, %v3693
        %v5390 = vpack.c.b16 %v3710, %v3694
        %v5391 = vpack.c.b16 %v3711, %v3695
        %v5392 = vpack.c.b16 %v3712, %v3696
        %v5393 = vpack.c.b16 %v3713, %v3697
        %v5394 = vpack.c.b16 %v3714, %v3698
        %v5395 = vpack.c.b16 %v3715, %v3699
        %v5396 = vpack.c.b16 %v3732, %v3716
        %v5397 = vpack.c.b16 %v3733, %v3717
        %v5398 = vpack.c.b16 %v3734, %v3718
        %v5399 = vpack.c.b16 %v3735, %v3719
        %v5400 = vpack.c.b16 %v3736, %v3720
        %v5401 = vpack.c.b16 %v3737, %v3721
        %v5402 = vpack.c.b16 %v3738, %v3722
        %v5403 = vpack.c.b16 %v3739, %v3723
        %v5404 = vpack.c.b16 %v3740, %v3724
        %v5405 = vpack.c.b16 %v3741, %v3725
        %v5406 = vpack.c.b16 %v3742, %v3726
        %v5407 = vpack.c.b16 %v3743, %v3727
        %v5408 = vpack.c.b16 %v3744, %v3728
        %v5409 = vpack.c.b16 %v3745, %v3729
        %v5410 = vpack.c.b16 %v3746, %v3730
        %v5411 = vpack.c.b16 %v3747, %v3731
        %v5412 = vpack.c.b16 %v3764, %v3748
        %v5413 = vpack.c.b16 %v3765, %v3749
        %v5414 = vpack.c.b16 %v3766, %v3750
        %v5415 = vpack.c.b16 %v3767, %v3751
        %v5416 = vpack.c.b16 %v3768, %v3752
        %v5417 = vpack.c.b16 %v3769, %v3753
        %v5418 = vpack.c.b16 %v3770, %v3754
        %v5419 = vpack.c.b16 %v3771, %v3755
        %v5420 = vpack.c.b16 %v3772, %v3756
        %v5421 = vpack.c.b16 %v3773, %v3757
        %v5422 = vpack.c.b16 %v3774, %v3758
        %v5423 = vpack.c.b16 %v3775, %v3759
        %v5424 = vpack.c.b16 %v3776, %v3760
        %v5425 = vpack.c.b16 %v3777, %v3761
        %v5426 = vpack.c.b16 %v3778, %v3762
        %v5427 = vpack.c.b16 %v3779, %v3763
        %v5428 = vpack.c.b16 %v3796, %v3780
        %v5429 = vpack.c.b16 %v3797, %v3781
        %v5430 = vpack.c.b16 %v3798, %v3782
        %v5431 = vpack.c.b16 %v3799, %v3783
        %v5432 = vpack.c.b16 %v3800, %v3784
        %v5433 = vpack.c.b16 %v3801, %v3785
        %v5434 = vpack.c.b16 %v3802, %v3786
        %v5435 = vpack.c.b16 %v3803, %v3787
        %v5436 = vpack.c.b16 %v3804, %v3788
        %v5437 = vpack.c.b16 %v3805, %v3789
        %v5438 = vpack.c.b16 %v3806, %v3790
        %v5439 = vpack.c.b16 %v3807, %v3791
        %v5440 = vpack.c.b16 %v3808, %v3792
        %v5441 = vpack.c.b16 %v3809, %v3793
        %v5442 = vpack.c.b16 %v3810, %v3794
        %v5443 = vpack.c.b16 %v3811, %v3795
        %v5444 = vpack.c.b16 %v3828, %v3812
        %v5445 = vpack.c.b16 %v3829, %v3813
        %v5446 = vpack.c.b16 %v3830, %v3814
        %v5447 = vpack.c.b16 %v3831, %v3815
        %v5448 = vpack.c.b16 %v3832, %v3816
        %v5449 = vpack.c.b16 %v3833, %v3817
        %v5450 = vpack.c.b16 %v3834, %v3818
        %v5451 = vpack.c.b16 %v3835, %v3819
        %v5452 = vpack.c.b16 %v3836, %v3820
        %v5453 = vpack.c.b16 %v3837, %v3821
        %v5454 = vpack.c.b16 %v3838, %v3822
        %v5455 = vpack.c.b16 %v3839, %v3823
        %v5456 = vpack.c.b16 %v3840, %v3824
        %v5457 = vpack.c.b16 %v3841, %v3825
        %v5458 = vpack.c.b16 %v3842, %v3826
        %v5459 = vpack.c.b16 %v3843, %v3827
        %v5460 = vpack.c.b16 %v3860, %v3844
        %v5461 = vpack.c.b16 %v3861, %v3845
        %v5462 = vpack.c.b16 %v3862, %v3846
        %v5463 = vpack.c.b16 %v3863, %v3847
        %v5464 = vpack.c.b16 %v3864, %v3848
        %v5465 = vpack.c.b16 %v3865, %v3849
        %v5466 = vpack.c.b16 %v3866, %v3850
        %v5467 = vpack.c.b16 %v3867, %v3851
        %v5468 = vpack.c.b16 %v3868, %v3852
        %v5469 = vpack.c.b16 %v3869, %v3853
        %v5470 = vpack.c.b16 %v3870, %v3854
        %v5471 = vpack.c.b16 %v3871, %v3855
        %v5472 = vpack.c.b16 %v3872, %v3856
        %v5473 = vpack.c.b16 %v3873, %v3857
        %v5474 = vpack.c.b16 %v3874, %v3858
        %v5475 = vpack.c.b16 %v3875, %v3859
        %v5476 = vpack.c.b16 %v3892, %v3876
        %v5477 = vpack.c.b16 %v3893, %v3877
        %v5478 = vpack.c.b16 %v3894, %v3878
        %v5479 = vpack.c.b16 %v3895, %v3879
        %v5480 = vpack.c.b16 %v3896, %v3880
        %v5481 = vpack.c.b16 %v3897, %v3881
        %v5482 = vpack.c.b16 %v3898, %v3882
        %v5483 = vpack.c.b16 %v3899, %v3883
        %v5484 = vpack.c.b16 %v3900, %v3884
        %v5485 = vpack.c.b16 %v3901, %v3885
        %v5486 = vpack.c.b16 %v3902, %v3886
        %v5487 = vpack.c.b16 %v3903, %v3887
        %v5488 = vpack.c.b16 %v3904, %v3888
        %v5489 = vpack.c.b16 %v3905, %v3889
        %v5490 = vpack.c.b16 %v3906, %v3890
        %v5491 = vpack.c.b16 %v3907, %v3891
        %v5492 = vpack.c.b16 %v3924, %v3908
        %v5493 = vpack.c.b16 %v3925, %v3909
        %v5494 = vpack.c.b16 %v3926, %v3910
        %v5495 = vpack.c.b16 %v3927, %v3911
        %v5496 = vpack.c.b16 %v3928, %v3912
        %v5497 = vpack.c.b16 %v3929, %v3913
        %v5498 = vpack.c.b16 %v3930, %v3914
        %v5499 = vpack.c.b16 %v3931, %v3915
        %v5500 = vpack.c.b16 %v3932, %v3916
        %v5501 = vpack.c.b16 %v3933, %v3917
        %v5502 = vpack.c.b16 %v3934, %v3918
        %v5503 = vpack.c.b16 %v3935, %v3919
        %v5504 = vpack.c.b16 %v3936, %v3920
        %v5505 = vpack.c.b16 %v3937, %v3921
        %v5506 = vpack.c.b16 %v3938, %v3922
        %v5507 = vpack.c.b16 %v3939, %v3923
        %v5508 = vpack.c.b16 %v3956, %v3940
        %v5509 = vpack.c.b16 %v3957, %v3941
        %v5510 = vpack.c.b16 %v3958, %v3942
        %v5511 = vpack.c.b16 %v3959, %v3943
        %v5512 = vpack.c.b16 %v3960, %v3944
        %v5513 = vpack.c.b16 %v3961, %v3945
        %v5514 = vpack.c.b16 %v3962, %v3946
        %v5515 = vpack.c.b16 %v3963, %v3947
        %v5516 = vpack.c.b16 %v3964, %v3948
        %v5517 = vpack.c.b16 %v3965, %v3949
        %v5518 = vpack.c.b16 %v3966, %v3950
        %v5519 = vpack.c.b16 %v3967, %v3951
        %v5520 = vpack.c.b16 %v3968, %v3952
        %v5521 = vpack.c.b16 %v3969, %v3953
        %v5522 = vpack.c.b16 %v3970, %v3954
        %v5523 = vpack.c.b16 %v3971, %v3955
        %v5524 = vpack.c.b16 %v3988, %v3972
        %v5525 = vpack.c.b16 %v3989, %v3973
        %v5526 = vpack.c.b16 %v3990, %v3974
        %v5527 = vpack.c.b16 %v3991, %v3975
        %v5528 = vpack.c.b16 %v3992, %v3976
        %v5529 = vpack.c.b16 %v3993, %v3977
        %v5530 = vpack.c.b16 %v3994, %v3978
        %v5531 = vpack.c.b16 %v3995, %v3979
        %v5532 = vpack.c.b16 %v3996, %v3980
        %v5533 = vpack.c.b16 %v3997, %v3981
        %v5534 = vpack.c.b16 %v3998, %v3982
        %v5535 = vpack.c.b16 %v3999, %v3983
        %v5536 = vpack.c.b16 %v4000, %v3984
        %v5537 = vpack.c.b16 %v4001, %v3985
        %v5538 = vpack.c.b16 %v4002, %v3986
        %v5539 = vpack.c.b16 %v4003, %v3987
        %v5540 = vpack.c.b16 %v4020, %v4004
        %v5541 = vpack.c.b16 %v4021, %v4005
        %v5542 = vpack.c.b16 %v4022, %v4006
        %v5543 = vpack.c.b16 %v4023, %v4007
        %v5544 = vpack.c.b16 %v4024, %v4008
        %v5545 = vpack.c.b16 %v4025, %v4009
        %v5546 = vpack.c.b16 %v4026, %v4010
        %v5547 = vpack.c.b16 %v4027, %v4011
        %v5548 = vpack.c.b16 %v4028, %v4012
        %v5549 = vpack.c.b16 %v4029, %v4013
        %v5550 = vpack.c.b16 %v4030, %v4014
        %v5551 = vpack.c.b16 %v4031, %v4015
        %v5552 = vpack.c.b16 %v4032, %v4016
        %v5553 = vpack.c.b16 %v4033, %v4017
        %v5554 = vpack.c.b16 %v4034, %v4018
        %v5555 = vpack.c.b16 %v4035, %v4019
        %v5556 = vpack.c.b16 %v4052, %v4036
        %v5557 = vpack.c.b16 %v4053, %v4037
        %v5558 = vpack.c.b16 %v4054, %v4038
        %v5559 = vpack.c.b16 %v4055, %v4039
        %v5560 = vpack.c.b16 %v4056, %v4040
        %v5561 = vpack.c.b16 %v4057, %v4041
        %v5562 = vpack.c.b16 %v4058, %v4042
        %v5563 = vpack.c.b16 %v4059, %v4043
        %v5564 = vpack.c.b16 %v4060, %v4044
        %v5565 = vpack.c.b16 %v4061, %v4045
        %v5566 = vpack.c.b16 %v4062, %v4046
        %v5567 = vpack.c.b16 %v4063, %v4047
        %v5568 = vpack.c.b16 %v4064, %v4048
        %v5569 = vpack.c.b16 %v4065, %v4049
        %v5570 = vpack.c.b16 %v4066, %v4050
        %v5571 = vpack.c.b16 %v4067, %v4051
        %v5572 = vpack.c.b16 %v4084, %v4068
        %v5573 = vpack.c.b16 %v4085, %v4069
        %v5574 = vpack.c.b16 %v4086, %v4070
        %v5575 = vpack.c.b16 %v4087, %v4071
        %v5576 = vpack.c.b16 %v4088, %v4072
        %v5577 = vpack.c.b16 %v4089, %v4073
        %v5578 = vpack.c.b16 %v4090, %v4074
        %v5579 = vpack.c.b16 %v4091, %v4075
        %v5580 = vpack.c.b16 %v4092, %v4076
        %v5581 = vpack.c.b16 %v4093, %v4077
        %v5582 = vpack.c.b16 %v4094, %v4078
        %v5583 = vpack.c.b16 %v4095, %v4079
        %v5584 = vpack.c.b16 %v4096, %v4080
        %v5585 = vpack.c.b16 %v4097, %v4081
        %v5586 = vpack.c.b16 %v4098, %v4082
        %v5587 = vpack.c.b16 %v4099, %v4083
        %v5588 = vpack.c.b16 %v4116, %v4100
        %v5589 = vpack.c.b16 %v4117, %v4101
        %v5590 = vpack.c.b16 %v4118, %v4102
        %v5591 = vpack.c.b16 %v4119, %v4103
        %v5592 = vpack.c.b16 %v4120, %v4104
        %v5593 = vpack.c.b16 %v4121, %v4105
        %v5594 = vpack.c.b16 %v4122, %v4106
        %v5595 = vpack.c.b16 %v4123, %v4107
        %v5596 = vpack.c.b16 %v4124, %v4108
        %v5597 = vpack.c.b16 %v4125, %v4109
        %v5598 = vpack.c.b16 %v4126, %v4110
        %v5599 = vpack.c.b16 %v4127, %v4111
        %v5600 = vpack.c.b16 %v4128, %v4112
        %v5601 = vpack.c.b16 %v4129, %v4113
        %v5602 = vpack.c.b16 %v4130, %v4114
        %v5603 = vpack.c.b16 %v4131, %v4115
        %v5604 = vpack.c.b16 %v4148, %v4132
        %v5605 = vpack.c.b16 %v4149, %v4133
        %v5606 = vpack.c.b16 %v4150, %v4134
        %v5607 = vpack.c.b16 %v4151, %v4135
        %v5608 = vpack.c.b16 %v4152, %v4136
        %v5609 = vpack.c.b16 %v4153, %v4137
        %v5610 = vpack.c.b16 %v4154, %v4138
        %v5611 = vpack.c.b16 %v4155, %v4139
        %v5612 = vpack.c.b16 %v4156, %v4140
        %v5613 = vpack.c.b16 %v4157, %v4141
        %v5614 = vpack.c.b16 %v4158, %v4142
        %v5615 = vpack.c.b16 %v4159, %v4143
        %v5616 = vpack.c.b16 %v4160, %v4144
        %v5617 = vpack.c.b16 %v4161, %v4145
        %v5618 = vpack.c.b16 %v4162, %v4146
        %v5619 = vpack.c.b16 %v4163, %v4147
        %v5620 = vpack.c.b16 %v4180, %v4164
        %v5621 = vpack.c.b16 %v4181, %v4165
        %v5622 = vpack.c.b16 %v4182, %v4166
        %v5623 = vpack.c.b16 %v4183, %v4167
        %v5624 = vpack.c.b16 %v4184, %v4168
        %v5625 = vpack.c.b16 %v4185, %v4169
        %v5626 = vpack.c.b16 %v4186, %v4170
        %v5627 = vpack.c.b16 %v4187, %v4171
        %v5628 = vpack.c.b16 %v4188, %v4172
        %v5629 = vpack.c.b16 %v4189, %v4173
        %v5630 = vpack.c.b16 %v4190, %v4174
        %v5631 = vpack.c.b16 %v4191, %v4175
        %v5632 = vpack.c.b16 %v4192, %v4176
        %v5633 = vpack.c.b16 %v4193, %v4177
        %v5634 = vpack.c.b16 %v4194, %v4178
        %v5635 = vpack.c.b16 %v4195, %v4179
        %v5636 = vpack.c.b16 %v4212, %v4196
        %v5637 = vpack.c.b16 %v4213, %v4197
        %v5638 = vpack.c.b16 %v4214, %v4198
        %v5639 = vpack.c.b16 %v4215, %v4199
        %v5640 = vpack.c.b16 %v4216, %v4200
        %v5641 = vpack.c.b16 %v4217, %v4201
        %v5642 = vpack.c.b16 %v4218, %v4202
        %v5643 = vpack.c.b16 %v4219, %v4203
        %v5644 = vpack.c.b16 %v4220, %v4204
        %v5645 = vpack.c.b16 %v4221, %v4205
        %v5646 = vpack.c.b16 %v4222, %v4206
        %v5647 = vpack.c.b16 %v4223, %v4207
        %v5648 = vpack.c.b16 %v4224, %v4208
        %v5649 = vpack.c.b16 %v4225, %v4209
        %v5650 = vpack.c.b16 %v4226, %v4210
        %v5651 = vpack.c.b16 %v4227, %v4211
        %v5652 = vpack.c.b16 %v4244, %v4228
        %v5653 = vpack.c.b16 %v4245, %v4229
        %v5654 = vpack.c.b16 %v4246, %v4230
        %v5655 = vpack.c.b16 %v4247, %v4231
        %v5656 = vpack.c.b16 %v4248, %v4232
        %v5657 = vpack.c.b16 %v4249, %v4233
        %v5658 = vpack.c.b16 %v4250, %v4234
        %v5659 = vpack.c.b16 %v4251, %v4235
        %v5660 = vpack.c.b16 %v4252, %v4236
        %v5661 = vpack.c.b16 %v4253, %v4237
        %v5662 = vpack.c.b16 %v4254, %v4238
        %v5663 = vpack.c.b16 %v4255, %v4239
        %v5664 = vpack.c.b16 %v4256, %v4240
        %v5665 = vpack.c.b16 %v4257, %v4241
        %v5666 = vpack.c.b16 %v4258, %v4242
        %v5667 = vpack.c.b16 %v4259, %v4243
        %v5668 = vpack.c.b16 %v4276, %v4260
        %v5669 = vpack.c.b16 %v4277, %v4261
        %v5670 = vpack.c.b16 %v4278, %v4262
        %v5671 = vpack.c.b16 %v4279, %v4263
        %v5672 = vpack.c.b16 %v4280, %v4264
        %v5673 = vpack.c.b16 %v4281, %v4265
        %v5674 = vpack.c.b16 %v4282, %v4266
        %v5675 = vpack.c.b16 %v4283, %v4267
        %v5676 = vpack.c.b16 %v4284, %v4268
        %v5677 = vpack.c.b16 %v4285, %v4269
        %v5678 = vpack.c.b16 %v4286, %v4270
        %v5679 = vpack.c.b16 %v4287, %v4271
        %v5680 = vpack.c.b16 %v4288, %v4272
        %v5681 = vpack.c.b16 %v4289, %v4273
        %v5682 = vpack.c.b16 %v4290, %v4274
        %v5683 = vpack.c.b16 %v4291, %v4275
        %v5684 = vpack.c.b16 %v4308, %v4292
        %v5685 = vpack.c.b16 %v4309, %v4293
        %v5686 = vpack.c.b16 %v4310, %v4294
        %v5687 = vpack.c.b16 %v4311, %v4295
        %v5688 = vpack.c.b16 %v4312, %v4296
        %v5689 = vpack.c.b16 %v4313, %v4297
        %v5690 = vpack.c.b16 %v4314, %v4298
        %v5691 = vpack.c.b16 %v4315, %v4299
        %v5692 = vpack.c.b16 %v4316, %v4300
        %v5693 = vpack.c.b16 %v4317, %v4301
        %v5694 = vpack.c.b16 %v4318, %v4302
        %v5695 = vpack.c.b16 %v4319, %v4303
        %v5696 = vpack.c.b16 %v4320, %v4304
        %v5697 = vpack.c.b16 %v4321, %v4305
        %v5698 = vpack.c.b16 %v4322, %v4306
        %v5699 = vpack.c.b16 %v4323, %v4307
        %v5700 = vpack.c.b16 %v4340, %v4324
        %v5701 = vpack.c.b16 %v4341, %v4325
        %v5702 = vpack.c.b16 %v4342, %v4326
        %v5703 = vpack.c.b16 %v4343, %v4327
        %v5704 = vpack.c.b16 %v4344, %v4328
        %v5705 = vpack.c.b16 %v4345, %v4329
        %v5706 = vpack.c.b16 %v4346, %v4330
        %v5707 = vpack.c.b16 %v4347, %v4331
        %v5708 = vpack.c.b16 %v4348, %v4332
        %v5709 = vpack.c.b16 %v4349, %v4333
        %v5710 = vpack.c.b16 %v4350, %v4334
        %v5711 = vpack.c.b16 %v4351, %v4335
        %v5712 = vpack.c.b16 %v4352, %v4336
        %v5713 = vpack.c.b16 %v4353, %v4337
        %v5714 = vpack.c.b16 %v4354, %v4338
        %v5715 = vpack.c.b16 %v4355, %v4339
        %v5716 = vpack.c.b16 %v4372, %v4356
        %v5717 = vpack.c.b16 %v4373, %v4357
        %v5718 = vpack.c.b16 %v4374, %v4358
        %v5719 = vpack.c.b16 %v4375, %v4359
        %v5720 = vpack.c.b16 %v4376, %v4360
        %v5721 = vpack.c.b16 %v4377, %v4361
        %v5722 = vpack.c.b16 %v4378, %v4362
        %v5723 = vpack.c.b16 %v4379, %v4363
        %v5724 = vpack.c.b16 %v4380, %v4364
        %v5725 = vpack.c.b16 %v4381, %v4365
        %v5726 = vpack.c.b16 %v4382, %v4366
        %v5727 = vpack.c.b16 %v4383, %v4367
        %v5728 = vpack.c.b16 %v4384, %v4368
        %v5729 = vpack.c.b16 %v4385, %v4369
        %v5730 = vpack.c.b16 %v4386, %v4370
        %v5731 = vpack.c.b16 %v4387, %v4371
        %v5732 = vpack.c.b16 %v4404, %v4388
        %v5733 = vpack.c.b16 %v4405, %v4389
        %v5734 = vpack.c.b16 %v4406, %v4390
        %v5735 = vpack.c.b16 %v4407, %v4391
        %v5736 = vpack.c.b16 %v4408, %v4392
        %v5737 = vpack.c.b16 %v4409, %v4393
        %v5738 = vpack.c.b16 %v4410, %v4394
        %v5739 = vpack.c.b16 %v4411, %v4395
        %v5740 = vpack.c.b16 %v4412, %v4396
        %v5741 = vpack.c.b16 %v4413, %v4397
        %v5742 = vpack.c.b16 %v4414, %v4398
        %v5743 = vpack.c.b16 %v4415, %v4399
        %v5744 = vpack.c.b16 %v4416, %v4400
        %v5745 = vpack.c.b16 %v4417, %v4401
        %v5746 = vpack.c.b16 %v4418, %v4402
        %v5747 = vpack.c.b16 %v4419, %v4403
        %v5748 = vpack.c.b16 %v4436, %v4420
        %v5749 = vpack.c.b16 %v4437, %v4421
        %v5750 = vpack.c.b16 %v4438, %v4422
        %v5751 = vpack.c.b16 %v4439, %v4423
        %v5752 = vpack.c.b16 %v4440, %v4424
        %v5753 = vpack.c.b16 %v4441, %v4425
        %v5754 = vpack.c.b16 %v4442, %v4426
        %v5755 = vpack.c.b16 %v4443, %v4427
        %v5756 = vpack.c.b16 %v4444, %v4428
        %v5757 = vpack.c.b16 %v4445, %v4429
        %v5758 = vpack.c.b16 %v4446, %v4430
        %v5759 = vpack.c.b16 %v4447, %v4431
        %v5760 = vpack.c.b16 %v4448, %v4432
        %v5761 = vpack.c.b16 %v4449, %v4433
        %v5762 = vpack.c.b16 %v4450, %v4434
        %v5763 = vpack.c.b16 %v4451, %v4435
        %v5764 = vpack.c.b16 %v4468, %v4452
        %v5765 = vpack.c.b16 %v4469, %v4453
        %v5766 = vpack.c.b16 %v4470, %v4454
        %v5767 = vpack.c.b16 %v4471, %v4455
        %v5768 = vpack.c.b16 %v4472, %v4456
        %v5769 = vpack.c.b16 %v4473, %v4457
        %v5770 = vpack.c.b16 %v4474, %v4458
        %v5771 = vpack.c.b16 %v4475, %v4459
        %v5772 = vpack.c.b16 %v4476, %v4460
        %v5773 = vpack.c.b16 %v4477, %v4461
        %v5774 = vpack.c.b16 %v4478, %v4462
        %v5775 = vpack.c.b16 %v4479, %v4463
        %v5776 = vpack.c.b16 %v4480, %v4464
        %v5777 = vpack.c.b16 %v4481, %v4465
        %v5778 = vpack.c.b16 %v4482, %v4466
        %v5779 = vpack.c.b16 %v4483, %v4467
        %v5780 = vpack.c.b16 %v4500, %v4484
        %v5781 = vpack.c.b16 %v4501, %v4485
        %v5782 = vpack.c.b16 %v4502, %v4486
        %v5783 = vpack.c.b16 %v4503, %v4487
        %v5784 = vpack.c.b16 %v4504, %v4488
        %v5785 = vpack.c.b16 %v4505, %v4489
        %v5786 = vpack.c.b16 %v4506, %v4490
        %v5787 = vpack.c.b16 %v4507, %v4491
        %v5788 = vpack.c.b16 %v4508, %v4492
        %v5789 = vpack.c.b16 %v4509, %v4493
        %v5790 = vpack.c.b16 %v4510, %v4494
        %v5791 = vpack.c.b16 %v4511, %v4495
        %v5792 = vpack.c.b16 %v4512, %v4496
        %v5793 = vpack.c.b16 %v4513, %v4497
        %v5794 = vpack.c.b16 %v4514, %v4498
        %v5795 = vpack.c.b16 %v4515, %v4499
        %v5796 = vpack.c.b16 %v4532, %v4516
        %v5797 = vpack.c.b16 %v4533, %v4517
        %v5798 = vpack.c.b16 %v4534, %v4518
        %v5799 = vpack.c.b16 %v4535, %v4519
        %v5800 = vpack.c.b16 %v4536, %v4520
        %v5801 = vpack.c.b16 %v4537, %v4521
        %v5802 = vpack.c.b16 %v4538, %v4522
        %v5803 = vpack.c.b16 %v4539, %v4523
        %v5804 = vpack.c.b16 %v4540, %v4524
        %v5805 = vpack.c.b16 %v4541, %v4525
        %v5806 = vpack.c.b16 %v4542, %v4526
        %v5807 = vpack.c.b16 %v4543, %v4527
        %v5808 = vpack.c.b16 %v4544, %v4528
        %v5809 = vpack.c.b16 %v4545, %v4529
        %v5810 = vpack.c.b16 %v4546, %v4530
        %v5811 = vpack.c.b16 %v4547, %v4531
        %v5812 = vpack.c.b16 %v4564, %v4548
        %v5813 = vpack.c.b16 %v4565, %v4549
        %v5814 = vpack.c.b16 %v4566, %v4550
        %v5815 = vpack.c.b16 %v4567, %v4551
        %v5816 = vpack.c.b16 %v4568, %v4552
        %v5817 = vpack.c.b16 %v4569, %v4553
        %v5818 = vpack.c.b16 %v4570, %v4554
        %v5819 = vpack.c.b16 %v4571, %v4555
        %v5820 = vpack.c.b16 %v4572, %v4556
        %v5821 = vpack.c.b16 %v4573, %v4557
        %v5822 = vpack.c.b16 %v4574, %v4558
        %v5823 = vpack.c.b16 %v4575, %v4559
        %v5824 = vpack.c.b16 %v4576, %v4560
        %v5825 = vpack.c.b16 %v4577, %v4561
        %v5826 = vpack.c.b16 %v4578, %v4562
        %v5827 = vpack.c.b16 %v4579, %v4563
        %v5828 = vpack.c.b16 %v4596, %v4580
        %v5829 = vpack.c.b16 %v4597, %v4581
        %v5830 = vpack.c.b16 %v4598, %v4582
        %v5831 = vpack.c.b16 %v4599, %v4583
        %v5832 = vpack.c.b16 %v4600, %v4584
        %v5833 = vpack.c.b16 %v4601, %v4585
        %v5834 = vpack.c.b16 %v4602, %v4586
        %v5835 = vpack.c.b16 %v4603, %v4587
        %v5836 = vpack.c.b16 %v4604, %v4588
        %v5837 = vpack.c.b16 %v4605, %v4589
        %v5838 = vpack.c.b16 %v4606, %v4590
        %v5839 = vpack.c.b16 %v4607, %v4591
        %v5840 = vpack.c.b16 %v4608, %v4592
        %v5841 = vpack.c.b16 %v4609, %v4593
        %v5842 = vpack.c.b16 %v4610, %v4594
        %v5843 = vpack.c.b16 %v4611, %v4595
        %v5844 = vpack.c.b16 %v4628, %v4612
        %v5845 = vpack.c.b16 %v4629, %v4613
        %v5846 = vpack.c.b16 %v4630, %v4614
        %v5847 = vpack.c.b16 %v4631, %v4615
        %v5848 = vpack.c.b16 %v4632, %v4616
        %v5849 = vpack.c.b16 %v4633, %v4617
        %v5850 = vpack.c.b16 %v4634, %v4618
        %v5851 = vpack.c.b16 %v4635, %v4619
        %v5852 = vpack.c.b16 %v4636, %v4620
        %v5853 = vpack.c.b16 %v4637, %v4621
        %v5854 = vpack.c.b16 %v4638, %v4622
        %v5855 = vpack.c.b16 %v4639, %v4623
        %v5856 = vpack.c.b16 %v4640, %v4624
        %v5857 = vpack.c.b16 %v4641, %v4625
        %v5858 = vpack.c.b16 %v4642, %v4626
        %v5859 = vpack.c.b16 %v4643, %v4627
        %v5860 = vpack.c.b16 %v4660, %v4644
        %v5861 = vpack.c.b16 %v4661, %v4645
        %v5862 = vpack.c.b16 %v4662, %v4646
        %v5863 = vpack.c.b16 %v4663, %v4647
        %v5864 = vpack.c.b16 %v4664, %v4648
        %v5865 = vpack.c.b16 %v4665, %v4649
        %v5866 = vpack.c.b16 %v4666, %v4650
        %v5867 = vpack.c.b16 %v4667, %v4651
        %v5868 = vpack.c.b16 %v4668, %v4652
        %v5869 = vpack.c.b16 %v4669, %v4653
        %v5870 = vpack.c.b16 %v4670, %v4654
        %v5871 = vpack.c.b16 %v4671, %v4655
        %v5872 = vpack.c.b16 %v4672, %v4656
        %v5873 = vpack.c.b16 %v4673, %v4657
        %v5874 = vpack.c.b16 %v4674, %v4658
        %v5875 = vpack.c.b16 %v4675, %v4659
        %v5876 = vpack.c.b16 %v4692, %v4676
        %v5877 = vpack.c.b16 %v4693, %v4677
        %v5878 = vpack.c.b16 %v4694, %v4678
        %v5879 = vpack.c.b16 %v4695, %v4679
        %v5880 = vpack.c.b16 %v4696, %v4680
        %v5881 = vpack.c.b16 %v4697, %v4681
        %v5882 = vpack.c.b16 %v4698, %v4682
        %v5883 = vpack.c.b16 %v4699, %v4683
        %v5884 = vpack.c.b16 %v4700, %v4684
        %v5885 = vpack.c.b16 %v4701, %v4685
        %v5886 = vpack.c.b16 %v4702, %v4686
        %v5887 = vpack.c.b16 %v4703, %v4687
        %v5888 = vpack.c.b16 %v4704, %v4688
        %v5889 = vpack.c.b16 %v4705, %v4689
        %v5890 = vpack.c.b16 %v4706, %v4690
        %v5891 = vpack.c.b16 %v4707, %v4691
        %v5892 = vpack.c.b16 %v4724, %v4708
        %v5893 = vpack.c.b16 %v4725, %v4709
        %v5894 = vpack.c.b16 %v4726, %v4710
        %v5895 = vpack.c.b16 %v4727, %v4711
        %v5896 = vpack.c.b16 %v4728, %v4712
        %v5897 = vpack.c.b16 %v4729, %v4713
        %v5898 = vpack.c.b16 %v4730, %v4714
        %v5899 = vpack.c.b16 %v4731, %v4715
        %v5900 = vpack.c.b16 %v4732, %v4716
        %v5901 = vpack.c.b16 %v4733, %v4717
        %v5902 = vpack.c.b16 %v4734, %v4718
        %v5903 = vpack.c.b16 %v4735, %v4719
        %v5904 = vpack.c.b16 %v4736, %v4720
        %v5905 = vpack.c.b16 %v4737, %v4721
        %v5906 = vpack.c.b16 %v4738, %v4722
        %v5907 = vpack.c.b16 %v4739, %v4723
        %v5908 = vpack.c.b16 %v4756, %v4740
        %v5909 = vpack.c.b16 %v4757, %v4741
        %v5910 = vpack.c.b16 %v4758, %v4742
        %v5911 = vpack.c.b16 %v4759, %v4743
        %v5912 = vpack.c.b16 %v4760, %v4744
        %v5913 = vpack.c.b16 %v4761, %v4745
        %v5914 = vpack.c.b16 %v4762, %v4746
        %v5915 = vpack.c.b16 %v4763, %v4747
        %v5916 = vpack.c.b16 %v4764, %v4748
        %v5917 = vpack.c.b16 %v4765, %v4749
        %v5918 = vpack.c.b16 %v4766, %v4750
        %v5919 = vpack.c.b16 %v4767, %v4751
        %v5920 = vpack.c.b16 %v4768, %v4752
        %v5921 = vpack.c.b16 %v4769, %v4753
        %v5922 = vpack.c.b16 %v4770, %v4754
        %v5923 = vpack.c.b16 %v4771, %v4755
        %v5924 = vpack.c.b16 %v4788, %v4772
        %v5925 = vpack.c.b16 %v4789, %v4773
        %v5926 = vpack.c.b16 %v4790, %v4774
        %v5927 = vpack.c.b16 %v4791, %v4775
        %v5928 = vpack.c.b16 %v4792, %v4776
        %v5929 = vpack.c.b16 %v4793, %v4777
        %v5930 = vpack.c.b16 %v4794, %v4778
        %v5931 = vpack.c.b16 %v4795, %v4779
        %v5932 = vpack.c.b16 %v4796, %v4780
        %v5933 = vpack.c.b16 %v4797, %v4781
        %v5934 = vpack.c.b16 %v4798, %v4782
        %v5935 = vpack.c.b16 %v4799, %v4783
        %v5936 = vpack.c.b16 %v4800, %v4784
        %v5937 = vpack.c.b16 %v4801, %v4785
        %v5938 = vpack.c.b16 %v4802, %v4786
        %v5939 = vpack.c.b16 %v4803, %v4787
        %v5940 = vpack.c.b16 %v4820, %v4804
        %v5941 = vpack.c.b16 %v4821, %v4805
        %v5942 = vpack.c.b16 %v4822, %v4806
        %v5943 = vpack.c.b16 %v4823, %v4807
        %v5944 = vpack.c.b16 %v4824, %v4808
        %v5945 = vpack.c.b16 %v4825, %v4809
        %v5946 = vpack.c.b16 %v4826, %v4810
        %v5947 = vpack.c.b16 %v4827, %v4811
        %v5948 = vpack.c.b16 %v4828, %v4812
        %v5949 = vpack.c.b16 %v4829, %v4813
        %v5950 = vpack.c.b16 %v4830, %v4814
        %v5951 = vpack.c.b16 %v4831, %v4815
        %v5952 = vpack.c.b16 %v4832, %v4816
        %v5953 = vpack.c.b16 %v4833, %v4817
        %v5954 = vpack.c.b16 %v4834, %v4818
        %v5955 = vpack.c.b16 %v4835, %v4819
        %v5956 = vpack.c.b16 %v4852, %v4836
        %v5957 = vpack.c.b16 %v4853, %v4837
        %v5958 = vpack.c.b16 %v4854, %v4838
        %v5959 = vpack.c.b16 %v4855, %v4839
        %v5960 = vpack.c.b16 %v4856, %v4840
        %v5961 = vpack.c.b16 %v4857, %v4841
        %v5962 = vpack.c.b16 %v4858, %v4842
        %v5963 = vpack.c.b16 %v4859, %v4843
        %v5964 = vpack.c.b16 %v4860, %v4844
        %v5965 = vpack.c.b16 %v4861, %v4845
        %v5966 = vpack.c.b16 %v4862, %v4846
        %v5967 = vpack.c.b16 %v4863, %v4847
        %v5968 = vpack.c.b16 %v4864, %v4848
        %v5969 = vpack.c.b16 %v4865, %v4849
        %v5970 = vpack.c.b16 %v4866, %v4850
        %v5971 = vpack.c.b16 %v4867, %v4851
        %v5972 = vpack.c.b16 %v4884, %v4868
        %v5973 = vpack.c.b16 %v4885, %v4869
        %v5974 = vpack.c.b16 %v4886, %v4870
        %v5975 = vpack.c.b16 %v4887, %v4871
        %v5976 = vpack.c.b16 %v4888, %v4872
        %v5977 = vpack.c.b16 %v4889, %v4873
        %v5978 = vpack.c.b16 %v4890, %v4874
        %v5979 = vpack.c.b16 %v4891, %v4875
        %v5980 = vpack.c.b16 %v4892, %v4876
        %v5981 = vpack.c.b16 %v4893, %v4877
        %v5982 = vpack.c.b16 %v4894, %v4878
        %v5983 = vpack.c.b16 %v4895, %v4879
        %v5984 = vpack.c.b16 %v4896, %v4880
        %v5985 = vpack.c.b16 %v4897, %v4881
        %v5986 = vpack.c.b16 %v4898, %v4882
        %v5987 = vpack.c.b16 %v4899, %v4883
        %v5988 = vpack.c.b16 %v4916, %v4900
        %v5989 = vpack.c.b16 %v4917, %v4901
        %v5990 = vpack.c.b16 %v4918, %v4902
        %v5991 = vpack.c.b16 %v4919, %v4903
        %v5992 = vpack.c.b16 %v4920, %v4904
        %v5993 = vpack.c.b16 %v4921, %v4905
        %v5994 = vpack.c.b16 %v4922, %v4906
        %v5995 = vpack.c.b16 %v4923, %v4907
        %v5996 = vpack.c.b16 %v4924, %v4908
        %v5997 = vpack.c.b16 %v4925, %v4909
        %v5998 = vpack.c.b16 %v4926, %v4910
        %v5999 = vpack.c.b16 %v4927, %v4911
        %v6000 = vpack.c.b16 %v4928, %v4912
        %v6001 = vpack.c.b16 %v4929, %v4913
        %v6002 = vpack.c.b16 %v4930, %v4914
        %v6003 = vpack.c.b16 %v4931, %v4915
        %v6004 = vpack.c.b16 %v4948, %v4932
        %v6005 = vpack.c.b16 %v4949, %v4933
        %v6006 = vpack.c.b16 %v4950, %v4934
        %v6007 = vpack.c.b16 %v4951, %v4935
        %v6008 = vpack.c.b16 %v4952, %v4936
        %v6009 = vpack.c.b16 %v4953, %v4937
        %v6010 = vpack.c.b16 %v4954, %v4938
        %v6011 = vpack.c.b16 %v4955, %v4939
        %v6012 = vpack.c.b16 %v4956, %v4940
        %v6013 = vpack.c.b16 %v4957, %v4941
        %v6014 = vpack.c.b16 %v4958, %v4942
        %v6015 = vpack.c.b16 %v4959, %v4943
        %v6016 = vpack.c.b16 %v4960, %v4944
        %v6017 = vpack.c.b16 %v4961, %v4945
        %v6018 = vpack.c.b16 %v4962, %v4946
        %v6019 = vpack.c.b16 %v4963, %v4947
        %v6020 = vpack.c.b16 %v4980, %v4964
        %v6021 = vpack.c.b16 %v4981, %v4965
        %v6022 = vpack.c.b16 %v4982, %v4966
        %v6023 = vpack.c.b16 %v4983, %v4967
        %v6024 = vpack.c.b16 %v4984, %v4968
        %v6025 = vpack.c.b16 %v4985, %v4969
        %v6026 = vpack.c.b16 %v4986, %v4970
        %v6027 = vpack.c.b16 %v4987, %v4971
        %v6028 = vpack.c.b16 %v4988, %v4972
        %v6029 = vpack.c.b16 %v4989, %v4973
        %v6030 = vpack.c.b16 %v4990, %v4974
        %v6031 = vpack.c.b16 %v4991, %v4975
        %v6032 = vpack.c.b16 %v4992, %v4976
        %v6033 = vpack.c.b16 %v4993, %v4977
        %v6034 = vpack.c.b16 %v4994, %v4978
        %v6035 = vpack.c.b16 %v4995, %v4979
        %v6036 = vpack.c.b16 %v5012, %v4996
        %v6037 = vpack.c.b16 %v5013, %v4997
        %v6038 = vpack.c.b16 %v5014, %v4998
        %v6039 = vpack.c.b16 %v5015, %v4999
        %v6040 = vpack.c.b16 %v5016, %v5000
        %v6041 = vpack.c.b16 %v5017, %v5001
        %v6042 = vpack.c.b16 %v5018, %v5002
        %v6043 = vpack.c.b16 %v5019, %v5003
        %v6044 = vpack.c.b16 %v5020, %v5004
        %v6045 = vpack.c.b16 %v5021, %v5005
        %v6046 = vpack.c.b16 %v5022, %v5006
        %v6047 = vpack.c.b16 %v5023, %v5007
        %v6048 = vpack.c.b16 %v5024, %v5008
        %v6049 = vpack.c.b16 %v5025, %v5009
        %v6050 = vpack.c.b16 %v5026, %v5010
        %v6051 = vpack.c.b16 %v5027, %v5011
        %7076 = vmatprep.subr.bf16.mxu0 %v5029
        %7077 = vmatpush1.bf16.msra.mxu0 %v5028
        %7078 = vmatprep.subr.bf16.mxu0 %v5045
        %7079 = vmatpush1.bf16.msra.mxu0 %v5044
        %7080 = vmatprep.subr.bf16.mxu0 %v5061
        %7081 = vmatpush1.bf16.msra.mxu0 %v5060
        %7082 = vmatprep.subr.bf16.mxu0 %v5077
        %7083 = vmatpush1.bf16.msra.mxu0 %v5076
        %7084 = vmatprep.subr.bf16.mxu0 %v5093
        %7085 = vmatpush1.bf16.msra.mxu0 %v5092
        %7086 = vmatprep.subr.bf16.mxu0 %v5109
        %7087 = vmatpush1.bf16.msra.mxu0 %v5108
        %7088 = vmatprep.subr.bf16.mxu0 %v5125
        %7089 = vmatpush1.bf16.msra.mxu0 %v5124
        %7090 = vmatprep.subr.bf16.mxu0 %v5141
        %7091 = vmatpush1.bf16.msra.mxu0 %v5140
        %7092 = vmatprep.subr.bf16.mxu0 %v5157
        %7093 = vmatpush1.bf16.msra.mxu0 %v5156
        %7094 = vmatprep.subr.bf16.mxu0 %v5173
        %7095 = vmatpush1.bf16.msra.mxu0 %v5172
        %7096 = vmatprep.subr.bf16.mxu0 %v5189
        %7097 = vmatpush1.bf16.msra.mxu0 %v5188
        %7098 = vmatprep.subr.bf16.mxu0 %v5205
        %7099 = vmatpush1.bf16.msra.mxu0 %v5204
        %7100 = vmatprep.subr.bf16.mxu0 %v5221
        %7101 = vmatpush1.bf16.msra.mxu0 %v5220
        %7102 = vmatprep.subr.bf16.mxu0 %v5237
        %7103 = vmatpush1.bf16.msra.mxu0 %v5236
        %7104 = vmatprep.subr.bf16.mxu0 %v5253
        %7105 = vmatpush1.bf16.msra.mxu0 %v5252
        %7106 = vmatprep.subr.bf16.mxu0 %v5269
        %7107 = vmatpush1.bf16.msra.mxu0 %v5268
        %7108 = vmatprep.mubr.bf16.mxu0 %v841
        %7109 = vmatmul.mubr.bf16.gmra.mrb[0].mxu0 %v840
        %v7110 = vpop.f32.mrb[0].mxu0
        %v7111 = vadd.f32 %v1879, %v7110
        %v7112 = vpop.f32.mrb[0].mxu0
        %v7113 = vadd.f32 %v1883, %v7112
        %v7114 = vpop.f32.mrb[0].mxu0
        %v7115 = vpop.f32.mrb[0].mxu0
        %7116 = vdwg.mxu0
        %7117 = vmatprep.subr.bf16.mxu0 %v5285
        %7118 = vmatpush1.bf16.msra.mxu0 %v5284
        %7119 = vmatprep.subr.bf16.mxu0 %v5301
        %7120 = vmatpush1.bf16.msra.mxu0 %v5300
        %7121 = vmatprep.subr.bf16.mxu0 %v5317
        %7122 = vmatpush1.bf16.msra.mxu0 %v5316
        %7123 = vmatprep.subr.bf16.mxu0 %v5333
        %7124 = vmatpush1.bf16.msra.mxu0 %v5332
        %7125 = vmatprep.subr.bf16.mxu0 %v5349
        %7126 = vmatpush1.bf16.msra.mxu0 %v5348
        %7127 = vmatprep.subr.bf16.mxu0 %v5365
        %7128 = vmatpush1.bf16.msra.mxu0 %v5364
        %7129 = vmatprep.subr.bf16.mxu0 %v5381
        %7130 = vmatpush1.bf16.msra.mxu0 %v5380
        %7131 = vmatprep.subr.bf16.mxu0 %v5397
        %7132 = vmatpush1.bf16.msra.mxu0 %v5396
        %7133 = vmatprep.subr.bf16.mxu0 %v5413
        %7134 = vmatpush1.bf16.msra.mxu0 %v5412
        %7135 = vmatprep.subr.bf16.mxu0 %v5429
        %7136 = vmatpush1.bf16.msra.mxu0 %v5428
        %7137 = vmatprep.subr.bf16.mxu0 %v5445
        %7138 = vmatpush1.bf16.msra.mxu0 %v5444
        %7139 = vmatprep.subr.bf16.mxu0 %v5461
        %7140 = vmatpush1.bf16.msra.mxu0 %v5460
        %7141 = vmatprep.subr.bf16.mxu0 %v5477
        %7142 = vmatpush1.bf16.msra.mxu0 %v5476
        %7143 = vmatprep.subr.bf16.mxu0 %v5493
        %7144 = vmatpush1.bf16.msra.mxu0 %v5492
        %7145 = vmatprep.subr.bf16.mxu0 %v5509
        %7146 = vmatpush1.bf16.msra.mxu0 %v5508
        %7147 = vmatprep.subr.bf16.mxu0 %v5525
        %7148 = vmatpush1.bf16.msra.mxu0 %v5524
        %7149 = vmatprep.mubr.bf16.mxu0 %v843
        %7150 = vmatmul.mubr.bf16.gmra.mrb[0].mxu0 %v842
        %v7151 = vpop.f32.mrb[0].mxu0
        %v7152 = vadd.f32 %v7111, %v7151
        %v7153 = vpop.f32.mrb[0].mxu0
        %v7154 = vadd.f32 %v7113, %v7153
        %v7155 = vpop.f32.mrb[0].mxu0
        %v7156 = vpop.f32.mrb[0].mxu0
        %7157 = vdwg.mxu0
        %7158 = vmatprep.subr.bf16.mxu0 %v5541
        %7159 = vmatpush1.bf16.msra.mxu0 %v5540
        %7160 = vmatprep.subr.bf16.mxu0 %v5557
        %7161 = vmatpush1.bf16.msra.mxu0 %v5556
        %7162 = vmatprep.subr.bf16.mxu0 %v5573
        %7163 = vmatpush1.bf16.msra.mxu0 %v5572
        %7164 = vmatprep.subr.bf16.mxu0 %v5589
        %7165 = vmatpush1.bf16.msra.mxu0 %v5588
        %7166 = vmatprep.subr.bf16.mxu0 %v5605
        %7167 = vmatpush1.bf16.msra.mxu0 %v5604
        %7168 = vmatprep.subr.bf16.mxu0 %v5621
        %7169 = vmatpush1.bf16.msra.mxu0 %v5620
        %7170 = vmatprep.subr.bf16.mxu0 %v5637
        %7171 = vmatpush1.bf16.msra.mxu0 %v5636
        %7172 = vmatprep.subr.bf16.mxu0 %v5653
        %7173 = vmatpush1.bf16.msra.mxu0 %v5652
        %7174 = vmatprep.subr.bf16.mxu0 %v5669
        %7175 = vmatpush1.bf16.msra.mxu0 %v5668
        %7176 = vmatprep.subr.bf16.mxu0 %v5685
        %7177 = vmatpush1.bf16.msra.mxu0 %v5684
        %7178 = vmatprep.subr.bf16.mxu0 %v5701
        %7179 = vmatpush1.bf16.msra.mxu0 %v5700
        %7180 = vmatprep.subr.bf16.mxu0 %v5717
        %7181 = vmatpush1.bf16.msra.mxu0 %v5716
        %7182 = vmatprep.subr.bf16.mxu0 %v5733
        %7183 = vmatpush1.bf16.msra.mxu0 %v5732
        %7184 = vmatprep.subr.bf16.mxu0 %v5749
        %7185 = vmatpush1.bf16.msra.mxu0 %v5748
        %7186 = vmatprep.subr.bf16.mxu0 %v5765
        %7187 = vmatpush1.bf16.msra.mxu0 %v5764
        %7188 = vmatprep.subr.bf16.mxu0 %v5781
        %7189 = vmatpush1.bf16.msra.mxu0 %v5780
        %7190 = vmatprep.mubr.bf16.mxu0 %v845
        %7191 = vmatmul.mubr.bf16.gmra.mrb[0].mxu0 %v844
        %v7192 = vpop.f32.mrb[0].mxu0
        %v7193 = vadd.f32 %v7152, %v7192
        %v7194 = vpop.f32.mrb[0].mxu0
        %v7195 = vadd.f32 %v7154, %v7194
        %v7196 = vpop.f32.mrb[0].mxu0
        %v7197 = vpop.f32.mrb[0].mxu0
        %7198 = vdwg.mxu0
        %7199 = vmatprep.subr.bf16.mxu0 %v5797
        %7200 = vmatpush1.bf16.msra.mxu0 %v5796
        %7201 = vmatprep.subr.bf16.mxu0 %v5813
        %7202 = vmatpush1.bf16.msra.mxu0 %v5812
        %7203 = vmatprep.subr.bf16.mxu0 %v5829
        %7204 = vmatpush1.bf16.msra.mxu0 %v5828
        %7205 = vmatprep.subr.bf16.mxu0 %v5845
        %7206 = vmatpush1.bf16.msra.mxu0 %v5844
        %7207 = vmatprep.subr.bf16.mxu0 %v5861
        %7208 = vmatpush1.bf16.msra.mxu0 %v5860
        %7209 = vmatprep.subr.bf16.mxu0 %v5877
        %7210 = vmatpush1.bf16.msra.mxu0 %v5876
        %7211 = vmatprep.subr.bf16.mxu0 %v5893
        %7212 = vmatpush1.bf16.msra.mxu0 %v5892
        %7213 = vmatprep.subr.bf16.mxu0 %v5909
        %7214 = vmatpush1.bf16.msra.mxu0 %v5908
        %7215 = vmatprep.subr.bf16.mxu0 %v5925
        %7216 = vmatpush1.bf16.msra.mxu0 %v5924
        %7217 = vmatprep.subr.bf16.mxu0 %v5941
        %7218 = vmatpush1.bf16.msra.mxu0 %v5940
        %7219 = vmatprep.subr.bf16.mxu0 %v5957
        %7220 = vmatpush1.bf16.msra.mxu0 %v5956
        %7221 = vmatprep.subr.bf16.mxu0 %v5973
        %7222 = vmatpush1.bf16.msra.mxu0 %v5972
        %7223 = vmatprep.subr.bf16.mxu0 %v5989
        %7224 = vmatpush1.bf16.msra.mxu0 %v5988
        %7225 = vmatprep.subr.bf16.mxu0 %v6005
        %7226 = vmatpush1.bf16.msra.mxu0 %v6004
        %7227 = vmatprep.subr.bf16.mxu0 %v6021
        %7228 = vmatpush1.bf16.msra.mxu0 %v6020
        %7229 = vmatprep.subr.bf16.mxu0 %v6037
        %7230 = vmatpush1.bf16.msra.mxu0 %v6036
        %7231 = vmatprep.mubr.bf16.mxu0 %v847
        %7232 = vmatmul.mubr.bf16.gmra.mrb[0].mxu0 %v846
        %v7233 = vpop.f32.mrb[0].mxu0
        %v7234 = vadd.f32 %v7193, %v7233
        %v7235 = vpop.f32.mrb[0].mxu0
        %v7236 = vadd.f32 %v7195, %v7235
        %v7237 = vpop.f32.mrb[0].mxu0
        %v7238 = vpop.f32.mrb[0].mxu0
        %7239 = vdwg.mxu0
        %7240 = vmatprep.subr.bf16.mxu0 %v5031
        %7241 = vmatpush1.bf16.msra.mxu0 %v5030
        %7242 = vmatprep.subr.bf16.mxu0 %v5047
        %7243 = vmatpush1.bf16.msra.mxu0 %v5046
        %7244 = vmatprep.subr.bf16.mxu0 %v5063
        %7245 = vmatpush1.bf16.msra.mxu0 %v5062
        %7246 = vmatprep.subr.bf16.mxu0 %v5079
        %7247 = vmatpush1.bf16.msra.mxu0 %v5078
        %7248 = vmatprep.subr.bf16.mxu0 %v5095
        %7249 = vmatpush1.bf16.msra.mxu0 %v5094
        %7250 = vmatprep.subr.bf16.mxu0 %v5111
        %7251 = vmatpush1.bf16.msra.mxu0 %v5110
        %7252 = vmatprep.subr.bf16.mxu0 %v5127
        %7253 = vmatpush1.bf16.msra.mxu0 %v5126
        %7254 = vmatprep.subr.bf16.mxu0 %v5143
        %7255 = vmatpush1.bf16.msra.mxu0 %v5142
        %7256 = vmatprep.subr.bf16.mxu0 %v5159
        %7257 = vmatpush1.bf16.msra.mxu0 %v5158
        %7258 = vmatprep.subr.bf16.mxu0 %v5175
        %7259 = vmatpush1.bf16.msra.mxu0 %v5174
        %7260 = vmatprep.subr.bf16.mxu0 %v5191
        %7261 = vmatpush1.bf16.msra.mxu0 %v5190
        %7262 = vmatprep.subr.bf16.mxu0 %v5207
        %7263 = vmatpush1.bf16.msra.mxu0 %v5206
        %7264 = vmatprep.subr.bf16.mxu0 %v5223
        %7265 = vmatpush1.bf16.msra.mxu0 %v5222
        %7266 = vmatprep.subr.bf16.mxu0 %v5239
        %7267 = vmatpush1.bf16.msra.mxu0 %v5238
        %7268 = vmatprep.subr.bf16.mxu0 %v5255
        %7269 = vmatpush1.bf16.msra.mxu0 %v5254
        %7270 = vmatprep.subr.bf16.mxu0 %v5271
        %7271 = vmatpush1.bf16.msra.mxu0 %v5270
        %7272 = vmatprep.mubr.bf16.mxu0 %v841
        %7273 = vmatmul.mubr.bf16.gmra.mrb[0].mxu0 %v840
        %v7274 = vpop.f32.mrb[0].mxu0
        %v7275 = vadd.f32 %v1887, %v7274
        %v7276 = vpop.f32.mrb[0].mxu0
        %v7277 = vadd.f32 %v1891, %v7276
        %v7278 = vpop.f32.mrb[0].mxu0
        %v7279 = vpop.f32.mrb[0].mxu0
        %7280 = vdwg.mxu0
        %7281 = vmatprep.subr.bf16.mxu0 %v5287
        %7282 = vmatpush1.bf16.msra.mxu0 %v5286
        %7283 = vmatprep.subr.bf16.mxu0 %v5303
        %7284 = vmatpush1.bf16.msra.mxu0 %v5302
        %7285 = vmatprep.subr.bf16.mxu0 %v5319
        %7286 = vmatpush1.bf16.msra.mxu0 %v5318
        %7287 = vmatprep.subr.bf16.mxu0 %v5335
        %7288 = vmatpush1.bf16.msra.mxu0 %v5334
        %7289 = vmatprep.subr.bf16.mxu0 %v5351
        %7290 = vmatpush1.bf16.msra.mxu0 %v5350
        %7291 = vmatprep.subr.bf16.mxu0 %v5367
        %7292 = vmatpush1.bf16.msra.mxu0 %v5366
        %7293 = vmatprep.subr.bf16.mxu0 %v5383
        %7294 = vmatpush1.bf16.msra.mxu0 %v5382
        %7295 = vmatprep.subr.bf16.mxu0 %v5399
        %7296 = vmatpush1.bf16.msra.mxu0 %v5398
        %7297 = vmatprep.subr.bf16.mxu0 %v5415
        %7298 = vmatpush1.bf16.msra.mxu0 %v5414
        %7299 = vmatprep.subr.bf16.mxu0 %v5431
        %7300 = vmatpush1.bf16.msra.mxu0 %v5430
        %7301 = vmatprep.subr.bf16.mxu0 %v5447
        %7302 = vmatpush1.bf16.msra.mxu0 %v5446
        %7303 = vmatprep.subr.bf16.mxu0 %v5463
        %7304 = vmatpush1.bf16.msra.mxu0 %v5462
        %7305 = vmatprep.subr.bf16.mxu0 %v5479
        %7306 = vmatpush1.bf16.msra.mxu0 %v5478
        %7307 = vmatprep.subr.bf16.mxu0 %v5495
        %7308 = vmatpush1.bf16.msra.mxu0 %v5494
        %7309 = vmatprep.subr.bf16.mxu0 %v5511
        %7310 = vmatpush1.bf16.msra.mxu0 %v5510
        %7311 = vmatprep.subr.bf16.mxu0 %v5527
        %7312 = vmatpush1.bf16.msra.mxu0 %v5526
        %7313 = vmatprep.mubr.bf16.mxu0 %v843
        %7314 = vmatmul.mubr.bf16.gmra.mrb[0].mxu0 %v842
        %v7315 = vpop.f32.mrb[0].mxu0
        %v7316 = vadd.f32 %v7275, %v7315
        %v7317 = vpop.f32.mrb[0].mxu0
        %v7318 = vadd.f32 %v7277, %v7317
        %v7319 = vpop.f32.mrb[0].mxu0
        %v7320 = vpop.f32.mrb[0].mxu0
        %7321 = vdwg.mxu0
        %7322 = vmatprep.subr.bf16.mxu0 %v5543
        %7323 = vmatpush1.bf16.msra.mxu0 %v5542
        %7324 = vmatprep.subr.bf16.mxu0 %v5559
        %7325 = vmatpush1.bf16.msra.mxu0 %v5558
        %7326 = vmatprep.subr.bf16.mxu0 %v5575
        %7327 = vmatpush1.bf16.msra.mxu0 %v5574
        %7328 = vmatprep.subr.bf16.mxu0 %v5591
        %7329 = vmatpush1.bf16.msra.mxu0 %v5590
        %7330 = vmatprep.subr.bf16.mxu0 %v5607
        %7331 = vmatpush1.bf16.msra.mxu0 %v5606
        %7332 = vmatprep.subr.bf16.mxu0 %v5623
        %7333 = vmatpush1.bf16.msra.mxu0 %v5622
        %7334 = vmatprep.subr.bf16.mxu0 %v5639
        %7335 = vmatpush1.bf16.msra.mxu0 %v5638
        %7336 = vmatprep.subr.bf16.mxu0 %v5655
        %7337 = vmatpush1.bf16.msra.mxu0 %v5654
        %7338 = vmatprep.subr.bf16.mxu0 %v5671
        %7339 = vmatpush1.bf16.msra.mxu0 %v5670
        %7340 = vmatprep.subr.bf16.mxu0 %v5687
        %7341 = vmatpush1.bf16.msra.mxu0 %v5686
        %7342 = vmatprep.subr.bf16.mxu0 %v5703
        %7343 = vmatpush1.bf16.msra.mxu0 %v5702
        %7344 = vmatprep.subr.bf16.mxu0 %v5719
        %7345 = vmatpush1.bf16.msra.mxu0 %v5718
        %7346 = vmatprep.subr.bf16.mxu0 %v5735
        %7347 = vmatpush1.bf16.msra.mxu0 %v5734
        %7348 = vmatprep.subr.bf16.mxu0 %v5751
        %7349 = vmatpush1.bf16.msra.mxu0 %v5750
        %7350 = vmatprep.subr.bf16.mxu0 %v5767
        %7351 = vmatpush1.bf16.msra.mxu0 %v5766
        %7352 = vmatprep.subr.bf16.mxu0 %v5783
        %7353 = vmatpush1.bf16.msra.mxu0 %v5782
        %7354 = vmatprep.mubr.bf16.mxu0 %v845
        %7355 = vmatmul.mubr.bf16.gmra.mrb[0].mxu0 %v844
        %v7356 = vpop.f32.mrb[0].mxu0
        %v7357 = vadd.f32 %v7316, %v7356
        %v7358 = vpop.f32.mrb[0].mxu0
        %v7359 = vadd.f32 %v7318, %v7358
        %v7360 = vpop.f32.mrb[0].mxu0
        %v7361 = vpop.f32.mrb[0].mxu0
        %7362 = vdwg.mxu0
        %7363 = vmatprep.subr.bf16.mxu0 %v5799
        %7364 = vmatpush1.bf16.msra.mxu0 %v5798
        %7365 = vmatprep.subr.bf16.mxu0 %v5815
        %7366 = vmatpush1.bf16.msra.mxu0 %v5814
        %7367 = vmatprep.subr.bf16.mxu0 %v5831
        %7368 = vmatpush1.bf16.msra.mxu0 %v5830
        %7369 = vmatprep.subr.bf16.mxu0 %v5847
        %7370 = vmatpush1.bf16.msra.mxu0 %v5846
        %7371 = vmatprep.subr.bf16.mxu0 %v5863
        %7372 = vmatpush1.bf16.msra.mxu0 %v5862
        %7373 = vmatprep.subr.bf16.mxu0 %v5879
        %7374 = vmatpush1.bf16.msra.mxu0 %v5878
        %7375 = vmatprep.subr.bf16.mxu0 %v5895
        %7376 = vmatpush1.bf16.msra.mxu0 %v5894
        %7377 = vmatprep.subr.bf16.mxu0 %v5911
        %7378 = vmatpush1.bf16.msra.mxu0 %v5910
        %7379 = vmatprep.subr.bf16.mxu0 %v5927
        %7380 = vmatpush1.bf16.msra.mxu0 %v5926
        %7381 = vmatprep.subr.bf16.mxu0 %v5943
        %7382 = vmatpush1.bf16.msra.mxu0 %v5942
        %7383 = vmatprep.subr.bf16.mxu0 %v5959
        %7384 = vmatpush1.bf16.msra.mxu0 %v5958
        %7385 = vmatprep.subr.bf16.mxu0 %v5975
        %7386 = vmatpush1.bf16.msra.mxu0 %v5974
        %7387 = vmatprep.subr.bf16.mxu0 %v5991
        %7388 = vmatpush1.bf16.msra.mxu0 %v5990
        %7389 = vmatprep.subr.bf16.mxu0 %v6007
        %7390 = vmatpush1.bf16.msra.mxu0 %v6006
        %7391 = vmatprep.subr.bf16.mxu0 %v6023
        %7392 = vmatpush1.bf16.msra.mxu0 %v6022
        %7393 = vmatprep.subr.bf16.mxu0 %v6039
        %7394 = vmatpush1.bf16.msra.mxu0 %v6038
        %7395 = vmatprep.mubr.bf16.mxu0 %v847
        %7396 = vmatmul.mubr.bf16.gmra.mrb[0].mxu0 %v846
        %v7397 = vpop.f32.mrb[0].mxu0
        %v7398 = vadd.f32 %v7357, %v7397
        %v7399 = vpop.f32.mrb[0].mxu0
        %v7400 = vadd.f32 %v7359, %v7399
        %v7401 = vpop.f32.mrb[0].mxu0
        %v7402 = vpop.f32.mrb[0].mxu0
        %7403 = vdwg.mxu0
        %7404 = vmatprep.subr.bf16.mxu0 %v5033
        %7405 = vmatpush1.bf16.msra.mxu0 %v5032
        %7406 = vmatprep.subr.bf16.mxu0 %v5049
        %7407 = vmatpush1.bf16.msra.mxu0 %v5048
        %7408 = vmatprep.subr.bf16.mxu0 %v5065
        %7409 = vmatpush1.bf16.msra.mxu0 %v5064
        %7410 = vmatprep.subr.bf16.mxu0 %v5081
        %7411 = vmatpush1.bf16.msra.mxu0 %v5080
        %7412 = vmatprep.subr.bf16.mxu0 %v5097
        %7413 = vmatpush1.bf16.msra.mxu0 %v5096
        %7414 = vmatprep.subr.bf16.mxu0 %v5113
        %7415 = vmatpush1.bf16.msra.mxu0 %v5112
        %7416 = vmatprep.subr.bf16.mxu0 %v5129
        %7417 = vmatpush1.bf16.msra.mxu0 %v5128
        %7418 = vmatprep.subr.bf16.mxu0 %v5145
        %7419 = vmatpush1.bf16.msra.mxu0 %v5144
        %7420 = vmatprep.subr.bf16.mxu0 %v5161
        %7421 = vmatpush1.bf16.msra.mxu0 %v5160
        %7422 = vmatprep.subr.bf16.mxu0 %v5177
        %7423 = vmatpush1.bf16.msra.mxu0 %v5176
        %7424 = vmatprep.subr.bf16.mxu0 %v5193
        %7425 = vmatpush1.bf16.msra.mxu0 %v5192
        %7426 = vmatprep.subr.bf16.mxu0 %v5209
        %7427 = vmatpush1.bf16.msra.mxu0 %v5208
        %7428 = vmatprep.subr.bf16.mxu0 %v5225
        %7429 = vmatpush1.bf16.msra.mxu0 %v5224
        %7430 = vmatprep.subr.bf16.mxu0 %v5241
        %7431 = vmatpush1.bf16.msra.mxu0 %v5240
        %7432 = vmatprep.subr.bf16.mxu0 %v5257
        %7433 = vmatpush1.bf16.msra.mxu0 %v5256
        %7434 = vmatprep.subr.bf16.mxu0 %v5273
        %7435 = vmatpush1.bf16.msra.mxu0 %v5272
        %7436 = vmatprep.mubr.bf16.mxu0 %v841
        %7437 = vmatmul.mubr.bf16.gmra.mrb[0].mxu0 %v840
        %v7438 = vpop.f32.mrb[0].mxu0
        %v7439 = vadd.f32 %v1895, %v7438
        %v7440 = vpop.f32.mrb[0].mxu0
        %v7441 = vadd.f32 %v1899, %v7440
        %v7442 = vpop.f32.mrb[0].mxu0
        %v7443 = vpop.f32.mrb[0].mxu0
        %7444 = vdwg.mxu0
        %7445 = vmatprep.subr.bf16.mxu0 %v5289
        %7446 = vmatpush1.bf16.msra.mxu0 %v5288
        %7447 = vmatprep.subr.bf16.mxu0 %v5305
        %7448 = vmatpush1.bf16.msra.mxu0 %v5304
        %7449 = vmatprep.subr.bf16.mxu0 %v5321
        %7450 = vmatpush1.bf16.msra.mxu0 %v5320
        %7451 = vmatprep.subr.bf16.mxu0 %v5337
        %7452 = vmatpush1.bf16.msra.mxu0 %v5336
        %7453 = vmatprep.subr.bf16.mxu0 %v5353
        %7454 = vmatpush1.bf16.msra.mxu0 %v5352
        %7455 = vmatprep.subr.bf16.mxu0 %v5369
        %7456 = vmatpush1.bf16.msra.mxu0 %v5368
        %7457 = vmatprep.subr.bf16.mxu0 %v5385
        %7458 = vmatpush1.bf16.msra.mxu0 %v5384
        %7459 = vmatprep.subr.bf16.mxu0 %v5401
        %7460 = vmatpush1.bf16.msra.mxu0 %v5400
        %7461 = vmatprep.subr.bf16.mxu0 %v5417
        %7462 = vmatpush1.bf16.msra.mxu0 %v5416
        %7463 = vmatprep.subr.bf16.mxu0 %v5433
        %7464 = vmatpush1.bf16.msra.mxu0 %v5432
        %7465 = vmatprep.subr.bf16.mxu0 %v5449
        %7466 = vmatpush1.bf16.msra.mxu0 %v5448
        %7467 = vmatprep.subr.bf16.mxu0 %v5465
        %7468 = vmatpush1.bf16.msra.mxu0 %v5464
        %7469 = vmatprep.subr.bf16.mxu0 %v5481
        %7470 = vmatpush1.bf16.msra.mxu0 %v5480
        %7471 = vmatprep.subr.bf16.mxu0 %v5497
        %7472 = vmatpush1.bf16.msra.mxu0 %v5496
        %7473 = vmatprep.subr.bf16.mxu0 %v5513
        %7474 = vmatpush1.bf16.msra.mxu0 %v5512
        %7475 = vmatprep.subr.bf16.mxu0 %v5529
        %7476 = vmatpush1.bf16.msra.mxu0 %v5528
        %7477 = vmatprep.mubr.bf16.mxu0 %v843
        %7478 = vmatmul.mubr.bf16.gmra.mrb[0].mxu0 %v842
        %v7479 = vpop.f32.mrb[0].mxu0
        %v7480 = vadd.f32 %v7439, %v7479
        %v7481 = vpop.f32.mrb[0].mxu0
        %v7482 = vadd.f32 %v7441, %v7481
        %v7483 = vpop.f32.mrb[0].mxu0
        %v7484 = vpop.f32.mrb[0].mxu0
        %7485 = vdwg.mxu0
        %7486 = vmatprep.subr.bf16.mxu0 %v5545
        %7487 = vmatpush1.bf16.msra.mxu0 %v5544
        %7488 = vmatprep.subr.bf16.mxu0 %v5561
        %7489 = vmatpush1.bf16.msra.mxu0 %v5560
        %7490 = vmatprep.subr.bf16.mxu0 %v5577
        %7491 = vmatpush1.bf16.msra.mxu0 %v5576
        %7492 = vmatprep.subr.bf16.mxu0 %v5593
        %7493 = vmatpush1.bf16.msra.mxu0 %v5592
        %7494 = vmatprep.subr.bf16.mxu0 %v5609
        %7495 = vmatpush1.bf16.msra.mxu0 %v5608
        %7496 = vmatprep.subr.bf16.mxu0 %v5625
        %7497 = vmatpush1.bf16.msra.mxu0 %v5624
        %7498 = vmatprep.subr.bf16.mxu0 %v5641
        %7499 = vmatpush1.bf16.msra.mxu0 %v5640
        %7500 = vmatprep.subr.bf16.mxu0 %v5657
        %7501 = vmatpush1.bf16.msra.mxu0 %v5656
        %7502 = vmatprep.subr.bf16.mxu0 %v5673
        %7503 = vmatpush1.bf16.msra.mxu0 %v5672
        %7504 = vmatprep.subr.bf16.mxu0 %v5689
        %7505 = vmatpush1.bf16.msra.mxu0 %v5688
        %7506 = vmatprep.subr.bf16.mxu0 %v5705
        %7507 = vmatpush1.bf16.msra.mxu0 %v5704
        %7508 = vmatprep.subr.bf16.mxu0 %v5721
        %7509 = vmatpush1.bf16.msra.mxu0 %v5720
        %7510 = vmatprep.subr.bf16.mxu0 %v5737
        %7511 = vmatpush1.bf16.msra.mxu0 %v5736
        %7512 = vmatprep.subr.bf16.mxu0 %v5753
        %7513 = vmatpush1.bf16.msra.mxu0 %v5752
        %7514 = vmatprep.subr.bf16.mxu0 %v5769
        %7515 = vmatpush1.bf16.msra.mxu0 %v5768
        %7516 = vmatprep.subr.bf16.mxu0 %v5785
        %7517 = vmatpush1.bf16.msra.mxu0 %v5784
        %7518 = vmatprep.mubr.bf16.mxu0 %v845
        %7519 = vmatmul.mubr.bf16.gmra.mrb[0].mxu0 %v844
        %v7520 = vpop.f32.mrb[0].mxu0
        %v7521 = vadd.f32 %v7480, %v7520
        %v7522 = vpop.f32.mrb[0].mxu0
        %v7523 = vadd.f32 %v7482, %v7522
        %v7524 = vpop.f32.mrb[0].mxu0
        %v7525 = vpop.f32.mrb[0].mxu0
        %7526 = vdwg.mxu0
        %7527 = vmatprep.subr.bf16.mxu0 %v5801
        %7528 = vmatpush1.bf16.msra.mxu0 %v5800
        %7529 = vmatprep.subr.bf16.mxu0 %v5817
        %7530 = vmatpush1.bf16.msra.mxu0 %v5816
        %7531 = vmatprep.subr.bf16.mxu0 %v5833
        %7532 = vmatpush1.bf16.msra.mxu0 %v5832
        %7533 = vmatprep.subr.bf16.mxu0 %v5849
        %7534 = vmatpush1.bf16.msra.mxu0 %v5848
        %7535 = vmatprep.subr.bf16.mxu0 %v5865
        %7536 = vmatpush1.bf16.msra.mxu0 %v5864
        %7537 = vmatprep.subr.bf16.mxu0 %v5881
        %7538 = vmatpush1.bf16.msra.mxu0 %v5880
        %7539 = vmatprep.subr.bf16.mxu0 %v5897
        %7540 = vmatpush1.bf16.msra.mxu0 %v5896
        %7541 = vmatprep.subr.bf16.mxu0 %v5913
        %7542 = vmatpush1.bf16.msra.mxu0 %v5912
        %7543 = vmatprep.subr.bf16.mxu0 %v5929
        %7544 = vmatpush1.bf16.msra.mxu0 %v5928
        %7545 = vmatprep.subr.bf16.mxu0 %v5945
        %7546 = vmatpush1.bf16.msra.mxu0 %v5944
        %7547 = vmatprep.subr.bf16.mxu0 %v5961
        %7548 = vmatpush1.bf16.msra.mxu0 %v5960
        %7549 = vmatprep.subr.bf16.mxu0 %v5977
        %7550 = vmatpush1.bf16.msra.mxu0 %v5976
        %7551 = vmatprep.subr.bf16.mxu0 %v5993
        %7552 = vmatpush1.bf16.msra.mxu0 %v5992
        %7553 = vmatprep.subr.bf16.mxu0 %v6009
        %7554 = vmatpush1.bf16.msra.mxu0 %v6008
        %7555 = vmatprep.subr.bf16.mxu0 %v6025
        %7556 = vmatpush1.bf16.msra.mxu0 %v6024
        %7557 = vmatprep.subr.bf16.mxu0 %v6041
        %7558 = vmatpush1.bf16.msra.mxu0 %v6040
        %7559 = vmatprep.mubr.bf16.mxu0 %v847
        %7560 = vmatmul.mubr.bf16.gmra.mrb[0].mxu0 %v846
        %v7561 = vpop.f32.mrb[0].mxu0
        %v7562 = vadd.f32 %v7521, %v7561
        %v7563 = vpop.f32.mrb[0].mxu0
        %v7564 = vadd.f32 %v7523, %v7563
        %v7565 = vpop.f32.mrb[0].mxu0
        %v7566 = vpop.f32.mrb[0].mxu0
        %7567 = vdwg.mxu0
        %7568 = vmatprep.subr.bf16.mxu0 %v5035
        %7569 = vmatpush1.bf16.msra.mxu0 %v5034
        %7570 = vmatprep.subr.bf16.mxu0 %v5051
        %7571 = vmatpush1.bf16.msra.mxu0 %v5050
        %7572 = vmatprep.subr.bf16.mxu0 %v5067
        %7573 = vmatpush1.bf16.msra.mxu0 %v5066
        %7574 = vmatprep.subr.bf16.mxu0 %v5083
        %7575 = vmatpush1.bf16.msra.mxu0 %v5082
        %7576 = vmatprep.subr.bf16.mxu0 %v5099
        %7577 = vmatpush1.bf16.msra.mxu0 %v5098
        %7578 = vmatprep.subr.bf16.mxu0 %v5115
        %7579 = vmatpush1.bf16.msra.mxu0 %v5114
        %7580 = vmatprep.subr.bf16.mxu0 %v5131
        %7581 = vmatpush1.bf16.msra.mxu0 %v5130
        %7582 = vmatprep.subr.bf16.mxu0 %v5147
        %7583 = vmatpush1.bf16.msra.mxu0 %v5146
        %7584 = vmatprep.subr.bf16.mxu0 %v5163
        %7585 = vmatpush1.bf16.msra.mxu0 %v5162
        %7586 = vmatprep.subr.bf16.mxu0 %v5179
        %7587 = vmatpush1.bf16.msra.mxu0 %v5178
        %7588 = vmatprep.subr.bf16.mxu0 %v5195
        %7589 = vmatpush1.bf16.msra.mxu0 %v5194
        %7590 = vmatprep.subr.bf16.mxu0 %v5211
        %7591 = vmatpush1.bf16.msra.mxu0 %v5210
        %7592 = vmatprep.subr.bf16.mxu0 %v5227
        %7593 = vmatpush1.bf16.msra.mxu0 %v5226
        %7594 = vmatprep.subr.bf16.mxu0 %v5243
        %7595 = vmatpush1.bf16.msra.mxu0 %v5242
        %7596 = vmatprep.subr.bf16.mxu0 %v5259
        %7597 = vmatpush1.bf16.msra.mxu0 %v5258
        %7598 = vmatprep.subr.bf16.mxu0 %v5275
        %7599 = vmatpush1.bf16.msra.mxu0 %v5274
        %7600 = vmatprep.mubr.bf16.mxu0 %v841
        %7601 = vmatmul.mubr.bf16.gmra.mrb[0].mxu0 %v840
        %v7602 = vpop.f32.mrb[0].mxu0
        %v7603 = vadd.f32 %v1903, %v7602
        %v7604 = vpop.f32.mrb[0].mxu0
        %v7605 = vadd.f32 %v1907, %v7604
        %v7606 = vpop.f32.mrb[0].mxu0
        %v7607 = vpop.f32.mrb[0].mxu0
        %7608 = vdwg.mxu0
        %7609 = vmatprep.subr.bf16.mxu0 %v5291
        %7610 = vmatpush1.bf16.msra.mxu0 %v5290
        %7611 = vmatprep.subr.bf16.mxu0 %v5307
        %7612 = vmatpush1.bf16.msra.mxu0 %v5306
        %7613 = vmatprep.subr.bf16.mxu0 %v5323
        %7614 = vmatpush1.bf16.msra.mxu0 %v5322
        %7615 = vmatprep.subr.bf16.mxu0 %v5339
        %7616 = vmatpush1.bf16.msra.mxu0 %v5338
        %7617 = vmatprep.subr.bf16.mxu0 %v5355
        %7618 = vmatpush1.bf16.msra.mxu0 %v5354
        %7619 = vmatprep.subr.bf16.mxu0 %v5371
        %7620 = vmatpush1.bf16.msra.mxu0 %v5370
        %7621 = vmatprep.subr.bf16.mxu0 %v5387
        %7622 = vmatpush1.bf16.msra.mxu0 %v5386
        %7623 = vmatprep.subr.bf16.mxu0 %v5403
        %7624 = vmatpush1.bf16.msra.mxu0 %v5402
        %7625 = vmatprep.subr.bf16.mxu0 %v5419
        %7626 = vmatpush1.bf16.msra.mxu0 %v5418
        %7627 = vmatprep.subr.bf16.mxu0 %v5435
        %7628 = vmatpush1.bf16.msra.mxu0 %v5434
        %7629 = vmatprep.subr.bf16.mxu0 %v5451
        %7630 = vmatpush1.bf16.msra.mxu0 %v5450
        %7631 = vmatprep.subr.bf16.mxu0 %v5467
        %7632 = vmatpush1.bf16.msra.mxu0 %v5466
        %7633 = vmatprep.subr.bf16.mxu0 %v5483
        %7634 = vmatpush1.bf16.msra.mxu0 %v5482
        %7635 = vmatprep.subr.bf16.mxu0 %v5499
        %7636 = vmatpush1.bf16.msra.mxu0 %v5498
        %7637 = vmatprep.subr.bf16.mxu0 %v5515
        %7638 = vmatpush1.bf16.msra.mxu0 %v5514
        %7639 = vmatprep.subr.bf16.mxu0 %v5531
        %7640 = vmatpush1.bf16.msra.mxu0 %v5530
        %7641 = vmatprep.mubr.bf16.mxu0 %v843
        %7642 = vmatmul.mubr.bf16.gmra.mrb[0].mxu0 %v842
        %v7643 = vpop.f32.mrb[0].mxu0
        %v7644 = vadd.f32 %v7603, %v7643
        %v7645 = vpop.f32.mrb[0].mxu0
        %v7646 = vadd.f32 %v7605, %v7645
        %v7647 = vpop.f32.mrb[0].mxu0
        %v7648 = vpop.f32.mrb[0].mxu0
        %7649 = vdwg.mxu0
        %7650 = vmatprep.subr.bf16.mxu0 %v5547
        %7651 = vmatpush1.bf16.msra.mxu0 %v5546
        %7652 = vmatprep.subr.bf16.mxu0 %v5563
        %7653 = vmatpush1.bf16.msra.mxu0 %v5562
        %7654 = vmatprep.subr.bf16.mxu0 %v5579
        %7655 = vmatpush1.bf16.msra.mxu0 %v5578
        %7656 = vmatprep.subr.bf16.mxu0 %v5595
        %7657 = vmatpush1.bf16.msra.mxu0 %v5594
        %7658 = vmatprep.subr.bf16.mxu0 %v5611
        %7659 = vmatpush1.bf16.msra.mxu0 %v5610
        %7660 = vmatprep.subr.bf16.mxu0 %v5627
        %7661 = vmatpush1.bf16.msra.mxu0 %v5626
        %7662 = vmatprep.subr.bf16.mxu0 %v5643
        %7663 = vmatpush1.bf16.msra.mxu0 %v5642
        %7664 = vmatprep.subr.bf16.mxu0 %v5659
        %7665 = vmatpush1.bf16.msra.mxu0 %v5658
        %7666 = vmatprep.subr.bf16.mxu0 %v5675
        %7667 = vmatpush1.bf16.msra.mxu0 %v5674
        %7668 = vmatprep.subr.bf16.mxu0 %v5691
        %7669 = vmatpush1.bf16.msra.mxu0 %v5690
        %7670 = vmatprep.subr.bf16.mxu0 %v5707
        %7671 = vmatpush1.bf16.msra.mxu0 %v5706
        %7672 = vmatprep.subr.bf16.mxu0 %v5723
        %7673 = vmatpush1.bf16.msra.mxu0 %v5722
        %7674 = vmatprep.subr.bf16.mxu0 %v5739
        %7675 = vmatpush1.bf16.msra.mxu0 %v5738
        %7676 = vmatprep.subr.bf16.mxu0 %v5755
        %7677 = vmatpush1.bf16.msra.mxu0 %v5754
        %7678 = vmatprep.subr.bf16.mxu0 %v5771
        %7679 = vmatpush1.bf16.msra.mxu0 %v5770
        %7680 = vmatprep.subr.bf16.mxu0 %v5787
        %7681 = vmatpush1.bf16.msra.mxu0 %v5786
        %7682 = vmatprep.mubr.bf16.mxu0 %v845
        %7683 = vmatmul.mubr.bf16.gmra.mrb[0].mxu0 %v844
        %v7684 = vpop.f32.mrb[0].mxu0
        %v7685 = vadd.f32 %v7644, %v7684
        %v7686 = vpop.f32.mrb[0].mxu0
        %v7687 = vadd.f32 %v7646, %v7686
        %v7688 = vpop.f32.mrb[0].mxu0
        %v7689 = vpop.f32.mrb[0].mxu0
        %7690 = vdwg.mxu0
        %7691 = vmatprep.subr.bf16.mxu0 %v5803
        %7692 = vmatpush1.bf16.msra.mxu0 %v5802
        %7693 = vmatprep.subr.bf16.mxu0 %v5819
        %7694 = vmatpush1.bf16.msra.mxu0 %v5818
        %7695 = vmatprep.subr.bf16.mxu0 %v5835
        %7696 = vmatpush1.bf16.msra.mxu0 %v5834
        %7697 = vmatprep.subr.bf16.mxu0 %v5851
        %7698 = vmatpush1.bf16.msra.mxu0 %v5850
        %7699 = vmatprep.subr.bf16.mxu0 %v5867
        %7700 = vmatpush1.bf16.msra.mxu0 %v5866
        %7701 = vmatprep.subr.bf16.mxu0 %v5883
        %7702 = vmatpush1.bf16.msra.mxu0 %v5882
        %7703 = vmatprep.subr.bf16.mxu0 %v5899
        %7704 = vmatpush1.bf16.msra.mxu0 %v5898
        %7705 = vmatprep.subr.bf16.mxu0 %v5915
        %7706 = vmatpush1.bf16.msra.mxu0 %v5914
        %7707 = vmatprep.subr.bf16.mxu0 %v5931
        %7708 = vmatpush1.bf16.msra.mxu0 %v5930
        %7709 = vmatprep.subr.bf16.mxu0 %v5947
        %7710 = vmatpush1.bf16.msra.mxu0 %v5946
        %7711 = vmatprep.subr.bf16.mxu0 %v5963
        %7712 = vmatpush1.bf16.msra.mxu0 %v5962
        %7713 = vmatprep.subr.bf16.mxu0 %v5979
        %7714 = vmatpush1.bf16.msra.mxu0 %v5978
        %7715 = vmatprep.subr.bf16.mxu0 %v5995
        %7716 = vmatpush1.bf16.msra.mxu0 %v5994
        %7717 = vmatprep.subr.bf16.mxu0 %v6011
        %7718 = vmatpush1.bf16.msra.mxu0 %v6010
        %7719 = vmatprep.subr.bf16.mxu0 %v6027
        %7720 = vmatpush1.bf16.msra.mxu0 %v6026
        %7721 = vmatprep.subr.bf16.mxu0 %v6043
        %7722 = vmatpush1.bf16.msra.mxu0 %v6042
        %7723 = vmatprep.mubr.bf16.mxu0 %v847
        %7724 = vmatmul.mubr.bf16.gmra.mrb[0].mxu0 %v846
        %v7725 = vpop.f32.mrb[0].mxu0
        %v7726 = vadd.f32 %v7685, %v7725
        %v7727 = vpop.f32.mrb[0].mxu0
        %v7728 = vadd.f32 %v7687, %v7727
        %v7729 = vpop.f32.mrb[0].mxu0
        %v7730 = vpop.f32.mrb[0].mxu0
        %7731 = vdwg.mxu0
        %7732 = vmatprep.subr.bf16.mxu0 %v5037
        %7733 = vmatpush1.bf16.msra.mxu0 %v5036
        %7734 = vmatprep.subr.bf16.mxu0 %v5053
        %7735 = vmatpush1.bf16.msra.mxu0 %v5052
        %7736 = vmatprep.subr.bf16.mxu0 %v5069
        %7737 = vmatpush1.bf16.msra.mxu0 %v5068
        %7738 = vmatprep.subr.bf16.mxu0 %v5085
        %7739 = vmatpush1.bf16.msra.mxu0 %v5084
        %7740 = vmatprep.subr.bf16.mxu0 %v5101
        %7741 = vmatpush1.bf16.msra.mxu0 %v5100
        %7742 = vmatprep.subr.bf16.mxu0 %v5117
        %7743 = vmatpush1.bf16.msra.mxu0 %v5116
        %7744 = vmatprep.subr.bf16.mxu0 %v5133
        %7745 = vmatpush1.bf16.msra.mxu0 %v5132
        %7746 = vmatprep.subr.bf16.mxu0 %v5149
        %7747 = vmatpush1.bf16.msra.mxu0 %v5148
        %7748 = vmatprep.subr.bf16.mxu0 %v5165
        %7749 = vmatpush1.bf16.msra.mxu0 %v5164
        %7750 = vmatprep.subr.bf16.mxu0 %v5181
        %7751 = vmatpush1.bf16.msra.mxu0 %v5180
        %7752 = vmatprep.subr.bf16.mxu0 %v5197
        %7753 = vmatpush1.bf16.msra.mxu0 %v5196
        %7754 = vmatprep.subr.bf16.mxu0 %v5213
        %7755 = vmatpush1.bf16.msra.mxu0 %v5212
        %7756 = vmatprep.subr.bf16.mxu0 %v5229
        %7757 = vmatpush1.bf16.msra.mxu0 %v5228
        %7758 = vmatprep.subr.bf16.mxu0 %v5245
        %7759 = vmatpush1.bf16.msra.mxu0 %v5244
        %7760 = vmatprep.subr.bf16.mxu0 %v5261
        %7761 = vmatpush1.bf16.msra.mxu0 %v5260
        %7762 = vmatprep.subr.bf16.mxu0 %v5277
        %7763 = vmatpush1.bf16.msra.mxu0 %v5276
        %7764 = vmatprep.mubr.bf16.mxu0 %v841
        %7765 = vmatmul.mubr.bf16.gmra.mrb[0].mxu0 %v840
        %v7766 = vpop.f32.mrb[0].mxu0
        %v7767 = vadd.f32 %v1911, %v7766
        %v7768 = vpop.f32.mrb[0].mxu0
        %v7769 = vadd.f32 %v1915, %v7768
        %v7770 = vpop.f32.mrb[0].mxu0
        %v7771 = vpop.f32.mrb[0].mxu0
        %7772 = vdwg.mxu0
        %7773 = vmatprep.subr.bf16.mxu0 %v5293
        %7774 = vmatpush1.bf16.msra.mxu0 %v5292
        %7775 = vmatprep.subr.bf16.mxu0 %v5309
        %7776 = vmatpush1.bf16.msra.mxu0 %v5308
        %7777 = vmatprep.subr.bf16.mxu0 %v5325
        %7778 = vmatpush1.bf16.msra.mxu0 %v5324
        %7779 = vmatprep.subr.bf16.mxu0 %v5341
        %7780 = vmatpush1.bf16.msra.mxu0 %v5340
        %7781 = vmatprep.subr.bf16.mxu0 %v5357
        %7782 = vmatpush1.bf16.msra.mxu0 %v5356
        %7783 = vmatprep.subr.bf16.mxu0 %v5373
        %7784 = vmatpush1.bf16.msra.mxu0 %v5372
        %7785 = vmatprep.subr.bf16.mxu0 %v5389
        %7786 = vmatpush1.bf16.msra.mxu0 %v5388
        %7787 = vmatprep.subr.bf16.mxu0 %v5405
        %7788 = vmatpush1.bf16.msra.mxu0 %v5404
        %7789 = vmatprep.subr.bf16.mxu0 %v5421
        %7790 = vmatpush1.bf16.msra.mxu0 %v5420
        %7791 = vmatprep.subr.bf16.mxu0 %v5437
        %7792 = vmatpush1.bf16.msra.mxu0 %v5436
        %7793 = vmatprep.subr.bf16.mxu0 %v5453
        %7794 = vmatpush1.bf16.msra.mxu0 %v5452
        %7795 = vmatprep.subr.bf16.mxu0 %v5469
        %7796 = vmatpush1.bf16.msra.mxu0 %v5468
        %7797 = vmatprep.subr.bf16.mxu0 %v5485
        %7798 = vmatpush1.bf16.msra.mxu0 %v5484
        %7799 = vmatprep.subr.bf16.mxu0 %v5501
        %7800 = vmatpush1.bf16.msra.mxu0 %v5500
        %7801 = vmatprep.subr.bf16.mxu0 %v5517
        %7802 = vmatpush1.bf16.msra.mxu0 %v5516
        %7803 = vmatprep.subr.bf16.mxu0 %v5533
        %7804 = vmatpush1.bf16.msra.mxu0 %v5532
        %7805 = vmatprep.mubr.bf16.mxu0 %v843
        %7806 = vmatmul.mubr.bf16.gmra.mrb[0].mxu0 %v842
        %v7807 = vpop.f32.mrb[0].mxu0
        %v7808 = vadd.f32 %v7767, %v7807
        %v7809 = vpop.f32.mrb[0].mxu0
        %v7810 = vadd.f32 %v7769, %v7809
        %v7811 = vpop.f32.mrb[0].mxu0
        %v7812 = vpop.f32.mrb[0].mxu0
        %7813 = vdwg.mxu0
        %7814 = vmatprep.subr.bf16.mxu0 %v5549
        %7815 = vmatpush1.bf16.msra.mxu0 %v5548
        %7816 = vmatprep.subr.bf16.mxu0 %v5565
        %7817 = vmatpush1.bf16.msra.mxu0 %v5564
        %7818 = vmatprep.subr.bf16.mxu0 %v5581
        %7819 = vmatpush1.bf16.msra.mxu0 %v5580
        %7820 = vmatprep.subr.bf16.mxu0 %v5597
        %7821 = vmatpush1.bf16.msra.mxu0 %v5596
        %7822 = vmatprep.subr.bf16.mxu0 %v5613
        %7823 = vmatpush1.bf16.msra.mxu0 %v5612
        %7824 = vmatprep.subr.bf16.mxu0 %v5629
        %7825 = vmatpush1.bf16.msra.mxu0 %v5628
        %7826 = vmatprep.subr.bf16.mxu0 %v5645
        %7827 = vmatpush1.bf16.msra.mxu0 %v5644
        %7828 = vmatprep.subr.bf16.mxu0 %v5661
        %7829 = vmatpush1.bf16.msra.mxu0 %v5660
        %7830 = vmatprep.subr.bf16.mxu0 %v5677
        %7831 = vmatpush1.bf16.msra.mxu0 %v5676
        %7832 = vmatprep.subr.bf16.mxu0 %v5693
        %7833 = vmatpush1.bf16.msra.mxu0 %v5692
        %7834 = vmatprep.subr.bf16.mxu0 %v5709
        %7835 = vmatpush1.bf16.msra.mxu0 %v5708
        %7836 = vmatprep.subr.bf16.mxu0 %v5725
        %7837 = vmatpush1.bf16.msra.mxu0 %v5724
        %7838 = vmatprep.subr.bf16.mxu0 %v5741
        %7839 = vmatpush1.bf16.msra.mxu0 %v5740
        %7840 = vmatprep.subr.bf16.mxu0 %v5757
        %7841 = vmatpush1.bf16.msra.mxu0 %v5756
        %7842 = vmatprep.subr.bf16.mxu0 %v5773
        %7843 = vmatpush1.bf16.msra.mxu0 %v5772
        %7844 = vmatprep.subr.bf16.mxu0 %v5789
        %7845 = vmatpush1.bf16.msra.mxu0 %v5788
        %7846 = vmatprep.mubr.bf16.mxu0 %v845
        %7847 = vmatmul.mubr.bf16.gmra.mrb[0].mxu0 %v844
        %v7848 = vpop.f32.mrb[0].mxu0
        %v7849 = vadd.f32 %v7808, %v7848
        %v7850 = vpop.f32.mrb[0].mxu0
        %v7851 = vadd.f32 %v7810, %v7850
        %v7852 = vpop.f32.mrb[0].mxu0
        %v7853 = vpop.f32.mrb[0].mxu0
        %7854 = vdwg.mxu0
        %7855 = vmatprep.subr.bf16.mxu0 %v5805
        %7856 = vmatpush1.bf16.msra.mxu0 %v5804
        %7857 = vmatprep.subr.bf16.mxu0 %v5821
        %7858 = vmatpush1.bf16.msra.mxu0 %v5820
        %7859 = vmatprep.subr.bf16.mxu0 %v5837
        %7860 = vmatpush1.bf16.msra.mxu0 %v5836
        %7861 = vmatprep.subr.bf16.mxu0 %v5853
        %7862 = vmatpush1.bf16.msra.mxu0 %v5852
        %7863 = vmatprep.subr.bf16.mxu0 %v5869
        %7864 = vmatpush1.bf16.msra.mxu0 %v5868
        %7865 = vmatprep.subr.bf16.mxu0 %v5885
        %7866 = vmatpush1.bf16.msra.mxu0 %v5884
        %7867 = vmatprep.subr.bf16.mxu0 %v5901
        %7868 = vmatpush1.bf16.msra.mxu0 %v5900
        %7869 = vmatprep.subr.bf16.mxu0 %v5917
        %7870 = vmatpush1.bf16.msra.mxu0 %v5916
        %7871 = vmatprep.subr.bf16.mxu0 %v5933
        %7872 = vmatpush1.bf16.msra.mxu0 %v5932
        %7873 = vmatprep.subr.bf16.mxu0 %v5949
        %7874 = vmatpush1.bf16.msra.mxu0 %v5948
        %7875 = vmatprep.subr.bf16.mxu0 %v5965
        %7876 = vmatpush1.bf16.msra.mxu0 %v5964
        %7877 = vmatprep.subr.bf16.mxu0 %v5981
        %7878 = vmatpush1.bf16.msra.mxu0 %v5980
        %7879 = vmatprep.subr.bf16.mxu0 %v5997
        %7880 = vmatpush1.bf16.msra.mxu0 %v5996
        %7881 = vmatprep.subr.bf16.mxu0 %v6013
        %7882 = vmatpush1.bf16.msra.mxu0 %v6012
        %7883 = vmatprep.subr.bf16.mxu0 %v6029
        %7884 = vmatpush1.bf16.msra.mxu0 %v6028
        %7885 = vmatprep.subr.bf16.mxu0 %v6045
        %7886 = vmatpush1.bf16.msra.mxu0 %v6044
        %7887 = vmatprep.mubr.bf16.mxu0 %v847
        %7888 = vmatmul.mubr.bf16.gmra.mrb[0].mxu0 %v846
        %v7889 = vpop.f32.mrb[0].mxu0
        %v7890 = vadd.f32 %v7849, %v7889
        %v7891 = vpop.f32.mrb[0].mxu0
        %v7892 = vadd.f32 %v7851, %v7891
        %v7893 = vpop.f32.mrb[0].mxu0
        %v7894 = vpop.f32.mrb[0].mxu0
        %7895 = vdwg.mxu0
        %7896 = vmatprep.subr.bf16.mxu0 %v5039
        %7897 = vmatpush1.bf16.msra.mxu0 %v5038
        %7898 = vmatprep.subr.bf16.mxu0 %v5055
        %7899 = vmatpush1.bf16.msra.mxu0 %v5054
        %7900 = vmatprep.subr.bf16.mxu0 %v5071
        %7901 = vmatpush1.bf16.msra.mxu0 %v5070
        %7902 = vmatprep.subr.bf16.mxu0 %v5087
        %7903 = vmatpush1.bf16.msra.mxu0 %v5086
        %7904 = vmatprep.subr.bf16.mxu0 %v5103
        %7905 = vmatpush1.bf16.msra.mxu0 %v5102
        %7906 = vmatprep.subr.bf16.mxu0 %v5119
        %7907 = vmatpush1.bf16.msra.mxu0 %v5118
        %7908 = vmatprep.subr.bf16.mxu0 %v5135
        %7909 = vmatpush1.bf16.msra.mxu0 %v5134
        %7910 = vmatprep.subr.bf16.mxu0 %v5151
        %7911 = vmatpush1.bf16.msra.mxu0 %v5150
        %7912 = vmatprep.subr.bf16.mxu0 %v5167
        %7913 = vmatpush1.bf16.msra.mxu0 %v5166
        %7914 = vmatprep.subr.bf16.mxu0 %v5183
        %7915 = vmatpush1.bf16.msra.mxu0 %v5182
        %7916 = vmatprep.subr.bf16.mxu0 %v5199
        %7917 = vmatpush1.bf16.msra.mxu0 %v5198
        %7918 = vmatprep.subr.bf16.mxu0 %v5215
        %7919 = vmatpush1.bf16.msra.mxu0 %v5214
        %7920 = vmatprep.subr.bf16.mxu0 %v5231
        %7921 = vmatpush1.bf16.msra.mxu0 %v5230
        %7922 = vmatprep.subr.bf16.mxu0 %v5247
        %7923 = vmatpush1.bf16.msra.mxu0 %v5246
        %7924 = vmatprep.subr.bf16.mxu0 %v5263
        %7925 = vmatpush1.bf16.msra.mxu0 %v5262
        %7926 = vmatprep.subr.bf16.mxu0 %v5279
        %7927 = vmatpush1.bf16.msra.mxu0 %v5278
        %7928 = vmatprep.mubr.bf16.mxu0 %v841
        %7929 = vmatmul.mubr.bf16.gmra.mrb[0].mxu0 %v840
        %v7930 = vpop.f32.mrb[0].mxu0
        %v7931 = vadd.f32 %v1919, %v7930
        %v7932 = vpop.f32.mrb[0].mxu0
        %v7933 = vadd.f32 %v1923, %v7932
        %v7934 = vpop.f32.mrb[0].mxu0
        %v7935 = vpop.f32.mrb[0].mxu0
        %7936 = vdwg.mxu0
        %7937 = vmatprep.subr.bf16.mxu0 %v5295
        %7938 = vmatpush1.bf16.msra.mxu0 %v5294
        %7939 = vmatprep.subr.bf16.mxu0 %v5311
        %7940 = vmatpush1.bf16.msra.mxu0 %v5310
        %7941 = vmatprep.subr.bf16.mxu0 %v5327
        %7942 = vmatpush1.bf16.msra.mxu0 %v5326
        %7943 = vmatprep.subr.bf16.mxu0 %v5343
        %7944 = vmatpush1.bf16.msra.mxu0 %v5342
        %7945 = vmatprep.subr.bf16.mxu0 %v5359
        %7946 = vmatpush1.bf16.msra.mxu0 %v5358
        %7947 = vmatprep.subr.bf16.mxu0 %v5375
        %7948 = vmatpush1.bf16.msra.mxu0 %v5374
        %7949 = vmatprep.subr.bf16.mxu0 %v5391
        %7950 = vmatpush1.bf16.msra.mxu0 %v5390
        %7951 = vmatprep.subr.bf16.mxu0 %v5407
        %7952 = vmatpush1.bf16.msra.mxu0 %v5406
        %7953 = vmatprep.subr.bf16.mxu0 %v5423
        %7954 = vmatpush1.bf16.msra.mxu0 %v5422
        %7955 = vmatprep.subr.bf16.mxu0 %v5439
        %7956 = vmatpush1.bf16.msra.mxu0 %v5438
        %7957 = vmatprep.subr.bf16.mxu0 %v5455
        %7958 = vmatpush1.bf16.msra.mxu0 %v5454
        %7959 = vmatprep.subr.bf16.mxu0 %v5471
        %7960 = vmatpush1.bf16.msra.mxu0 %v5470
        %7961 = vmatprep.subr.bf16.mxu0 %v5487
        %7962 = vmatpush1.bf16.msra.mxu0 %v5486
        %7963 = vmatprep.subr.bf16.mxu0 %v5503
        %7964 = vmatpush1.bf16.msra.mxu0 %v5502
        %7965 = vmatprep.subr.bf16.mxu0 %v5519
        %7966 = vmatpush1.bf16.msra.mxu0 %v5518
        %7967 = vmatprep.subr.bf16.mxu0 %v5535
        %7968 = vmatpush1.bf16.msra.mxu0 %v5534
        %7969 = vmatprep.mubr.bf16.mxu0 %v843
        %7970 = vmatmul.mubr.bf16.gmra.mrb[0].mxu0 %v842
        %v7971 = vpop.f32.mrb[0].mxu0
        %v7972 = vadd.f32 %v7931, %v7971
        %v7973 = vpop.f32.mrb[0].mxu0
        %v7974 = vadd.f32 %v7933, %v7973
        %v7975 = vpop.f32.mrb[0].mxu0
        %v7976 = vpop.f32.mrb[0].mxu0
        %7977 = vdwg.mxu0
        %7978 = vmatprep.subr.bf16.mxu0 %v5551
        %7979 = vmatpush1.bf16.msra.mxu0 %v5550
        %7980 = vmatprep.subr.bf16.mxu0 %v5567
        %7981 = vmatpush1.bf16.msra.mxu0 %v5566
        %7982 = vmatprep.subr.bf16.mxu0 %v5583
        %7983 = vmatpush1.bf16.msra.mxu0 %v5582
        %7984 = vmatprep.subr.bf16.mxu0 %v5599
        %7985 = vmatpush1.bf16.msra.mxu0 %v5598
        %7986 = vmatprep.subr.bf16.mxu0 %v5615
        %7987 = vmatpush1.bf16.msra.mxu0 %v5614
        %7988 = vmatprep.subr.bf16.mxu0 %v5631
        %7989 = vmatpush1.bf16.msra.mxu0 %v5630
        %7990 = vmatprep.subr.bf16.mxu0 %v5647
        %7991 = vmatpush1.bf16.msra.mxu0 %v5646
        %7992 = vmatprep.subr.bf16.mxu0 %v5663
        %7993 = vmatpush1.bf16.msra.mxu0 %v5662
        %7994 = vmatprep.subr.bf16.mxu0 %v5679
        %7995 = vmatpush1.bf16.msra.mxu0 %v5678
        %7996 = vmatprep.subr.bf16.mxu0 %v5695
        %7997 = vmatpush1.bf16.msra.mxu0 %v5694
        %7998 = vmatprep.subr.bf16.mxu0 %v5711
        %7999 = vmatpush1.bf16.msra.mxu0 %v5710
        %8000 = vmatprep.subr.bf16.mxu0 %v5727
        %8001 = vmatpush1.bf16.msra.mxu0 %v5726
        %8002 = vmatprep.subr.bf16.mxu0 %v5743
        %8003 = vmatpush1.bf16.msra.mxu0 %v5742
        %8004 = vmatprep.subr.bf16.mxu0 %v5759
        %8005 = vmatpush1.bf16.msra.mxu0 %v5758
        %8006 = vmatprep.subr.bf16.mxu0 %v5775
        %8007 = vmatpush1.bf16.msra.mxu0 %v5774
        %8008 = vmatprep.subr.bf16.mxu0 %v5791
        %8009 = vmatpush1.bf16.msra.mxu0 %v5790
        %8010 = vmatprep.mubr.bf16.mxu0 %v845
        %8011 = vmatmul.mubr.bf16.gmra.mrb[0].mxu0 %v844
        %v8012 = vpop.f32.mrb[0].mxu0
        %v8013 = vadd.f32 %v7972, %v8012
        %v8014 = vpop.f32.mrb[0].mxu0
        %v8015 = vadd.f32 %v7974, %v8014
        %v8016 = vpop.f32.mrb[0].mxu0
        %v8017 = vpop.f32.mrb[0].mxu0
        %8018 = vdwg.mxu0
        %8019 = vmatprep.subr.bf16.mxu0 %v5807
        %8020 = vmatpush1.bf16.msra.mxu0 %v5806
        %8021 = vmatprep.subr.bf16.mxu0 %v5823
        %8022 = vmatpush1.bf16.msra.mxu0 %v5822
        %8023 = vmatprep.subr.bf16.mxu0 %v5839
        %8024 = vmatpush1.bf16.msra.mxu0 %v5838
        %8025 = vmatprep.subr.bf16.mxu0 %v5855
        %8026 = vmatpush1.bf16.msra.mxu0 %v5854
        %8027 = vmatprep.subr.bf16.mxu0 %v5871
        %8028 = vmatpush1.bf16.msra.mxu0 %v5870
        %8029 = vmatprep.subr.bf16.mxu0 %v5887
        %8030 = vmatpush1.bf16.msra.mxu0 %v5886
        %8031 = vmatprep.subr.bf16.mxu0 %v5903
        %8032 = vmatpush1.bf16.msra.mxu0 %v5902
        %8033 = vmatprep.subr.bf16.mxu0 %v5919
        %8034 = vmatpush1.bf16.msra.mxu0 %v5918
        %8035 = vmatprep.subr.bf16.mxu0 %v5935
        %8036 = vmatpush1.bf16.msra.mxu0 %v5934
        %8037 = vmatprep.subr.bf16.mxu0 %v5951
        %8038 = vmatpush1.bf16.msra.mxu0 %v5950
        %8039 = vmatprep.subr.bf16.mxu0 %v5967
        %8040 = vmatpush1.bf16.msra.mxu0 %v5966
        %8041 = vmatprep.subr.bf16.mxu0 %v5983
        %8042 = vmatpush1.bf16.msra.mxu0 %v5982
        %8043 = vmatprep.subr.bf16.mxu0 %v5999
        %8044 = vmatpush1.bf16.msra.mxu0 %v5998
        %8045 = vmatprep.subr.bf16.mxu0 %v6015
        %8046 = vmatpush1.bf16.msra.mxu0 %v6014
        %8047 = vmatprep.subr.bf16.mxu0 %v6031
        %8048 = vmatpush1.bf16.msra.mxu0 %v6030
        %8049 = vmatprep.subr.bf16.mxu0 %v6047
        %8050 = vmatpush1.bf16.msra.mxu0 %v6046
        %8051 = vmatprep.mubr.bf16.mxu0 %v847
        %8052 = vmatmul.mubr.bf16.gmra.mrb[0].mxu0 %v846
        %v8053 = vpop.f32.mrb[0].mxu0
        %v8054 = vadd.f32 %v8013, %v8053
        %v8055 = vpop.f32.mrb[0].mxu0
        %v8056 = vadd.f32 %v8015, %v8055
        %v8057 = vpop.f32.mrb[0].mxu0
        %v8058 = vpop.f32.mrb[0].mxu0
        %8059 = vdwg.mxu0
        %8060 = vmatprep.subr.bf16.mxu0 %v5041
        %8061 = vmatpush1.bf16.msra.mxu0 %v5040
        %8062 = vmatprep.subr.bf16.mxu0 %v5057
        %8063 = vmatpush1.bf16.msra.mxu0 %v5056
        %8064 = vmatprep.subr.bf16.mxu0 %v5073
        %8065 = vmatpush1.bf16.msra.mxu0 %v5072
        %8066 = vmatprep.subr.bf16.mxu0 %v5089
        %8067 = vmatpush1.bf16.msra.mxu0 %v5088
        %8068 = vmatprep.subr.bf16.mxu0 %v5105
        %8069 = vmatpush1.bf16.msra.mxu0 %v5104
        %8070 = vmatprep.subr.bf16.mxu0 %v5121
        %8071 = vmatpush1.bf16.msra.mxu0 %v5120
        %8072 = vmatprep.subr.bf16.mxu0 %v5137
        %8073 = vmatpush1.bf16.msra.mxu0 %v5136
        %8074 = vmatprep.subr.bf16.mxu0 %v5153
        %8075 = vmatpush1.bf16.msra.mxu0 %v5152
        %8076 = vmatprep.subr.bf16.mxu0 %v5169
        %8077 = vmatpush1.bf16.msra.mxu0 %v5168
        %8078 = vmatprep.subr.bf16.mxu0 %v5185
        %8079 = vmatpush1.bf16.msra.mxu0 %v5184
        %8080 = vmatprep.subr.bf16.mxu0 %v5201
        %8081 = vmatpush1.bf16.msra.mxu0 %v5200
        %8082 = vmatprep.subr.bf16.mxu0 %v5217
        %8083 = vmatpush1.bf16.msra.mxu0 %v5216
        %8084 = vmatprep.subr.bf16.mxu0 %v5233
        %8085 = vmatpush1.bf16.msra.mxu0 %v5232
        %8086 = vmatprep.subr.bf16.mxu0 %v5249
        %8087 = vmatpush1.bf16.msra.mxu0 %v5248
        %8088 = vmatprep.subr.bf16.mxu0 %v5265
        %8089 = vmatpush1.bf16.msra.mxu0 %v5264
        %8090 = vmatprep.subr.bf16.mxu0 %v5281
        %8091 = vmatpush1.bf16.msra.mxu0 %v5280
        %8092 = vmatprep.mubr.bf16.mxu0 %v841
        %8093 = vmatmul.mubr.bf16.gmra.mrb[0].mxu0 %v840
        %v8094 = vpop.f32.mrb[0].mxu0
        %v8095 = vadd.f32 %v1927, %v8094
        %v8096 = vpop.f32.mrb[0].mxu0
        %v8097 = vadd.f32 %v1931, %v8096
        %v8098 = vpop.f32.mrb[0].mxu0
        %v8099 = vpop.f32.mrb[0].mxu0
        %8100 = vdwg.mxu0
        %8101 = vmatprep.subr.bf16.mxu0 %v5297
        %8102 = vmatpush1.bf16.msra.mxu0 %v5296
        %8103 = vmatprep.subr.bf16.mxu0 %v5313
        %8104 = vmatpush1.bf16.msra.mxu0 %v5312
        %8105 = vmatprep.subr.bf16.mxu0 %v5329
        %8106 = vmatpush1.bf16.msra.mxu0 %v5328
        %8107 = vmatprep.subr.bf16.mxu0 %v5345
        %8108 = vmatpush1.bf16.msra.mxu0 %v5344
        %8109 = vmatprep.subr.bf16.mxu0 %v5361
        %8110 = vmatpush1.bf16.msra.mxu0 %v5360
        %8111 = vmatprep.subr.bf16.mxu0 %v5377
        %8112 = vmatpush1.bf16.msra.mxu0 %v5376
        %8113 = vmatprep.subr.bf16.mxu0 %v5393
        %8114 = vmatpush1.bf16.msra.mxu0 %v5392
        %8115 = vmatprep.subr.bf16.mxu0 %v5409
        %8116 = vmatpush1.bf16.msra.mxu0 %v5408
        %8117 = vmatprep.subr.bf16.mxu0 %v5425
        %8118 = vmatpush1.bf16.msra.mxu0 %v5424
        %8119 = vmatprep.subr.bf16.mxu0 %v5441
        %8120 = vmatpush1.bf16.msra.mxu0 %v5440
        %8121 = vmatprep.subr.bf16.mxu0 %v5457
        %8122 = vmatpush1.bf16.msra.mxu0 %v5456
        %8123 = vmatprep.subr.bf16.mxu0 %v5473
        %8124 = vmatpush1.bf16.msra.mxu0 %v5472
        %8125 = vmatprep.subr.bf16.mxu0 %v5489
        %8126 = vmatpush1.bf16.msra.mxu0 %v5488
        %8127 = vmatprep.subr.bf16.mxu0 %v5505
        %8128 = vmatpush1.bf16.msra.mxu0 %v5504
        %8129 = vmatprep.subr.bf16.mxu0 %v5521
        %8130 = vmatpush1.bf16.msra.mxu0 %v5520
        %8131 = vmatprep.subr.bf16.mxu0 %v5537
        %8132 = vmatpush1.bf16.msra.mxu0 %v5536
        %8133 = vmatprep.mubr.bf16.mxu0 %v843
        %8134 = vmatmul.mubr.bf16.gmra.mrb[0].mxu0 %v842
        %v8135 = vpop.f32.mrb[0].mxu0
        %v8136 = vadd.f32 %v8095, %v8135
        %v8137 = vpop.f32.mrb[0].mxu0
        %v8138 = vadd.f32 %v8097, %v8137
        %v8139 = vpop.f32.mrb[0].mxu0
        %v8140 = vpop.f32.mrb[0].mxu0
        %8141 = vdwg.mxu0
        %8142 = vmatprep.subr.bf16.mxu0 %v5553
        %8143 = vmatpush1.bf16.msra.mxu0 %v5552
        %8144 = vmatprep.subr.bf16.mxu0 %v5569
        %8145 = vmatpush1.bf16.msra.mxu0 %v5568
        %8146 = vmatprep.subr.bf16.mxu0 %v5585
        %8147 = vmatpush1.bf16.msra.mxu0 %v5584
        %8148 = vmatprep.subr.bf16.mxu0 %v5601
        %8149 = vmatpush1.bf16.msra.mxu0 %v5600
        %8150 = vmatprep.subr.bf16.mxu0 %v5617
        %8151 = vmatpush1.bf16.msra.mxu0 %v5616
        %8152 = vmatprep.subr.bf16.mxu0 %v5633
        %8153 = vmatpush1.bf16.msra.mxu0 %v5632
        %8154 = vmatprep.subr.bf16.mxu0 %v5649
        %8155 = vmatpush1.bf16.msra.mxu0 %v5648
        %8156 = vmatprep.subr.bf16.mxu0 %v5665
        %8157 = vmatpush1.bf16.msra.mxu0 %v5664
        %8158 = vmatprep.subr.bf16.mxu0 %v5681
        %8159 = vmatpush1.bf16.msra.mxu0 %v5680
        %8160 = vmatprep.subr.bf16.mxu0 %v5697
        %8161 = vmatpush1.bf16.msra.mxu0 %v5696
        %8162 = vmatprep.subr.bf16.mxu0 %v5713
        %8163 = vmatpush1.bf16.msra.mxu0 %v5712
        %8164 = vmatprep.subr.bf16.mxu0 %v5729
        %8165 = vmatpush1.bf16.msra.mxu0 %v5728
        %8166 = vmatprep.subr.bf16.mxu0 %v5745
        %8167 = vmatpush1.bf16.msra.mxu0 %v5744
        %8168 = vmatprep.subr.bf16.mxu0 %v5761
        %8169 = vmatpush1.bf16.msra.mxu0 %v5760
        %8170 = vmatprep.subr.bf16.mxu0 %v5777
        %8171 = vmatpush1.bf16.msra.mxu0 %v5776
        %8172 = vmatprep.subr.bf16.mxu0 %v5793
        %8173 = vmatpush1.bf16.msra.mxu0 %v5792
        %8174 = vmatprep.mubr.bf16.mxu0 %v845
        %8175 = vmatmul.mubr.bf16.gmra.mrb[0].mxu0 %v844
        %v8176 = vpop.f32.mrb[0].mxu0
        %v8177 = vadd.f32 %v8136, %v8176
        %v8178 = vpop.f32.mrb[0].mxu0
        %v8179 = vadd.f32 %v8138, %v8178
        %v8180 = vpop.f32.mrb[0].mxu0
        %v8181 = vpop.f32.mrb[0].mxu0
        %8182 = vdwg.mxu0
        %8183 = vmatprep.subr.bf16.mxu0 %v5809
        %8184 = vmatpush1.bf16.msra.mxu0 %v5808
        %8185 = vmatprep.subr.bf16.mxu0 %v5825
        %8186 = vmatpush1.bf16.msra.mxu0 %v5824
        %8187 = vmatprep.subr.bf16.mxu0 %v5841
        %8188 = vmatpush1.bf16.msra.mxu0 %v5840
        %8189 = vmatprep.subr.bf16.mxu0 %v5857
        %8190 = vmatpush1.bf16.msra.mxu0 %v5856
        %8191 = vmatprep.subr.bf16.mxu0 %v5873
        %8192 = vmatpush1.bf16.msra.mxu0 %v5872
        %8193 = vmatprep.subr.bf16.mxu0 %v5889
        %8194 = vmatpush1.bf16.msra.mxu0 %v5888
        %8195 = vmatprep.subr.bf16.mxu0 %v5905
        %8196 = vmatpush1.bf16.msra.mxu0 %v5904
        %8197 = vmatprep.subr.bf16.mxu0 %v5921
        %8198 = vmatpush1.bf16.msra.mxu0 %v5920
        %8199 = vmatprep.subr.bf16.mxu0 %v5937
        %8200 = vmatpush1.bf16.msra.mxu0 %v5936
        %8201 = vmatprep.subr.bf16.mxu0 %v5953
        %8202 = vmatpush1.bf16.msra.mxu0 %v5952
        %8203 = vmatprep.subr.bf16.mxu0 %v5969
        %8204 = vmatpush1.bf16.msra.mxu0 %v5968
        %8205 = vmatprep.subr.bf16.mxu0 %v5985
        %8206 = vmatpush1.bf16.msra.mxu0 %v5984
        %8207 = vmatprep.subr.bf16.mxu0 %v6001
        %8208 = vmatpush1.bf16.msra.mxu0 %v6000
        %8209 = vmatprep.subr.bf16.mxu0 %v6017
        %8210 = vmatpush1.bf16.msra.mxu0 %v6016
        %8211 = vmatprep.subr.bf16.mxu0 %v6033
        %8212 = vmatpush1.bf16.msra.mxu0 %v6032
        %8213 = vmatprep.subr.bf16.mxu0 %v6049
        %8214 = vmatpush1.bf16.msra.mxu0 %v6048
        %8215 = vmatprep.mubr.bf16.mxu0 %v847
        %8216 = vmatmul.mubr.bf16.gmra.mrb[0].mxu0 %v846
        %v8217 = vpop.f32.mrb[0].mxu0
        %v8218 = vadd.f32 %v8177, %v8217
        %v8219 = vpop.f32.mrb[0].mxu0
        %v8220 = vadd.f32 %v8179, %v8219
        %v8221 = vpop.f32.mrb[0].mxu0
        %v8222 = vpop.f32.mrb[0].mxu0
        %8223 = vdwg.mxu0
        %8224 = vmatprep.subr.bf16.mxu0 %v5043
        %8225 = vmatpush1.bf16.msra.mxu0 %v5042
        %8226 = vmatprep.subr.bf16.mxu0 %v5059
        %8227 = vmatpush1.bf16.msra.mxu0 %v5058
        %8228 = vmatprep.subr.bf16.mxu0 %v5075
        %8229 = vmatpush1.bf16.msra.mxu0 %v5074
        %8230 = vmatprep.subr.bf16.mxu0 %v5091
        %8231 = vmatpush1.bf16.msra.mxu0 %v5090
        %8232 = vmatprep.subr.bf16.mxu0 %v5107
        %8233 = vmatpush1.bf16.msra.mxu0 %v5106
        %8234 = vmatprep.subr.bf16.mxu0 %v5123
        %8235 = vmatpush1.bf16.msra.mxu0 %v5122
        %8236 = vmatprep.subr.bf16.mxu0 %v5139
        %8237 = vmatpush1.bf16.msra.mxu0 %v5138
        %8238 = vmatprep.subr.bf16.mxu0 %v5155
        %8239 = vmatpush1.bf16.msra.mxu0 %v5154
        %8240 = vmatprep.subr.bf16.mxu0 %v5171
        %8241 = vmatpush1.bf16.msra.mxu0 %v5170
        %8242 = vmatprep.subr.bf16.mxu0 %v5187
        %8243 = vmatpush1.bf16.msra.mxu0 %v5186
        %8244 = vmatprep.subr.bf16.mxu0 %v5203
        %8245 = vmatpush1.bf16.msra.mxu0 %v5202
        %8246 = vmatprep.subr.bf16.mxu0 %v5219
        %8247 = vmatpush1.bf16.msra.mxu0 %v5218
        %8248 = vmatprep.subr.bf16.mxu0 %v5235
        %8249 = vmatpush1.bf16.msra.mxu0 %v5234
        %8250 = vmatprep.subr.bf16.mxu0 %v5251
        %8251 = vmatpush1.bf16.msra.mxu0 %v5250
        %8252 = vmatprep.subr.bf16.mxu0 %v5267
        %8253 = vmatpush1.bf16.msra.mxu0 %v5266
        %8254 = vmatprep.subr.bf16.mxu0 %v5283
        %8255 = vmatpush1.bf16.msra.mxu0 %v5282
        %8256 = vmatprep.mubr.bf16.mxu0 %v841
        %8257 = vmatmul.mubr.bf16.gmra.mrb[0].mxu0 %v840
        %v8258 = vpop.f32.mrb[0].mxu0
        %v8259 = vadd.f32 %v1935, %v8258
        %v8260 = vpop.f32.mrb[0].mxu0
        %v8261 = vadd.f32 %v1939, %v8260
        %v8262 = vpop.f32.mrb[0].mxu0
        %v8263 = vpop.f32.mrb[0].mxu0
        %8264 = vdwg.mxu0
        %8265 = vmatprep.subr.bf16.mxu0 %v5299
        %8266 = vmatpush1.bf16.msra.mxu0 %v5298
        %8267 = vmatprep.subr.bf16.mxu0 %v5315
        %8268 = vmatpush1.bf16.msra.mxu0 %v5314
        %8269 = vmatprep.subr.bf16.mxu0 %v5331
        %8270 = vmatpush1.bf16.msra.mxu0 %v5330
        %8271 = vmatprep.subr.bf16.mxu0 %v5347
        %8272 = vmatpush1.bf16.msra.mxu0 %v5346
        %8273 = vmatprep.subr.bf16.mxu0 %v5363
        %8274 = vmatpush1.bf16.msra.mxu0 %v5362
        %8275 = vmatprep.subr.bf16.mxu0 %v5379
        %8276 = vmatpush1.bf16.msra.mxu0 %v5378
        %8277 = vmatprep.subr.bf16.mxu0 %v5395
        %8278 = vmatpush1.bf16.msra.mxu0 %v5394
        %8279 = vmatprep.subr.bf16.mxu0 %v5411
        %8280 = vmatpush1.bf16.msra.mxu0 %v5410
        %8281 = vmatprep.subr.bf16.mxu0 %v5427
        %8282 = vmatpush1.bf16.msra.mxu0 %v5426
        %8283 = vmatprep.subr.bf16.mxu0 %v5443
        %8284 = vmatpush1.bf16.msra.mxu0 %v5442
        %8285 = vmatprep.subr.bf16.mxu0 %v5459
        %8286 = vmatpush1.bf16.msra.mxu0 %v5458
        %8287 = vmatprep.subr.bf16.mxu0 %v5475
        %8288 = vmatpush1.bf16.msra.mxu0 %v5474
        %8289 = vmatprep.subr.bf16.mxu0 %v5491
        %8290 = vmatpush1.bf16.msra.mxu0 %v5490
        %8291 = vmatprep.subr.bf16.mxu0 %v5507
        %8292 = vmatpush1.bf16.msra.mxu0 %v5506
        %8293 = vmatprep.subr.bf16.mxu0 %v5523
        %8294 = vmatpush1.bf16.msra.mxu0 %v5522
        %8295 = vmatprep.subr.bf16.mxu0 %v5539
        %8296 = vmatpush1.bf16.msra.mxu0 %v5538
        %8297 = vmatprep.mubr.bf16.mxu0 %v843
        %8298 = vmatmul.mubr.bf16.gmra.mrb[0].mxu0 %v842
        %v8299 = vpop.f32.mrb[0].mxu0
        %v8300 = vadd.f32 %v8259, %v8299
        %v8301 = vpop.f32.mrb[0].mxu0
        %v8302 = vadd.f32 %v8261, %v8301
        %v8303 = vpop.f32.mrb[0].mxu0
        %v8304 = vpop.f32.mrb[0].mxu0
        %8305 = vdwg.mxu0
        %8306 = vmatprep.subr.bf16.mxu0 %v5555
        %8307 = vmatpush1.bf16.msra.mxu0 %v5554
        %8308 = vmatprep.subr.bf16.mxu0 %v5571
        %8309 = vmatpush1.bf16.msra.mxu0 %v5570
        %8310 = vmatprep.subr.bf16.mxu0 %v5587
        %8311 = vmatpush1.bf16.msra.mxu0 %v5586
        %8312 = vmatprep.subr.bf16.mxu0 %v5603
        %8313 = vmatpush1.bf16.msra.mxu0 %v5602
        %8314 = vmatprep.subr.bf16.mxu0 %v5619
        %8315 = vmatpush1.bf16.msra.mxu0 %v5618
        %8316 = vmatprep.subr.bf16.mxu0 %v5635
        %8317 = vmatpush1.bf16.msra.mxu0 %v5634
        %8318 = vmatprep.subr.bf16.mxu0 %v5651
        %8319 = vmatpush1.bf16.msra.mxu0 %v5650
        %8320 = vmatprep.subr.bf16.mxu0 %v5667
        %8321 = vmatpush1.bf16.msra.mxu0 %v5666
        %8322 = vmatprep.subr.bf16.mxu0 %v5683
        %8323 = vmatpush1.bf16.msra.mxu0 %v5682
        %8324 = vmatprep.subr.bf16.mxu0 %v5699
        %8325 = vmatpush1.bf16.msra.mxu0 %v5698
        %8326 = vmatprep.subr.bf16.mxu0 %v5715
        %8327 = vmatpush1.bf16.msra.mxu0 %v5714
        %8328 = vmatprep.subr.bf16.mxu0 %v5731
        %8329 = vmatpush1.bf16.msra.mxu0 %v5730
        %8330 = vmatprep.subr.bf16.mxu0 %v5747
        %8331 = vmatpush1.bf16.msra.mxu0 %v5746
        %8332 = vmatprep.subr.bf16.mxu0 %v5763
        %8333 = vmatpush1.bf16.msra.mxu0 %v5762
        %8334 = vmatprep.subr.bf16.mxu0 %v5779
        %8335 = vmatpush1.bf16.msra.mxu0 %v5778
        %8336 = vmatprep.subr.bf16.mxu0 %v5795
        %8337 = vmatpush1.bf16.msra.mxu0 %v5794
        %8338 = vmatprep.mubr.bf16.mxu0 %v845
        %8339 = vmatmul.mubr.bf16.gmra.mrb[0].mxu0 %v844
        %v8340 = vpop.f32.mrb[0].mxu0
        %v8341 = vadd.f32 %v8300, %v8340
        %v8342 = vpop.f32.mrb[0].mxu0
        %v8343 = vadd.f32 %v8302, %v8342
        %v8344 = vpop.f32.mrb[0].mxu0
        %v8345 = vpop.f32.mrb[0].mxu0
        %8346 = vdwg.mxu0
        %8347 = vmatprep.subr.bf16.mxu0 %v5811
        %8348 = vmatpush1.bf16.msra.mxu0 %v5810
        %8349 = vmatprep.subr.bf16.mxu0 %v5827
        %8350 = vmatpush1.bf16.msra.mxu0 %v5826
        %8351 = vmatprep.subr.bf16.mxu0 %v5843
        %8352 = vmatpush1.bf16.msra.mxu0 %v5842
        %8353 = vmatprep.subr.bf16.mxu0 %v5859
        %8354 = vmatpush1.bf16.msra.mxu0 %v5858
        %8355 = vmatprep.subr.bf16.mxu0 %v5875
        %8356 = vmatpush1.bf16.msra.mxu0 %v5874
        %8357 = vmatprep.subr.bf16.mxu0 %v5891
        %8358 = vmatpush1.bf16.msra.mxu0 %v5890
        %8359 = vmatprep.subr.bf16.mxu0 %v5907
        %8360 = vmatpush1.bf16.msra.mxu0 %v5906
        %8361 = vmatprep.subr.bf16.mxu0 %v5923
        %8362 = vmatpush1.bf16.msra.mxu0 %v5922
        %8363 = vmatprep.subr.bf16.mxu0 %v5939
        %8364 = vmatpush1.bf16.msra.mxu0 %v5938
        %8365 = vmatprep.subr.bf16.mxu0 %v5955
        %8366 = vmatpush1.bf16.msra.mxu0 %v5954
        %8367 = vmatprep.subr.bf16.mxu0 %v5971
        %8368 = vmatpush1.bf16.msra.mxu0 %v5970
        %8369 = vmatprep.subr.bf16.mxu0 %v5987
        %8370 = vmatpush1.bf16.msra.mxu0 %v5986
        %8371 = vmatprep.subr.bf16.mxu0 %v6003
        %8372 = vmatpush1.bf16.msra.mxu0 %v6002
        %8373 = vmatprep.subr.bf16.mxu0 %v6019
        %8374 = vmatpush1.bf16.msra.mxu0 %v6018
        %8375 = vmatprep.subr.bf16.mxu0 %v6035
        %8376 = vmatpush1.bf16.msra.mxu0 %v6034
        %8377 = vmatprep.subr.bf16.mxu0 %v6051
        %8378 = vmatpush1.bf16.msra.mxu0 %v6050
        %8379 = vmatprep.mubr.bf16.mxu0 %v847
        %8380 = vmatmul.mubr.bf16.gmra.mrb[0].mxu0 %v846
        %v8381 = vpop.f32.mrb[0].mxu0
        %v8382 = vadd.f32 %v8341, %v8381
        %v8383 = vpop.f32.mrb[0].mxu0
        %v8384 = vadd.f32 %v8343, %v8383
        %v8385 = vpop.f32.mrb[0].mxu0
        %v8386 = vpop.f32.mrb[0].mxu0
        %8387 = vdwg.mxu0
        %v8388 = vmax.f32 %v7234, 0.0
        %v8389 = vmax.f32 %v7236, 0.0
        %v8390 = vmax.f32 %v7398, 0.0
        %v8391 = vmax.f32 %v7400, 0.0
        %v8392 = vmax.f32 %v7562, 0.0
        %v8393 = vmax.f32 %v7564, 0.0
        %v8394 = vmax.f32 %v7726, 0.0
        %v8395 = vmax.f32 %v7728, 0.0
        %v8396 = vmax.f32 %v7890, 0.0
        %v8397 = vmax.f32 %v7892, 0.0
        %v8398 = vmax.f32 %v8054, 0.0
        %v8399 = vmax.f32 %v8056, 0.0
        %v8400 = vmax.f32 %v8218, 0.0
        %v8401 = vmax.f32 %v8220, 0.0
        %v8402 = vmax.f32 %v8382, 0.0
        %v8403 = vmax.f32 %v8384, 0.0
        %v8404 = vpack.c.bf16 %v8388, %v8388
        %v8405 = vpack.c.bf16 %v8389, %v8389
        %v8406 = vpack.c.bf16 %v8390, %v8390
        %v8407 = vpack.c.bf16 %v8391, %v8391
        %v8408 = vpack.c.bf16 %v8392, %v8392
        %v8409 = vpack.c.bf16 %v8393, %v8393
        %v8410 = vpack.c.bf16 %v8394, %v8394
        %v8411 = vpack.c.bf16 %v8395, %v8395
        %v8412 = vpack.c.bf16 %v8396, %v8396
        %v8413 = vpack.c.bf16 %v8397, %v8397
        %v8414 = vpack.c.bf16 %v8398, %v8398
        %v8415 = vpack.c.bf16 %v8399, %v8399
        %v8416 = vpack.c.bf16 %v8400, %v8400
        %v8417 = vpack.c.bf16 %v8401, %v8401
        %v8418 = vpack.c.bf16 %v8402, %v8402
        %v8419 = vpack.c.bf16 %v8403, %v8403
        %v8420 = vld [vmem:[%s5] sm:$0xf]
        %v8421 = vld [vmem:[%s5 + $0x4] sm:$0xf]
        %v8422 = vld [vmem:[%s5 + $0x8] sm:$0xf]
        %v8423 = vld [vmem:[%s5 + $0xc] sm:$0xf]
        %v8424 = vld [vmem:[%s5 + $0x10] sm:$0xf]
        %v8425 = vld [vmem:[%s5 + $0x14] sm:$0xf]
        %v8426 = vld [vmem:[%s5 + $0x18] sm:$0xf]
        %v8427 = vld [vmem:[%s5 + $0x1c] sm:$0xf]
        %v8428 = vld [vmem:[%s5 + $0x20] sm:$0xf]
        %v8429 = vld [vmem:[%s5 + $0x24] sm:$0xf]
        %v8430 = vld [vmem:[%s5 + $0x28] sm:$0xf]
        %v8431 = vld [vmem:[%s5 + $0x2c] sm:$0xf]
        %v8432 = vld [vmem:[%s5 + $0x30] sm:$0xf]
        %v8433 = vld [vmem:[%s5 + $0x34] sm:$0xf]
        %v8434 = vld [vmem:[%s5 + $0x38] sm:$0xf]
        %v8435 = vld [vmem:[%s5 + $0x3c] sm:$0xf]
        %v8436 = vld [vmem:[%s5 + $0x40] sm:$0xf]
        %v8437 = vld [vmem:[%s5 + $0x44] sm:$0xf]
        %v8438 = vld [vmem:[%s5 + $0x48] sm:$0xf]
        %v8439 = vld [vmem:[%s5 + $0x4c] sm:$0xf]
        %v8440 = vld [vmem:[%s5 + $0x50] sm:$0xf]
        %v8441 = vld [vmem:[%s5 + $0x54] sm:$0xf]
        %v8442 = vld [vmem:[%s5 + $0x58] sm:$0xf]
        %v8443 = vld [vmem:[%s5 + $0x5c] sm:$0xf]
        %v8444 = vld [vmem:[%s5 + $0x60] sm:$0xf]
        %v8445 = vld [vmem:[%s5 + $0x64] sm:$0xf]
        %v8446 = vld [vmem:[%s5 + $0x68] sm:$0xf]
        %v8447 = vld [vmem:[%s5 + $0x6c] sm:$0xf]
        %v8448 = vld [vmem:[%s5 + $0x70] sm:$0xf]
        %v8449 = vld [vmem:[%s5 + $0x74] sm:$0xf]
        %v8450 = vld [vmem:[%s5 + $0x78] sm:$0xf]
        %v8451 = vld [vmem:[%s5 + $0x7c] sm:$0xf]
        %v8452 = vld [vmem:[%s5 + $0x80] sm:$0xf]
        %v8453 = vld [vmem:[%s5 + $0x84] sm:$0xf]
        %v8454 = vld [vmem:[%s5 + $0x88] sm:$0xf]
        %v8455 = vld [vmem:[%s5 + $0x8c] sm:$0xf]
        %v8456 = vld [vmem:[%s5 + $0x90] sm:$0xf]
        %v8457 = vld [vmem:[%s5 + $0x94] sm:$0xf]
        %v8458 = vld [vmem:[%s5 + $0x98] sm:$0xf]
        %v8459 = vld [vmem:[%s5 + $0x9c] sm:$0xf]
        %v8460 = vld [vmem:[%s5 + $0xa0] sm:$0xf]
        %v8461 = vld [vmem:[%s5 + $0xa4] sm:$0xf]
        %v8462 = vld [vmem:[%s5 + $0xa8] sm:$0xf]
        %v8463 = vld [vmem:[%s5 + $0xac] sm:$0xf]
        %v8464 = vld [vmem:[%s5 + $0xb0] sm:$0xf]
        %v8465 = vld [vmem:[%s5 + $0xb4] sm:$0xf]
        %v8466 = vld [vmem:[%s5 + $0xb8] sm:$0xf]
        %v8467 = vld [vmem:[%s5 + $0xbc] sm:$0xf]
        %v8468 = vld [vmem:[%s5 + $0xc0] sm:$0xf]
        %v8469 = vld [vmem:[%s5 + $0xc4] sm:$0xf]
        %v8470 = vld [vmem:[%s5 + $0xc8] sm:$0xf]
        %v8471 = vld [vmem:[%s5 + $0xcc] sm:$0xf]
        %v8472 = vld [vmem:[%s5 + $0xd0] sm:$0xf]
        %v8473 = vld [vmem:[%s5 + $0xd4] sm:$0xf]
        %v8474 = vld [vmem:[%s5 + $0xd8] sm:$0xf]
        %v8475 = vld [vmem:[%s5 + $0xdc] sm:$0xf]
        %v8476 = vld [vmem:[%s5 + $0xe0] sm:$0xf]
        %v8477 = vld [vmem:[%s5 + $0xe4] sm:$0xf]
        %v8478 = vld [vmem:[%s5 + $0xe8] sm:$0xf]
        %v8479 = vld [vmem:[%s5 + $0xec] sm:$0xf]
        %v8480 = vld [vmem:[%s5 + $0xf0] sm:$0xf]
        %v8481 = vld [vmem:[%s5 + $0xf4] sm:$0xf]
        %v8482 = vld [vmem:[%s5 + $0xf8] sm:$0xf]
        %v8483 = vld [vmem:[%s5 + $0xfc] sm:$0xf]
        %v8484 = vld [vmem:[%s5 + $0x100] sm:$0xf]
        %v8485 = vld [vmem:[%s5 + $0x104] sm:$0xf]
        %v8486 = vld [vmem:[%s5 + $0x108] sm:$0xf]
        %v8487 = vld [vmem:[%s5 + $0x10c] sm:$0xf]
        %v8488 = vld [vmem:[%s5 + $0x110] sm:$0xf]
        %v8489 = vld [vmem:[%s5 + $0x114] sm:$0xf]
        %v8490 = vld [vmem:[%s5 + $0x118] sm:$0xf]
        %v8491 = vld [vmem:[%s5 + $0x11c] sm:$0xf]
        %v8492 = vld [vmem:[%s5 + $0x120] sm:$0xf]
        %v8493 = vld [vmem:[%s5 + $0x124] sm:$0xf]
        %v8494 = vld [vmem:[%s5 + $0x128] sm:$0xf]
        %v8495 = vld [vmem:[%s5 + $0x12c] sm:$0xf]
        %v8496 = vld [vmem:[%s5 + $0x130] sm:$0xf]
        %v8497 = vld [vmem:[%s5 + $0x134] sm:$0xf]
        %v8498 = vld [vmem:[%s5 + $0x138] sm:$0xf]
        %v8499 = vld [vmem:[%s5 + $0x13c] sm:$0xf]
        %v8500 = vld [vmem:[%s5 + $0x140] sm:$0xf]
        %v8501 = vld [vmem:[%s5 + $0x144] sm:$0xf]
        %v8502 = vld [vmem:[%s5 + $0x148] sm:$0xf]
        %v8503 = vld [vmem:[%s5 + $0x14c] sm:$0xf]
        %v8504 = vld [vmem:[%s5 + $0x150] sm:$0xf]
        %v8505 = vld [vmem:[%s5 + $0x154] sm:$0xf]
        %v8506 = vld [vmem:[%s5 + $0x158] sm:$0xf]
        %v8507 = vld [vmem:[%s5 + $0x15c] sm:$0xf]
        %v8508 = vld [vmem:[%s5 + $0x160] sm:$0xf]
        %v8509 = vld [vmem:[%s5 + $0x164] sm:$0xf]
        %v8510 = vld [vmem:[%s5 + $0x168] sm:$0xf]
        %v8511 = vld [vmem:[%s5 + $0x16c] sm:$0xf]
        %v8512 = vld [vmem:[%s5 + $0x170] sm:$0xf]
        %v8513 = vld [vmem:[%s5 + $0x174] sm:$0xf]
        %v8514 = vld [vmem:[%s5 + $0x178] sm:$0xf]
        %v8515 = vld [vmem:[%s5 + $0x17c] sm:$0xf]
        %v8516 = vld [vmem:[%s5 + $0x180] sm:$0xf]
        %v8517 = vld [vmem:[%s5 + $0x184] sm:$0xf]
        %v8518 = vld [vmem:[%s5 + $0x188] sm:$0xf]
        %v8519 = vld [vmem:[%s5 + $0x18c] sm:$0xf]
        %v8520 = vld [vmem:[%s5 + $0x190] sm:$0xf]
        %v8521 = vld [vmem:[%s5 + $0x194] sm:$0xf]
        %v8522 = vld [vmem:[%s5 + $0x198] sm:$0xf]
        %v8523 = vld [vmem:[%s5 + $0x19c] sm:$0xf]
        %v8524 = vld [vmem:[%s5 + $0x1a0] sm:$0xf]
        %v8525 = vld [vmem:[%s5 + $0x1a4] sm:$0xf]
        %v8526 = vld [vmem:[%s5 + $0x1a8] sm:$0xf]
        %v8527 = vld [vmem:[%s5 + $0x1ac] sm:$0xf]
        %v8528 = vld [vmem:[%s5 + $0x1b0] sm:$0xf]
        %v8529 = vld [vmem:[%s5 + $0x1b4] sm:$0xf]
        %v8530 = vld [vmem:[%s5 + $0x1b8] sm:$0xf]
        %v8531 = vld [vmem:[%s5 + $0x1bc] sm:$0xf]
        %v8532 = vld [vmem:[%s5 + $0x1c0] sm:$0xf]
        %v8533 = vld [vmem:[%s5 + $0x1c4] sm:$0xf]
        %v8534 = vld [vmem:[%s5 + $0x1c8] sm:$0xf]
        %v8535 = vld [vmem:[%s5 + $0x1cc] sm:$0xf]
        %v8536 = vld [vmem:[%s5 + $0x1d0] sm:$0xf]
        %v8537 = vld [vmem:[%s5 + $0x1d4] sm:$0xf]
        %v8538 = vld [vmem:[%s5 + $0x1d8] sm:$0xf]
        %v8539 = vld [vmem:[%s5 + $0x1dc] sm:$0xf]
        %v8540 = vld [vmem:[%s5 + $0x1e0] sm:$0xf]
        %v8541 = vld [vmem:[%s5 + $0x1e4] sm:$0xf]
        %v8542 = vld [vmem:[%s5 + $0x1e8] sm:$0xf]
        %v8543 = vld [vmem:[%s5 + $0x1ec] sm:$0xf]
        %v8544 = vld [vmem:[%s5 + $0x1f0] sm:$0xf]
        %v8545 = vld [vmem:[%s5 + $0x1f4] sm:$0xf]
        %v8546 = vld [vmem:[%s5 + $0x1f8] sm:$0xf]
        %v8547 = vld [vmem:[%s5 + $0x1fc] sm:$0xf]
        %v8548 = vld [vmem:[%s5 + $0x200] sm:$0xf]
        %v8549 = vld [vmem:[%s5 + $0x204] sm:$0xf]
        %v8550 = vld [vmem:[%s5 + $0x208] sm:$0xf]
        %v8551 = vld [vmem:[%s5 + $0x20c] sm:$0xf]
        %v8552 = vld [vmem:[%s5 + $0x210] sm:$0xf]
        %v8553 = vld [vmem:[%s5 + $0x214] sm:$0xf]
        %v8554 = vld [vmem:[%s5 + $0x218] sm:$0xf]
        %v8555 = vld [vmem:[%s5 + $0x21c] sm:$0xf]
        %v8556 = vld [vmem:[%s5 + $0x220] sm:$0xf]
        %v8557 = vld [vmem:[%s5 + $0x224] sm:$0xf]
        %v8558 = vld [vmem:[%s5 + $0x228] sm:$0xf]
        %v8559 = vld [vmem:[%s5 + $0x22c] sm:$0xf]
        %v8560 = vld [vmem:[%s5 + $0x230] sm:$0xf]
        %v8561 = vld [vmem:[%s5 + $0x234] sm:$0xf]
        %v8562 = vld [vmem:[%s5 + $0x238] sm:$0xf]
        %v8563 = vld [vmem:[%s5 + $0x23c] sm:$0xf]
        %v8564 = vld [vmem:[%s5 + $0x240] sm:$0xf]
        %v8565 = vld [vmem:[%s5 + $0x244] sm:$0xf]
        %v8566 = vld [vmem:[%s5 + $0x248] sm:$0xf]
        %v8567 = vld [vmem:[%s5 + $0x24c] sm:$0xf]
        %v8568 = vld [vmem:[%s5 + $0x250] sm:$0xf]
        %v8569 = vld [vmem:[%s5 + $0x254] sm:$0xf]
        %v8570 = vld [vmem:[%s5 + $0x258] sm:$0xf]
        %v8571 = vld [vmem:[%s5 + $0x25c] sm:$0xf]
        %v8572 = vld [vmem:[%s5 + $0x260] sm:$0xf]
        %v8573 = vld [vmem:[%s5 + $0x264] sm:$0xf]
        %v8574 = vld [vmem:[%s5 + $0x268] sm:$0xf]
        %v8575 = vld [vmem:[%s5 + $0x26c] sm:$0xf]
        %v8576 = vld [vmem:[%s5 + $0x270] sm:$0xf]
        %v8577 = vld [vmem:[%s5 + $0x274] sm:$0xf]
        %v8578 = vld [vmem:[%s5 + $0x278] sm:$0xf]
        %v8579 = vld [vmem:[%s5 + $0x27c] sm:$0xf]
        %v8580 = vld [vmem:[%s5 + $0x280] sm:$0xf]
        %v8581 = vld [vmem:[%s5 + $0x284] sm:$0xf]
        %v8582 = vld [vmem:[%s5 + $0x288] sm:$0xf]
        %v8583 = vld [vmem:[%s5 + $0x28c] sm:$0xf]
        %v8584 = vld [vmem:[%s5 + $0x290] sm:$0xf]
        %v8585 = vld [vmem:[%s5 + $0x294] sm:$0xf]
        %v8586 = vld [vmem:[%s5 + $0x298] sm:$0xf]
        %v8587 = vld [vmem:[%s5 + $0x29c] sm:$0xf]
        %v8588 = vld [vmem:[%s5 + $0x2a0] sm:$0xf]
        %v8589 = vld [vmem:[%s5 + $0x2a4] sm:$0xf]
        %v8590 = vld [vmem:[%s5 + $0x2a8] sm:$0xf]
        %v8591 = vld [vmem:[%s5 + $0x2ac] sm:$0xf]
        %v8592 = vld [vmem:[%s5 + $0x2b0] sm:$0xf]
        %v8593 = vld [vmem:[%s5 + $0x2b4] sm:$0xf]
        %v8594 = vld [vmem:[%s5 + $0x2b8] sm:$0xf]
        %v8595 = vld [vmem:[%s5 + $0x2bc] sm:$0xf]
        %v8596 = vld [vmem:[%s5 + $0x2c0] sm:$0xf]
        %v8597 = vld [vmem:[%s5 + $0x2c4] sm:$0xf]
        %v8598 = vld [vmem:[%s5 + $0x2c8] sm:$0xf]
        %v8599 = vld [vmem:[%s5 + $0x2cc] sm:$0xf]
        %v8600 = vld [vmem:[%s5 + $0x2d0] sm:$0xf]
        %v8601 = vld [vmem:[%s5 + $0x2d4] sm:$0xf]
        %v8602 = vld [vmem:[%s5 + $0x2d8] sm:$0xf]
        %v8603 = vld [vmem:[%s5 + $0x2dc] sm:$0xf]
        %v8604 = vld [vmem:[%s5 + $0x2e0] sm:$0xf]
        %v8605 = vld [vmem:[%s5 + $0x2e4] sm:$0xf]
        %v8606 = vld [vmem:[%s5 + $0x2e8] sm:$0xf]
        %v8607 = vld [vmem:[%s5 + $0x2ec] sm:$0xf]
        %v8608 = vld [vmem:[%s5 + $0x2f0] sm:$0xf]
        %v8609 = vld [vmem:[%s5 + $0x2f4] sm:$0xf]
        %v8610 = vld [vmem:[%s5 + $0x2f8] sm:$0xf]
        %v8611 = vld [vmem:[%s5 + $0x2fc] sm:$0xf]
        %v8612 = vld [vmem:[%s5 + $0x300] sm:$0xf]
        %v8613 = vld [vmem:[%s5 + $0x304] sm:$0xf]
        %v8614 = vld [vmem:[%s5 + $0x308] sm:$0xf]
        %v8615 = vld [vmem:[%s5 + $0x30c] sm:$0xf]
        %v8616 = vld [vmem:[%s5 + $0x310] sm:$0xf]
        %v8617 = vld [vmem:[%s5 + $0x314] sm:$0xf]
        %v8618 = vld [vmem:[%s5 + $0x318] sm:$0xf]
        %v8619 = vld [vmem:[%s5 + $0x31c] sm:$0xf]
        %v8620 = vld [vmem:[%s5 + $0x320] sm:$0xf]
        %v8621 = vld [vmem:[%s5 + $0x324] sm:$0xf]
        %v8622 = vld [vmem:[%s5 + $0x328] sm:$0xf]
        %v8623 = vld [vmem:[%s5 + $0x32c] sm:$0xf]
        %v8624 = vld [vmem:[%s5 + $0x330] sm:$0xf]
        %v8625 = vld [vmem:[%s5 + $0x334] sm:$0xf]
        %v8626 = vld [vmem:[%s5 + $0x338] sm:$0xf]
        %v8627 = vld [vmem:[%s5 + $0x33c] sm:$0xf]
        %v8628 = vld [vmem:[%s5 + $0x340] sm:$0xf]
        %v8629 = vld [vmem:[%s5 + $0x344] sm:$0xf]
        %v8630 = vld [vmem:[%s5 + $0x348] sm:$0xf]
        %v8631 = vld [vmem:[%s5 + $0x34c] sm:$0xf]
        %v8632 = vld [vmem:[%s5 + $0x350] sm:$0xf]
        %v8633 = vld [vmem:[%s5 + $0x354] sm:$0xf]
        %v8634 = vld [vmem:[%s5 + $0x358] sm:$0xf]
        %v8635 = vld [vmem:[%s5 + $0x35c] sm:$0xf]
        %v8636 = vld [vmem:[%s5 + $0x360] sm:$0xf]
        %v8637 = vld [vmem:[%s5 + $0x364] sm:$0xf]
        %v8638 = vld [vmem:[%s5 + $0x368] sm:$0xf]
        %v8639 = vld [vmem:[%s5 + $0x36c] sm:$0xf]
        %v8640 = vld [vmem:[%s5 + $0x370] sm:$0xf]
        %v8641 = vld [vmem:[%s5 + $0x374] sm:$0xf]
        %v8642 = vld [vmem:[%s5 + $0x378] sm:$0xf]
        %v8643 = vld [vmem:[%s5 + $0x37c] sm:$0xf]
        %v8644 = vld [vmem:[%s5 + $0x380] sm:$0xf]
        %v8645 = vld [vmem:[%s5 + $0x384] sm:$0xf]
        %v8646 = vld [vmem:[%s5 + $0x388] sm:$0xf]
        %v8647 = vld [vmem:[%s5 + $0x38c] sm:$0xf]
        %v8648 = vld [vmem:[%s5 + $0x390] sm:$0xf]
        %v8649 = vld [vmem:[%s5 + $0x394] sm:$0xf]
        %v8650 = vld [vmem:[%s5 + $0x398] sm:$0xf]
        %v8651 = vld [vmem:[%s5 + $0x39c] sm:$0xf]
        %v8652 = vld [vmem:[%s5 + $0x3a0] sm:$0xf]
        %v8653 = vld [vmem:[%s5 + $0x3a4] sm:$0xf]
        %v8654 = vld [vmem:[%s5 + $0x3a8] sm:$0xf]
        %v8655 = vld [vmem:[%s5 + $0x3ac] sm:$0xf]
        %v8656 = vld [vmem:[%s5 + $0x3b0] sm:$0xf]
        %v8657 = vld [vmem:[%s5 + $0x3b4] sm:$0xf]
        %v8658 = vld [vmem:[%s5 + $0x3b8] sm:$0xf]
        %v8659 = vld [vmem:[%s5 + $0x3bc] sm:$0xf]
        %v8660 = vld [vmem:[%s5 + $0x3c0] sm:$0xf]
        %v8661 = vld [vmem:[%s5 + $0x3c4] sm:$0xf]
        %v8662 = vld [vmem:[%s5 + $0x3c8] sm:$0xf]
        %v8663 = vld [vmem:[%s5 + $0x3cc] sm:$0xf]
        %v8664 = vld [vmem:[%s5 + $0x3d0] sm:$0xf]
        %v8665 = vld [vmem:[%s5 + $0x3d4] sm:$0xf]
        %v8666 = vld [vmem:[%s5 + $0x3d8] sm:$0xf]
        %v8667 = vld [vmem:[%s5 + $0x3dc] sm:$0xf]
        %v8668 = vld [vmem:[%s5 + $0x3e0] sm:$0xf]
        %v8669 = vld [vmem:[%s5 + $0x3e4] sm:$0xf]
        %v8670 = vld [vmem:[%s5 + $0x3e8] sm:$0xf]
        %v8671 = vld [vmem:[%s5 + $0x3ec] sm:$0xf]
        %v8672 = vld [vmem:[%s5 + $0x3f0] sm:$0xf]
        %v8673 = vld [vmem:[%s5 + $0x3f4] sm:$0xf]
        %v8674 = vld [vmem:[%s5 + $0x3f8] sm:$0xf]
        %v8675 = vld [vmem:[%s5 + $0x3fc] sm:$0xf]
        %v8676 = vld [vmem:[#allocation10] sm:$0x1]
        %v8678 = vlaneseq
        %v8679 = vshrl.u32 %v8678, 7
        %v8680 = vsub.s32 0, %v8679
        %v8681 = vrot.slane %v8676, %v8680
        %v8939 = vunpack.c.l.b16 %v8420
        %v8940 = vunpack.c.l.b16 %v8421
        %v8941 = vunpack.c.l.b16 %v8422
        %v8942 = vunpack.c.l.b16 %v8423
        %v8943 = vunpack.c.l.b16 %v8424
        %v8944 = vunpack.c.l.b16 %v8425
        %v8945 = vunpack.c.l.b16 %v8426
        %v8946 = vunpack.c.l.b16 %v8427
        %v8947 = vunpack.c.l.b16 %v8428
        %v8948 = vunpack.c.l.b16 %v8429
        %v8949 = vunpack.c.l.b16 %v8430
        %v8950 = vunpack.c.l.b16 %v8431
        %v8951 = vunpack.c.l.b16 %v8432
        %v8952 = vunpack.c.l.b16 %v8433
        %v8953 = vunpack.c.l.b16 %v8434
        %v8954 = vunpack.c.l.b16 %v8435
        %v8955 = vunpack.c.l.b16 %v8436
        %v8956 = vunpack.c.l.b16 %v8437
        %v8957 = vunpack.c.l.b16 %v8438
        %v8958 = vunpack.c.l.b16 %v8439
        %v8959 = vunpack.c.l.b16 %v8440
        %v8960 = vunpack.c.l.b16 %v8441
        %v8961 = vunpack.c.l.b16 %v8442
        %v8962 = vunpack.c.l.b16 %v8443
        %v8963 = vunpack.c.l.b16 %v8444
        %v8964 = vunpack.c.l.b16 %v8445
        %v8965 = vunpack.c.l.b16 %v8446
        %v8966 = vunpack.c.l.b16 %v8447
        %v8967 = vunpack.c.l.b16 %v8448
        %v8968 = vunpack.c.l.b16 %v8449
        %v8969 = vunpack.c.l.b16 %v8450
        %v8970 = vunpack.c.l.b16 %v8451
        %v8971 = vunpack.c.l.b16 %v8452
        %v8972 = vunpack.c.l.b16 %v8453
        %v8973 = vunpack.c.l.b16 %v8454
        %v8974 = vunpack.c.l.b16 %v8455
        %v8975 = vunpack.c.l.b16 %v8456
        %v8976 = vunpack.c.l.b16 %v8457
        %v8977 = vunpack.c.l.b16 %v8458
        %v8978 = vunpack.c.l.b16 %v8459
        %v8979 = vunpack.c.l.b16 %v8460
        %v8980 = vunpack.c.l.b16 %v8461
        %v8981 = vunpack.c.l.b16 %v8462
        %v8982 = vunpack.c.l.b16 %v8463
        %v8983 = vunpack.c.l.b16 %v8464
        %v8984 = vunpack.c.l.b16 %v8465
        %v8985 = vunpack.c.l.b16 %v8466
        %v8986 = vunpack.c.l.b16 %v8467
        %v8987 = vunpack.c.l.b16 %v8468
        %v8988 = vunpack.c.l.b16 %v8469
        %v8989 = vunpack.c.l.b16 %v8470
        %v8990 = vunpack.c.l.b16 %v8471
        %v8991 = vunpack.c.l.b16 %v8472
        %v8992 = vunpack.c.l.b16 %v8473
        %v8993 = vunpack.c.l.b16 %v8474
        %v8994 = vunpack.c.l.b16 %v8475
        %v8995 = vunpack.c.l.b16 %v8476
        %v8996 = vunpack.c.l.b16 %v8477
        %v8997 = vunpack.c.l.b16 %v8478
        %v8998 = vunpack.c.l.b16 %v8479
        %v8999 = vunpack.c.l.b16 %v8480
        %v9000 = vunpack.c.l.b16 %v8481
        %v9001 = vunpack.c.l.b16 %v8482
        %v9002 = vunpack.c.l.b16 %v8483
        %v9003 = vunpack.c.l.b16 %v8484
        %v9004 = vunpack.c.l.b16 %v8485
        %v9005 = vunpack.c.l.b16 %v8486
        %v9006 = vunpack.c.l.b16 %v8487
        %v9007 = vunpack.c.l.b16 %v8488
        %v9008 = vunpack.c.l.b16 %v8489
        %v9009 = vunpack.c.l.b16 %v8490
        %v9010 = vunpack.c.l.b16 %v8491
        %v9011 = vunpack.c.l.b16 %v8492
        %v9012 = vunpack.c.l.b16 %v8493
        %v9013 = vunpack.c.l.b16 %v8494
        %v9014 = vunpack.c.l.b16 %v8495
        %v9015 = vunpack.c.l.b16 %v8496
        %v9016 = vunpack.c.l.b16 %v8497
        %v9017 = vunpack.c.l.b16 %v8498
        %v9018 = vunpack.c.l.b16 %v8499
        %v9019 = vunpack.c.l.b16 %v8500
        %v9020 = vunpack.c.l.b16 %v8501
        %v9021 = vunpack.c.l.b16 %v8502
        %v9022 = vunpack.c.l.b16 %v8503
        %v9023 = vunpack.c.l.b16 %v8504
        %v9024 = vunpack.c.l.b16 %v8505
        %v9025 = vunpack.c.l.b16 %v8506
        %v9026 = vunpack.c.l.b16 %v8507
        %v9027 = vunpack.c.l.b16 %v8508
        %v9028 = vunpack.c.l.b16 %v8509
        %v9029 = vunpack.c.l.b16 %v8510
        %v9030 = vunpack.c.l.b16 %v8511
        %v9031 = vunpack.c.l.b16 %v8512
        %v9032 = vunpack.c.l.b16 %v8513
        %v9033 = vunpack.c.l.b16 %v8514
        %v9034 = vunpack.c.l.b16 %v8515
        %v9035 = vunpack.c.l.b16 %v8516
        %v9036 = vunpack.c.l.b16 %v8517
        %v9037 = vunpack.c.l.b16 %v8518
        %v9038 = vunpack.c.l.b16 %v8519
        %v9039 = vunpack.c.l.b16 %v8520
        %v9040 = vunpack.c.l.b16 %v8521
        %v9041 = vunpack.c.l.b16 %v8522
        %v9042 = vunpack.c.l.b16 %v8523
        %v9043 = vunpack.c.l.b16 %v8524
        %v9044 = vunpack.c.l.b16 %v8525
        %v9045 = vunpack.c.l.b16 %v8526
        %v9046 = vunpack.c.l.b16 %v8527
        %v9047 = vunpack.c.l.b16 %v8528
        %v9048 = vunpack.c.l.b16 %v8529
        %v9049 = vunpack.c.l.b16 %v8530
        %v9050 = vunpack.c.l.b16 %v8531
        %v9051 = vunpack.c.l.b16 %v8532
        %v9052 = vunpack.c.l.b16 %v8533
        %v9053 = vunpack.c.l.b16 %v8534
        %v9054 = vunpack.c.l.b16 %v8535
        %v9055 = vunpack.c.l.b16 %v8536
        %v9056 = vunpack.c.l.b16 %v8537
        %v9057 = vunpack.c.l.b16 %v8538
        %v9058 = vunpack.c.l.b16 %v8539
        %v9059 = vunpack.c.l.b16 %v8540
        %v9060 = vunpack.c.l.b16 %v8541
        %v9061 = vunpack.c.l.b16 %v8542
        %v9062 = vunpack.c.l.b16 %v8543
        %v9063 = vunpack.c.l.b16 %v8544
        %v9064 = vunpack.c.l.b16 %v8545
        %v9065 = vunpack.c.l.b16 %v8546
        %v9066 = vunpack.c.l.b16 %v8547
        %v9067 = vunpack.c.l.b16 %v8548
        %v9068 = vunpack.c.l.b16 %v8549
        %v9069 = vunpack.c.l.b16 %v8550
        %v9070 = vunpack.c.l.b16 %v8551
        %v9071 = vunpack.c.l.b16 %v8552
        %v9072 = vunpack.c.l.b16 %v8553
        %v9073 = vunpack.c.l.b16 %v8554
        %v9074 = vunpack.c.l.b16 %v8555
        %v9075 = vunpack.c.l.b16 %v8556
        %v9076 = vunpack.c.l.b16 %v8557
        %v9077 = vunpack.c.l.b16 %v8558
        %v9078 = vunpack.c.l.b16 %v8559
        %v9079 = vunpack.c.l.b16 %v8560
        %v9080 = vunpack.c.l.b16 %v8561
        %v9081 = vunpack.c.l.b16 %v8562
        %v9082 = vunpack.c.l.b16 %v8563
        %v9083 = vunpack.c.l.b16 %v8564
        %v9084 = vunpack.c.l.b16 %v8565
        %v9085 = vunpack.c.l.b16 %v8566
        %v9086 = vunpack.c.l.b16 %v8567
        %v9087 = vunpack.c.l.b16 %v8568
        %v9088 = vunpack.c.l.b16 %v8569
        %v9089 = vunpack.c.l.b16 %v8570
        %v9090 = vunpack.c.l.b16 %v8571
        %v9091 = vunpack.c.l.b16 %v8572
        %v9092 = vunpack.c.l.b16 %v8573
        %v9093 = vunpack.c.l.b16 %v8574
        %v9094 = vunpack.c.l.b16 %v8575
        %v9095 = vunpack.c.l.b16 %v8576
        %v9096 = vunpack.c.l.b16 %v8577
        %v9097 = vunpack.c.l.b16 %v8578
        %v9098 = vunpack.c.l.b16 %v8579
        %v9099 = vunpack.c.l.b16 %v8580
        %v9100 = vunpack.c.l.b16 %v8581
        %v9101 = vunpack.c.l.b16 %v8582
        %v9102 = vunpack.c.l.b16 %v8583
        %v9103 = vunpack.c.l.b16 %v8584
        %v9104 = vunpack.c.l.b16 %v8585
        %v9105 = vunpack.c.l.b16 %v8586
        %v9106 = vunpack.c.l.b16 %v8587
        %v9107 = vunpack.c.l.b16 %v8588
        %v9108 = vunpack.c.l.b16 %v8589
        %v9109 = vunpack.c.l.b16 %v8590
        %v9110 = vunpack.c.l.b16 %v8591
        %v9111 = vunpack.c.l.b16 %v8592
        %v9112 = vunpack.c.l.b16 %v8593
        %v9113 = vunpack.c.l.b16 %v8594
        %v9114 = vunpack.c.l.b16 %v8595
        %v9115 = vunpack.c.l.b16 %v8596
        %v9116 = vunpack.c.l.b16 %v8597
        %v9117 = vunpack.c.l.b16 %v8598
        %v9118 = vunpack.c.l.b16 %v8599
        %v9119 = vunpack.c.l.b16 %v8600
        %v9120 = vunpack.c.l.b16 %v8601
        %v9121 = vunpack.c.l.b16 %v8602
        %v9122 = vunpack.c.l.b16 %v8603
        %v9123 = vunpack.c.l.b16 %v8604
        %v9124 = vunpack.c.l.b16 %v8605
        %v9125 = vunpack.c.l.b16 %v8606
        %v9126 = vunpack.c.l.b16 %v8607
        %v9127 = vunpack.c.l.b16 %v8608
        %v9128 = vunpack.c.l.b16 %v8609
        %v9129 = vunpack.c.l.b16 %v8610
        %v9130 = vunpack.c.l.b16 %v8611
        %v9131 = vunpack.c.l.b16 %v8612
        %v9132 = vunpack.c.l.b16 %v8613
        %v9133 = vunpack.c.l.b16 %v8614
        %v9134 = vunpack.c.l.b16 %v8615
        %v9135 = vunpack.c.l.b16 %v8616
        %v9136 = vunpack.c.l.b16 %v8617
        %v9137 = vunpack.c.l.b16 %v8618
        %v9138 = vunpack.c.l.b16 %v8619
        %v9139 = vunpack.c.l.b16 %v8620
        %v9140 = vunpack.c.l.b16 %v8621
        %v9141 = vunpack.c.l.b16 %v8622
        %v9142 = vunpack.c.l.b16 %v8623
        %v9143 = vunpack.c.l.b16 %v8624
        %v9144 = vunpack.c.l.b16 %v8625
        %v9145 = vunpack.c.l.b16 %v8626
        %v9146 = vunpack.c.l.b16 %v8627
        %v9147 = vunpack.c.l.b16 %v8628
        %v9148 = vunpack.c.l.b16 %v8629
        %v9149 = vunpack.c.l.b16 %v8630
        %v9150 = vunpack.c.l.b16 %v8631
        %v9151 = vunpack.c.l.b16 %v8632
        %v9152 = vunpack.c.l.b16 %v8633
        %v9153 = vunpack.c.l.b16 %v8634
        %v9154 = vunpack.c.l.b16 %v8635
        %v9155 = vunpack.c.l.b16 %v8636
        %v9156 = vunpack.c.l.b16 %v8637
        %v9157 = vunpack.c.l.b16 %v8638
        %v9158 = vunpack.c.l.b16 %v8639
        %v9159 = vunpack.c.l.b16 %v8640
        %v9160 = vunpack.c.l.b16 %v8641
        %v9161 = vunpack.c.l.b16 %v8642
        %v9162 = vunpack.c.l.b16 %v8643
        %v9163 = vunpack.c.l.b16 %v8644
        %v9164 = vunpack.c.l.b16 %v8645
        %v9165 = vunpack.c.l.b16 %v8646
        %v9166 = vunpack.c.l.b16 %v8647
        %v9167 = vunpack.c.l.b16 %v8648
        %v9168 = vunpack.c.l.b16 %v8649
        %v9169 = vunpack.c.l.b16 %v8650
        %v9170 = vunpack.c.l.b16 %v8651
        %v9171 = vunpack.c.l.b16 %v8652
        %v9172 = vunpack.c.l.b16 %v8653
        %v9173 = vunpack.c.l.b16 %v8654
        %v9174 = vunpack.c.l.b16 %v8655
        %v9175 = vunpack.c.l.b16 %v8656
        %v9176 = vunpack.c.l.b16 %v8657
        %v9177 = vunpack.c.l.b16 %v8658
        %v9178 = vunpack.c.l.b16 %v8659
        %v9179 = vunpack.c.l.b16 %v8660
        %v9180 = vunpack.c.l.b16 %v8661
        %v9181 = vunpack.c.l.b16 %v8662
        %v9182 = vunpack.c.l.b16 %v8663
        %v9183 = vunpack.c.l.b16 %v8664
        %v9184 = vunpack.c.l.b16 %v8665
        %v9185 = vunpack.c.l.b16 %v8666
        %v9186 = vunpack.c.l.b16 %v8667
        %v9187 = vunpack.c.l.b16 %v8668
        %v9188 = vunpack.c.l.b16 %v8669
        %v9189 = vunpack.c.l.b16 %v8670
        %v9190 = vunpack.c.l.b16 %v8671
        %v9191 = vunpack.c.l.b16 %v8672
        %v9192 = vunpack.c.l.b16 %v8673
        %v9193 = vunpack.c.l.b16 %v8674
        %v9194 = vunpack.c.l.b16 %v8675
        %v9195 = vpack.c.b16 %v8940, %v8939
        %v9196 = vpack.c.b16 %v8942, %v8941
        %v9197 = vpack.c.b16 %v8944, %v8943
        %v9198 = vpack.c.b16 %v8946, %v8945
        %v9199 = vpack.c.b16 %v8948, %v8947
        %v9200 = vpack.c.b16 %v8950, %v8949
        %v9201 = vpack.c.b16 %v8952, %v8951
        %v9202 = vpack.c.b16 %v8954, %v8953
        %v9203 = vpack.c.b16 %v8956, %v8955
        %v9204 = vpack.c.b16 %v8958, %v8957
        %v9205 = vpack.c.b16 %v8960, %v8959
        %v9206 = vpack.c.b16 %v8962, %v8961
        %v9207 = vpack.c.b16 %v8964, %v8963
        %v9208 = vpack.c.b16 %v8966, %v8965
        %v9209 = vpack.c.b16 %v8968, %v8967
        %v9210 = vpack.c.b16 %v8970, %v8969
        %v9211 = vpack.c.b16 %v8972, %v8971
        %v9212 = vpack.c.b16 %v8974, %v8973
        %v9213 = vpack.c.b16 %v8976, %v8975
        %v9214 = vpack.c.b16 %v8978, %v8977
        %v9215 = vpack.c.b16 %v8980, %v8979
        %v9216 = vpack.c.b16 %v8982, %v8981
        %v9217 = vpack.c.b16 %v8984, %v8983
        %v9218 = vpack.c.b16 %v8986, %v8985
        %v9219 = vpack.c.b16 %v8988, %v8987
        %v9220 = vpack.c.b16 %v8990, %v8989
        %v9221 = vpack.c.b16 %v8992, %v8991
        %v9222 = vpack.c.b16 %v8994, %v8993
        %v9223 = vpack.c.b16 %v8996, %v8995
        %v9224 = vpack.c.b16 %v8998, %v8997
        %v9225 = vpack.c.b16 %v9000, %v8999
        %v9226 = vpack.c.b16 %v9002, %v9001
        %v9227 = vpack.c.b16 %v9004, %v9003
        %v9228 = vpack.c.b16 %v9006, %v9005
        %v9229 = vpack.c.b16 %v9008, %v9007
        %v9230 = vpack.c.b16 %v9010, %v9009
        %v9231 = vpack.c.b16 %v9012, %v9011
        %v9232 = vpack.c.b16 %v9014, %v9013
        %v9233 = vpack.c.b16 %v9016, %v9015
        %v9234 = vpack.c.b16 %v9018, %v9017
        %v9235 = vpack.c.b16 %v9020, %v9019
        %v9236 = vpack.c.b16 %v9022, %v9021
        %v9237 = vpack.c.b16 %v9024, %v9023
        %v9238 = vpack.c.b16 %v9026, %v9025
        %v9239 = vpack.c.b16 %v9028, %v9027
        %v9240 = vpack.c.b16 %v9030, %v9029
        %v9241 = vpack.c.b16 %v9032, %v9031
        %v9242 = vpack.c.b16 %v9034, %v9033
        %v9243 = vpack.c.b16 %v9036, %v9035
        %v9244 = vpack.c.b16 %v9038, %v9037
        %v9245 = vpack.c.b16 %v9040, %v9039
        %v9246 = vpack.c.b16 %v9042, %v9041
        %v9247 = vpack.c.b16 %v9044, %v9043
        %v9248 = vpack.c.b16 %v9046, %v9045
        %v9249 = vpack.c.b16 %v9048, %v9047
        %v9250 = vpack.c.b16 %v9050, %v9049
        %v9251 = vpack.c.b16 %v9052, %v9051
        %v9252 = vpack.c.b16 %v9054, %v9053
        %v9253 = vpack.c.b16 %v9056, %v9055
        %v9254 = vpack.c.b16 %v9058, %v9057
        %v9255 = vpack.c.b16 %v9060, %v9059
        %v9256 = vpack.c.b16 %v9062, %v9061
        %v9257 = vpack.c.b16 %v9064, %v9063
        %v9258 = vpack.c.b16 %v9066, %v9065
        %v9259 = vpack.c.b16 %v9068, %v9067
        %v9260 = vpack.c.b16 %v9070, %v9069
        %v9261 = vpack.c.b16 %v9072, %v9071
        %v9262 = vpack.c.b16 %v9074, %v9073
        %v9263 = vpack.c.b16 %v9076, %v9075
        %v9264 = vpack.c.b16 %v9078, %v9077
        %v9265 = vpack.c.b16 %v9080, %v9079
        %v9266 = vpack.c.b16 %v9082, %v9081
        %v9267 = vpack.c.b16 %v9084, %v9083
        %v9268 = vpack.c.b16 %v9086, %v9085
        %v9269 = vpack.c.b16 %v9088, %v9087
        %v9270 = vpack.c.b16 %v9090, %v9089
        %v9271 = vpack.c.b16 %v9092, %v9091
        %v9272 = vpack.c.b16 %v9094, %v9093
        %v9273 = vpack.c.b16 %v9096, %v9095
        %v9274 = vpack.c.b16 %v9098, %v9097
        %v9275 = vpack.c.b16 %v9100, %v9099
        %v9276 = vpack.c.b16 %v9102, %v9101
        %v9277 = vpack.c.b16 %v9104, %v9103
        %v9278 = vpack.c.b16 %v9106, %v9105
        %v9279 = vpack.c.b16 %v9108, %v9107
        %v9280 = vpack.c.b16 %v9110, %v9109
        %v9281 = vpack.c.b16 %v9112, %v9111
        %v9282 = vpack.c.b16 %v9114, %v9113
        %v9283 = vpack.c.b16 %v9116, %v9115
        %v9284 = vpack.c.b16 %v9118, %v9117
        %v9285 = vpack.c.b16 %v9120, %v9119
        %v9286 = vpack.c.b16 %v9122, %v9121
        %v9287 = vpack.c.b16 %v9124, %v9123
        %v9288 = vpack.c.b16 %v9126, %v9125
        %v9289 = vpack.c.b16 %v9128, %v9127
        %v9290 = vpack.c.b16 %v9130, %v9129
        %v9291 = vpack.c.b16 %v9132, %v9131
        %v9292 = vpack.c.b16 %v9134, %v9133
        %v9293 = vpack.c.b16 %v9136, %v9135
        %v9294 = vpack.c.b16 %v9138, %v9137
        %v9295 = vpack.c.b16 %v9140, %v9139
        %v9296 = vpack.c.b16 %v9142, %v9141
        %v9297 = vpack.c.b16 %v9144, %v9143
        %v9298 = vpack.c.b16 %v9146, %v9145
        %v9299 = vpack.c.b16 %v9148, %v9147
        %v9300 = vpack.c.b16 %v9150, %v9149
        %v9301 = vpack.c.b16 %v9152, %v9151
        %v9302 = vpack.c.b16 %v9154, %v9153
        %v9303 = vpack.c.b16 %v9156, %v9155
        %v9304 = vpack.c.b16 %v9158, %v9157
        %v9305 = vpack.c.b16 %v9160, %v9159
        %v9306 = vpack.c.b16 %v9162, %v9161
        %v9307 = vpack.c.b16 %v9164, %v9163
        %v9308 = vpack.c.b16 %v9166, %v9165
        %v9309 = vpack.c.b16 %v9168, %v9167
        %v9310 = vpack.c.b16 %v9170, %v9169
        %v9311 = vpack.c.b16 %v9172, %v9171
        %v9312 = vpack.c.b16 %v9174, %v9173
        %v9313 = vpack.c.b16 %v9176, %v9175
        %v9314 = vpack.c.b16 %v9178, %v9177
        %v9315 = vpack.c.b16 %v9180, %v9179
        %v9316 = vpack.c.b16 %v9182, %v9181
        %v9317 = vpack.c.b16 %v9184, %v9183
        %v9318 = vpack.c.b16 %v9186, %v9185
        %v9319 = vpack.c.b16 %v9188, %v9187
        %v9320 = vpack.c.b16 %v9190, %v9189
        %v9321 = vpack.c.b16 %v9192, %v9191
        %v9322 = vpack.c.b16 %v9194, %v9193
        %9451 = vmatprep.subr.bf16.mxu0 0
        %9452 = vmatpush1.bf16.msra.mxu0 %v9195
        %9453 = vmatprep.subr.bf16.mxu0 0
        %9454 = vmatpush1.bf16.msra.mxu0 %v9196
        %9455 = vmatprep.subr.bf16.mxu0 0
        %9456 = vmatpush1.bf16.msra.mxu0 %v9197
        %9457 = vmatprep.subr.bf16.mxu0 0
        %9458 = vmatpush1.bf16.msra.mxu0 %v9198
        %9459 = vmatprep.subr.bf16.mxu0 0
        %9460 = vmatpush1.bf16.msra.mxu0 %v9199
        %9461 = vmatprep.subr.bf16.mxu0 0
        %9462 = vmatpush1.bf16.msra.mxu0 %v9200
        %9463 = vmatprep.subr.bf16.mxu0 0
        %9464 = vmatpush1.bf16.msra.mxu0 %v9201
        %9465 = vmatprep.subr.bf16.mxu0 0
        %9466 = vmatpush1.bf16.msra.mxu0 %v9202
        %9467 = vmatprep.subr.bf16.mxu0 0
        %9468 = vmatpush1.bf16.msra.mxu0 %v9203
        %9469 = vmatprep.subr.bf16.mxu0 0
        %9470 = vmatpush1.bf16.msra.mxu0 %v9204
        %9471 = vmatprep.subr.bf16.mxu0 0
        %9472 = vmatpush1.bf16.msra.mxu0 %v9205
        %9473 = vmatprep.subr.bf16.mxu0 0
        %9474 = vmatpush1.bf16.msra.mxu0 %v9206
        %9475 = vmatprep.subr.bf16.mxu0 0
        %9476 = vmatpush1.bf16.msra.mxu0 %v9207
        %9477 = vmatprep.subr.bf16.mxu0 0
        %9478 = vmatpush1.bf16.msra.mxu0 %v9208
        %9479 = vmatprep.subr.bf16.mxu0 0
        %9480 = vmatpush1.bf16.msra.mxu0 %v9209
        %9481 = vmatprep.subr.bf16.mxu0 0
        %9482 = vmatpush1.bf16.msra.mxu0 %v9210
        %9483 = vmatprep.mubr.bf16.mxu0 %v8405
        %9484 = vmatmul.mubr.bf16.gmra.mrb[0].mxu0 %v8404
        %v9485 = vpop.f32.mrb[0].mxu0
        %v9486 = vadd.f32 %v8681, %v9485
        %v9487 = vpop.f32.mrb[0].mxu0
        %v9488 = vpop.f32.mrb[0].mxu0
        %v9489 = vpop.f32.mrb[0].mxu0
        %9490 = vdwg.mxu0
        %9491 = vmatprep.subr.bf16.mxu0 0
        %9492 = vmatpush1.bf16.msra.mxu0 %v9211
        %9493 = vmatprep.subr.bf16.mxu0 0
        %9494 = vmatpush1.bf16.msra.mxu0 %v9212
        %9495 = vmatprep.subr.bf16.mxu0 0
        %9496 = vmatpush1.bf16.msra.mxu0 %v9213
        %9497 = vmatprep.subr.bf16.mxu0 0
        %9498 = vmatpush1.bf16.msra.mxu0 %v9214
        %9499 = vmatprep.subr.bf16.mxu0 0
        %9500 = vmatpush1.bf16.msra.mxu0 %v9215
        %9501 = vmatprep.subr.bf16.mxu0 0
        %9502 = vmatpush1.bf16.msra.mxu0 %v9216
        %9503 = vmatprep.subr.bf16.mxu0 0
        %9504 = vmatpush1.bf16.msra.mxu0 %v9217
        %9505 = vmatprep.subr.bf16.mxu0 0
        %9506 = vmatpush1.bf16.msra.mxu0 %v9218
        %9507 = vmatprep.subr.bf16.mxu0 0
        %9508 = vmatpush1.bf16.msra.mxu0 %v9219
        %9509 = vmatprep.subr.bf16.mxu0 0
        %9510 = vmatpush1.bf16.msra.mxu0 %v9220
        %9511 = vmatprep.subr.bf16.mxu0 0
        %9512 = vmatpush1.bf16.msra.mxu0 %v9221
        %9513 = vmatprep.subr.bf16.mxu0 0
        %9514 = vmatpush1.bf16.msra.mxu0 %v9222
        %9515 = vmatprep.subr.bf16.mxu0 0
        %9516 = vmatpush1.bf16.msra.mxu0 %v9223
        %9517 = vmatprep.subr.bf16.mxu0 0
        %9518 = vmatpush1.bf16.msra.mxu0 %v9224
        %9519 = vmatprep.subr.bf16.mxu0 0
        %9520 = vmatpush1.bf16.msra.mxu0 %v9225
        %9521 = vmatprep.subr.bf16.mxu0 0
        %9522 = vmatpush1.bf16.msra.mxu0 %v9226
        %9523 = vmatprep.mubr.bf16.mxu0 %v8407
        %9524 = vmatmul.mubr.bf16.gmra.mrb[0].mxu0 %v8406
        %v9525 = vpop.f32.mrb[0].mxu0
        %v9526 = vadd.f32 %v9486, %v9525
        %v9527 = vpop.f32.mrb[0].mxu0
        %v9528 = vpop.f32.mrb[0].mxu0
        %v9529 = vpop.f32.mrb[0].mxu0
        %9530 = vdwg.mxu0
        %9531 = vmatprep.subr.bf16.mxu0 0
        %9532 = vmatpush1.bf16.msra.mxu0 %v9227
        %9533 = vmatprep.subr.bf16.mxu0 0
        %9534 = vmatpush1.bf16.msra.mxu0 %v9228
        %9535 = vmatprep.subr.bf16.mxu0 0
        %9536 = vmatpush1.bf16.msra.mxu0 %v9229
        %9537 = vmatprep.subr.bf16.mxu0 0
        %9538 = vmatpush1.bf16.msra.mxu0 %v9230
        %9539 = vmatprep.subr.bf16.mxu0 0
        %9540 = vmatpush1.bf16.msra.mxu0 %v9231
        %9541 = vmatprep.subr.bf16.mxu0 0
        %9542 = vmatpush1.bf16.msra.mxu0 %v9232
        %9543 = vmatprep.subr.bf16.mxu0 0
        %9544 = vmatpush1.bf16.msra.mxu0 %v9233
        %9545 = vmatprep.subr.bf16.mxu0 0
        %9546 = vmatpush1.bf16.msra.mxu0 %v9234
        %9547 = vmatprep.subr.bf16.mxu0 0
        %9548 = vmatpush1.bf16.msra.mxu0 %v9235
        %9549 = vmatprep.subr.bf16.mxu0 0
        %9550 = vmatpush1.bf16.msra.mxu0 %v9236
        %9551 = vmatprep.subr.bf16.mxu0 0
        %9552 = vmatpush1.bf16.msra.mxu0 %v9237
        %9553 = vmatprep.subr.bf16.mxu0 0
        %9554 = vmatpush1.bf16.msra.mxu0 %v9238
        %9555 = vmatprep.subr.bf16.mxu0 0
        %9556 = vmatpush1.bf16.msra.mxu0 %v9239
        %9557 = vmatprep.subr.bf16.mxu0 0
        %9558 = vmatpush1.bf16.msra.mxu0 %v9240
        %9559 = vmatprep.subr.bf16.mxu0 0
        %9560 = vmatpush1.bf16.msra.mxu0 %v9241
        %9561 = vmatprep.subr.bf16.mxu0 0
        %9562 = vmatpush1.bf16.msra.mxu0 %v9242
        %9563 = vmatprep.mubr.bf16.mxu0 %v8409
        %9564 = vmatmul.mubr.bf16.gmra.mrb[0].mxu0 %v8408
        %v9565 = vpop.f32.mrb[0].mxu0
        %v9566 = vadd.f32 %v9526, %v9565
        %v9567 = vpop.f32.mrb[0].mxu0
        %v9568 = vpop.f32.mrb[0].mxu0
        %v9569 = vpop.f32.mrb[0].mxu0
        %9570 = vdwg.mxu0
        %9571 = vmatprep.subr.bf16.mxu0 0
        %9572 = vmatpush1.bf16.msra.mxu0 %v9243
        %9573 = vmatprep.subr.bf16.mxu0 0
        %9574 = vmatpush1.bf16.msra.mxu0 %v9244
        %9575 = vmatprep.subr.bf16.mxu0 0
        %9576 = vmatpush1.bf16.msra.mxu0 %v9245
        %9577 = vmatprep.subr.bf16.mxu0 0
        %9578 = vmatpush1.bf16.msra.mxu0 %v9246
        %9579 = vmatprep.subr.bf16.mxu0 0
        %9580 = vmatpush1.bf16.msra.mxu0 %v9247
        %9581 = vmatprep.subr.bf16.mxu0 0
        %9582 = vmatpush1.bf16.msra.mxu0 %v9248
        %9583 = vmatprep.subr.bf16.mxu0 0
        %9584 = vmatpush1.bf16.msra.mxu0 %v9249
        %9585 = vmatprep.subr.bf16.mxu0 0
        %9586 = vmatpush1.bf16.msra.mxu0 %v9250
        %9587 = vmatprep.subr.bf16.mxu0 0
        %9588 = vmatpush1.bf16.msra.mxu0 %v9251
        %9589 = vmatprep.subr.bf16.mxu0 0
        %9590 = vmatpush1.bf16.msra.mxu0 %v9252
        %9591 = vmatprep.subr.bf16.mxu0 0
        %9592 = vmatpush1.bf16.msra.mxu0 %v9253
        %9593 = vmatprep.subr.bf16.mxu0 0
        %9594 = vmatpush1.bf16.msra.mxu0 %v9254
        %9595 = vmatprep.subr.bf16.mxu0 0
        %9596 = vmatpush1.bf16.msra.mxu0 %v9255
        %9597 = vmatprep.subr.bf16.mxu0 0
        %9598 = vmatpush1.bf16.msra.mxu0 %v9256
        %9599 = vmatprep.subr.bf16.mxu0 0
        %9600 = vmatpush1.bf16.msra.mxu0 %v9257
        %9601 = vmatprep.subr.bf16.mxu0 0
        %9602 = vmatpush1.bf16.msra.mxu0 %v9258
        %9603 = vmatprep.mubr.bf16.mxu0 %v8411
        %9604 = vmatmul.mubr.bf16.gmra.mrb[0].mxu0 %v8410
        %v9605 = vpop.f32.mrb[0].mxu0
        %v9606 = vadd.f32 %v9566, %v9605
        %v9607 = vpop.f32.mrb[0].mxu0
        %v9608 = vpop.f32.mrb[0].mxu0
        %v9609 = vpop.f32.mrb[0].mxu0
        %9610 = vdwg.mxu0
        %9611 = vmatprep.subr.bf16.mxu0 0
        %9612 = vmatpush1.bf16.msra.mxu0 %v9259
        %9613 = vmatprep.subr.bf16.mxu0 0
        %9614 = vmatpush1.bf16.msra.mxu0 %v9260
        %9615 = vmatprep.subr.bf16.mxu0 0
        %9616 = vmatpush1.bf16.msra.mxu0 %v9261
        %9617 = vmatprep.subr.bf16.mxu0 0
        %9618 = vmatpush1.bf16.msra.mxu0 %v9262
        %9619 = vmatprep.subr.bf16.mxu0 0
        %9620 = vmatpush1.bf16.msra.mxu0 %v9263
        %9621 = vmatprep.subr.bf16.mxu0 0
        %9622 = vmatpush1.bf16.msra.mxu0 %v9264
        %9623 = vmatprep.subr.bf16.mxu0 0
        %9624 = vmatpush1.bf16.msra.mxu0 %v9265
        %9625 = vmatprep.subr.bf16.mxu0 0
        %9626 = vmatpush1.bf16.msra.mxu0 %v9266
        %9627 = vmatprep.subr.bf16.mxu0 0
        %9628 = vmatpush1.bf16.msra.mxu0 %v9267
        %9629 = vmatprep.subr.bf16.mxu0 0
        %9630 = vmatpush1.bf16.msra.mxu0 %v9268
        %9631 = vmatprep.subr.bf16.mxu0 0
        %9632 = vmatpush1.bf16.msra.mxu0 %v9269
        %9633 = vmatprep.subr.bf16.mxu0 0
        %9634 = vmatpush1.bf16.msra.mxu0 %v9270
        %9635 = vmatprep.subr.bf16.mxu0 0
        %9636 = vmatpush1.bf16.msra.mxu0 %v9271
        %9637 = vmatprep.subr.bf16.mxu0 0
        %9638 = vmatpush1.bf16.msra.mxu0 %v9272
        %9639 = vmatprep.subr.bf16.mxu0 0
        %9640 = vmatpush1.bf16.msra.mxu0 %v9273
        %9641 = vmatprep.subr.bf16.mxu0 0
        %9642 = vmatpush1.bf16.msra.mxu0 %v9274
        %9643 = vmatprep.mubr.bf16.mxu0 %v8413
        %9644 = vmatmul.mubr.bf16.gmra.mrb[0].mxu0 %v8412
        %v9645 = vpop.f32.mrb[0].mxu0
        %v9646 = vadd.f32 %v9606, %v9645
        %v9647 = vpop.f32.mrb[0].mxu0
        %v9648 = vpop.f32.mrb[0].mxu0
        %v9649 = vpop.f32.mrb[0].mxu0
        %9650 = vdwg.mxu0
        %9651 = vmatprep.subr.bf16.mxu0 0
        %9652 = vmatpush1.bf16.msra.mxu0 %v9275
        %9653 = vmatprep.subr.bf16.mxu0 0
        %9654 = vmatpush1.bf16.msra.mxu0 %v9276
        %9655 = vmatprep.subr.bf16.mxu0 0
        %9656 = vmatpush1.bf16.msra.mxu0 %v9277
        %9657 = vmatprep.subr.bf16.mxu0 0
        %9658 = vmatpush1.bf16.msra.mxu0 %v9278
        %9659 = vmatprep.subr.bf16.mxu0 0
        %9660 = vmatpush1.bf16.msra.mxu0 %v9279
        %9661 = vmatprep.subr.bf16.mxu0 0
        %9662 = vmatpush1.bf16.msra.mxu0 %v9280
        %9663 = vmatprep.subr.bf16.mxu0 0
        %9664 = vmatpush1.bf16.msra.mxu0 %v9281
        %9665 = vmatprep.subr.bf16.mxu0 0
        %9666 = vmatpush1.bf16.msra.mxu0 %v9282
        %9667 = vmatprep.subr.bf16.mxu0 0
        %9668 = vmatpush1.bf16.msra.mxu0 %v9283
        %9669 = vmatprep.subr.bf16.mxu0 0
        %9670 = vmatpush1.bf16.msra.mxu0 %v9284
        %9671 = vmatprep.subr.bf16.mxu0 0
        %9672 = vmatpush1.bf16.msra.mxu0 %v9285
        %9673 = vmatprep.subr.bf16.mxu0 0
        %9674 = vmatpush1.bf16.msra.mxu0 %v9286
        %9675 = vmatprep.subr.bf16.mxu0 0
        %9676 = vmatpush1.bf16.msra.mxu0 %v9287
        %9677 = vmatprep.subr.bf16.mxu0 0
        %9678 = vmatpush1.bf16.msra.mxu0 %v9288
        %9679 = vmatprep.subr.bf16.mxu0 0
        %9680 = vmatpush1.bf16.msra.mxu0 %v9289
        %9681 = vmatprep.subr.bf16.mxu0 0
        %9682 = vmatpush1.bf16.msra.mxu0 %v9290
        %9683 = vmatprep.mubr.bf16.mxu0 %v8415
        %9684 = vmatmul.mubr.bf16.gmra.mrb[0].mxu0 %v8414
        %v9685 = vpop.f32.mrb[0].mxu0
        %v9686 = vadd.f32 %v9646, %v9685
        %v9687 = vpop.f32.mrb[0].mxu0
        %v9688 = vpop.f32.mrb[0].mxu0
        %v9689 = vpop.f32.mrb[0].mxu0
        %9690 = vdwg.mxu0
        %9691 = vmatprep.subr.bf16.mxu0 0
        %9692 = vmatpush1.bf16.msra.mxu0 %v9291
        %9693 = vmatprep.subr.bf16.mxu0 0
        %9694 = vmatpush1.bf16.msra.mxu0 %v9292
        %9695 = vmatprep.subr.bf16.mxu0 0
        %9696 = vmatpush1.bf16.msra.mxu0 %v9293
        %9697 = vmatprep.subr.bf16.mxu0 0
        %9698 = vmatpush1.bf16.msra.mxu0 %v9294
        %9699 = vmatprep.subr.bf16.mxu0 0
        %9700 = vmatpush1.bf16.msra.mxu0 %v9295
        %9701 = vmatprep.subr.bf16.mxu0 0
        %9702 = vmatpush1.bf16.msra.mxu0 %v9296
        %9703 = vmatprep.subr.bf16.mxu0 0
        %9704 = vmatpush1.bf16.msra.mxu0 %v9297
        %9705 = vmatprep.subr.bf16.mxu0 0
        %9706 = vmatpush1.bf16.msra.mxu0 %v9298
        %9707 = vmatprep.subr.bf16.mxu0 0
        %9708 = vmatpush1.bf16.msra.mxu0 %v9299
        %9709 = vmatprep.subr.bf16.mxu0 0
        %9710 = vmatpush1.bf16.msra.mxu0 %v9300
        %9711 = vmatprep.subr.bf16.mxu0 0
        %9712 = vmatpush1.bf16.msra.mxu0 %v9301
        %9713 = vmatprep.subr.bf16.mxu0 0
        %9714 = vmatpush1.bf16.msra.mxu0 %v9302
        %9715 = vmatprep.subr.bf16.mxu0 0
        %9716 = vmatpush1.bf16.msra.mxu0 %v9303
        %9717 = vmatprep.subr.bf16.mxu0 0
        %9718 = vmatpush1.bf16.msra.mxu0 %v9304
        %9719 = vmatprep.subr.bf16.mxu0 0
        %9720 = vmatpush1.bf16.msra.mxu0 %v9305
        %9721 = vmatprep.subr.bf16.mxu0 0
        %9722 = vmatpush1.bf16.msra.mxu0 %v9306
        %9723 = vmatprep.mubr.bf16.mxu0 %v8417
        %9724 = vmatmul.mubr.bf16.gmra.mrb[0].mxu0 %v8416
        %v9725 = vpop.f32.mrb[0].mxu0
        %v9726 = vadd.f32 %v9686, %v9725
        %v9727 = vpop.f32.mrb[0].mxu0
        %v9728 = vpop.f32.mrb[0].mxu0
        %v9729 = vpop.f32.mrb[0].mxu0
        %9730 = vdwg.mxu0
        %9731 = vmatprep.subr.bf16.mxu0 0
        %9732 = vmatpush1.bf16.msra.mxu0 %v9307
        %9733 = vmatprep.subr.bf16.mxu0 0
        %9734 = vmatpush1.bf16.msra.mxu0 %v9308
        %9735 = vmatprep.subr.bf16.mxu0 0
        %9736 = vmatpush1.bf16.msra.mxu0 %v9309
        %9737 = vmatprep.subr.bf16.mxu0 0
        %9738 = vmatpush1.bf16.msra.mxu0 %v9310
        %9739 = vmatprep.subr.bf16.mxu0 0
        %9740 = vmatpush1.bf16.msra.mxu0 %v9311
        %9741 = vmatprep.subr.bf16.mxu0 0
        %9742 = vmatpush1.bf16.msra.mxu0 %v9312
        %9743 = vmatprep.subr.bf16.mxu0 0
        %9744 = vmatpush1.bf16.msra.mxu0 %v9313
        %9745 = vmatprep.subr.bf16.mxu0 0
        %9746 = vmatpush1.bf16.msra.mxu0 %v9314
        %9747 = vmatprep.subr.bf16.mxu0 0
        %9748 = vmatpush1.bf16.msra.mxu0 %v9315
        %9749 = vmatprep.subr.bf16.mxu0 0
        %9750 = vmatpush1.bf16.msra.mxu0 %v9316
        %9751 = vmatprep.subr.bf16.mxu0 0
        %9752 = vmatpush1.bf16.msra.mxu0 %v9317
        %9753 = vmatprep.subr.bf16.mxu0 0
        %9754 = vmatpush1.bf16.msra.mxu0 %v9318
        %9755 = vmatprep.subr.bf16.mxu0 0
        %9756 = vmatpush1.bf16.msra.mxu0 %v9319
        %9757 = vmatprep.subr.bf16.mxu0 0
        %9758 = vmatpush1.bf16.msra.mxu0 %v9320
        %9759 = vmatprep.subr.bf16.mxu0 0
        %9760 = vmatpush1.bf16.msra.mxu0 %v9321
        %9761 = vmatprep.subr.bf16.mxu0 0
        %9762 = vmatpush1.bf16.msra.mxu0 %v9322
        %9763 = vmatprep.mubr.bf16.mxu0 %v8419
        %9764 = vmatmul.mubr.bf16.gmra.mrb[0].mxu0 %v8418
        %v9765 = vpop.f32.mrb[0].mxu0
        %v9766 = vadd.f32 %v9726, %v9765
        %v9767 = vpop.f32.mrb[0].mxu0
        %v9768 = vpop.f32.mrb[0].mxu0
        %v9769 = vpop.f32.mrb[0].mxu0
        %9770 = vdwg.mxu0
        %v9771 = vmax.f32 %v9766, 0.0
        %v9772 = vpack.c.bf16 %v9771, %v9771
        %v9773 = vld [vmem:[%s7] sm:$0xf]
        %v9774 = vld [vmem:[%s7 + $0x4] sm:$0xf]
        %v9775 = vld [vmem:[%s7 + $0x8] sm:$0xf]
        %v9776 = vld [vmem:[%s7 + $0xc] sm:$0xf]
        %v9777 = vld [vmem:[%s7 + $0x10] sm:$0xf]
        %v9778 = vld [vmem:[%s7 + $0x14] sm:$0xf]
        %v9779 = vld [vmem:[%s7 + $0x18] sm:$0xf]
        %v9780 = vld [vmem:[%s7 + $0x1c] sm:$0xf]
        %v9781 = vld [vmem:[#allocation12] sm:$0x1]
        %v9783 = vlaneseq
        %v9784 = vshrl.u32 %v9783, 7
        %v9785 = vsub.s32 0, %v9784
        %v9786 = vrot.slane %v9781, %v9785
        %v9796 = vunpack.c.l.b16 %v9773
        %v9797 = vunpack.c.l.b16 %v9774
        %v9798 = vunpack.c.l.b16 %v9775
        %v9799 = vunpack.c.l.b16 %v9776
        %v9800 = vunpack.c.l.b16 %v9777
        %v9801 = vunpack.c.l.b16 %v9778
        %v9802 = vunpack.c.l.b16 %v9779
        %v9803 = vunpack.c.l.b16 %v9780
        %v9804 = vpack.c.b16 %v9797, %v9796
        %v9805 = vpack.c.b16 %v9799, %v9798
        %v9806 = vpack.c.b16 %v9801, %v9800
        %v9807 = vpack.c.b16 %v9803, %v9802
        %v9813 = vsel %vm664, %v9772, 0
        %9815 = vmatprep.subr.bf16.mxu0 0
        %9816 = vmatpush1.bf16.msra.mxu0 %v9804
        %9817 = vmatprep.subr.bf16.mxu0 0
        %9818 = vmatpush1.bf16.msra.mxu0 %v9805
        %9819 = vmatprep.subr.bf16.mxu0 0
        %9820 = vmatpush1.bf16.msra.mxu0 %v9806
        %9821 = vmatprep.subr.bf16.mxu0 0
        %9822 = vmatpush1.bf16.msra.mxu0 %v9807
        %9823 = vmatprep.subr.bf16.mxu0 0
        %9824 = vmatpush1.bf16.msra.mxu0 0
        %9825 = vmatprep.subr.bf16.mxu0 0
        %9826 = vmatpush1.bf16.msra.mxu0 0
        %9827 = vmatprep.subr.bf16.mxu0 0
        %9828 = vmatpush1.bf16.msra.mxu0 0
        %9829 = vmatprep.subr.bf16.mxu0 0
        %9830 = vmatpush1.bf16.msra.mxu0 0
        %9831 = vmatprep.subr.bf16.mxu0 0
        %9832 = vmatpush1.bf16.msra.mxu0 0
        %9833 = vmatprep.subr.bf16.mxu0 0
        %9834 = vmatpush1.bf16.msra.mxu0 0
        %9835 = vmatprep.subr.bf16.mxu0 0
        %9836 = vmatpush1.bf16.msra.mxu0 0
        %9837 = vmatprep.subr.bf16.mxu0 0
        %9838 = vmatpush1.bf16.msra.mxu0 0
        %9839 = vmatprep.subr.bf16.mxu0 0
        %9840 = vmatpush1.bf16.msra.mxu0 0
        %9841 = vmatprep.subr.bf16.mxu0 0
        %9842 = vmatpush1.bf16.msra.mxu0 0
        %9843 = vmatprep.subr.bf16.mxu0 0
        %9844 = vmatpush1.bf16.msra.mxu0 0
        %9845 = vmatprep.subr.bf16.mxu0 0
        %9846 = vmatpush1.bf16.msra.mxu0 0
        %9847 = vmatprep.mubr.bf16.mxu0 0
        %9848 = vmatmul.mubr.bf16.gmra.mrb[0].mxu0 %v9813
        %v9849 = vpop.f32.mrb[0].mxu0
        %v9850 = vadd.f32 %v9786, %v9849
        %v9851 = vpop.f32.mrb[0].mxu0
        %v9852 = vpop.f32.mrb[0].mxu0
        %v9853 = vpop.f32.mrb[0].mxu0
        %9854 = vdwg.mxu0
        %vm9855 = vcmask 31744
        %v9856 = vsel %vm9855, %v9850, -inf
        %9857 = vmax.xlane.f32.xlu0 %v9856
        %v9858 = vpop.xlane.xlu0 %9857
        %v9859 = vsub.f32 %v9850, %v9858
        %v9860 = vmul.f32 %v9859, 1.442695
        %v9861 = vpow.pop %v9860
        %v9862 = vsel %vm9855, %v9861, 0.0
        %9863 = vadd.xlane.f32.xlu0 %v9862
        %v9864 = vpop.xlane.xlu0 %9863
        %v9865 = vrcp.pop %v9864
        %v9866 = vmul.f32 %v9861, %v9865
        %9867 = vst.msk [vmem:[%s426] sm:$0xff] %vm9855, %v9866
        %p9868 = scmp.lt.s32.totalorder %s26, 2
        %s9869 = scalar_select %p9868, %s26, 2
        %s9870 = smul.addr %s9869, 8
        %s9871 = scalar_lea.vmem %s9, %s9870
        // Predicated region
        $region85: #{tpu_custom_call.1} parent=55 // pred_check
          %p9872 = pneg %p238
        $region86: #{tpu_custom_call.1} parent=55 // pred_check_branch
          %9874 = sbr.rel (%p9872) target = $region88
        $region87: #{tpu_custom_call.1} parent=55 // pred_region
          _
        $region88: #{tpu_custom_call.1} parent=55 // pred_fallthru
          _
      $region56: #{tpu_custom_call.1} parent=5 // pred_fallthru
        _
      %p9875 = scmp.le.s32.totalorder 2, %s21
      // Predicated region
      $region89: #{tpu_custom_call.1} parent=5 // pred_check
        %p9876 = pneg %p9875
      $region90: #{tpu_custom_call.1} parent=5 // pred_check_branch
        %9878 = sbr.rel (%p9876) target = $region92
      $region91: #{tpu_custom_call.1} parent=5 // pred_region
        %s9879 = ssub.s32 %s21, 2
        // Predicated region
        $region93: #{tpu_custom_call.1} parent=91 // pred_check
          %p9880 = pneg %p244
        $region94: #{tpu_custom_call.1} parent=91 // pred_check_branch
          %9882 = sbr.rel (%p9880) target = $region96
        $region95: #{tpu_custom_call.1} parent=91 // pred_region
          %p9883 = scmp.lt.s32.totalorder %s27, 2
          %s9884 = scalar_select %p9883, %s27, 2
          %s9885 = smul.addr %s9884, 8
          %s9886 = scalar_lea.vmem %s9, %s9885
        $region96: #{tpu_custom_call.1} parent=91 // pred_fallthru
          _
      $region92: #{tpu_custom_call.1} parent=5 // pred_fallthru
        _
    $region6: #{tpu_custom_call.1} parent=1 // loop_footer
      %s25 = sadd.s32 1, %s21
    $region7: #{tpu_custom_call.1} parent=1 // loop_footer_branch
      %20 = sbr.rel target = $region3
    $region8: #{tpu_custom_call.1} parent=1 // loop_exit
      _
    %9887 = vsyncpa [#allocation3], 1
    %s9888 = scalar_lea.sflag [#allocation3], 1
    %9889 = vsyncpa %s9888, 1
    %9890 = vsyncpa [#allocation5], 1
    %9891 = vsyncpa [#allocation8], 1
    %9892 = vsyncpa [#allocation11], 1

</llo_original>
